<compile_context>
chip_gen: v6e
topology: v6e:2x2x1
jax: 0.10.0
libtpu: 0.0.40
codegen_flags: <defaults>
</compile_context>

<pallas_src>
import functools

import jax
import jax.numpy as jnp
from jax.experimental import pallas as pl
from jax.experimental.pallas import tpu as pltpu

EPS = 1e-5
NEG_SLOPE = 0.1
SUB = 8                          # sublane replication for partial-sum outputs
VMEM_LIMIT = 32 * 1024 * 1024    # >= default scoped VMEM on v5e/v6e/v7x


def _leaky_relu(z):
    return jnp.where(z > 0, z, NEG_SLOPE * z)


def _cdiv(a, b):
    return (a + b - 1) // b


def _pick_row_tile(rows, bytes_per_row, budget=8 << 20):
    """Pick a row tile: multiple of 8, double-buffered block under `budget`.

    Prefers a tile that divides `rows` exactly (no pad copy) and gives >= 2
    pipeline steps.  Returns (tile, padded_rows); padded_rows > rows only
    when no suitable divisor exists (tail handled by zero-row padding).
    """
    limit = max(8, (budget // 2) // max(bytes_per_row, 1))
    cands = [t for t in (4096, 2048, 1024, 512, 256, 128, 64, 32, 16, 8)
             if t <= limit] or [8]
    divisors = [t for t in cands if rows % t == 0]
    for t in divisors:
        if rows // t >= 2:
            return t, rows
    if divisors:
        return divisors[0], rows
    t = min(cands[0], 8 * _cdiv(rows, 8))
    return t, t * _cdiv(rows, t)


def _weight_spec(block_shape, index_map, nbytes):
    """Constant (weight) block spec; single-buffer it when it is large."""
    if nbytes >= (1 << 20) and hasattr(pl, "Buffered"):
        try:
            return pl.BlockSpec(block_shape, index_map,
                                pipeline_mode=pl.Buffered(1))
        except TypeError:        # older JAX without pipeline_mode
            pass
    return pl.BlockSpec(block_shape, index_map)


def _cparams():
    return pltpu.CompilerParams(dimension_semantics=("parallel",),
                                vmem_limit_bytes=VMEM_LIMIT)


# ---------------------------------------------------------------------------
# Kernels
# ---------------------------------------------------------------------------
def conv1x1_stats_kernel(x_ref, w_ref, y_ref, sum_ref, ssq_ref):
    """Row tile of the 1x1 conv (one matmul) + per-tile partial BN sums."""
    y = jnp.dot(x_ref[...].astype(jnp.bfloat16), w_ref[...],
                preferred_element_type=jnp.float32)
    y_ref[...] = y.astype(y_ref.dtype)
    s = jnp.sum(y, axis=0, keepdims=True)
    q = jnp.sum(y * y, axis=0, keepdims=True)
    # Replicate over SUB sublanes so the partial-sum blocks stay (8, Ch).
    sum_ref[...] = jnp.broadcast_to(s, sum_ref.shape)
    ssq_ref[...] = jnp.broadcast_to(q, ssq_ref.shape)


def conv3x3_fused_kernel(y1_ref, sc1_ref, sh1_ref, w_ref,
                         y2_ref, sum_ref, ssq_ref,
                         hp_ref, acc_ref, *, H, W):
    """One image: layer-1 BN+LeakyReLU + zero-pad (in VMEM) + 3x3 conv + stats.

    y1_ref : (H*W, Ch)   raw 1x1-conv output, compact rows (bf16).
    sc1/sh1: (1, Ch)     layer-1 BN scale / shift (f32).
    w_ref  : (9, Ch, C)  3x3 weights, tap k = dy*3 + dx (bf16).
    y2_ref : (H*W, C)    compact raw 3x3-conv output (bf16).
    sum/ssq: (SUB, C)    per-image partial BN sums, replicated over sublanes.
    hp_ref : ((H+2)*(W+2)+2, Ch) f32 scratch: zero-padded normalized image,
             (h, w) rows flattened so every tap is a contiguous row-slice.
    acc_ref: (H*(W+2), C) f32 scratch: conv accumulator, padded-width rows.
    """
    Wp = W + 2
    rows = H * Wp
    C = y2_ref.shape[1]

    # 1) Zero the padded scratch: border rows/columns must be exactly 0.
    hp_ref[...] = jnp.zeros_like(hp_ref)

    # 2) Layer-1 normalize + LeakyReLU, scattered into the padded layout.
    sc1 = sc1_ref[...]
    sh1 = sh1_ref[...]
    for i in range(H):                        # H is a compile-time constant
        y = y1_ref[pl.ds(i * W, W), :].astype(jnp.float32)
        hp_ref[pl.ds((i + 1) * Wp + 1, W), :] = _leaky_relu(y * sc1 + sh1)

    # 3) 3x3 conv: 9 shifted matmuls accumulated in an f32 VMEM scratch.
    # TODO(synk): merge the three dx taps per dy into one K=3*Ch matmul for
    # better MXU fill when Ch < 128, and use MRB accumulation on v7x.
    acc_ref[...] = jnp.dot(hp_ref[pl.ds(0, rows), :], w_ref[0],
                           preferred_element_type=jnp.float32)
    for k in range(1, 9):
        dy, dx = divmod(k, 3)
        acc_ref[...] += jnp.dot(hp_ref[pl.ds(dy * Wp + dx, rows), :], w_ref[k],
                                preferred_element_type=jnp.float32)

    # 4) Compact store (drops the 2 pad columns) + per-image partial BN sums.
    s = jnp.zeros((1, C), jnp.float32)
    q = jnp.zeros((1, C), jnp.float32)
    for i in range(H):
        blk = acc_ref[pl.ds(i * Wp, W), :]
        y2_ref[pl.ds(i * W, W), :] = blk.astype(y2_ref.dtype)
        s = s + jnp.sum(blk, axis=0, keepdims=True)
        q = q + jnp.sum(blk * blk, axis=0, keepdims=True)
    sum_ref[...] = jnp.broadcast_to(s, sum_ref.shape)
    ssq_ref[...] = jnp.broadcast_to(q, ssq_ref.shape)


def bn_lrelu_res_kernel(y_ref, res_ref, scale_ref, shift_ref, o_ref):
    z = y_ref[...].astype(jnp.float32) * scale_ref[...] + shift_ref[...]
    o_ref[...] = (_leaky_relu(z) + res_ref[...]).astype(o_ref.dtype)


# ---------------------------------------------------------------------------
# Wrapper
# ---------------------------------------------------------------------------
def _reduce_partial(part):
    # Each grid step wrote its partial sum replicated over SUB sublanes.
    return jnp.sum(part, axis=0, keepdims=True) / SUB


def _bn_scale_shift(part_sum, part_ssq, count, gamma, beta):
    s = _reduce_partial(part_sum)
    q = _reduce_partial(part_ssq)
    mu = s / count
    var = jnp.maximum(q / count - mu * mu, 0.0)   # biased (train-mode BN)
    scale = gamma * jax.lax.rsqrt(var + EPS)
    shift = beta - mu * scale
    return scale, shift


def residual_block_forward(x_nchw, params):
    N, C, H, W = x_nchw.shape
    Ch = C // 2
    M = N * H * W
    HW = H * W
    Wp = W + 2

    # TODO(synk): accept/return NHWC from the surrounding graph to drop these
    # two full HBM transpose copies.
    x2d = jnp.transpose(x_nchw, (0, 2, 3, 1)).reshape(M, C)

    w1 = params["w1"].astype(jnp.bfloat16)
    w2 = params["w2"].astype(jnp.bfloat16)

    # --- pass 1: 1x1 conv + partial BN statistics (row tiles, parallel) -----
    TM, Mpad = _pick_row_tile(M, bytes_per_row=4 * C + 2 * Ch)
    G = Mpad // TM
    x2d_in = jnp.pad(x2d, ((0, Mpad - M), (0, 0))) if Mpad != M else x2d

    y1, s1p, q1p = pl.pallas_call(
        conv1x1_stats_kernel,
        grid=(G,),
        in_specs=[
            pl.BlockSpec((TM, C), lambda i: (i, 0)),
            _weight_spec((C, Ch), lambda i: (0, 0), C * Ch * 2),
        ],
        out_specs=(
            pl.BlockSpec((TM, Ch), lambda i: (i, 0)),
            pl.BlockSpec((SUB, Ch), lambda i: (i, 0)),
            pl.BlockSpec((SUB, Ch), lambda i: (i, 0)),
        ),
        out_shape=(
            jax.ShapeDtypeStruct((Mpad, Ch), jnp.bfloat16),
            jax.ShapeDtypeStruct((SUB * G, Ch), jnp.float32),
            jax.ShapeDtypeStruct((SUB * G, Ch), jnp.float32),
        ),
        compiler_params=_cparams(),
    )(x2d_in, w1)

    scale1, shift1 = _bn_scale_shift(s1p, q1p, M, params["g1"], params["beta1"])

    # --- pass 2: fused layer-1 normalize + pad + 3x3 conv + partial stats ---
    # TODO(synk): tile over row bands (with a 1-row halo) instead of whole
    # images when H*W*C grows past a few MiB (large YOLOv3 feature maps).
    y2, s2p, q2p = pl.pallas_call(
        functools.partial(conv3x3_fused_kernel, H=H, W=W),
        grid=(N,),
        in_specs=[
            pl.BlockSpec((HW, Ch), lambda n: (n, 0)),
            pl.BlockSpec((1, Ch), lambda n: (0, 0)),
            pl.BlockSpec((1, Ch), lambda n: (0, 0)),
            _weight_spec((9, Ch, C), lambda n: (0, 0, 0), 9 * Ch * C * 2),
        ],
        out_specs=(
            pl.BlockSpec((HW, C), lambda n: (n, 0)),
            pl.BlockSpec((SUB, C), lambda n: (n, 0)),
            pl.BlockSpec((SUB, C), lambda n: (n, 0)),
        ),
        out_shape=(
            jax.ShapeDtypeStruct((M, C), jnp.bfloat16),
            jax.ShapeDtypeStruct((SUB * N, C), jnp.float32),
            jax.ShapeDtypeStruct((SUB * N, C), jnp.float32),
        ),
        scratch_shapes=[
            pltpu.VMEM(((H + 2) * Wp + 2, Ch), jnp.float32),
            pltpu.VMEM((H * Wp, C), jnp.float32),
        ],
        compiler_params=_cparams(),
    )(y1, scale1, shift1, w2)

    scale2, shift2 = _bn_scale_shift(s2p, q2p, M, params["g2"], params["beta2"])

    # --- pass 3: normalize + LeakyReLU + residual (lane-dense, parallel) ----
    # Present (M, C) as (M/k, k*C) with a 128-wide last dim when C < 128:
    # a free row-major reshape that avoids masked partial stores.
    k = 128 // C if (C < 128 and 128 % C == 0 and M % (128 // C) == 0) else 1
    rows3, width3 = M // k, k * C
    y2r = y2.reshape(rows3, width3)
    xr = x2d.reshape(rows3, width3)
    sc2 = jnp.tile(scale2, (1, k))
    sh2 = jnp.tile(shift2, (1, k))

    TM3, rows3pad = _pick_row_tile(rows3, bytes_per_row=width3 * 10)
    G3 = rows3pad // TM3
    if rows3pad != rows3:
        y2r = jnp.pad(y2r, ((0, rows3pad - rows3), (0, 0)))
        xr = jnp.pad(xr, ((0, rows3pad - rows3), (0, 0)))

    out_r = pl.pallas_call(
        bn_lrelu_res_kernel,
        grid=(G3,),
        in_specs=[
            pl.BlockSpec((TM3, width3), lambda i: (i, 0)),
            pl.BlockSpec((TM3, width3), lambda i: (i, 0)),
            pl.BlockSpec((1, width3), lambda i: (0, 0)),
            pl.BlockSpec((1, width3), lambda i: (0, 0)),
        ],
        out_specs=pl.BlockSpec((TM3, width3), lambda i: (i, 0)),
        out_shape=jax.ShapeDtypeStruct((rows3pad, width3), jnp.float32),
        compiler_params=_cparams(),
    )(y2r, xr, sc2, sh2)

    out2d = out_r.reshape(-1, C)[:M]
    return jnp.transpose(out2d.reshape(N, H, W, C), (0, 3, 1, 2))


# ---------------------------------------------------------------------------
# Pure-JAX reference (same math as the PyTorch module, biases included)
# ---------------------------------------------------------------------------
def reference_forward(x_nchw, params):
    C = x_nchw.shape[1]
    Ch = C // 2
    x = jnp.transpose(x_nchw, (0, 2, 3, 1))

    def bn_lrelu(y, g, b):
        mu = jnp.mean(y, axis=(0, 1, 2), keepdims=True)
        var = jnp.mean((y - mu) ** 2, axis=(0, 1, 2), keepdims=True)
        z = (y - mu) * jax.lax.rsqrt(var + EPS) * g.reshape(1, 1, 1, -1) \
            + b.reshape(1, 1, 1, -1)
        return jnp.where(z > 0, z, NEG_SLOPE * z)

    w1 = params["w1"].reshape(1, 1, C, Ch)
    y1 = jax.lax.conv_general_dilated(
        x, w1, (1, 1), "VALID", dimension_numbers=("NHWC", "HWIO", "NHWC"))
    y1 = y1 + params["b1"].reshape(1, 1, 1, Ch)
    h = bn_lrelu(y1, params["g1"], params["beta1"])

    w2 = params["w2"].reshape(3, 3, Ch, C)
    y2 = jax.lax.conv_general_dilated(
        h, w2, (1, 1), ((1, 1), (1, 1)),
        dimension_numbers=("NHWC", "HWIO", "NHWC"))
    y2 = y2 + params["b2"].reshape(1, 1, 1, C)
    out = bn_lrelu(y2, params["g2"], params["beta2"]) + x
    return jnp.transpose(out, (0, 3, 1, 2))


def init_params(key, C):
    Ch = C // 2
    ks = jax.random.split(key, 8)
    return {
        # conv1 (1x1): weight (C_in, C_out); bias (1, C_out)
        "w1": 0.3 * jax.random.normal(ks[0], (C, Ch), jnp.float32),
        "b1": 0.1 * jax.random.normal(ks[1], (1, Ch), jnp.float32),
        "g1": 1.0 + 0.1 * jax.random.normal(ks[2], (1, Ch), jnp.float32),
        "beta1": 0.1 * jax.random.normal(ks[3], (1, Ch), jnp.float32),
        # conv2 (3x3): weight (9, C_in, C_out), tap k = dy*3 + dx; bias (1, C_out)
        "w2": 0.2 * jax.random.normal(ks[4], (9, Ch, C), jnp.float32),
        "b2": 0.1 * jax.random.normal(ks[5], (1, C), jnp.float32),
        "g2": 1.0 + 0.1 * jax.random.normal(ks[6], (1, C), jnp.float32),
        "beta2": 0.1 * jax.random.normal(ks[7], (1, C), jnp.float32),
    }


if __name__ == "__main__":
    key = jax.random.PRNGKey(0)
    k_x, k_p = jax.random.split(key)

    N, C, H, W = 2, 4, 16, 16            # in_channels = 4 -> hidden = 2
    x = jax.random.normal(k_x, (N, C, H, W), jnp.float32)
    params = init_params(k_p, C)

    out = jax.block_until_ready(jax.jit(residual_block_forward)(x, params))
    ref = jax.block_until_ready(reference_forward(x, params))

    assert out.shape == (N, C, H, W)
    err = float(jnp.max(jnp.abs(out - ref)))
    # bf16 intermediates/weights + default (bf16-native) MXU precision.
    assert jnp.allclose(out, ref, atol=3e-2, rtol=3e-2), err
    print("KERNEL_OK")
</pallas_src>

<mosaic_0001>
module attributes {stable_mosaic.version = 11 : i64} {
  func.func @conv1x1_stats_kernel(%arg0: i32, %arg1: memref<256x4xf32, #tpu.memory_space<vmem>>, %arg2: memref<4x2xbf16, #tpu.memory_space<vmem>>, %arg3: memref<256x2xbf16, #tpu.memory_space<vmem>>, %arg4: memref<8x2xf32, #tpu.memory_space<vmem>>, %arg5: memref<8x2xf32, #tpu.memory_space<vmem>>) attributes {dimension_semantics = [#tpu.dimension_semantics<parallel>], iteration_bounds = array<i64: 2>, scalar_prefetch = 0 : i64, scratch_operands = 0 : i64, tpu.core_type = #tpu.core_type<tc>, window_params = [{transform_indices = @transform_0, window_bounds = array<i64: 256, 4>}, {pipeline_mode = #tpu.pipeline_mode<synchronous>, transform_indices = @transform_1, window_bounds = array<i64: 4, 2>}, {transform_indices = @transform_2, window_bounds = array<i64: 256, 2>}, {transform_indices = @transform_3, window_bounds = array<i64: 8, 2>}, {transform_indices = @transform_4, window_bounds = array<i64: 8, 2>}]} {
    %c0 = arith.constant 0 : index
    %c0_0 = arith.constant 0 : index
    %0 = vector.load %arg1[%c0, %c0_0] : memref<256x4xf32, #tpu.memory_space<vmem>>, vector<256x4xf32>
    %1 = arith.truncf %0 : vector<256x4xf32> to vector<256x4xbf16>
    %c0_1 = arith.constant 0 : index
    %c0_2 = arith.constant 0 : index
    %2 = vector.load %arg2[%c0_1, %c0_2] : memref<4x2xbf16, #tpu.memory_space<vmem>>, vector<4x2xbf16>
    %cst = arith.constant dense<0.000000e+00> : vector<256x2xf32>
    %3 = tpu.matmul %1, %2, %cst {dimension_numbers = #tpu.dot_dimension_numbers<[1], [0], [0], [1], [0, 0, 1, 1], [], []>} : vector<256x4xbf16>, vector<4x2xbf16>, vector<256x2xf32> -> vector<256x2xf32>
    %4 = arith.truncf %3 : vector<256x2xf32> to vector<256x2xbf16>
    %c0_3 = arith.constant 0 : index
    %c0_4 = arith.constant 0 : index
    %5 = vector.load %arg3[%c0_3, %c0_4] : memref<256x2xbf16, #tpu.memory_space<vmem>>, vector<256x2xbf16>
    tpu.vector_store %arg3[%c0_3, %c0_4], %4 {strides = array<i32>} : memref<256x2xbf16, #tpu.memory_space<vmem>>, vector<256x2xbf16>,
    %cst_5 = arith.constant dense<0.000000e+00> : vector<2xf32>
    %6 = vector.multi_reduction <add>, %3, %cst_5 [0] : vector<256x2xf32> to vector<2xf32>
    %7 = vector.shape_cast %6 : vector<2xf32> to vector<1x2xf32>
    %8 = arith.mulf %3, %3 : vector<256x2xf32>
    %cst_6 = arith.constant dense<0.000000e+00> : vector<2xf32>
    %9 = vector.multi_reduction <add>, %8, %cst_6 [0] : vector<256x2xf32> to vector<2xf32>
    %10 = vector.shape_cast %9 : vector<2xf32> to vector<1x2xf32>
    %11 = vector.shape_cast %7 : vector<1x2xf32> to vector<1x2xf32>
    %12 = vector.broadcast %11 : vector<1x2xf32> to vector<8x2xf32>
    %c0_7 = arith.constant 0 : index
    %c0_8 = arith.constant 0 : index
    %13 = vector.load %arg4[%c0_7, %c0_8] : memref<8x2xf32, #tpu.memory_space<vmem>>, vector<8x2xf32>
    tpu.vector_store %arg4[%c0_7, %c0_8], %12 {strides = array<i32>} : memref<8x2xf32, #tpu.memory_space<vmem>>, vector<8x2xf32>,
    %14 = vector.shape_cast %10 : vector<1x2xf32> to vector<1x2xf32>
    %15 = vector.broadcast %14 : vector<1x2xf32> to vector<8x2xf32>
    %c0_9 = arith.constant 0 : index
    %c0_10 = arith.constant 0 : index
    %16 = vector.load %arg5[%c0_9, %c0_10] : memref<8x2xf32, #tpu.memory_space<vmem>>, vector<8x2xf32>
    tpu.vector_store %arg5[%c0_9, %c0_10], %15 {strides = array<i32>} : memref<8x2xf32, #tpu.memory_space<vmem>>, vector<8x2xf32>,
    return
  }
  func.func @transform_0(%arg0: i32) -> (i32, i32) {
    %c0_i32 = arith.constant 0 : i32
    %c0_i32_0 = arith.constant 0 : i32
    return %arg0, %c0_i32 : i32, i32
  }
  func.func @transform_1(%arg0: i32) -> (i32, i32) {
    %c0_i32 = arith.constant 0 : i32
    %c0_i32_0 = arith.constant 0 : i32
    %c0_i32_1 = arith.constant 0 : i32
    return %c0_i32, %c0_i32_0 : i32, i32
  }
  func.func @transform_2(%arg0: i32) -> (i32, i32) {
    %c0_i32 = arith.constant 0 : i32
    %c0_i32_0 = arith.constant 0 : i32
    return %arg0, %c0_i32 : i32, i32
  }
  func.func @transform_3(%arg0: i32) -> (i32, i32) {
    %c0_i32 = arith.constant 0 : i32
    %c0_i32_0 = arith.constant 0 : i32
    return %arg0, %c0_i32 : i32, i32
  }
  func.func @transform_4(%arg0: i32) -> (i32, i32) {
    %c0_i32 = arith.constant 0 : i32
    %c0_i32_0 = arith.constant 0 : i32
    return %arg0, %c0_i32 : i32, i32
  }
}

module attributes {stable_mosaic.version = 11 : i64} {
  func.func @conv3x3_fused_kernel(%arg0: i32, %arg1: memref<256x2xbf16, #tpu.memory_space<vmem>>, %arg2: memref<1x2xf32, #tpu.memory_space<vmem>>, %arg3: memref<1x2xf32, #tpu.memory_space<vmem>>, %arg4: memref<9x2x4xbf16, #tpu.memory_space<vmem>>, %arg5: memref<256x4xbf16, #tpu.memory_space<vmem>>, %arg6: memref<8x4xf32, #tpu.memory_space<vmem>>, %arg7: memref<8x4xf32, #tpu.memory_space<vmem>>, %arg8: memref<326x2xf32, #tpu.memory_space<vmem>>, %arg9: memref<288x4xf32, #tpu.memory_space<vmem>>) attributes {dimension_semantics = [#tpu.dimension_semantics<parallel>], iteration_bounds = array<i64: 2>, scalar_prefetch = 0 : i64, scratch_operands = 2 : i64, tpu.core_type = #tpu.core_type<tc>, window_params = [{transform_indices = @transform_0, window_bounds = array<i64: 256, 2>}, {pipeline_mode = #tpu.pipeline_mode<synchronous>, transform_indices = @transform_1, window_bounds = array<i64: 1, 2>}, {pipeline_mode = #tpu.pipeline_mode<synchronous>, transform_indices = @transform_2, window_bounds = array<i64: 1, 2>}, {pipeline_mode = #tpu.pipeline_mode<synchronous>, transform_indices = @transform_3, window_bounds = array<i64: 9, 2, 4>}, {transform_indices = @transform_4, window_bounds = array<i64: 256, 4>}, {transform_indices = @transform_5, window_bounds = array<i64: 8, 4>}, {transform_indices = @transform_6, window_bounds = array<i64: 8, 4>}]} {
    %cst = arith.constant 0.000000e+00 : f32
    %0 = vector.broadcast %cst : f32 to vector<326x2xf32>
    %c0 = arith.constant 0 : index
    %c0_0 = arith.constant 0 : index
    %1 = vector.load %arg8[%c0, %c0_0] : memref<326x2xf32, #tpu.memory_space<vmem>>, vector<326x2xf32>
    tpu.vector_store %arg8[%c0, %c0_0], %0 {strides = array<i32>} : memref<326x2xf32, #tpu.memory_space<vmem>>, vector<326x2xf32>,
    %c0_1 = arith.constant 0 : index
    %c0_2 = arith.constant 0 : index
    %2 = vector.load %arg2[%c0_1, %c0_2] : memref<1x2xf32, #tpu.memory_space<vmem>>, vector<1x2xf32>
    %c0_3 = arith.constant 0 : index
    %c0_4 = arith.constant 0 : index
    %3 = vector.load %arg3[%c0_3, %c0_4] : memref<1x2xf32, #tpu.memory_space<vmem>>, vector<1x2xf32>
    %c0_5 = arith.constant 0 : index
    %c0_6 = arith.constant 0 : index
    %4 = vector.load %arg1[%c0_5, %c0_6] : memref<256x2xbf16, #tpu.memory_space<vmem>>, vector<16x2xbf16>
    %5 = arith.extf %4 : vector<16x2xbf16> to vector<16x2xf32>
    %6 = vector.broadcast %2 : vector<1x2xf32> to vector<16x2xf32>
    %7 = arith.mulf %5, %6 : vector<16x2xf32>
    %8 = vector.broadcast %3 : vector<1x2xf32> to vector<16x2xf32>
    %9 = arith.addf %7, %8 : vector<16x2xf32>
    %cst_7 = arith.constant 0.000000e+00 : f32
    %10 = vector.broadcast %cst_7 : f32 to vector<16x2xf32>
    %11 = arith.cmpf ogt, %9, %10 : vector<16x2xf32>
    %cst_8 = arith.constant 1.000000e-01 : f32
    %12 = vector.broadcast %cst_8 : f32 to vector<16x2xf32>
    %13 = arith.mulf %12, %9 : vector<16x2xf32>
    %14 = arith.select %11, %9, %13 : vector<16x2xi1>, vector<16x2xf32>
    %c19 = arith.constant 19 : index
    %c0_9 = arith.constant 0 : index
    %15 = vector.load %arg8[%c19, %c0_9] : memref<326x2xf32, #tpu.memory_space<vmem>>, vector<16x2xf32>
    tpu.vector_store %arg8[%c19, %c0_9], %14 {strides = array<i32>} : memref<326x2xf32, #tpu.memory_space<vmem>>, vector<16x2xf32>,
    %c16 = arith.constant 16 : index
    %c0_10 = arith.constant 0 : index
    %16 = vector.load %arg1[%c16, %c0_10] : memref<256x2xbf16, #tpu.memory_space<vmem>>, vector<16x2xbf16>
    %17 = arith.extf %16 : vector<16x2xbf16> to vector<16x2xf32>
    %18 = vector.broadcast %2 : vector<1x2xf32> to vector<16x2xf32>
    %19 = arith.mulf %17, %18 : vector<16x2xf32>
    %20 = vector.broadcast %3 : vector<1x2xf32> to vector<16x2xf32>
    %21 = arith.addf %19, %20 : vector<16x2xf32>
    %cst_11 = arith.constant 0.000000e+00 : f32
    %22 = vector.broadcast %cst_11 : f32 to vector<16x2xf32>
    %23 = arith.cmpf ogt, %21, %22 : vector<16x2xf32>
    %cst_12 = arith.constant 1.000000e-01 : f32
    %24 = vector.broadcast %cst_12 : f32 to vector<16x2xf32>
    %25 = arith.mulf %24, %21 : vector<16x2xf32>
    %26 = arith.select %23, %21, %25 : vector<16x2xi1>, vector<16x2xf32>
    %c37 = arith.constant 37 : index
    %c0_13 = arith.constant 0 : index
    %27 = vector.load %arg8[%c37, %c0_13] : memref<326x2xf32, #tpu.memory_space<vmem>>, vector<16x2xf32>
    tpu.vector_store %arg8[%c37, %c0_13], %26 {strides = array<i32>} : memref<326x2xf32, #tpu.memory_space<vmem>>, vector<16x2xf32>,
    %c32 = arith.constant 32 : index
    %c0_14 = arith.constant 0 : index
    %28 = vector.load %arg1[%c32, %c0_14] : memref<256x2xbf16, #tpu.memory_space<vmem>>, vector<16x2xbf16>
    %29 = arith.extf %28 : vector<16x2xbf16> to vector<16x2xf32>
    %30 = vector.broadcast %2 : vector<1x2xf32> to vector<16x2xf32>
    %31 = arith.mulf %29, %30 : vector<16x2xf32>
    %32 = vector.broadcast %3 : vector<1x2xf32> to vector<16x2xf32>
    %33 = arith.addf %31, %32 : vector<16x2xf32>
    %cst_15 = arith.constant 0.000000e+00 : f32
    %34 = vector.broadcast %cst_15 : f32 to vector<16x2xf32>
    %35 = arith.cmpf ogt, %33, %34 : vector<16x2xf32>
    %cst_16 = arith.constant 1.000000e-01 : f32
    %36 = vector.broadcast %cst_16 : f32 to vector<16x2xf32>
    %37 = arith.mulf %36, %33 : vector<16x2xf32>
    %38 = arith.select %35, %33, %37 : vector<16x2xi1>, vector<16x2xf32>
    %c55 = arith.constant 55 : index
    %c0_17 = arith.constant 0 : index
    %39 = vector.load %arg8[%c55, %c0_17] : memref<326x2xf32, #tpu.memory_space<vmem>>, vector<16x2xf32>
    tpu.vector_store %arg8[%c55, %c0_17], %38 {strides = array<i32>} : memref<326x2xf32, #tpu.memory_space<vmem>>, vector<16x2xf32>,
    %c48 = arith.constant 48 : index
    %c0_18 = arith.constant 0 : index
    %40 = vector.load %arg1[%c48, %c0_18] : memref<256x2xbf16, #tpu.memory_space<vmem>>, vector<16x2xbf16>
    %41 = arith.extf %40 : vector<16x2xbf16> to vector<16x2xf32>
    %42 = vector.broadcast %2 : vector<1x2xf32> to vector<16x2xf32>
    %43 = arith.mulf %41, %42 : vector<16x2xf32>
    %44 = vector.broadcast %3 : vector<1x2xf32> to vector<16x2xf32>
    %45 = arith.addf %43, %44 : vector<16x2xf32>
    %cst_19 = arith.constant 0.000000e+00 : f32
    %46 = vector.broadcast %cst_19 : f32 to vector<16x2xf32>
    %47 = arith.cmpf ogt, %45, %46 : vector<16x2xf32>
    %cst_20 = arith.constant 1.000000e-01 : f32
    %48 = vector.broadcast %cst_20 : f32 to vector<16x2xf32>
    %49 = arith.mulf %48, %45 : vector<16x2xf32>
    %50 = arith.select %47, %45, %49 : vector<16x2xi1>, vector<16x2xf32>
    %c73 = arith.constant 73 : index
    %c0_21 = arith.constant 0 : index
    %51 = vector.load %arg8[%c73, %c0_21] : memref<326x2xf32, #tpu.memory_space<vmem>>, vector<16x2xf32>
    tpu.vector_store %arg8[%c73, %c0_21], %50 {strides = array<i32>} : memref<326x2xf32, #tpu.memory_space<vmem>>, vector<16x2xf32>,
    %c64 = arith.constant 64 : index
    %c0_22 = arith.constant 0 : index
    %52 = vector.load %arg1[%c64, %c0_22] : memref<256x2xbf16, #tpu.memory_space<vmem>>, vector<16x2xbf16>
    %53 = arith.extf %52 : vector<16x2xbf16> to vector<16x2xf32>
    %54 = vector.broadcast %2 : vector<1x2xf32> to vector<16x2xf32>
    %55 = arith.mulf %53, %54 : vector<16x2xf32>
    %56 = vector.broadcast %3 : vector<1x2xf32> to vector<16x2xf32>
    %57 = arith.addf %55, %56 : vector<16x2xf32>
    %cst_23 = arith.constant 0.000000e+00 : f32
    %58 = vector.broadcast %cst_23 : f32 to vector<16x2xf32>
    %59 = arith.cmpf ogt, %57, %58 : vector<16x2xf32>
    %cst_24 = arith.constant 1.000000e-01 : f32
    %60 = vector.broadcast %cst_24 : f32 to vector<16x2xf32>
    %61 = arith.mulf %60, %57 : vector<16x2xf32>
    %62 = arith.select %59, %57, %61 : vector<16x2xi1>, vector<16x2xf32>
    %c91 = arith.constant 91 : index
    %c0_25 = arith.constant 0 : index
    %63 = vector.load %arg8[%c91, %c0_25] : memref<326x2xf32, #tpu.memory_space<vmem>>, vector<16x2xf32>
    tpu.vector_store %arg8[%c91, %c0_25], %62 {strides = array<i32>} : memref<326x2xf32, #tpu.memory_space<vmem>>, vector<16x2xf32>,
    %c80 = arith.constant 80 : index
    %c0_26 = arith.constant 0 : index
    %64 = vector.load %arg1[%c80, %c0_26] : memref<256x2xbf16, #tpu.memory_space<vmem>>, vector<16x2xbf16>
    %65 = arith.extf %64 : vector<16x2xbf16> to vector<16x2xf32>
    %66 = vector.broadcast %2 : vector<1x2xf32> to vector<16x2xf32>
    %67 = arith.mulf %65, %66 : vector<16x2xf32>
    %68 = vector.broadcast %3 : vector<1x2xf32> to vector<16x2xf32>
    %69 = arith.addf %67, %68 : vector<16x2xf32>
    %cst_27 = arith.constant 0.000000e+00 : f32
    %70 = vector.broadcast %cst_27 : f32 to vector<16x2xf32>
    %71 = arith.cmpf ogt, %69, %70 : vector<16x2xf32>
    %cst_28 = arith.constant 1.000000e-01 : f32
    %72 = vector.broadcast %cst_28 : f32 to vector<16x2xf32>
    %73 = arith.mulf %72, %69 : vector<16x2xf32>
    %74 = arith.select %71, %69, %73 : vector<16x2xi1>, vector<16x2xf32>
    %c109 = arith.constant 109 : index
    %c0_29 = arith.constant 0 : index
    %75 = vector.load %arg8[%c109, %c0_29] : memref<326x2xf32, #tpu.memory_space<vmem>>, vector<16x2xf32>
    tpu.vector_store %arg8[%c109, %c0_29], %74 {strides = array<i32>} : memref<326x2xf32, #tpu.memory_space<vmem>>, vector<16x2xf32>,
    %c96 = arith.constant 96 : index
    %c0_30 = arith.constant 0 : index
    %76 = vector.load %arg1[%c96, %c0_30] : memref<256x2xbf16, #tpu.memory_space<vmem>>, vector<16x2xbf16>
    %77 = arith.extf %76 : vector<16x2xbf16> to vector<16x2xf32>
    %78 = vector.broadcast %2 : vector<1x2xf32> to vector<16x2xf32>
    %79 = arith.mulf %77, %78 : vector<16x2xf32>
    %80 = vector.broadcast %3 : vector<1x2xf32> to vector<16x2xf32>
    %81 = arith.addf %79, %80 : vector<16x2xf32>
    %cst_31 = arith.constant 0.000000e+00 : f32
    %82 = vector.broadcast %cst_31 : f32 to vector<16x2xf32>
    %83 = arith.cmpf ogt, %81, %82 : vector<16x2xf32>
    %cst_32 = arith.constant 1.000000e-01 : f32
    %84 = vector.broadcast %cst_32 : f32 to vector<16x2xf32>
    %85 = arith.mulf %84, %81 : vector<16x2xf32>
    %86 = arith.select %83, %81, %85 : vector<16x2xi1>, vector<16x2xf32>
    %c127 = arith.constant 127 : index
    %c0_33 = arith.constant 0 : index
    %87 = vector.load %arg8[%c127, %c0_33] : memref<326x2xf32, #tpu.memory_space<vmem>>, vector<16x2xf32>
    tpu.vector_store %arg8[%c127, %c0_33], %86 {strides = array<i32>} : memref<326x2xf32, #tpu.memory_space<vmem>>, vector<16x2xf32>,
    %c112 = arith.constant 112 : index
    %c0_34 = arith.constant 0 : index
    %88 = vector.load %arg1[%c112, %c0_34] : memref<256x2xbf16, #tpu.memory_space<vmem>>, vector<16x2xbf16>
    %89 = arith.extf %88 : vector<16x2xbf16> to vector<16x2xf32>
    %90 = vector.broadcast %2 : vector<1x2xf32> to vector<16x2xf32>
    %91 = arith.mulf %89, %90 : vector<16x2xf32>
    %92 = vector.broadcast %3 : vector<1x2xf32> to vector<16x2xf32>
    %93 = arith.addf %91, %92 : vector<16x2xf32>
    %cst_35 = arith.constant 0.000000e+00 : f32
    %94 = vector.broadcast %cst_35 : f32 to vector<16x2xf32>
    %95 = arith.cmpf ogt, %93, %94 : vector<16x2xf32>
    %cst_36 = arith.constant 1.000000e-01 : f32
    %96 = vector.broadcast %cst_36 : f32 to vector<16x2xf32>
    %97 = arith.mulf %96, %93 : vector<16x2xf32>
    %98 = arith.select %95, %93, %97 : vector<16x2xi1>, vector<16x2xf32>
    %c145 = arith.constant 145 : index
    %c0_37 = arith.constant 0 : index
    %99 = vector.load %arg8[%c145, %c0_37] : memref<326x2xf32, #tpu.memory_space<vmem>>, vector<16x2xf32>
    tpu.vector_store %arg8[%c145, %c0_37], %98 {strides = array<i32>} : memref<326x2xf32, #tpu.memory_space<vmem>>, vector<16x2xf32>,
    %c128 = arith.constant 128 : index
    %c0_38 = arith.constant 0 : index
    %100 = vector.load %arg1[%c128, %c0_38] : memref<256x2xbf16, #tpu.memory_space<vmem>>, vector<16x2xbf16>
    %101 = arith.extf %100 : vector<16x2xbf16> to vector<16x2xf32>
    %102 = vector.broadcast %2 : vector<1x2xf32> to vector<16x2xf32>
    %103 = arith.mulf %101, %102 : vector<16x2xf32>
    %104 = vector.broadcast %3 : vector<1x2xf32> to vector<16x2xf32>
    %105 = arith.addf %103, %104 : vector<16x2xf32>
    %cst_39 = arith.constant 0.000000e+00 : f32
    %106 = vector.broadcast %cst_39 : f32 to vector<16x2xf32>
    %107 = arith.cmpf ogt, %105, %106 : vector<16x2xf32>
    %cst_40 = arith.constant 1.000000e-01 : f32
    %108 = vector.broadcast %cst_40 : f32 to vector<16x2xf32>
    %109 = arith.mulf %108, %105 : vector<16x2xf32>
    %110 = arith.select %107, %105, %109 : vector<16x2xi1>, vector<16x2xf32>
    %c163 = arith.constant 163 : index
    %c0_41 = arith.constant 0 : index
    %111 = vector.load %arg8[%c163, %c0_41] : memref<326x2xf32, #tpu.memory_space<vmem>>, vector<16x2xf32>
    tpu.vector_store %arg8[%c163, %c0_41], %110 {strides = array<i32>} : memref<326x2xf32, #tpu.memory_space<vmem>>, vector<16x2xf32>,
    %c144 = arith.constant 144 : index
    %c0_42 = arith.constant 0 : index
    %112 = vector.load %arg1[%c144, %c0_42] : memref<256x2xbf16, #tpu.memory_space<vmem>>, vector<16x2xbf16>
    %113 = arith.extf %112 : vector<16x2xbf16> to vector<16x2xf32>
    %114 = vector.broadcast %2 : vector<1x2xf32> to vector<16x2xf32>
    %115 = arith.mulf %113, %114 : vector<16x2xf32>
    %116 = vector.broadcast %3 : vector<1x2xf32> to vector<16x2xf32>
    %117 = arith.addf %115, %116 : vector<16x2xf32>
    %cst_43 = arith.constant 0.000000e+00 : f32
    %118 = vector.broadcast %cst_43 : f32 to vector<16x2xf32>
    %119 = arith.cmpf ogt, %117, %118 : vector<16x2xf32>
    %cst_44 = arith.constant 1.000000e-01 : f32
    %120 = vector.broadcast %cst_44 : f32 to vector<16x2xf32>
    %121 = arith.mulf %120, %117 : vector<16x2xf32>
    %122 = arith.select %119, %117, %121 : vector<16x2xi1>, vector<16x2xf32>
    %c181 = arith.constant 181 : index
    %c0_45 = arith.constant 0 : index
    %123 = vector.load %arg8[%c181, %c0_45] : memref<326x2xf32, #tpu.memory_space<vmem>>, vector<16x2xf32>
    tpu.vector_store %arg8[%c181, %c0_45], %122 {strides = array<i32>} : memref<326x2xf32, #tpu.memory_space<vmem>>, vector<16x2xf32>,
    %c160 = arith.constant 160 : index
    %c0_46 = arith.constant 0 : index
    %124 = vector.load %arg1[%c160, %c0_46] : memref<256x2xbf16, #tpu.memory_space<vmem>>, vector<16x2xbf16>
    %125 = arith.extf %124 : vector<16x2xbf16> to vector<16x2xf32>
    %126 = vector.broadcast %2 : vector<1x2xf32> to vector<16x2xf32>
    %127 = arith.mulf %125, %126 : vector<16x2xf32>
    %128 = vector.broadcast %3 : vector<1x2xf32> to vector<16x2xf32>
    %129 = arith.addf %127, %128 : vector<16x2xf32>
    %cst_47 = arith.constant 0.000000e+00 : f32
    %130 = vector.broadcast %cst_47 : f32 to vector<16x2xf32>
    %131 = arith.cmpf ogt, %129, %130 : vector<16x2xf32>
    %cst_48 = arith.constant 1.000000e-01 : f32
    %132 = vector.broadcast %cst_48 : f32 to vector<16x2xf32>
    %133 = arith.mulf %132, %129 : vector<16x2xf32>
    %134 = arith.select %131, %129, %133 : vector<16x2xi1>, vector<16x2xf32>
    %c199 = arith.constant 199 : index
    %c0_49 = arith.constant 0 : index
    %135 = vector.load %arg8[%c199, %c0_49] : memref<326x2xf32, #tpu.memory_space<vmem>>, vector<16x2xf32>
    tpu.vector_store %arg8[%c199, %c0_49], %134 {strides = array<i32>} : memref<326x2xf32, #tpu.memory_space<vmem>>, vector<16x2xf32>,
    %c176 = arith.constant 176 : index
    %c0_50 = arith.constant 0 : index
    %136 = vector.load %arg1[%c176, %c0_50] : memref<256x2xbf16, #tpu.memory_space<vmem>>, vector<16x2xbf16>
    %137 = arith.extf %136 : vector<16x2xbf16> to vector<16x2xf32>
    %138 = vector.broadcast %2 : vector<1x2xf32> to vector<16x2xf32>
    %139 = arith.mulf %137, %138 : vector<16x2xf32>
    %140 = vector.broadcast %3 : vector<1x2xf32> to vector<16x2xf32>
    %141 = arith.addf %139, %140 : vector<16x2xf32>
    %cst_51 = arith.constant 0.000000e+00 : f32
    %142 = vector.broadcast %cst_51 : f32 to vector<16x2xf32>
    %143 = arith.cmpf ogt, %141, %142 : vector<16x2xf32>
    %cst_52 = arith.constant 1.000000e-01 : f32
    %144 = vector.broadcast %cst_52 : f32 to vector<16x2xf32>
    %145 = arith.mulf %144, %141 : vector<16x2xf32>
    %146 = arith.select %143, %141, %145 : vector<16x2xi1>, vector<16x2xf32>
    %c217 = arith.constant 217 : index
    %c0_53 = arith.constant 0 : index
    %147 = vector.load %arg8[%c217, %c0_53] : memref<326x2xf32, #tpu.memory_space<vmem>>, vector<16x2xf32>
    tpu.vector_store %arg8[%c217, %c0_53], %146 {strides = array<i32>} : memref<326x2xf32, #tpu.memory_space<vmem>>, vector<16x2xf32>,
    %c192 = arith.constant 192 : index
    %c0_54 = arith.constant 0 : index
    %148 = vector.load %arg1[%c192, %c0_54] : memref<256x2xbf16, #tpu.memory_space<vmem>>, vector<16x2xbf16>
    %149 = arith.extf %148 : vector<16x2xbf16> to vector<16x2xf32>
    %150 = vector.broadcast %2 : vector<1x2xf32> to vector<16x2xf32>
    %151 = arith.mulf %149, %150 : vector<16x2xf32>
    %152 = vector.broadcast %3 : vector<1x2xf32> to vector<16x2xf32>
    %153 = arith.addf %151, %152 : vector<16x2xf32>
    %cst_55 = arith.constant 0.000000e+00 : f32
    %154 = vector.broadcast %cst_55 : f32 to vector<16x2xf32>
    %155 = arith.cmpf ogt, %153, %154 : vector<16x2xf32>
    %cst_56 = arith.constant 1.000000e-01 : f32
    %156 = vector.broadcast %cst_56 : f32 to vector<16x2xf32>
    %157 = arith.mulf %156, %153 : vector<16x2xf32>
    %158 = arith.select %155, %153, %157 : vector<16x2xi1>, vector<16x2xf32>
    %c235 = arith.constant 235 : index
    %c0_57 = arith.constant 0 : index
    %159 = vector.load %arg8[%c235, %c0_57] : memref<326x2xf32, #tpu.memory_space<vmem>>, vector<16x2xf32>
    tpu.vector_store %arg8[%c235, %c0_57], %158 {strides = array<i32>} : memref<326x2xf32, #tpu.memory_space<vmem>>, vector<16x2xf32>,
    %c208 = arith.constant 208 : index
    %c0_58 = arith.constant 0 : index
    %160 = vector.load %arg1[%c208, %c0_58] : memref<256x2xbf16, #tpu.memory_space<vmem>>, vector<16x2xbf16>
    %161 = arith.extf %160 : vector<16x2xbf16> to vector<16x2xf32>
    %162 = vector.broadcast %2 : vector<1x2xf32> to vector<16x2xf32>
    %163 = arith.mulf %161, %162 : vector<16x2xf32>
    %164 = vector.broadcast %3 : vector<1x2xf32> to vector<16x2xf32>
    %165 = arith.addf %163, %164 : vector<16x2xf32>
    %cst_59 = arith.constant 0.000000e+00 : f32
    %166 = vector.broadcast %cst_59 : f32 to vector<16x2xf32>
    %167 = arith.cmpf ogt, %165, %166 : vector<16x2xf32>
    %cst_60 = arith.constant 1.000000e-01 : f32
    %168 = vector.broadcast %cst_60 : f32 to vector<16x2xf32>
    %169 = arith.mulf %168, %165 : vector<16x2xf32>
    %170 = arith.select %167, %165, %169 : vector<16x2xi1>, vector<16x2xf32>
    %c253 = arith.constant 253 : index
    %c0_61 = arith.constant 0 : index
    %171 = vector.load %arg8[%c253, %c0_61] : memref<326x2xf32, #tpu.memory_space<vmem>>, vector<16x2xf32>
    tpu.vector_store %arg8[%c253, %c0_61], %170 {strides = array<i32>} : memref<326x2xf32, #tpu.memory_space<vmem>>, vector<16x2xf32>,
    %c224 = arith.constant 224 : index
    %c0_62 = arith.constant 0 : index
    %172 = vector.load %arg1[%c224, %c0_62] : memref<256x2xbf16, #tpu.memory_space<vmem>>, vector<16x2xbf16>
    %173 = arith.extf %172 : vector<16x2xbf16> to vector<16x2xf32>
    %174 = vector.broadcast %2 : vector<1x2xf32> to vector<16x2xf32>
    %175 = arith.mulf %173, %174 : vector<16x2xf32>
    %176 = vector.broadcast %3 : vector<1x2xf32> to vector<16x2xf32>
    %177 = arith.addf %175, %176 : vector<16x2xf32>
    %cst_63 = arith.constant 0.000000e+00 : f32
    %178 = vector.broadcast %cst_63 : f32 to vector<16x2xf32>
    %179 = arith.cmpf ogt, %177, %178 : vector<16x2xf32>
    %cst_64 = arith.constant 1.000000e-01 : f32
    %180 = vector.broadcast %cst_64 : f32 to vector<16x2xf32>
    %181 = arith.mulf %180, %177 : vector<16x2xf32>
    %182 = arith.select %179, %177, %181 : vector<16x2xi1>, vector<16x2xf32>
    %c271 = arith.constant 271 : index
    %c0_65 = arith.constant 0 : index
    %183 = vector.load %arg8[%c271, %c0_65] : memref<326x2xf32, #tpu.memory_space<vmem>>, vector<16x2xf32>
    tpu.vector_store %arg8[%c271, %c0_65], %182 {strides = array<i32>} : memref<326x2xf32, #tpu.memory_space<vmem>>, vector<16x2xf32>,
    %c240 = arith.constant 240 : index
    %c0_66 = arith.constant 0 : index
    %184 = vector.load %arg1[%c240, %c0_66] : memref<256x2xbf16, #tpu.memory_space<vmem>>, vector<16x2xbf16>
    %185 = arith.extf %184 : vector<16x2xbf16> to vector<16x2xf32>
    %186 = vector.broadcast %2 : vector<1x2xf32> to vector<16x2xf32>
    %187 = arith.mulf %185, %186 : vector<16x2xf32>
    %188 = vector.broadcast %3 : vector<1x2xf32> to vector<16x2xf32>
    %189 = arith.addf %187, %188 : vector<16x2xf32>
    %cst_67 = arith.constant 0.000000e+00 : f32
    %190 = vector.broadcast %cst_67 : f32 to vector<16x2xf32>
    %191 = arith.cmpf ogt, %189, %190 : vector<16x2xf32>
    %cst_68 = arith.constant 1.000000e-01 : f32
    %192 = vector.broadcast %cst_68 : f32 to vector<16x2xf32>
    %193 = arith.mulf %192, %189 : vector<16x2xf32>
    %194 = arith.select %191, %189, %193 : vector<16x2xi1>, vector<16x2xf32>
    %c289 = arith.constant 289 : index
    %c0_69 = arith.constant 0 : index
    %195 = vector.load %arg8[%c289, %c0_69] : memref<326x2xf32, #tpu.memory_space<vmem>>, vector<16x2xf32>
    tpu.vector_store %arg8[%c289, %c0_69], %194 {strides = array<i32>} : memref<326x2xf32, #tpu.memory_space<vmem>>, vector<16x2xf32>,
    %c0_70 = arith.constant 0 : index
    %c0_71 = arith.constant 0 : index
    %196 = vector.load %arg8[%c0_70, %c0_71] : memref<326x2xf32, #tpu.memory_space<vmem>>, vector<288x2xf32>
    %c0_72 = arith.constant 0 : index
    %c0_73 = arith.constant 0 : index
    %c0_74 = arith.constant 0 : index
    %197 = vector.load %arg4[%c0_72, %c0_73, %c0_74] : memref<9x2x4xbf16, #tpu.memory_space<vmem>>, vector<1x2x4xbf16>
    %198 = vector.shape_cast %197 : vector<1x2x4xbf16> to vector<2x4xbf16>
    %cst_75 = arith.constant dense<0.000000e+00> : vector<288x4xf32>
    %199 = tpu.matmul %196, %198, %cst_75 {dimension_numbers = #tpu.dot_dimension_numbers<[1], [0], [0], [1], [0, 0, 1, 1], [], []>} : vector<288x2xf32>, vector<2x4xbf16>, vector<288x4xf32> -> vector<288x4xf32>
    %c0_76 = arith.constant 0 : index
    %c0_77 = arith.constant 0 : index
    %200 = vector.load %arg9[%c0_76, %c0_77] : memref<288x4xf32, #tpu.memory_space<vmem>>, vector<288x4xf32>
    tpu.vector_store %arg9[%c0_76, %c0_77], %199 {strides = array<i32>} : memref<288x4xf32, #tpu.memory_space<vmem>>, vector<288x4xf32>,
    %c0_78 = arith.constant 0 : index
    %c0_79 = arith.constant 0 : index
    %201 = vector.load %arg9[%c0_78, %c0_79] : memref<288x4xf32, #tpu.memory_space<vmem>>, vector<288x4xf32>
    %c1 = arith.constant 1 : index
    %c0_80 = arith.constant 0 : index
    %202 = vector.load %arg8[%c1, %c0_80] : memref<326x2xf32, #tpu.memory_space<vmem>>, vector<288x2xf32>
    %c1_81 = arith.constant 1 : index
    %c0_82 = arith.constant 0 : index
    %c0_83 = arith.constant 0 : index
    %203 = vector.load %arg4[%c1_81, %c0_82, %c0_83] : memref<9x2x4xbf16, #tpu.memory_space<vmem>>, vector<1x2x4xbf16>
    %204 = vector.shape_cast %203 : vector<1x2x4xbf16> to vector<2x4xbf16>
    %cst_84 = arith.constant dense<0.000000e+00> : vector<288x4xf32>
    %205 = tpu.matmul %202, %204, %cst_84 {dimension_numbers = #tpu.dot_dimension_numbers<[1], [0], [0], [1], [0, 0, 1, 1], [], []>} : vector<288x2xf32>, vector<2x4xbf16>, vector<288x4xf32> -> vector<288x4xf32>
    %206 = arith.addf %201, %205 : vector<288x4xf32>
    %c0_85 = arith.constant 0 : index
    %c0_86 = arith.constant 0 : index
    %207 = vector.load %arg9[%c0_85, %c0_86] : memref<288x4xf32, #tpu.memory_space<vmem>>, vector<288x4xf32>
    tpu.vector_store %arg9[%c0_85, %c0_86], %206 {strides = array<i32>} : memref<288x4xf32, #tpu.memory_space<vmem>>, vector<288x4xf32>,
    %c0_87 = arith.constant 0 : index
    %c0_88 = arith.constant 0 : index
    %208 = vector.load %arg9[%c0_87, %c0_88] : memref<288x4xf32, #tpu.memory_space<vmem>>, vector<288x4xf32>
    %c2 = arith.constant 2 : index
    %c0_89 = arith.constant 0 : index
    %209 = vector.load %arg8[%c2, %c0_89] : memref<326x2xf32, #tpu.memory_space<vmem>>, vector<288x2xf32>
    %c2_90 = arith.constant 2 : index
    %c0_91 = arith.constant 0 : index
    %c0_92 = arith.constant 0 : index
    %210 = vector.load %arg4[%c2_90, %c0_91, %c0_92] : memref<9x2x4xbf16, #tpu.memory_space<vmem>>, vector<1x2x4xbf16>
    %211 = vector.shape_cast %210 : vector<1x2x4xbf16> to vector<2x4xbf16>
    %cst_93 = arith.constant dense<0.000000e+00> : vector<288x4xf32>
    %212 = tpu.matmul %209, %211, %cst_93 {dimension_numbers = #tpu.dot_dimension_numbers<[1], [0], [0], [1], [0, 0, 1, 1], [], []>} : vector<288x2xf32>, vector<2x4xbf16>, vector<288x4xf32> -> vector<288x4xf32>
    %213 = arith.addf %208, %212 : vector<288x4xf32>
    %c0_94 = arith.constant 0 : index
    %c0_95 = arith.constant 0 : index
    %214 = vector.load %arg9[%c0_94, %c0_95] : memref<288x4xf32, #tpu.memory_space<vmem>>, vector<288x4xf32>
    tpu.vector_store %arg9[%c0_94, %c0_95], %213 {strides = array<i32>} : memref<288x4xf32, #tpu.memory_space<vmem>>, vector<288x4xf32>,
    %c0_96 = arith.constant 0 : index
    %c0_97 = arith.constant 0 : index
    %215 = vector.load %arg9[%c0_96, %c0_97] : memref<288x4xf32, #tpu.memory_space<vmem>>, vector<288x4xf32>
    %c18 = arith.constant 18 : index
    %c0_98 = arith.constant 0 : index
    %216 = vector.load %arg8[%c18, %c0_98] : memref<326x2xf32, #tpu.memory_space<vmem>>, vector<288x2xf32>
    %c3 = arith.constant 3 : index
    %c0_99 = arith.constant 0 : index
    %c0_100 = arith.constant 0 : index
    %217 = vector.load %arg4[%c3, %c0_99, %c0_100] : memref<9x2x4xbf16, #tpu.memory_space<vmem>>, vector<1x2x4xbf16>
    %218 = vector.shape_cast %217 : vector<1x2x4xbf16> to vector<2x4xbf16>
    %cst_101 = arith.constant dense<0.000000e+00> : vector<288x4xf32>
    %219 = tpu.matmul %216, %218, %cst_101 {dimension_numbers = #tpu.dot_dimension_numbers<[1], [0], [0], [1], [0, 0, 1, 1], [], []>} : vector<288x2xf32>, vector<2x4xbf16>, vector<288x4xf32> -> vector<288x4xf32>
    %220 = arith.addf %215, %219 : vector<288x4xf32>
    %c0_102 = arith.constant 0 : index
    %c0_103 = arith.constant 0 : index
    %221 = vector.load %arg9[%c0_102, %c0_103] : memref<288x4xf32, #tpu.memory_space<vmem>>, vector<288x4xf32>
    tpu.vector_store %arg9[%c0_102, %c0_103], %220 {strides = array<i32>} : memref<288x4xf32, #tpu.memory_space<vmem>>, vector<288x4xf32>,
    %c0_104 = arith.constant 0 : index
    %c0_105 = arith.constant 0 : index
    %222 = vector.load %arg9[%c0_104, %c0_105] : memref<288x4xf32, #tpu.memory_space<vmem>>, vector<288x4xf32>
    %c19_106 = arith.constant 19 : index
    %c0_107 = arith.constant 0 : index
    %223 = vector.load %arg8[%c19_106, %c0_107] : memref<326x2xf32, #tpu.memory_space<vmem>>, vector<288x2xf32>
    %c4 = arith.constant 4 : index
    %c0_108 = arith.constant 0 : index
    %c0_109 = arith.constant 0 : index
    %224 = vector.load %arg4[%c4, %c0_108, %c0_109] : memref<9x2x4xbf16, #tpu.memory_space<vmem>>, vector<1x2x4xbf16>
    %225 = vector.shape_cast %224 : vector<1x2x4xbf16> to vector<2x4xbf16>
    %cst_110 = arith.constant dense<0.000000e+00> : vector<288x4xf32>
    %226 = tpu.matmul %223, %225, %cst_110 {dimension_numbers = #tpu.dot_dimension_numbers<[1], [0], [0], [1], [0, 0, 1, 1], [], []>} : vector<288x2xf32>, vector<2x4xbf16>, vector<288x4xf32> -> vector<288x4xf32>
    %227 = arith.addf %222, %226 : vector<288x4xf32>
    %c0_111 = arith.constant 0 : index
    %c0_112 = arith.constant 0 : index
    %228 = vector.load %arg9[%c0_111, %c0_112] : memref<288x4xf32, #tpu.memory_space<vmem>>, vector<288x4xf32>
    tpu.vector_store %arg9[%c0_111, %c0_112], %227 {strides = array<i32>} : memref<288x4xf32, #tpu.memory_space<vmem>>, vector<288x4xf32>,
    %c0_113 = arith.constant 0 : index
    %c0_114 = arith.constant 0 : index
    %229 = vector.load %arg9[%c0_113, %c0_114] : memref<288x4xf32, #tpu.memory_space<vmem>>, vector<288x4xf32>
    %c20 = arith.constant 20 : index
    %c0_115 = arith.constant 0 : index
    %230 = vector.load %arg8[%c20, %c0_115] : memref<326x2xf32, #tpu.memory_space<vmem>>, vector<288x2xf32>
    %c5 = arith.constant 5 : index
    %c0_116 = arith.constant 0 : index
    %c0_117 = arith.constant 0 : index
    %231 = vector.load %arg4[%c5, %c0_116, %c0_117] : memref<9x2x4xbf16, #tpu.memory_space<vmem>>, vector<1x2x4xbf16>
    %232 = vector.shape_cast %231 : vector<1x2x4xbf16> to vector<2x4xbf16>
    %cst_118 = arith.constant dense<0.000000e+00> : vector<288x4xf32>
    %233 = tpu.matmul %230, %232, %cst_118 {dimension_numbers = #tpu.dot_dimension_numbers<[1], [0], [0], [1], [0, 0, 1, 1], [], []>} : vector<288x2xf32>, vector<2x4xbf16>, vector<288x4xf32> -> vector<288x4xf32>
    %234 = arith.addf %229, %233 : vector<288x4xf32>
    %c0_119 = arith.constant 0 : index
    %c0_120 = arith.constant 0 : index
    %235 = vector.load %arg9[%c0_119, %c0_120] : memref<288x4xf32, #tpu.memory_space<vmem>>, vector<288x4xf32>
    tpu.vector_store %arg9[%c0_119, %c0_120], %234 {strides = array<i32>} : memref<288x4xf32, #tpu.memory_space<vmem>>, vector<288x4xf32>,
    %c0_121 = arith.constant 0 : index
    %c0_122 = arith.constant 0 : index
    %236 = vector.load %arg9[%c0_121, %c0_122] : memref<288x4xf32, #tpu.memory_space<vmem>>, vector<288x4xf32>
    %c36 = arith.constant 36 : index
    %c0_123 = arith.constant 0 : index
    %237 = vector.load %arg8[%c36, %c0_123] : memref<326x2xf32, #tpu.memory_space<vmem>>, vector<288x2xf32>
    %c6 = arith.constant 6 : index
    %c0_124 = arith.constant 0 : index
    %c0_125 = arith.constant 0 : index
    %238 = vector.load %arg4[%c6, %c0_124, %c0_125] : memref<9x2x4xbf16, #tpu.memory_space<vmem>>, vector<1x2x4xbf16>
    %239 = vector.shape_cast %238 : vector<1x2x4xbf16> to vector<2x4xbf16>
    %cst_126 = arith.constant dense<0.000000e+00> : vector<288x4xf32>
    %240 = tpu.matmul %237, %239, %cst_126 {dimension_numbers = #tpu.dot_dimension_numbers<[1], [0], [0], [1], [0, 0, 1, 1], [], []>} : vector<288x2xf32>, vector<2x4xbf16>, vector<288x4xf32> -> vector<288x4xf32>
    %241 = arith.addf %236, %240 : vector<288x4xf32>
    %c0_127 = arith.constant 0 : index
    %c0_128 = arith.constant 0 : index
    %242 = vector.load %arg9[%c0_127, %c0_128] : memref<288x4xf32, #tpu.memory_space<vmem>>, vector<288x4xf32>
    tpu.vector_store %arg9[%c0_127, %c0_128], %241 {strides = array<i32>} : memref<288x4xf32, #tpu.memory_space<vmem>>, vector<288x4xf32>,
    %c0_129 = arith.constant 0 : index
    %c0_130 = arith.constant 0 : index
    %243 = vector.load %arg9[%c0_129, %c0_130] : memref<288x4xf32, #tpu.memory_space<vmem>>, vector<288x4xf32>
    %c37_131 = arith.constant 37 : index
    %c0_132 = arith.constant 0 : index
    %244 = vector.load %arg8[%c37_131, %c0_132] : memref<326x2xf32, #tpu.memory_space<vmem>>, vector<288x2xf32>
    %c7 = arith.constant 7 : index
    %c0_133 = arith.constant 0 : index
    %c0_134 = arith.constant 0 : index
    %245 = vector.load %arg4[%c7, %c0_133, %c0_134] : memref<9x2x4xbf16, #tpu.memory_space<vmem>>, vector<1x2x4xbf16>
    %246 = vector.shape_cast %245 : vector<1x2x4xbf16> to vector<2x4xbf16>
    %cst_135 = arith.constant dense<0.000000e+00> : vector<288x4xf32>
    %247 = tpu.matmul %244, %246, %cst_135 {dimension_numbers = #tpu.dot_dimension_numbers<[1], [0], [0], [1], [0, 0, 1, 1], [], []>} : vector<288x2xf32>, vector<2x4xbf16>, vector<288x4xf32> -> vector<288x4xf32>
    %248 = arith.addf %243, %247 : vector<288x4xf32>
    %c0_136 = arith.constant 0 : index
    %c0_137 = arith.constant 0 : index
    %249 = vector.load %arg9[%c0_136, %c0_137] : memref<288x4xf32, #tpu.memory_space<vmem>>, vector<288x4xf32>
    tpu.vector_store %arg9[%c0_136, %c0_137], %248 {strides = array<i32>} : memref<288x4xf32, #tpu.memory_space<vmem>>, vector<288x4xf32>,
    %c0_138 = arith.constant 0 : index
    %c0_139 = arith.constant 0 : index
    %250 = vector.load %arg9[%c0_138, %c0_139] : memref<288x4xf32, #tpu.memory_space<vmem>>, vector<288x4xf32>
    %c38 = arith.constant 38 : index
    %c0_140 = arith.constant 0 : index
    %251 = vector.load %arg8[%c38, %c0_140] : memref<326x2xf32, #tpu.memory_space<vmem>>, vector<288x2xf32>
    %c8 = arith.constant 8 : index
    %c0_141 = arith.constant 0 : index
    %c0_142 = arith.constant 0 : index
    %252 = vector.load %arg4[%c8, %c0_141, %c0_142] : memref<9x2x4xbf16, #tpu.memory_space<vmem>>, vector<1x2x4xbf16>
    %253 = vector.shape_cast %252 : vector<1x2x4xbf16> to vector<2x4xbf16>
    %cst_143 = arith.constant dense<0.000000e+00> : vector<288x4xf32>
    %254 = tpu.matmul %251, %253, %cst_143 {dimension_numbers = #tpu.dot_dimension_numbers<[1], [0], [0], [1], [0, 0, 1, 1], [], []>} : vector<288x2xf32>, vector<2x4xbf16>, vector<288x4xf32> -> vector<288x4xf32>
    %255 = arith.addf %250, %254 : vector<288x4xf32>
    %c0_144 = arith.constant 0 : index
    %c0_145 = arith.constant 0 : index
    %256 = vector.load %arg9[%c0_144, %c0_145] : memref<288x4xf32, #tpu.memory_space<vmem>>, vector<288x4xf32>
    tpu.vector_store %arg9[%c0_144, %c0_145], %255 {strides = array<i32>} : memref<288x4xf32, #tpu.memory_space<vmem>>, vector<288x4xf32>,
    %cst_146 = arith.constant 0.000000e+00 : f32
    %257 = vector.broadcast %cst_146 : f32 to vector<1x4xf32>
    %cst_147 = arith.constant 0.000000e+00 : f32
    %258 = vector.broadcast %cst_147 : f32 to vector<1x4xf32>
    %c0_148 = arith.constant 0 : index
    %c0_149 = arith.constant 0 : index
    %259 = vector.load %arg9[%c0_148, %c0_149] : memref<288x4xf32, #tpu.memory_space<vmem>>, vector<16x4xf32>
    %260 = arith.truncf %259 : vector<16x4xf32> to vector<16x4xbf16>
    %c0_150 = arith.constant 0 : index
    %c0_151 = arith.constant 0 : index
    %261 = vector.load %arg5[%c0_150, %c0_151] : memref<256x4xbf16, #tpu.memory_space<vmem>>, vector<16x4xbf16>
    tpu.vector_store %arg5[%c0_150, %c0_151], %260 {strides = array<i32>} : memref<256x4xbf16, #tpu.memory_space<vmem>>, vector<16x4xbf16>,
    %cst_152 = arith.constant dense<0.000000e+00> : vector<4xf32>
    %262 = vector.multi_reduction <add>, %259, %cst_152 [0] : vector<16x4xf32> to vector<4xf32>
    %263 = vector.shape_cast %262 : vector<4xf32> to vector<1x4xf32>
    %264 = arith.addf %257, %263 : vector<1x4xf32>
    %265 = arith.mulf %259, %259 : vector<16x4xf32>
    %cst_153 = arith.constant dense<0.000000e+00> : vector<4xf32>
    %266 = vector.multi_reduction <add>, %265, %cst_153 [0] : vector<16x4xf32> to vector<4xf32>
    %267 = vector.shape_cast %266 : vector<4xf32> to vector<1x4xf32>
    %268 = arith.addf %258, %267 : vector<1x4xf32>
    %c18_154 = arith.constant 18 : index
    %c0_155 = arith.constant 0 : index
    %269 = vector.load %arg9[%c18_154, %c0_155] : memref<288x4xf32, #tpu.memory_space<vmem>>, vector<16x4xf32>
    %270 = arith.truncf %269 : vector<16x4xf32> to vector<16x4xbf16>
    %c16_156 = arith.constant 16 : index
    %c0_157 = arith.constant 0 : index
    %271 = vector.load %arg5[%c16_156, %c0_157] : memref<256x4xbf16, #tpu.memory_space<vmem>>, vector<16x4xbf16>
    tpu.vector_store %arg5[%c16_156, %c0_157], %270 {strides = array<i32>} : memref<256x4xbf16, #tpu.memory_space<vmem>>, vector<16x4xbf16>,
    %cst_158 = arith.constant dense<0.000000e+00> : vector<4xf32>
    %272 = vector.multi_reduction <add>, %269, %cst_158 [0] : vector<16x4xf32> to vector<4xf32>
    %273 = vector.shape_cast %272 : vector<4xf32> to vector<1x4xf32>
    %274 = arith.addf %264, %273 : vector<1x4xf32>
    %275 = arith.mulf %269, %269 : vector<16x4xf32>
    %cst_159 = arith.constant dense<0.000000e+00> : vector<4xf32>
    %276 = vector.multi_reduction <add>, %275, %cst_159 [0] : vector<16x4xf32> to vector<4xf32>
    %277 = vector.shape_cast %276 : vector<4xf32> to vector<1x4xf32>
    %278 = arith.addf %268, %277 : vector<1x4xf32>
    %c36_160 = arith.constant 36 : index
    %c0_161 = arith.constant 0 : index
    %279 = vector.load %arg9[%c36_160, %c0_161] : memref<288x4xf32, #tpu.memory_space<vmem>>, vector<16x4xf32>
    %280 = arith.truncf %279 : vector<16x4xf32> to vector<16x4xbf16>
    %c32_162 = arith.constant 32 : index
    %c0_163 = arith.constant 0 : index
    %281 = vector.load %arg5[%c32_162, %c0_163] : memref<256x4xbf16, #tpu.memory_space<vmem>>, vector<16x4xbf16>
    tpu.vector_store %arg5[%c32_162, %c0_163], %280 {strides = array<i32>} : memref<256x4xbf16, #tpu.memory_space<vmem>>, vector<16x4xbf16>,
    %cst_164 = arith.constant dense<0.000000e+00> : vector<4xf32>
    %282 = vector.multi_reduction <add>, %279, %cst_164 [0] : vector<16x4xf32> to vector<4xf32>
    %283 = vector.shape_cast %282 : vector<4xf32> to vector<1x4xf32>
    %284 = arith.addf %274, %283 : vector<1x4xf32>
    %285 = arith.mulf %279, %279 : vector<16x4xf32>
    %cst_165 = arith.constant dense<0.000000e+00> : vector<4xf32>
    %286 = vector.multi_reduction <add>, %285, %cst_165 [0] : vector<16x4xf32> to vector<4xf32>
    %287 = vector.shape_cast %286 : vector<4xf32> to vector<1x4xf32>
    %288 = arith.addf %278, %287 : vector<1x4xf32>
    %c54 = arith.constant 54 : index
    %c0_166 = arith.constant 0 : index
    %289 = vector.load %arg9[%c54, %c0_166] : memref<288x4xf32, #tpu.memory_space<vmem>>, vector<16x4xf32>
    %290 = arith.truncf %289 : vector<16x4xf32> to vector<16x4xbf16>
    %c48_167 = arith.constant 48 : index
    %c0_168 = arith.constant 0 : index
    %291 = vector.load %arg5[%c48_167, %c0_168] : memref<256x4xbf16, #tpu.memory_space<vmem>>, vector<16x4xbf16>
    tpu.vector_store %arg5[%c48_167, %c0_168], %290 {strides = array<i32>} : memref<256x4xbf16, #tpu.memory_space<vmem>>, vector<16x4xbf16>,
    %cst_169 = arith.constant dense<0.000000e+00> : vector<4xf32>
    %292 = vector.multi_reduction <add>, %289, %cst_169 [0] : vector<16x4xf32> to vector<4xf32>
    %293 = vector.shape_cast %292 : vector<4xf32> to vector<1x4xf32>
    %294 = arith.addf %284, %293 : vector<1x4xf32>
    %295 = arith.mulf %289, %289 : vector<16x4xf32>
    %cst_170 = arith.constant dense<0.000000e+00> : vector<4xf32>
    %296 = vector.multi_reduction <add>, %295, %cst_170 [0] : vector<16x4xf32> to vector<4xf32>
    %297 = vector.shape_cast %296 : vector<4xf32> to vector<1x4xf32>
    %298 = arith.addf %288, %297 : vector<1x4xf32>
    %c72 = arith.constant 72 : index
    %c0_171 = arith.constant 0 : index
    %299 = vector.load %arg9[%c72, %c0_171] : memref<288x4xf32, #tpu.memory_space<vmem>>, vector<16x4xf32>
    %300 = arith.truncf %299 : vector<16x4xf32> to vector<16x4xbf16>
    %c64_172 = arith.constant 64 : index
    %c0_173 = arith.constant 0 : index
    %301 = vector.load %arg5[%c64_172, %c0_173] : memref<256x4xbf16, #tpu.memory_space<vmem>>, vector<16x4xbf16>
    tpu.vector_store %arg5[%c64_172, %c0_173], %300 {strides = array<i32>} : memref<256x4xbf16, #tpu.memory_space<vmem>>, vector<16x4xbf16>,
    %cst_174 = arith.constant dense<0.000000e+00> : vector<4xf32>
    %302 = vector.multi_reduction <add>, %299, %cst_174 [0] : vector<16x4xf32> to vector<4xf32>
    %303 = vector.shape_cast %302 : vector<4xf32> to vector<1x4xf32>
    %304 = arith.addf %294, %303 : vector<1x4xf32>
    %305 = arith.mulf %299, %299 : vector<16x4xf32>
    %cst_175 = arith.constant dense<0.000000e+00> : vector<4xf32>
    %306 = vector.multi_reduction <add>, %305, %cst_175 [0] : vector<16x4xf32> to vector<4xf32>
    %307 = vector.shape_cast %306 : vector<4xf32> to vector<1x4xf32>
    %308 = arith.addf %298, %307 : vector<1x4xf32>
    %c90 = arith.constant 90 : index
    %c0_176 = arith.constant 0 : index
    %309 = vector.load %arg9[%c90, %c0_176] : memref<288x4xf32, #tpu.memory_space<vmem>>, vector<16x4xf32>
    %310 = arith.truncf %309 : vector<16x4xf32> to vector<16x4xbf16>
    %c80_177 = arith.constant 80 : index
    %c0_178 = arith.constant 0 : index
    %311 = vector.load %arg5[%c80_177, %c0_178] : memref<256x4xbf16, #tpu.memory_space<vmem>>, vector<16x4xbf16>
    tpu.vector_store %arg5[%c80_177, %c0_178], %310 {strides = array<i32>} : memref<256x4xbf16, #tpu.memory_space<vmem>>, vector<16x4xbf16>,
    %cst_179 = arith.constant dense<0.000000e+00> : vector<4xf32>
    %312 = vector.multi_reduction <add>, %309, %cst_179 [0] : vector<16x4xf32> to vector<4xf32>
    %313 = vector.shape_cast %312 : vector<4xf32> to vector<1x4xf32>
    %314 = arith.addf %304, %313 : vector<1x4xf32>
    %315 = arith.mulf %309, %309 : vector<16x4xf32>
    %cst_180 = arith.constant dense<0.000000e+00> : vector<4xf32>
    %316 = vector.multi_reduction <add>, %315, %cst_180 [0] : vector<16x4xf32> to vector<4xf32>
    %317 = vector.shape_cast %316 : vector<4xf32> to vector<1x4xf32>
    %318 = arith.addf %308, %317 : vector<1x4xf32>
    %c108 = arith.constant 108 : index
    %c0_181 = arith.constant 0 : index
    %319 = vector.load %arg9[%c108, %c0_181] : memref<288x4xf32, #tpu.memory_space<vmem>>, vector<16x4xf32>
    %320 = arith.truncf %319 : vector<16x4xf32> to vector<16x4xbf16>
    %c96_182 = arith.constant 96 : index
    %c0_183 = arith.constant 0 : index
    %321 = vector.load %arg5[%c96_182, %c0_183] : memref<256x4xbf16, #tpu.memory_space<vmem>>, vector<16x4xbf16>
    tpu.vector_store %arg5[%c96_182, %c0_183], %320 {strides = array<i32>} : memref<256x4xbf16, #tpu.memory_space<vmem>>, vector<16x4xbf16>,
    %cst_184 = arith.constant dense<0.000000e+00> : vector<4xf32>
    %322 = vector.multi_reduction <add>, %319, %cst_184 [0] : vector<16x4xf32> to vector<4xf32>
    %323 = vector.shape_cast %322 : vector<4xf32> to vector<1x4xf32>
    %324 = arith.addf %314, %323 : vector<1x4xf32>
    %325 = arith.mulf %319, %319 : vector<16x4xf32>
    %cst_185 = arith.constant dense<0.000000e+00> : vector<4xf32>
    %326 = vector.multi_reduction <add>, %325, %cst_185 [0] : vector<16x4xf32> to vector<4xf32>
    %327 = vector.shape_cast %326 : vector<4xf32> to vector<1x4xf32>
    %328 = arith.addf %318, %327 : vector<1x4xf32>
    %c126 = arith.constant 126 : index
    %c0_186 = arith.constant 0 : index
    %329 = vector.load %arg9[%c126, %c0_186] : memref<288x4xf32, #tpu.memory_space<vmem>>, vector<16x4xf32>
    %330 = arith.truncf %329 : vector<16x4xf32> to vector<16x4xbf16>
    %c112_187 = arith.constant 112 : index
    %c0_188 = arith.constant 0 : index
    %331 = vector.load %arg5[%c112_187, %c0_188] : memref<256x4xbf16, #tpu.memory_space<vmem>>, vector<16x4xbf16>
    tpu.vector_store %arg5[%c112_187, %c0_188], %330 {strides = array<i32>} : memref<256x4xbf16, #tpu.memory_space<vmem>>, vector<16x4xbf16>,
    %cst_189 = arith.constant dense<0.000000e+00> : vector<4xf32>
    %332 = vector.multi_reduction <add>, %329, %cst_189 [0] : vector<16x4xf32> to vector<4xf32>
    %333 = vector.shape_cast %332 : vector<4xf32> to vector<1x4xf32>
    %334 = arith.addf %324, %333 : vector<1x4xf32>
    %335 = arith.mulf %329, %329 : vector<16x4xf32>
    %cst_190 = arith.constant dense<0.000000e+00> : vector<4xf32>
    %336 = vector.multi_reduction <add>, %335, %cst_190 [0] : vector<16x4xf32> to vector<4xf32>
    %337 = vector.shape_cast %336 : vector<4xf32> to vector<1x4xf32>
    %338 = arith.addf %328, %337 : vector<1x4xf32>
    %c144_191 = arith.constant 144 : index
    %c0_192 = arith.constant 0 : index
    %339 = vector.load %arg9[%c144_191, %c0_192] : memref<288x4xf32, #tpu.memory_space<vmem>>, vector<16x4xf32>
    %340 = arith.truncf %339 : vector<16x4xf32> to vector<16x4xbf16>
    %c128_193 = arith.constant 128 : index
    %c0_194 = arith.constant 0 : index
    %341 = vector.load %arg5[%c128_193, %c0_194] : memref<256x4xbf16, #tpu.memory_space<vmem>>, vector<16x4xbf16>
    tpu.vector_store %arg5[%c128_193, %c0_194], %340 {strides = array<i32>} : memref<256x4xbf16, #tpu.memory_space<vmem>>, vector<16x4xbf16>,
    %cst_195 = arith.constant dense<0.000000e+00> : vector<4xf32>
    %342 = vector.multi_reduction <add>, %339, %cst_195 [0] : vector<16x4xf32> to vector<4xf32>
    %343 = vector.shape_cast %342 : vector<4xf32> to vector<1x4xf32>
    %344 = arith.addf %334, %343 : vector<1x4xf32>
    %345 = arith.mulf %339, %339 : vector<16x4xf32>
    %cst_196 = arith.constant dense<0.000000e+00> : vector<4xf32>
    %346 = vector.multi_reduction <add>, %345, %cst_196 [0] : vector<16x4xf32> to vector<4xf32>
    %347 = vector.shape_cast %346 : vector<4xf32> to vector<1x4xf32>
    %348 = arith.addf %338, %347 : vector<1x4xf32>
    %c162 = arith.constant 162 : index
    %c0_197 = arith.constant 0 : index
    %349 = vector.load %arg9[%c162, %c0_197] : memref<288x4xf32, #tpu.memory_space<vmem>>, vector<16x4xf32>
    %350 = arith.truncf %349 : vector<16x4xf32> to vector<16x4xbf16>
    %c144_198 = arith.constant 144 : index
    %c0_199 = arith.constant 0 : index
    %351 = vector.load %arg5[%c144_198, %c0_199] : memref<256x4xbf16, #tpu.memory_space<vmem>>, vector<16x4xbf16>
    tpu.vector_store %arg5[%c144_198, %c0_199], %350 {strides = array<i32>} : memref<256x4xbf16, #tpu.memory_space<vmem>>, vector<16x4xbf16>,
    %cst_200 = arith.constant dense<0.000000e+00> : vector<4xf32>
    %352 = vector.multi_reduction <add>, %349, %cst_200 [0] : vector<16x4xf32> to vector<4xf32>
    %353 = vector.shape_cast %352 : vector<4xf32> to vector<1x4xf32>
    %354 = arith.addf %344, %353 : vector<1x4xf32>
    %355 = arith.mulf %349, %349 : vector<16x4xf32>
    %cst_201 = arith.constant dense<0.000000e+00> : vector<4xf32>
    %356 = vector.multi_reduction <add>, %355, %cst_201 [0] : vector<16x4xf32> to vector<4xf32>
    %357 = vector.shape_cast %356 : vector<4xf32> to vector<1x4xf32>
    %358 = arith.addf %348, %357 : vector<1x4xf32>
    %c180 = arith.constant 180 : index
    %c0_202 = arith.constant 0 : index
    %359 = vector.load %arg9[%c180, %c0_202] : memref<288x4xf32, #tpu.memory_space<vmem>>, vector<16x4xf32>
    %360 = arith.truncf %359 : vector<16x4xf32> to vector<16x4xbf16>
    %c160_203 = arith.constant 160 : index
    %c0_204 = arith.constant 0 : index
    %361 = vector.load %arg5[%c160_203, %c0_204] : memref<256x4xbf16, #tpu.memory_space<vmem>>, vector<16x4xbf16>
    tpu.vector_store %arg5[%c160_203, %c0_204], %360 {strides = array<i32>} : memref<256x4xbf16, #tpu.memory_space<vmem>>, vector<16x4xbf16>,
    %cst_205 = arith.constant dense<0.000000e+00> : vector<4xf32>
    %362 = vector.multi_reduction <add>, %359, %cst_205 [0] : vector<16x4xf32> to vector<4xf32>
    %363 = vector.shape_cast %362 : vector<4xf32> to vector<1x4xf32>
    %364 = arith.addf %354, %363 : vector<1x4xf32>
    %365 = arith.mulf %359, %359 : vector<16x4xf32>
    %cst_206 = arith.constant dense<0.000000e+00> : vector<4xf32>
    %366 = vector.multi_reduction <add>, %365, %cst_206 [0] : vector<16x4xf32> to vector<4xf32>
    %367 = vector.shape_cast %366 : vector<4xf32> to vector<1x4xf32>
    %368 = arith.addf %358, %367 : vector<1x4xf32>
    %c198 = arith.constant 198 : index
    %c0_207 = arith.constant 0 : index
    %369 = vector.load %arg9[%c198, %c0_207] : memref<288x4xf32, #tpu.memory_space<vmem>>, vector<16x4xf32>
    %370 = arith.truncf %369 : vector<16x4xf32> to vector<16x4xbf16>
    %c176_208 = arith.constant 176 : index
    %c0_209 = arith.constant 0 : index
    %371 = vector.load %arg5[%c176_208, %c0_209] : memref<256x4xbf16, #tpu.memory_space<vmem>>, vector<16x4xbf16>
    tpu.vector_store %arg5[%c176_208, %c0_209], %370 {strides = array<i32>} : memref<256x4xbf16, #tpu.memory_space<vmem>>, vector<16x4xbf16>,
    %cst_210 = arith.constant dense<0.000000e+00> : vector<4xf32>
    %372 = vector.multi_reduction <add>, %369, %cst_210 [0] : vector<16x4xf32> to vector<4xf32>
    %373 = vector.shape_cast %372 : vector<4xf32> to vector<1x4xf32>
    %374 = arith.addf %364, %373 : vector<1x4xf32>
    %375 = arith.mulf %369, %369 : vector<16x4xf32>
    %cst_211 = arith.constant dense<0.000000e+00> : vector<4xf32>
    %376 = vector.multi_reduction <add>, %375, %cst_211 [0] : vector<16x4xf32> to vector<4xf32>
    %377 = vector.shape_cast %376 : vector<4xf32> to vector<1x4xf32>
    %378 = arith.addf %368, %377 : vector<1x4xf32>
    %c216 = arith.constant 216 : index
    %c0_212 = arith.constant 0 : index
    %379 = vector.load %arg9[%c216, %c0_212] : memref<288x4xf32, #tpu.memory_space<vmem>>, vector<16x4xf32>
    %380 = arith.truncf %379 : vector<16x4xf32> to vector<16x4xbf16>
    %c192_213 = arith.constant 192 : index
    %c0_214 = arith.constant 0 : index
    %381 = vector.load %arg5[%c192_213, %c0_214] : memref<256x4xbf16, #tpu.memory_space<vmem>>, vector<16x4xbf16>
    tpu.vector_store %arg5[%c192_213, %c0_214], %380 {strides = array<i32>} : memref<256x4xbf16, #tpu.memory_space<vmem>>, vector<16x4xbf16>,
    %cst_215 = arith.constant dense<0.000000e+00> : vector<4xf32>
    %382 = vector.multi_reduction <add>, %379, %cst_215 [0] : vector<16x4xf32> to vector<4xf32>
    %383 = vector.shape_cast %382 : vector<4xf32> to vector<1x4xf32>
    %384 = arith.addf %374, %383 : vector<1x4xf32>
    %385 = arith.mulf %379, %379 : vector<16x4xf32>
    %cst_216 = arith.constant dense<0.000000e+00> : vector<4xf32>
    %386 = vector.multi_reduction <add>, %385, %cst_216 [0] : vector<16x4xf32> to vector<4xf32>
    %387 = vector.shape_cast %386 : vector<4xf32> to vector<1x4xf32>
    %388 = arith.addf %378, %387 : vector<1x4xf32>
    %c234 = arith.constant 234 : index
    %c0_217 = arith.constant 0 : index
    %389 = vector.load %arg9[%c234, %c0_217] : memref<288x4xf32, #tpu.memory_space<vmem>>, vector<16x4xf32>
    %390 = arith.truncf %389 : vector<16x4xf32> to vector<16x4xbf16>
    %c208_218 = arith.constant 208 : index
    %c0_219 = arith.constant 0 : index
    %391 = vector.load %arg5[%c208_218, %c0_219] : memref<256x4xbf16, #tpu.memory_space<vmem>>, vector<16x4xbf16>
    tpu.vector_store %arg5[%c208_218, %c0_219], %390 {strides = array<i32>} : memref<256x4xbf16, #tpu.memory_space<vmem>>, vector<16x4xbf16>,
    %cst_220 = arith.constant dense<0.000000e+00> : vector<4xf32>
    %392 = vector.multi_reduction <add>, %389, %cst_220 [0] : vector<16x4xf32> to vector<4xf32>
    %393 = vector.shape_cast %392 : vector<4xf32> to vector<1x4xf32>
    %394 = arith.addf %384, %393 : vector<1x4xf32>
    %395 = arith.mulf %389, %389 : vector<16x4xf32>
    %cst_221 = arith.constant dense<0.000000e+00> : vector<4xf32>
    %396 = vector.multi_reduction <add>, %395, %cst_221 [0] : vector<16x4xf32> to vector<4xf32>
    %397 = vector.shape_cast %396 : vector<4xf32> to vector<1x4xf32>
    %398 = arith.addf %388, %397 : vector<1x4xf32>
    %c252 = arith.constant 252 : index
    %c0_222 = arith.constant 0 : index
    %399 = vector.load %arg9[%c252, %c0_222] : memref<288x4xf32, #tpu.memory_space<vmem>>, vector<16x4xf32>
    %400 = arith.truncf %399 : vector<16x4xf32> to vector<16x4xbf16>
    %c224_223 = arith.constant 224 : index
    %c0_224 = arith.constant 0 : index
    %401 = vector.load %arg5[%c224_223, %c0_224] : memref<256x4xbf16, #tpu.memory_space<vmem>>, vector<16x4xbf16>
    tpu.vector_store %arg5[%c224_223, %c0_224], %400 {strides = array<i32>} : memref<256x4xbf16, #tpu.memory_space<vmem>>, vector<16x4xbf16>,
    %cst_225 = arith.constant dense<0.000000e+00> : vector<4xf32>
    %402 = vector.multi_reduction <add>, %399, %cst_225 [0] : vector<16x4xf32> to vector<4xf32>
    %403 = vector.shape_cast %402 : vector<4xf32> to vector<1x4xf32>
    %404 = arith.addf %394, %403 : vector<1x4xf32>
    %405 = arith.mulf %399, %399 : vector<16x4xf32>
    %cst_226 = arith.constant dense<0.000000e+00> : vector<4xf32>
    %406 = vector.multi_reduction <add>, %405, %cst_226 [0] : vector<16x4xf32> to vector<4xf32>
    %407 = vector.shape_cast %406 : vector<4xf32> to vector<1x4xf32>
    %408 = arith.addf %398, %407 : vector<1x4xf32>
    %c270 = arith.constant 270 : index
    %c0_227 = arith.constant 0 : index
    %409 = vector.load %arg9[%c270, %c0_227] : memref<288x4xf32, #tpu.memory_space<vmem>>, vector<16x4xf32>
    %410 = arith.truncf %409 : vector<16x4xf32> to vector<16x4xbf16>
    %c240_228 = arith.constant 240 : index
    %c0_229 = arith.constant 0 : index
    %411 = vector.load %arg5[%c240_228, %c0_229] : memref<256x4xbf16, #tpu.memory_space<vmem>>, vector<16x4xbf16>
    tpu.vector_store %arg5[%c240_228, %c0_229], %410 {strides = array<i32>} : memref<256x4xbf16, #tpu.memory_space<vmem>>, vector<16x4xbf16>,
    %cst_230 = arith.constant dense<0.000000e+00> : vector<4xf32>
    %412 = vector.multi_reduction <add>, %409, %cst_230 [0] : vector<16x4xf32> to vector<4xf32>
    %413 = vector.shape_cast %412 : vector<4xf32> to vector<1x4xf32>
    %414 = arith.addf %404, %413 : vector<1x4xf32>
    %415 = arith.mulf %409, %409 : vector<16x4xf32>
    %cst_231 = arith.constant dense<0.000000e+00> : vector<4xf32>
    %416 = vector.multi_reduction <add>, %415, %cst_231 [0] : vector<16x4xf32> to vector<4xf32>
    %417 = vector.shape_cast %416 : vector<4xf32> to vector<1x4xf32>
    %418 = arith.addf %408, %417 : vector<1x4xf32>
    %419 = vector.shape_cast %414 : vector<1x4xf32> to vector<1x4xf32>
    %420 = vector.broadcast %419 : vector<1x4xf32> to vector<8x4xf32>
    %c0_232 = arith.constant 0 : index
    %c0_233 = arith.constant 0 : index
    %421 = vector.load %arg6[%c0_232, %c0_233] : memref<8x4xf32, #tpu.memory_space<vmem>>, vector<8x4xf32>
    tpu.vector_store %arg6[%c0_232, %c0_233], %420 {strides = array<i32>} : memref<8x4xf32, #tpu.memory_space<vmem>>, vector<8x4xf32>,
    %422 = vector.shape_cast %418 : vector<1x4xf32> to vector<1x4xf32>
    %423 = vector.broadcast %422 : vector<1x4xf32> to vector<8x4xf32>
    %c0_234 = arith.constant 0 : index
    %c0_235 = arith.constant 0 : index
    %424 = vector.load %arg7[%c0_234, %c0_235] : memref<8x4xf32, #tpu.memory_space<vmem>>, vector<8x4xf32>
    tpu.vector_store %arg7[%c0_234, %c0_235], %423 {strides = array<i32>} : memref<8x4xf32, #tpu.memory_space<vmem>>, vector<8x4xf32>,
    return
  }
  func.func @transform_0(%arg0: i32) -> (i32, i32) {
    %c0_i32 = arith.constant 0 : i32
    %c0_i32_0 = arith.constant 0 : i32
    return %arg0, %c0_i32 : i32, i32
  }
  func.func @transform_1(%arg0: i32) -> (i32, i32) {
    %c0_i32 = arith.constant 0 : i32
    %c0_i32_0 = arith.constant 0 : i32
    %c0_i32_1 = arith.constant 0 : i32
    return %c0_i32, %c0_i32_0 : i32, i32
  }
  func.func @transform_2(%arg0: i32) -> (i32, i32) {
    %c0_i32 = arith.constant 0 : i32
    %c0_i32_0 = arith.constant 0 : i32
    %c0_i32_1 = arith.constant 0 : i32
    return %c0_i32, %c0_i32_0 : i32, i32
  }
  func.func @transform_3(%arg0: i32) -> (i32, i32, i32) {
    %c0_i32 = arith.constant 0 : i32
    %c0_i32_0 = arith.constant 0 : i32
    %c0_i32_1 = arith.constant 0 : i32
    %c0_i32_2 = arith.constant 0 : i32
    return %c0_i32, %c0_i32_0, %c0_i32_1 : i32, i32, i32
  }
  func.func @transform_4(%arg0: i32) -> (i32, i32) {
    %c0_i32 = arith.constant 0 : i32
    %c0_i32_0 = arith.constant 0 : i32
    return %arg0, %c0_i32 : i32, i32
  }
  func.func @transform_5(%arg0: i32) -> (i32, i32) {
    %c0_i32 = arith.constant 0 : i32
    %c0_i32_0 = arith.constant 0 : i32
    return %arg0, %c0_i32 : i32, i32
  }
  func.func @transform_6(%arg0: i32) -> (i32, i32) {
    %c0_i32 = arith.constant 0 : i32
    %c0_i32_0 = arith.constant 0 : i32
    return %arg0, %c0_i32 : i32, i32
  }
}

module attributes {stable_mosaic.version = 11 : i64} {
  func.func @bn_lrelu_res_kernel(%arg0: i32, %arg1: memref<8x128xbf16, #tpu.memory_space<vmem>>, %arg2: memref<8x128xf32, #tpu.memory_space<vmem>>, %arg3: memref<1x128xf32, #tpu.memory_space<vmem>>, %arg4: memref<1x128xf32, #tpu.memory_space<vmem>>, %arg5: memref<8x128xf32, #tpu.memory_space<vmem>>) attributes {dimension_semantics = [#tpu.dimension_semantics<parallel>], iteration_bounds = array<i64: 2>, scalar_prefetch = 0 : i64, scratch_operands = 0 : i64, tpu.core_type = #tpu.core_type<tc>, window_params = [{transform_indices = @transform_0, window_bounds = array<i64: 8, 128>}, {transform_indices = @transform_1, window_bounds = array<i64: 8, 128>}, {pipeline_mode = #tpu.pipeline_mode<synchronous>, transform_indices = @transform_2, window_bounds = array<i64: 1, 128>}, {pipeline_mode = #tpu.pipeline_mode<synchronous>, transform_indices = @transform_3, window_bounds = array<i64: 1, 128>}, {transform_indices = @transform_4, window_bounds = array<i64: 8, 128>}]} {
    %c0 = arith.constant 0 : index
    %c0_0 = arith.constant 0 : index
    %0 = vector.load %arg1[%c0, %c0_0] : memref<8x128xbf16, #tpu.memory_space<vmem>>, vector<8x128xbf16>
    %1 = arith.extf %0 : vector<8x128xbf16> to vector<8x128xf32>
    %c0_1 = arith.constant 0 : index
    %c0_2 = arith.constant 0 : index
    %2 = vector.load %arg3[%c0_1, %c0_2] : memref<1x128xf32, #tpu.memory_space<vmem>>, vector<1x128xf32>
    %3 = vector.broadcast %2 : vector<1x128xf32> to vector<8x128xf32>
    %4 = arith.mulf %1, %3 : vector<8x128xf32>
    %c0_3 = arith.constant 0 : index
    %c0_4 = arith.constant 0 : index
    %5 = vector.load %arg4[%c0_3, %c0_4] : memref<1x128xf32, #tpu.memory_space<vmem>>, vector<1x128xf32>
    %6 = vector.broadcast %5 : vector<1x128xf32> to vector<8x128xf32>
    %7 = arith.addf %4, %6 : vector<8x128xf32>
    %cst = arith.constant 0.000000e+00 : f32
    %8 = vector.broadcast %cst : f32 to vector<8x128xf32>
    %9 = arith.cmpf ogt, %7, %8 : vector<8x128xf32>
    %cst_5 = arith.constant 1.000000e-01 : f32
    %10 = vector.broadcast %cst_5 : f32 to vector<8x128xf32>
    %11 = arith.mulf %10, %7 : vector<8x128xf32>
    %12 = arith.select %9, %7, %11 : vector<8x128xi1>, vector<8x128xf32>
    %c0_6 = arith.constant 0 : index
    %c0_7 = arith.constant 0 : index
    %13 = vector.load %arg2[%c0_6, %c0_7] : memref<8x128xf32, #tpu.memory_space<vmem>>, vector<8x128xf32>
    %14 = arith.addf %12, %13 : vector<8x128xf32>
    %c0_8 = arith.constant 0 : index
    %c0_9 = arith.constant 0 : index
    %15 = vector.load %arg5[%c0_8, %c0_9] : memref<8x128xf32, #tpu.memory_space<vmem>>, vector<8x128xf32>
    tpu.vector_store %arg5[%c0_8, %c0_9], %14 {strides = array<i32>} : memref<8x128xf32, #tpu.memory_space<vmem>>, vector<8x128xf32>,
    return
  }
  func.func @transform_0(%arg0: i32) -> (i32, i32) {
    %c0_i32 = arith.constant 0 : i32
    %c0_i32_0 = arith.constant 0 : i32
    return %arg0, %c0_i32 : i32, i32
  }
  func.func @transform_1(%arg0: i32) -> (i32, i32) {
    %c0_i32 = arith.constant 0 : i32
    %c0_i32_0 = arith.constant 0 : i32
    return %arg0, %c0_i32 : i32, i32
  }
  func.func @transform_2(%arg0: i32) -> (i32, i32) {
    %c0_i32 = arith.constant 0 : i32
    %c0_i32_0 = arith.constant 0 : i32
    %c0_i32_1 = arith.constant 0 : i32
    return %c0_i32, %c0_i32_0 : i32, i32
  }
  func.func @transform_3(%arg0: i32) -> (i32, i32) {
    %c0_i32 = arith.constant 0 : i32
    %c0_i32_0 = arith.constant 0 : i32
    %c0_i32_1 = arith.constant 0 : i32
    return %c0_i32, %c0_i32_0 : i32, i32
  }
  func.func @transform_4(%arg0: i32) -> (i32, i32) {
    %c0_i32 = arith.constant 0 : i32
    %c0_i32_0 = arith.constant 0 : i32
    return %arg0, %c0_i32 : i32, i32
  }
}

</mosaic_0001>

<llo_original>
// kernel: residual_block_forward.3
$region0: #{residual_block_forward.3}
  #allocation0 [shape = 'u32[]', space=smem, size = 0x4, offset = 0x4, fixed_abs, tag = 'smem constant byte address 0x4 - core index']
  #allocation1 [shape = 'u32[144,128]{1,0:T(1,128)}', space=vmem, size = 0x12000, scoped, tag = 'internal scratch']
  %s0 = inlined_call_operand.vmem [shape: f32[512,4], index: 0, kind: input, shape index: {}]
  %s1 = inlined_call_operand.vmem [shape: bf16[4,2], index: 1, kind: input, shape index: {}]
  %s2 = inlined_call_operand.vmem [shape: bf16[512,2], index: 2, kind: output, shape index: {0}]
  %s3 = inlined_call_operand.vmem [shape: f32[16,2], index: 3, kind: output, shape index: {1}]
  %s4 = inlined_call_operand.vmem [shape: f32[16,2], index: 4, kind: output, shape index: {2}]
  %5 = xla_tuple %s2, %s3, %s4
  %s6 = sld [smem:[#allocation0]]
  $region57: #{residual_block_forward.3} parent=0
    _
  %s8 = ssub.s32 1, %s6
  %s9 = scalar_select 0, %s8, %s6
  loop: start=0, step=1, limit=4
  $region2: #{residual_block_forward.3} parent=0 // loop_pre_header
    _
  $region3: #{residual_block_forward.3} parent=0 // loop_header
    %s11 = sphi 0, %s15
    %p12 = scmp.ge.s32.totalorder %s11, 4
    %s21 = sphi 0, %s23
    %s24 = sphi 0, %s21
    %s25 = sphi 0, %s24
    %s41 = sphi 0, %s25
    %s45 = sphi 0, %s45
    %s47 = sphi 0, %s45
    %s48 = sphi 0, %s47
    %s62 = sphi 0, %s48
    %s68 = sphi 0, %s70
    %s71 = sphi 0, %s68
    %s72 = sphi 0, %s71
    %s88 = sphi 0, %s72
    %s94 = sphi 0, %s96
    %s97 = sphi 0, %s94
    %s98 = sphi 0, %s97
    %s114 = sphi 0, %s98
    %s120 = sphi 0, %s122
    %s123 = sphi 0, %s120
    %s124 = sphi 0, %s123
    %s140 = sphi 0, %s124
  $region4: #{residual_block_forward.3} parent=0 // loop_header_branch
    %14 = sbr.rel (%p12) target = $region8
  $region5: #{residual_block_forward.3} parent=0 // loop_body
    %s16 = ssub.s32 %s11, 1
    %s17 = ssub.s32 %s11, 2
    %s18 = sadd.s32 %s11, 1
    %s19 = ssub.s32 %s11, %s18
    %p20 = scmp.eq.s32.totalorder %s19, 0
    %s22 = sadd.s32 %s21, 1
    %s23 = scalar_select %p20, %s21, %s22
    %p26 = pneg %p20
    %p27 = scmp.eq.s32.totalorder %s11, 1
    %p28 = por %p26, %p27
    %p29 = scmp.ne.s32.totalorder %s21, %s24
    %p30 = scmp.eq.s32.totalorder %s11, 0
    %p31 = por %p29, %p30
    %p32 = scmp.ne.s32.totalorder %s21, %s24
    %p33 = scmp.eq.s32.totalorder %s16, 1
    %p34 = por %p32, %p33
    %p35 = scmp.ne.s32.totalorder %s24, %s25
    %p36 = scmp.eq.s32.totalorder %s16, 0
    %p37 = por %p35, %p36
    %p38 = scmp.ne.s32.totalorder %s24, %s25
    %p39 = scmp.eq.s32.totalorder %s17, 1
    %p40 = por %p38, %p39
    %p42 = scmp.ne.s32.totalorder %s25, %s41
    %p43 = scmp.eq.s32.totalorder %s17, 0
    %p44 = por %p42, %p43
    %s46 = sadd.s32 %s45, 1
    %p49 = scmp.eq.s32.totalorder %s11, 1
    %p50 = scmp.ne.s32.totalorder %s45, %s47
    %p51 = scmp.eq.s32.totalorder %s11, 0
    %p52 = por %p50, %p51
    %p53 = scmp.ne.s32.totalorder %s45, %s47
    %p54 = scmp.eq.s32.totalorder %s16, 1
    %p55 = por %p53, %p54
    %p56 = scmp.ne.s32.totalorder %s47, %s48
    %p57 = scmp.eq.s32.totalorder %s16, 0
    %p58 = por %p56, %p57
    %p59 = scmp.ne.s32.totalorder %s47, %s48
    %p60 = scmp.eq.s32.totalorder %s17, 1
    %p61 = por %p59, %p60
    %p63 = scmp.ne.s32.totalorder %s48, %s62
    %p64 = scmp.eq.s32.totalorder %s17, 0
    %p65 = por %p63, %p64
    %s66 = ssub.s32 %s11, %s18
    %p67 = scmp.eq.s32.totalorder %s66, 0
    %s69 = sadd.s32 %s68, 1
    %s70 = scalar_select %p67, %s68, %s69
    %p73 = pneg %p67
    %p74 = scmp.eq.s32.totalorder %s11, 1
    %p75 = por %p73, %p74
    %p76 = scmp.ne.s32.totalorder %s68, %s71
    %p77 = scmp.eq.s32.totalorder %s11, 0
    %p78 = por %p76, %p77
    %p79 = scmp.ne.s32.totalorder %s68, %s71
    %p80 = scmp.eq.s32.totalorder %s16, 1
    %p81 = por %p79, %p80
    %p82 = scmp.ne.s32.totalorder %s71, %s72
    %p83 = scmp.eq.s32.totalorder %s16, 0
    %p84 = por %p82, %p83
    %p85 = scmp.ne.s32.totalorder %s71, %s72
    %p86 = scmp.eq.s32.totalorder %s17, 1
    %p87 = por %p85, %p86
    %p89 = scmp.ne.s32.totalorder %s72, %s88
    %p90 = scmp.eq.s32.totalorder %s17, 0
    %p91 = por %p89, %p90
    %s92 = ssub.s32 %s11, %s18
    %p93 = scmp.eq.s32.totalorder %s92, 0
    %s95 = sadd.s32 %s94, 1
    %s96 = scalar_select %p93, %s94, %s95
    %p99 = pneg %p93
    %p100 = scmp.eq.s32.totalorder %s11, 1
    %p101 = por %p99, %p100
    %p102 = scmp.ne.s32.totalorder %s94, %s97
    %p103 = scmp.eq.s32.totalorder %s11, 0
    %p104 = por %p102, %p103
    %p105 = scmp.ne.s32.totalorder %s94, %s97
    %p106 = scmp.eq.s32.totalorder %s16, 1
    %p107 = por %p105, %p106
    %p108 = scmp.ne.s32.totalorder %s97, %s98
    %p109 = scmp.eq.s32.totalorder %s16, 0
    %p110 = por %p108, %p109
    %p111 = scmp.ne.s32.totalorder %s97, %s98
    %p112 = scmp.eq.s32.totalorder %s17, 1
    %p113 = por %p111, %p112
    %p115 = scmp.ne.s32.totalorder %s98, %s114
    %p116 = scmp.eq.s32.totalorder %s17, 0
    %p117 = por %p115, %p116
    %s118 = ssub.s32 %s11, %s18
    %p119 = scmp.eq.s32.totalorder %s118, 0
    %s121 = sadd.s32 %s120, 1
    %s122 = scalar_select %p119, %s120, %s121
    %p125 = pneg %p119
    %p126 = scmp.eq.s32.totalorder %s11, 1
    %p127 = por %p125, %p126
    %p128 = scmp.ne.s32.totalorder %s120, %s123
    %p129 = scmp.eq.s32.totalorder %s11, 0
    %p130 = por %p128, %p129
    %p131 = scmp.ne.s32.totalorder %s120, %s123
    %p132 = scmp.eq.s32.totalorder %s16, 1
    %p133 = por %p131, %p132
    %p134 = scmp.ne.s32.totalorder %s123, %s124
    %p135 = scmp.eq.s32.totalorder %s16, 0
    %p136 = por %p134, %p135
    %p137 = scmp.ne.s32.totalorder %s123, %s124
    %p138 = scmp.eq.s32.totalorder %s17, 1
    %p139 = por %p137, %p138
    %p141 = scmp.ne.s32.totalorder %s124, %s140
    %p142 = scmp.eq.s32.totalorder %s17, 0
    %p143 = por %p141, %p142
    %p144 = scmp.le.s32.totalorder 1, %s11
    %p145 = scmp.lt.s32.totalorder %s11, 3
    %p146 = pnand %p144, %p145
    %p147 = pneg %p146
    // Predicated region
    $region9: #{residual_block_forward.3} parent=5 // pred_check
      _
    $region10: #{residual_block_forward.3} parent=5 // pred_check_branch
      %149 = sbr.rel (%p146) target = $region12
    $region11: #{residual_block_forward.3} parent=5 // pred_region
      %s150 = ssub.s32 %s11, 1
      // Predicated region
      $region13: #{residual_block_forward.3} parent=11 // pred_check
        %p151 = pneg %p58
      $region14: #{residual_block_forward.3} parent=11 // pred_check_branch
        %153 = sbr.rel (%p151) target = $region16
      $region15: #{residual_block_forward.3} parent=11 // pred_region
        _
      $region16: #{residual_block_forward.3} parent=11 // pred_fallthru
        _
    $region12: #{residual_block_forward.3} parent=5 // pred_fallthru
      _
    %p154 = scmp.lt.s32.totalorder %s11, 2
    // Predicated region
    $region17: #{residual_block_forward.3} parent=5 // pred_check
      %p155 = pneg %p154
    $region18: #{residual_block_forward.3} parent=5 // pred_check_branch
      %157 = sbr.rel (%p155) target = $region20
    $region19: #{residual_block_forward.3} parent=5 // pred_region
      // Predicated region
      $region21: #{residual_block_forward.3} parent=19 // pred_check
        %p158 = pneg %p31
      $region22: #{residual_block_forward.3} parent=19 // pred_check_branch
        %160 = sbr.rel (%p158) target = $region24
      $region23: #{residual_block_forward.3} parent=19 // pred_region
        %s161 = smul.u32 32, %s11
        %p162 = scmp.lt.s32.totalorder %s161, 63
        %s163 = scalar_select %p162, %s161, 63
        %s164 = smul.addr %s163, 8
        %s165 = scalar_lea.vmem %s0, %s164
        %s166 = smul.u32 32, %s11
      $region24: #{residual_block_forward.3} parent=19 // pred_fallthru
        _
    $region20: #{residual_block_forward.3} parent=5 // pred_fallthru
      _
    %p167 = scmp.le.s32.totalorder 1, %s11
    %p168 = scmp.lt.s32.totalorder %s11, 3
    %p169 = pnand %p167, %p168
    %p170 = pneg %p169
    // Predicated region
    $region25: #{residual_block_forward.3} parent=5 // pred_check
      _
    $region26: #{residual_block_forward.3} parent=5 // pred_check_branch
      %172 = sbr.rel (%p169) target = $region28
    $region27: #{residual_block_forward.3} parent=5 // pred_region
      %s173 = ssub.s32 %s11, 1
      %s174 = smul.u32 32, %s16
      %p175 = scmp.lt.s32.totalorder %s174, 63
      %s176 = scalar_select %p175, %s174, 63
      %s177 = smul.addr %s176, 8
      %s178 = scalar_lea.vmem %s0, %s177
      %p179 = pneg %p37
      %p180 = pneg %p34
      %p181 = pneg %p58
      %p182 = pneg %p55
      %p183 = pneg %p84
      %p184 = pneg %p81
      %s185 = smul.u32 32, %s16
      %p186 = scmp.lt.s32.totalorder %s185, 63
      %s187 = scalar_select %p186, %s185, 63
      %s188 = smul.addr %s187, 4
      %s189 = scalar_lea.vmem %s2, %s188
      %p190 = pneg %p110
      %p191 = pneg %p107
      %p192 = scmp.lt.s32.totalorder %s16, 1
      %s193 = scalar_select %p192, %s16, 1
      %s194 = smul.addr %s193, 8
      %s195 = scalar_lea.vmem %s3, %s194
      %p196 = pneg %p136
      %p197 = pneg %p133
      %p198 = scmp.lt.s32.totalorder %s16, 1
      %s199 = scalar_select %p198, %s16, 1
      %s200 = smul.addr %s199, 8
      %s201 = scalar_lea.vmem %s4, %s200
      %s202 = smul.u32 32, %s16
      %p203 = scmp.lt.s32.totalorder %s202, 63
      %s204 = scalar_select %p203, %s202, 63
      %s205 = smul.addr %s204, 8
      %s206 = scalar_lea.vmem %s0, %s205
      %s207 = smul.u32 32, %s16
      %s208 = smul.u32 32, %s16
      %p209 = scmp.lt.s32.totalorder %s208, 63
      %s210 = scalar_select %p209, %s208, 63
      %s211 = smul.addr %s210, 4
      %s212 = scalar_lea.vmem %s2, %s211
      %s213 = smul.u32 32, %s16
      %p214 = scmp.lt.s32.totalorder %s16, 1
      %s215 = scalar_select %p214, %s16, 1
      %s216 = smul.addr %s215, 8
      %s217 = scalar_lea.vmem %s3, %s216
      %p218 = scmp.lt.s32.totalorder %s16, 1
      %s219 = scalar_select %p218, %s16, 1
      %s220 = smul.addr %s219, 8
      %s221 = scalar_lea.vmem %s4, %s220
      %v223 = vld [vmem:[%s206] sm:$0xff]
      %v224 = vld [vmem:[%s206 + $0x8] sm:$0xff]
      %v225 = vld [vmem:[%s206 + $0x10] sm:$0xff]
      %v226 = vld [vmem:[%s206 + $0x18] sm:$0xff]
      %v227 = vld [vmem:[%s206 + $0x20] sm:$0xff]
      %v228 = vld [vmem:[%s206 + $0x28] sm:$0xff]
      %v229 = vld [vmem:[%s206 + $0x30] sm:$0xff]
      %v230 = vld [vmem:[%s206 + $0x38] sm:$0xff]
      %v231 = vld [vmem:[%s206 + $0x40] sm:$0xff]
      %v232 = vld [vmem:[%s206 + $0x48] sm:$0xff]
      %v233 = vld [vmem:[%s206 + $0x50] sm:$0xff]
      %v234 = vld [vmem:[%s206 + $0x58] sm:$0xff]
      %v235 = vld [vmem:[%s206 + $0x60] sm:$0xff]
      %v236 = vld [vmem:[%s206 + $0x68] sm:$0xff]
      %v237 = vld [vmem:[%s206 + $0x70] sm:$0xff]
      %v238 = vld [vmem:[%s206 + $0x78] sm:$0xff]
      %v239 = vld [vmem:[%s206 + $0x80] sm:$0xff]
      %v240 = vld [vmem:[%s206 + $0x88] sm:$0xff]
      %v241 = vld [vmem:[%s206 + $0x90] sm:$0xff]
      %v242 = vld [vmem:[%s206 + $0x98] sm:$0xff]
      %v243 = vld [vmem:[%s206 + $0xa0] sm:$0xff]
      %v244 = vld [vmem:[%s206 + $0xa8] sm:$0xff]
      %v245 = vld [vmem:[%s206 + $0xb0] sm:$0xff]
      %v246 = vld [vmem:[%s206 + $0xb8] sm:$0xff]
      %v247 = vld [vmem:[%s206 + $0xc0] sm:$0xff]
      %v248 = vld [vmem:[%s206 + $0xc8] sm:$0xff]
      %v249 = vld [vmem:[%s206 + $0xd0] sm:$0xff]
      %v250 = vld [vmem:[%s206 + $0xd8] sm:$0xff]
      %v251 = vld [vmem:[%s206 + $0xe0] sm:$0xff]
      %v252 = vld [vmem:[%s206 + $0xe8] sm:$0xff]
      %v253 = vld [vmem:[%s206 + $0xf0] sm:$0xff]
      %v254 = vld [vmem:[%s206 + $0xf8] sm:$0xff]
      %v255 = vpack.c.bf16 %v224, %v223
      %v256 = vpack.c.bf16 %v226, %v225
      %v257 = vpack.c.bf16 %v228, %v227
      %v258 = vpack.c.bf16 %v230, %v229
      %v259 = vpack.c.bf16 %v232, %v231
      %v260 = vpack.c.bf16 %v234, %v233
      %v261 = vpack.c.bf16 %v236, %v235
      %v262 = vpack.c.bf16 %v238, %v237
      %v263 = vpack.c.bf16 %v240, %v239
      %v264 = vpack.c.bf16 %v242, %v241
      %v265 = vpack.c.bf16 %v244, %v243
      %v266 = vpack.c.bf16 %v246, %v245
      %v267 = vpack.c.bf16 %v248, %v247
      %v268 = vpack.c.bf16 %v250, %v249
      %v269 = vpack.c.bf16 %v252, %v251
      %v270 = vpack.c.bf16 %v254, %v253
      %v271 = vld [vmem:[%s1] sm:$0x3]
      %vm272 = vcmask 31744
      %v274 = vsel %vm272, %v255, 0
      %v277 = vsel %vm272, %v256, 0
      %v280 = vsel %vm272, %v257, 0
      %v283 = vsel %vm272, %v258, 0
      %v286 = vsel %vm272, %v259, 0
      %v289 = vsel %vm272, %v260, 0
      %v292 = vsel %vm272, %v261, 0
      %v295 = vsel %vm272, %v262, 0
      %v298 = vsel %vm272, %v263, 0
      %v301 = vsel %vm272, %v264, 0
      %v304 = vsel %vm272, %v265, 0
      %v307 = vsel %vm272, %v266, 0
      %v310 = vsel %vm272, %v267, 0
      %v313 = vsel %vm272, %v268, 0
      %v316 = vsel %vm272, %v269, 0
      %v319 = vsel %vm272, %v270, 0
      %vm321 = vcmask 1041408
      %v323 = vsel %vm321, %v271, 0
      %325 = vmatprep.subr.bf16.mxu0 0
      %326 = vmatpush1.bf16.msra.mxu0 0
      %327 = vmatprep.subr.bf16.mxu0 0
      %328 = vmatpush1.bf16.msra.mxu0 0
      %329 = vmatprep.subr.bf16.mxu0 0
      %330 = vmatpush1.bf16.msra.mxu0 0
      %331 = vmatprep.subr.bf16.mxu0 0
      %332 = vmatpush1.bf16.msra.mxu0 0
      %333 = vmatprep.subr.bf16.mxu0 0
      %334 = vmatpush1.bf16.msra.mxu0 0
      %335 = vmatprep.subr.bf16.mxu0 0
      %336 = vmatpush1.bf16.msra.mxu0 0
      %337 = vmatprep.subr.bf16.mxu0 0
      %338 = vmatpush1.bf16.msra.mxu0 0
      %339 = vmatprep.subr.bf16.mxu0 0
      %340 = vmatpush1.bf16.msra.mxu0 %v323
      %341 = vmatprep.subr.bf16.mxu0 0
      %342 = vmatpush2.bf16.msra.mxu0 0
      %343 = vmatprep.subr.bf16.mxu0 0
      %344 = vmatpush2.bf16.msra.mxu0 0
      %345 = vmatprep.subr.bf16.mxu0 0
      %346 = vmatpush2.bf16.msra.mxu0 0
      %347 = vmatprep.subr.bf16.mxu0 0
      %348 = vmatpush2.bf16.msra.mxu0 0
      %349 = vmatprep.subr.bf16.mxu0 0
      %350 = vmatpush2.bf16.msra.mxu0 0
      %351 = vmatprep.subr.bf16.mxu0 0
      %352 = vmatpush2.bf16.msra.mxu0 0
      %353 = vmatprep.subr.bf16.mxu0 0
      %354 = vmatpush2.bf16.msra.mxu0 0
      %355 = vmatprep.subr.bf16.mxu0 0
      %356 = vmatpush2.bf16.msra.mxu0 0
      %357 = vmatprep.mubr.bf16.mxu0 0
      %358 = vmatmul.mubr.bf16.gmra.mxu0 %v274
      %v359 = vpop.f32.mrf.mxu0
      %v360 = vadd.f32 0.0, %v359
      %v361 = vpop.f32.mrf.mxu0
      %v362 = vpop.f32.mrf.mxu0
      %v363 = vadd.f32 0.0, %v362
      %v364 = vpop.f32.mrf.mxu0
      %365 = vmatprep.mubr.bf16.mxu0 0
      %366 = vmatmul.mubr.bf16.gmra.mxu0 %v277
      %v367 = vpop.f32.mrf.mxu0
      %v368 = vadd.f32 0.0, %v367
      %v369 = vpop.f32.mrf.mxu0
      %v370 = vpop.f32.mrf.mxu0
      %v371 = vadd.f32 0.0, %v370
      %v372 = vpop.f32.mrf.mxu0
      %373 = vmatprep.mubr.bf16.mxu0 0
      %374 = vmatmul.mubr.bf16.gmra.mxu0 %v280
      %v375 = vpop.f32.mrf.mxu0
      %v376 = vadd.f32 0.0, %v375
      %v377 = vpop.f32.mrf.mxu0
      %v378 = vpop.f32.mrf.mxu0
      %v379 = vadd.f32 0.0, %v378
      %v380 = vpop.f32.mrf.mxu0
      %381 = vmatprep.mubr.bf16.mxu0 0
      %382 = vmatmul.mubr.bf16.gmra.mxu0 %v283
      %v383 = vpop.f32.mrf.mxu0
      %v384 = vadd.f32 0.0, %v383
      %v385 = vpop.f32.mrf.mxu0
      %v386 = vpop.f32.mrf.mxu0
      %v387 = vadd.f32 0.0, %v386
      %v388 = vpop.f32.mrf.mxu0
      %389 = vmatprep.mubr.bf16.mxu0 0
      %390 = vmatmul.mubr.bf16.gmra.mxu0 %v286
      %v391 = vpop.f32.mrf.mxu0
      %v392 = vadd.f32 0.0, %v391
      %v393 = vpop.f32.mrf.mxu0
      %v394 = vpop.f32.mrf.mxu0
      %v395 = vadd.f32 0.0, %v394
      %v396 = vpop.f32.mrf.mxu0
      %397 = vmatprep.mubr.bf16.mxu0 0
      %398 = vmatmul.mubr.bf16.gmra.mxu0 %v289
      %v399 = vpop.f32.mrf.mxu0
      %v400 = vadd.f32 0.0, %v399
      %v401 = vpop.f32.mrf.mxu0
      %v402 = vpop.f32.mrf.mxu0
      %v403 = vadd.f32 0.0, %v402
      %v404 = vpop.f32.mrf.mxu0
      %405 = vmatprep.mubr.bf16.mxu0 0
      %406 = vmatmul.mubr.bf16.gmra.mxu0 %v292
      %v407 = vpop.f32.mrf.mxu0
      %v408 = vadd.f32 0.0, %v407
      %v409 = vpop.f32.mrf.mxu0
      %v410 = vpop.f32.mrf.mxu0
      %v411 = vadd.f32 0.0, %v410
      %v412 = vpop.f32.mrf.mxu0
      %413 = vmatprep.mubr.bf16.mxu0 0
      %414 = vmatmul.mubr.bf16.gmra.mxu0 %v295
      %v415 = vpop.f32.mrf.mxu0
      %v416 = vadd.f32 0.0, %v415
      %v417 = vpop.f32.mrf.mxu0
      %v418 = vpop.f32.mrf.mxu0
      %v419 = vadd.f32 0.0, %v418
      %v420 = vpop.f32.mrf.mxu0
      %421 = vmatprep.mubr.bf16.mxu0 0
      %422 = vmatmul.mubr.bf16.gmra.mxu0 %v298
      %v423 = vpop.f32.mrf.mxu0
      %v424 = vadd.f32 0.0, %v423
      %v425 = vpop.f32.mrf.mxu0
      %v426 = vpop.f32.mrf.mxu0
      %v427 = vadd.f32 0.0, %v426
      %v428 = vpop.f32.mrf.mxu0
      %429 = vmatprep.mubr.bf16.mxu0 0
      %430 = vmatmul.mubr.bf16.gmra.mxu0 %v301
      %v431 = vpop.f32.mrf.mxu0
      %v432 = vadd.f32 0.0, %v431
      %v433 = vpop.f32.mrf.mxu0
      %v434 = vpop.f32.mrf.mxu0
      %v435 = vadd.f32 0.0, %v434
      %v436 = vpop.f32.mrf.mxu0
      %437 = vmatprep.mubr.bf16.mxu0 0
      %438 = vmatmul.mubr.bf16.gmra.mxu0 %v304
      %v439 = vpop.f32.mrf.mxu0
      %v440 = vadd.f32 0.0, %v439
      %v441 = vpop.f32.mrf.mxu0
      %v442 = vpop.f32.mrf.mxu0
      %v443 = vadd.f32 0.0, %v442
      %v444 = vpop.f32.mrf.mxu0
      %445 = vmatprep.mubr.bf16.mxu0 0
      %446 = vmatmul.mubr.bf16.gmra.mxu0 %v307
      %v447 = vpop.f32.mrf.mxu0
      %v448 = vadd.f32 0.0, %v447
      %v449 = vpop.f32.mrf.mxu0
      %v450 = vpop.f32.mrf.mxu0
      %v451 = vadd.f32 0.0, %v450
      %v452 = vpop.f32.mrf.mxu0
      %453 = vmatprep.mubr.bf16.mxu0 0
      %454 = vmatmul.mubr.bf16.gmra.mxu0 %v310
      %v455 = vpop.f32.mrf.mxu0
      %v456 = vadd.f32 0.0, %v455
      %v457 = vpop.f32.mrf.mxu0
      %v458 = vpop.f32.mrf.mxu0
      %v459 = vadd.f32 0.0, %v458
      %v460 = vpop.f32.mrf.mxu0
      %461 = vmatprep.mubr.bf16.mxu0 0
      %462 = vmatmul.mubr.bf16.gmra.mxu0 %v313
      %v463 = vpop.f32.mrf.mxu0
      %v464 = vadd.f32 0.0, %v463
      %v465 = vpop.f32.mrf.mxu0
      %v466 = vpop.f32.mrf.mxu0
      %v467 = vadd.f32 0.0, %v466
      %v468 = vpop.f32.mrf.mxu0
      %469 = vmatprep.mubr.bf16.mxu0 0
      %470 = vmatmul.mubr.bf16.gmra.mxu0 %v316
      %v471 = vpop.f32.mrf.mxu0
      %v472 = vadd.f32 0.0, %v471
      %v473 = vpop.f32.mrf.mxu0
      %v474 = vpop.f32.mrf.mxu0
      %v475 = vadd.f32 0.0, %v474
      %v476 = vpop.f32.mrf.mxu0
      %477 = vmatprep.mubr.bf16.mxu0 0
      %478 = vmatmul.mubr.bf16.gmra.mxu0 %v319
      %v479 = vpop.f32.mrf.mxu0
      %v480 = vadd.f32 0.0, %v479
      %v481 = vpop.f32.mrf.mxu0
      %v482 = vpop.f32.mrf.mxu0
      %v483 = vadd.f32 0.0, %v482
      %v484 = vpop.f32.mrf.mxu0
      %485 = vdwg.mxu0
      %v486 = vpack.c.bf16 %v363, %v360
      %v487 = vpack.c.bf16 %v371, %v368
      %v488 = vpack.c.bf16 %v379, %v376
      %v489 = vpack.c.bf16 %v387, %v384
      %v490 = vpack.c.bf16 %v395, %v392
      %v491 = vpack.c.bf16 %v403, %v400
      %v492 = vpack.c.bf16 %v411, %v408
      %v493 = vpack.c.bf16 %v419, %v416
      %v494 = vpack.c.bf16 %v427, %v424
      %v495 = vpack.c.bf16 %v435, %v432
      %v496 = vpack.c.bf16 %v443, %v440
      %v497 = vpack.c.bf16 %v451, %v448
      %v498 = vpack.c.bf16 %v459, %v456
      %v499 = vpack.c.bf16 %v467, %v464
      %v500 = vpack.c.bf16 %v475, %v472
      %v501 = vpack.c.bf16 %v483, %v480
      %v518 = vunpack.c.l.b16 %v486
      %v519 = vunpack.c.h.b16 %v486
      %v520 = vunpack.c.l.b16 %v487
      %v521 = vunpack.c.h.b16 %v487
      %v522 = vunpack.c.l.b16 %v488
      %v523 = vunpack.c.h.b16 %v488
      %v524 = vunpack.c.l.b16 %v489
      %v525 = vunpack.c.h.b16 %v489
      %v526 = vunpack.c.l.b16 %v490
      %v527 = vunpack.c.h.b16 %v490
      %v528 = vunpack.c.l.b16 %v491
      %v529 = vunpack.c.h.b16 %v491
      %v530 = vunpack.c.l.b16 %v492
      %v531 = vunpack.c.h.b16 %v492
      %v532 = vunpack.c.l.b16 %v493
      %v533 = vunpack.c.h.b16 %v493
      %v534 = vunpack.c.l.b16 %v494
      %v535 = vunpack.c.h.b16 %v494
      %v536 = vunpack.c.l.b16 %v495
      %v537 = vunpack.c.h.b16 %v495
      %v538 = vunpack.c.l.b16 %v496
      %v539 = vunpack.c.h.b16 %v496
      %v540 = vunpack.c.l.b16 %v497
      %v541 = vunpack.c.h.b16 %v497
      %v542 = vunpack.c.l.b16 %v498
      %v543 = vunpack.c.h.b16 %v498
      %v544 = vunpack.c.l.b16 %v499
      %v545 = vunpack.c.h.b16 %v499
      %v546 = vunpack.c.l.b16 %v500
      %v547 = vunpack.c.h.b16 %v500
      %v548 = vunpack.c.l.b16 %v501
      %v549 = vunpack.c.h.b16 %v501
      %v550 = vpack.c.b16 %v518, %v518
      %v551 = vpack.c.b16 %v519, %v519
      %v552 = vpack.c.b16 %v520, %v520
      %v553 = vpack.c.b16 %v521, %v521
      %v554 = vpack.c.b16 %v522, %v522
      %v555 = vpack.c.b16 %v523, %v523
      %v556 = vpack.c.b16 %v524, %v524
      %v557 = vpack.c.b16 %v525, %v525
      %v558 = vpack.c.b16 %v526, %v526
      %v559 = vpack.c.b16 %v527, %v527
      %v560 = vpack.c.b16 %v528, %v528
      %v561 = vpack.c.b16 %v529, %v529
      %v562 = vpack.c.b16 %v530, %v530
      %v563 = vpack.c.b16 %v531, %v531
      %v564 = vpack.c.b16 %v532, %v532
      %v565 = vpack.c.b16 %v533, %v533
      %v566 = vpack.c.b16 %v534, %v534
      %v567 = vpack.c.b16 %v535, %v535
      %v568 = vpack.c.b16 %v536, %v536
      %v569 = vpack.c.b16 %v537, %v537
      %v570 = vpack.c.b16 %v538, %v538
      %v571 = vpack.c.b16 %v539, %v539
      %v572 = vpack.c.b16 %v540, %v540
      %v573 = vpack.c.b16 %v541, %v541
      %v574 = vpack.c.b16 %v542, %v542
      %v575 = vpack.c.b16 %v543, %v543
      %v576 = vpack.c.b16 %v544, %v544
      %v577 = vpack.c.b16 %v545, %v545
      %v578 = vpack.c.b16 %v546, %v546
      %v579 = vpack.c.b16 %v547, %v547
      %v580 = vpack.c.b16 %v548, %v548
      %v581 = vpack.c.b16 %v549, %v549
      %vm614 = vcmask 11264
      %615 = vst.msk [vmem:[%s212] sm:$0xf] %vm614, %v550
      %616 = vst.msk [vmem:[%s212 + $0x4] sm:$0xf] %vm614, %v551
      %617 = vst.msk [vmem:[%s212 + $0x8] sm:$0xf] %vm614, %v552
      %618 = vst.msk [vmem:[%s212 + $0xc] sm:$0xf] %vm614, %v553
      %619 = vst.msk [vmem:[%s212 + $0x10] sm:$0xf] %vm614, %v554
      %620 = vst.msk [vmem:[%s212 + $0x14] sm:$0xf] %vm614, %v555
      %621 = vst.msk [vmem:[%s212 + $0x18] sm:$0xf] %vm614, %v556
      %622 = vst.msk [vmem:[%s212 + $0x1c] sm:$0xf] %vm614, %v557
      %623 = vst.msk [vmem:[%s212 + $0x20] sm:$0xf] %vm614, %v558
      %624 = vst.msk [vmem:[%s212 + $0x24] sm:$0xf] %vm614, %v559
      %625 = vst.msk [vmem:[%s212 + $0x28] sm:$0xf] %vm614, %v560
      %626 = vst.msk [vmem:[%s212 + $0x2c] sm:$0xf] %vm614, %v561
      %627 = vst.msk [vmem:[%s212 + $0x30] sm:$0xf] %vm614, %v562
      %628 = vst.msk [vmem:[%s212 + $0x34] sm:$0xf] %vm614, %v563
      %629 = vst.msk [vmem:[%s212 + $0x38] sm:$0xf] %vm614, %v564
      %630 = vst.msk [vmem:[%s212 + $0x3c] sm:$0xf] %vm614, %v565
      %631 = vst.msk [vmem:[%s212 + $0x40] sm:$0xf] %vm614, %v566
      %632 = vst.msk [vmem:[%s212 + $0x44] sm:$0xf] %vm614, %v567
      %633 = vst.msk [vmem:[%s212 + $0x48] sm:$0xf] %vm614, %v568
      %634 = vst.msk [vmem:[%s212 + $0x4c] sm:$0xf] %vm614, %v569
      %635 = vst.msk [vmem:[%s212 + $0x50] sm:$0xf] %vm614, %v570
      %636 = vst.msk [vmem:[%s212 + $0x54] sm:$0xf] %vm614, %v571
      %637 = vst.msk [vmem:[%s212 + $0x58] sm:$0xf] %vm614, %v572
      %638 = vst.msk [vmem:[%s212 + $0x5c] sm:$0xf] %vm614, %v573
      %639 = vst.msk [vmem:[%s212 + $0x60] sm:$0xf] %vm614, %v574
      %640 = vst.msk [vmem:[%s212 + $0x64] sm:$0xf] %vm614, %v575
      %641 = vst.msk [vmem:[%s212 + $0x68] sm:$0xf] %vm614, %v576
      %642 = vst.msk [vmem:[%s212 + $0x6c] sm:$0xf] %vm614, %v577
      %643 = vst.msk [vmem:[%s212 + $0x70] sm:$0xf] %vm614, %v578
      %644 = vst.msk [vmem:[%s212 + $0x74] sm:$0xf] %vm614, %v579
      %645 = vst.msk [vmem:[%s212 + $0x78] sm:$0xf] %vm614, %v580
      %646 = vst.msk [vmem:[%s212 + $0x7c] sm:$0xf] %vm614, %v581
      %vm647 = vcmask 15360
      %v648 = vsel %vm647, %v360, 0.0
      %v649 = vsel %vm647, %v363, 0.0
      %v650 = vadd.f32 %v648, %v649
      %v651 = vsel %vm647, %v368, 0.0
      %v652 = vadd.f32 %v650, %v651
      %v653 = vsel %vm647, %v371, 0.0
      %v654 = vadd.f32 %v652, %v653
      %v655 = vsel %vm647, %v376, 0.0
      %v656 = vadd.f32 %v654, %v655
      %v657 = vsel %vm647, %v379, 0.0
      %v658 = vadd.f32 %v656, %v657
      %v659 = vsel %vm647, %v384, 0.0
      %v660 = vadd.f32 %v658, %v659
      %v661 = vsel %vm647, %v387, 0.0
      %v662 = vadd.f32 %v660, %v661
      %v663 = vsel %vm647, %v392, 0.0
      %v664 = vadd.f32 %v662, %v663
      %v665 = vsel %vm647, %v395, 0.0
      %v666 = vadd.f32 %v664, %v665
      %v667 = vsel %vm647, %v400, 0.0
      %v668 = vadd.f32 %v666, %v667
      %v669 = vsel %vm647, %v403, 0.0
      %v670 = vadd.f32 %v668, %v669
      %v671 = vsel %vm647, %v408, 0.0
      %v672 = vadd.f32 %v670, %v671
      %v673 = vsel %vm647, %v411, 0.0
      %v674 = vadd.f32 %v672, %v673
      %v675 = vsel %vm647, %v416, 0.0
      %v676 = vadd.f32 %v674, %v675
      %v677 = vsel %vm647, %v419, 0.0
      %v678 = vadd.f32 %v676, %v677
      %v679 = vsel %vm647, %v424, 0.0
      %v680 = vadd.f32 %v678, %v679
      %v681 = vsel %vm647, %v427, 0.0
      %v682 = vadd.f32 %v680, %v681
      %v683 = vsel %vm647, %v432, 0.0
      %v684 = vadd.f32 %v682, %v683
      %v685 = vsel %vm647, %v435, 0.0
      %v686 = vadd.f32 %v684, %v685
      %v687 = vsel %vm647, %v440, 0.0
      %v688 = vadd.f32 %v686, %v687
      %v689 = vsel %vm647, %v443, 0.0
      %v690 = vadd.f32 %v688, %v689
      %v691 = vsel %vm647, %v448, 0.0
      %v692 = vadd.f32 %v690, %v691
      %v693 = vsel %vm647, %v451, 0.0
      %v694 = vadd.f32 %v692, %v693
      %v695 = vsel %vm647, %v456, 0.0
      %v696 = vadd.f32 %v694, %v695
      %v697 = vsel %vm647, %v459, 0.0
      %v698 = vadd.f32 %v696, %v697
      %v699 = vsel %vm647, %v464, 0.0
      %v700 = vadd.f32 %v698, %v699
      %v701 = vsel %vm647, %v467, 0.0
      %v702 = vadd.f32 %v700, %v701
      %v703 = vsel %vm647, %v472, 0.0
      %v704 = vadd.f32 %v702, %v703
      %v705 = vsel %vm647, %v475, 0.0
      %v706 = vadd.f32 %v704, %v705
      %v707 = vsel %vm647, %v480, 0.0
      %v708 = vadd.f32 %v706, %v707
      %v709 = vsel %vm647, %v483, 0.0
      %v710 = vadd.f32 %v708, %v709
      %v711 = vrot.slane %v710, 4
      %v712 = vadd.f32 %v710, %v711
      %v713 = vrot.slane %v712, 2
      %v714 = vadd.f32 %v712, %v713
      %v715 = vrot.slane %v714, 1
      %v716 = vadd.f32 %v714, %v715
      %v717 = vmul.f32 %v360, %v360
      %v718 = vmul.f32 %v363, %v363
      %v719 = vmul.f32 %v368, %v368
      %v720 = vmul.f32 %v371, %v371
      %v721 = vmul.f32 %v376, %v376
      %v722 = vmul.f32 %v379, %v379
      %v723 = vmul.f32 %v384, %v384
      %v724 = vmul.f32 %v387, %v387
      %v725 = vmul.f32 %v392, %v392
      %v726 = vmul.f32 %v395, %v395
      %v727 = vmul.f32 %v400, %v400
      %v728 = vmul.f32 %v403, %v403
      %v729 = vmul.f32 %v408, %v408
      %v730 = vmul.f32 %v411, %v411
      %v731 = vmul.f32 %v416, %v416
      %v732 = vmul.f32 %v419, %v419
      %v733 = vmul.f32 %v424, %v424
      %v734 = vmul.f32 %v427, %v427
      %v735 = vmul.f32 %v432, %v432
      %v736 = vmul.f32 %v435, %v435
      %v737 = vmul.f32 %v440, %v440
      %v738 = vmul.f32 %v443, %v443
      %v739 = vmul.f32 %v448, %v448
      %v740 = vmul.f32 %v451, %v451
      %v741 = vmul.f32 %v456, %v456
      %v742 = vmul.f32 %v459, %v459
      %v743 = vmul.f32 %v464, %v464
      %v744 = vmul.f32 %v467, %v467
      %v745 = vmul.f32 %v472, %v472
      %v746 = vmul.f32 %v475, %v475
      %v747 = vmul.f32 %v480, %v480
      %v748 = vmul.f32 %v483, %v483
      %v749 = vsel %vm647, %v717, 0.0
      %v750 = vsel %vm647, %v718, 0.0
      %v751 = vadd.f32 %v749, %v750
      %v752 = vsel %vm647, %v719, 0.0
      %v753 = vadd.f32 %v751, %v752
      %v754 = vsel %vm647, %v720, 0.0
      %v755 = vadd.f32 %v753, %v754
      %v756 = vsel %vm647, %v721, 0.0
      %v757 = vadd.f32 %v755, %v756
      %v758 = vsel %vm647, %v722, 0.0
      %v759 = vadd.f32 %v757, %v758
      %v760 = vsel %vm647, %v723, 0.0
      %v761 = vadd.f32 %v759, %v760
      %v762 = vsel %vm647, %v724, 0.0
      %v763 = vadd.f32 %v761, %v762
      %v764 = vsel %vm647, %v725, 0.0
      %v765 = vadd.f32 %v763, %v764
      %v766 = vsel %vm647, %v726, 0.0
      %v767 = vadd.f32 %v765, %v766
      %v768 = vsel %vm647, %v727, 0.0
      %v769 = vadd.f32 %v767, %v768
      %v770 = vsel %vm647, %v728, 0.0
      %v771 = vadd.f32 %v769, %v770
      %v772 = vsel %vm647, %v729, 0.0
      %v773 = vadd.f32 %v771, %v772
      %v774 = vsel %vm647, %v730, 0.0
      %v775 = vadd.f32 %v773, %v774
      %v776 = vsel %vm647, %v731, 0.0
      %v777 = vadd.f32 %v775, %v776
      %v778 = vsel %vm647, %v732, 0.0
      %v779 = vadd.f32 %v777, %v778
      %v780 = vsel %vm647, %v733, 0.0
      %v781 = vadd.f32 %v779, %v780
      %v782 = vsel %vm647, %v734, 0.0
      %v783 = vadd.f32 %v781, %v782
      %v784 = vsel %vm647, %v735, 0.0
      %v785 = vadd.f32 %v783, %v784
      %v786 = vsel %vm647, %v736, 0.0
      %v787 = vadd.f32 %v785, %v786
      %v788 = vsel %vm647, %v737, 0.0
      %v789 = vadd.f32 %v787, %v788
      %v790 = vsel %vm647, %v738, 0.0
      %v791 = vadd.f32 %v789, %v790
      %v792 = vsel %vm647, %v739, 0.0
      %v793 = vadd.f32 %v791, %v792
      %v794 = vsel %vm647, %v740, 0.0
      %v795 = vadd.f32 %v793, %v794
      %v796 = vsel %vm647, %v741, 0.0
      %v797 = vadd.f32 %v795, %v796
      %v798 = vsel %vm647, %v742, 0.0
      %v799 = vadd.f32 %v797, %v798
      %v800 = vsel %vm647, %v743, 0.0
      %v801 = vadd.f32 %v799, %v800
      %v802 = vsel %vm647, %v744, 0.0
      %v803 = vadd.f32 %v801, %v802
      %v804 = vsel %vm647, %v745, 0.0
      %v805 = vadd.f32 %v803, %v804
      %v806 = vsel %vm647, %v746, 0.0
      %v807 = vadd.f32 %v805, %v806
      %v808 = vsel %vm647, %v747, 0.0
      %v809 = vadd.f32 %v807, %v808
      %v810 = vsel %vm647, %v748, 0.0
      %v811 = vadd.f32 %v809, %v810
      %v812 = vrot.slane %v811, 4
      %v813 = vadd.f32 %v811, %v812
      %v814 = vrot.slane %v813, 2
      %v815 = vadd.f32 %v813, %v814
      %v816 = vrot.slane %v815, 1
      %v817 = vadd.f32 %v815, %v816
      %818 = vst.msk [vmem:[%s217] sm:$0xff] %vm647, %v716
      %819 = vst.msk [vmem:[%s221] sm:$0xff] %vm647, %v817
      %s820 = smul.u32 32, %s16
      %p821 = scmp.lt.s32.totalorder %s820, 63
      %s822 = scalar_select %p821, %s820, 63
      %s823 = smul.addr %s822, 4
      %s824 = scalar_lea.vmem %s2, %s823
      %p825 = scmp.lt.s32.totalorder %s16, 1
      %s826 = scalar_select %p825, %s16, 1
      %s827 = smul.addr %s826, 8
      %s828 = scalar_lea.vmem %s3, %s827
      %p829 = scmp.lt.s32.totalorder %s16, 1
      %s830 = scalar_select %p829, %s16, 1
      %s831 = smul.addr %s830, 8
      %s832 = scalar_lea.vmem %s4, %s831
      // Predicated region
      $region29: #{residual_block_forward.3} parent=27 // pred_check
        %p833 = pneg %p81
      $region30: #{residual_block_forward.3} parent=27 // pred_check_branch
        %835 = sbr.rel (%p833) target = $region32
      $region31: #{residual_block_forward.3} parent=27 // pred_region
        %s836 = smul.u32 32, %s16
      $region32: #{residual_block_forward.3} parent=27 // pred_fallthru
        _
      // Predicated region
      $region33: #{residual_block_forward.3} parent=27 // pred_check
        %p837 = pneg %p107
      $region34: #{residual_block_forward.3} parent=27 // pred_check_branch
        %839 = sbr.rel (%p837) target = $region36
      $region35: #{residual_block_forward.3} parent=27 // pred_region
        _
      $region36: #{residual_block_forward.3} parent=27 // pred_fallthru
        _
      // Predicated region
      $region37: #{residual_block_forward.3} parent=27 // pred_check
        %p840 = pneg %p133
      $region38: #{residual_block_forward.3} parent=27 // pred_check_branch
        %842 = sbr.rel (%p840) target = $region40
      $region39: #{residual_block_forward.3} parent=27 // pred_region
        _
      $region40: #{residual_block_forward.3} parent=27 // pred_fallthru
        _
    $region28: #{residual_block_forward.3} parent=5 // pred_fallthru
      _
    %p843 = scmp.le.s32.totalorder 2, %s11
    // Predicated region
    $region41: #{residual_block_forward.3} parent=5 // pred_check
      %p844 = pneg %p843
    $region42: #{residual_block_forward.3} parent=5 // pred_check_branch
      %846 = sbr.rel (%p844) target = $region44
    $region43: #{residual_block_forward.3} parent=5 // pred_region
      %s847 = ssub.s32 %s11, 2
      // Predicated region
      $region45: #{residual_block_forward.3} parent=43 // pred_check
        %p848 = pneg %p87
      $region46: #{residual_block_forward.3} parent=43 // pred_check_branch
        %850 = sbr.rel (%p848) target = $region48
      $region47: #{residual_block_forward.3} parent=43 // pred_region
        %s851 = smul.u32 32, %s17
        %p852 = scmp.lt.s32.totalorder %s851, 63
        %s853 = scalar_select %p852, %s851, 63
        %s854 = smul.addr %s853, 4
        %s855 = scalar_lea.vmem %s2, %s854
      $region48: #{residual_block_forward.3} parent=43 // pred_fallthru
        _
      // Predicated region
      $region49: #{residual_block_forward.3} parent=43 // pred_check
        %p856 = pneg %p113
      $region50: #{residual_block_forward.3} parent=43 // pred_check_branch
        %858 = sbr.rel (%p856) target = $region52
      $region51: #{residual_block_forward.3} parent=43 // pred_region
        %p859 = scmp.lt.s32.totalorder %s17, 1
        %s860 = scalar_select %p859, %s17, 1
        %s861 = smul.addr %s860, 8
        %s862 = scalar_lea.vmem %s3, %s861
      $region52: #{residual_block_forward.3} parent=43 // pred_fallthru
        _
      // Predicated region
      $region53: #{residual_block_forward.3} parent=43 // pred_check
        %p863 = pneg %p139
      $region54: #{residual_block_forward.3} parent=43 // pred_check_branch
        %865 = sbr.rel (%p863) target = $region56
      $region55: #{residual_block_forward.3} parent=43 // pred_region
        %p866 = scmp.lt.s32.totalorder %s17, 1
        %s867 = scalar_select %p866, %s17, 1
        %s868 = smul.addr %s867, 8
        %s869 = scalar_lea.vmem %s4, %s868
      $region56: #{residual_block_forward.3} parent=43 // pred_fallthru
        _
    $region44: #{residual_block_forward.3} parent=5 // pred_fallthru
      _
  $region6: #{residual_block_forward.3} parent=0 // loop_footer
    %s15 = sadd.s32 1, %s11
  $region7: #{residual_block_forward.3} parent=0 // loop_footer_branch
    %10 = sbr.rel target = $region3
  $region8: #{residual_block_forward.3} parent=0 // loop_exit
    _

// kernel: residual_block_forward.5
$region0: #{residual_block_forward.5}
  #allocation0 [shape = 'u32[]', space=smem, size = 0x4, offset = 0x4, fixed_abs, tag = 'smem constant byte address 0x4 - core index']
  #allocation1 [shape = 'u32[144,128]{1,0:T(1,128)}', space=vmem, size = 0x12000, scoped, tag = 'internal scratch']
  %s0 = inlined_call_operand.vmem [shape: bf16[16,128], index: 0, kind: input, shape index: {}]
  %s1 = inlined_call_operand.vmem [shape: f32[16,128], index: 1, kind: input, shape index: {}]
  %s2 = inlined_call_operand.vmem [shape: f32[1,128], index: 2, kind: input, shape index: {}]
  %s3 = inlined_call_operand.vmem [shape: f32[1,128], index: 3, kind: input, shape index: {}]
  %s4 = inlined_call_operand.vmem [shape: f32[16,128], index: 4, kind: output, shape index: {}]
  %s5 = sld [smem:[#allocation0]]
  $region49: #{residual_block_forward.5} parent=0
    _
  %s7 = ssub.s32 1, %s5
  %s8 = scalar_select 0, %s7, %s5
  loop: start=0, step=1, limit=4
  $region2: #{residual_block_forward.5} parent=0 // loop_pre_header
    _
  $region3: #{residual_block_forward.5} parent=0 // loop_header
    %s10 = sphi 0, %s14
    %p11 = scmp.ge.s32.totalorder %s10, 4
    %s20 = sphi 0, %s22
    %s23 = sphi 0, %s20
    %s24 = sphi 0, %s23
    %s40 = sphi 0, %s24
    %s46 = sphi 0, %s48
    %s49 = sphi 0, %s46
    %s50 = sphi 0, %s49
    %s66 = sphi 0, %s50
    %s70 = sphi 0, %s70
    %s72 = sphi 0, %s70
    %s73 = sphi 0, %s72
    %s87 = sphi 0, %s73
    %s91 = sphi 0, %s91
    %s93 = sphi 0, %s91
    %s94 = sphi 0, %s93
    %s108 = sphi 0, %s94
    %s114 = sphi 0, %s116
    %s117 = sphi 0, %s114
    %s118 = sphi 0, %s117
    %s134 = sphi 0, %s118
  $region4: #{residual_block_forward.5} parent=0 // loop_header_branch
    %13 = sbr.rel (%p11) target = $region8
  $region5: #{residual_block_forward.5} parent=0 // loop_body
    %s15 = ssub.s32 %s10, 1
    %s16 = ssub.s32 %s10, 2
    %s17 = sadd.s32 %s10, 1
    %s18 = ssub.s32 %s10, %s17
    %p19 = scmp.eq.s32.totalorder %s18, 0
    %s21 = sadd.s32 %s20, 1
    %s22 = scalar_select %p19, %s20, %s21
    %p25 = pneg %p19
    %p26 = scmp.eq.s32.totalorder %s10, 1
    %p27 = por %p25, %p26
    %p28 = scmp.ne.s32.totalorder %s20, %s23
    %p29 = scmp.eq.s32.totalorder %s10, 0
    %p30 = por %p28, %p29
    %p31 = scmp.ne.s32.totalorder %s20, %s23
    %p32 = scmp.eq.s32.totalorder %s15, 1
    %p33 = por %p31, %p32
    %p34 = scmp.ne.s32.totalorder %s23, %s24
    %p35 = scmp.eq.s32.totalorder %s15, 0
    %p36 = por %p34, %p35
    %p37 = scmp.ne.s32.totalorder %s23, %s24
    %p38 = scmp.eq.s32.totalorder %s16, 1
    %p39 = por %p37, %p38
    %p41 = scmp.ne.s32.totalorder %s24, %s40
    %p42 = scmp.eq.s32.totalorder %s16, 0
    %p43 = por %p41, %p42
    %s44 = ssub.s32 %s10, %s17
    %p45 = scmp.eq.s32.totalorder %s44, 0
    %s47 = sadd.s32 %s46, 1
    %s48 = scalar_select %p45, %s46, %s47
    %p51 = pneg %p45
    %p52 = scmp.eq.s32.totalorder %s10, 1
    %p53 = por %p51, %p52
    %p54 = scmp.ne.s32.totalorder %s46, %s49
    %p55 = scmp.eq.s32.totalorder %s10, 0
    %p56 = por %p54, %p55
    %p57 = scmp.ne.s32.totalorder %s46, %s49
    %p58 = scmp.eq.s32.totalorder %s15, 1
    %p59 = por %p57, %p58
    %p60 = scmp.ne.s32.totalorder %s49, %s50
    %p61 = scmp.eq.s32.totalorder %s15, 0
    %p62 = por %p60, %p61
    %p63 = scmp.ne.s32.totalorder %s49, %s50
    %p64 = scmp.eq.s32.totalorder %s16, 1
    %p65 = por %p63, %p64
    %p67 = scmp.ne.s32.totalorder %s50, %s66
    %p68 = scmp.eq.s32.totalorder %s16, 0
    %p69 = por %p67, %p68
    %s71 = sadd.s32 %s70, 1
    %p74 = scmp.eq.s32.totalorder %s10, 1
    %p75 = scmp.ne.s32.totalorder %s70, %s72
    %p76 = scmp.eq.s32.totalorder %s10, 0
    %p77 = por %p75, %p76
    %p78 = scmp.ne.s32.totalorder %s70, %s72
    %p79 = scmp.eq.s32.totalorder %s15, 1
    %p80 = por %p78, %p79
    %p81 = scmp.ne.s32.totalorder %s72, %s73
    %p82 = scmp.eq.s32.totalorder %s15, 0
    %p83 = por %p81, %p82
    %p84 = scmp.ne.s32.totalorder %s72, %s73
    %p85 = scmp.eq.s32.totalorder %s16, 1
    %p86 = por %p84, %p85
    %p88 = scmp.ne.s32.totalorder %s73, %s87
    %p89 = scmp.eq.s32.totalorder %s16, 0
    %p90 = por %p88, %p89
    %s92 = sadd.s32 %s91, 1
    %p95 = scmp.eq.s32.totalorder %s10, 1
    %p96 = scmp.ne.s32.totalorder %s91, %s93
    %p97 = scmp.eq.s32.totalorder %s10, 0
    %p98 = por %p96, %p97
    %p99 = scmp.ne.s32.totalorder %s91, %s93
    %p100 = scmp.eq.s32.totalorder %s15, 1
    %p101 = por %p99, %p100
    %p102 = scmp.ne.s32.totalorder %s93, %s94
    %p103 = scmp.eq.s32.totalorder %s15, 0
    %p104 = por %p102, %p103
    %p105 = scmp.ne.s32.totalorder %s93, %s94
    %p106 = scmp.eq.s32.totalorder %s16, 1
    %p107 = por %p105, %p106
    %p109 = scmp.ne.s32.totalorder %s94, %s108
    %p110 = scmp.eq.s32.totalorder %s16, 0
    %p111 = por %p109, %p110
    %s112 = ssub.s32 %s10, %s17
    %p113 = scmp.eq.s32.totalorder %s112, 0
    %s115 = sadd.s32 %s114, 1
    %s116 = scalar_select %p113, %s114, %s115
    %p119 = pneg %p113
    %p120 = scmp.eq.s32.totalorder %s10, 1
    %p121 = por %p119, %p120
    %p122 = scmp.ne.s32.totalorder %s114, %s117
    %p123 = scmp.eq.s32.totalorder %s10, 0
    %p124 = por %p122, %p123
    %p125 = scmp.ne.s32.totalorder %s114, %s117
    %p126 = scmp.eq.s32.totalorder %s15, 1
    %p127 = por %p125, %p126
    %p128 = scmp.ne.s32.totalorder %s117, %s118
    %p129 = scmp.eq.s32.totalorder %s15, 0
    %p130 = por %p128, %p129
    %p131 = scmp.ne.s32.totalorder %s117, %s118
    %p132 = scmp.eq.s32.totalorder %s16, 1
    %p133 = por %p131, %p132
    %p135 = scmp.ne.s32.totalorder %s118, %s134
    %p136 = scmp.eq.s32.totalorder %s16, 0
    %p137 = por %p135, %p136
    %p138 = scmp.le.s32.totalorder 1, %s10
    %p139 = scmp.lt.s32.totalorder %s10, 3
    %p140 = pnand %p138, %p139
    %p141 = pneg %p140
    // Predicated region
    $region9: #{residual_block_forward.5} parent=5 // pred_check
      _
    $region10: #{residual_block_forward.5} parent=5 // pred_check_branch
      %143 = sbr.rel (%p140) target = $region12
    $region11: #{residual_block_forward.5} parent=5 // pred_region
      %s144 = ssub.s32 %s10, 1
      // Predicated region
      $region13: #{residual_block_forward.5} parent=11 // pred_check
        %p145 = pneg %p83
      $region14: #{residual_block_forward.5} parent=11 // pred_check_branch
        %147 = sbr.rel (%p145) target = $region16
      $region15: #{residual_block_forward.5} parent=11 // pred_region
        _
      $region16: #{residual_block_forward.5} parent=11 // pred_fallthru
        _
      // Predicated region
      $region17: #{residual_block_forward.5} parent=11 // pred_check
        %p148 = pneg %p104
      $region18: #{residual_block_forward.5} parent=11 // pred_check_branch
        %150 = sbr.rel (%p148) target = $region20
      $region19: #{residual_block_forward.5} parent=11 // pred_region
        _
      $region20: #{residual_block_forward.5} parent=11 // pred_fallthru
        _
    $region12: #{residual_block_forward.5} parent=5 // pred_fallthru
      _
    %p151 = scmp.lt.s32.totalorder %s10, 2
    // Predicated region
    $region21: #{residual_block_forward.5} parent=5 // pred_check
      %p152 = pneg %p151
    $region22: #{residual_block_forward.5} parent=5 // pred_check_branch
      %154 = sbr.rel (%p152) target = $region24
    $region23: #{residual_block_forward.5} parent=5 // pred_region
      // Predicated region
      $region25: #{residual_block_forward.5} parent=23 // pred_check
        %p155 = pneg %p30
      $region26: #{residual_block_forward.5} parent=23 // pred_check_branch
        %157 = sbr.rel (%p155) target = $region28
      $region27: #{residual_block_forward.5} parent=23 // pred_region
        %p158 = scmp.lt.s32.totalorder %s10, 1
        %s159 = scalar_select %p158, %s10, 1
        %s160 = smul.addr %s159, 4
        %s161 = scalar_lea.vmem %s0, %s160
      $region28: #{residual_block_forward.5} parent=23 // pred_fallthru
        _
      // Predicated region
      $region29: #{residual_block_forward.5} parent=23 // pred_check
        %p162 = pneg %p56
      $region30: #{residual_block_forward.5} parent=23 // pred_check_branch
        %164 = sbr.rel (%p162) target = $region32
      $region31: #{residual_block_forward.5} parent=23 // pred_region
        %p165 = scmp.lt.s32.totalorder %s10, 1
        %s166 = scalar_select %p165, %s10, 1
        %s167 = smul.addr %s166, 8
        %s168 = scalar_lea.vmem %s1, %s167
      $region32: #{residual_block_forward.5} parent=23 // pred_fallthru
        _
    $region24: #{residual_block_forward.5} parent=5 // pred_fallthru
      _
    %p169 = scmp.le.s32.totalorder 1, %s10
    %p170 = scmp.lt.s32.totalorder %s10, 3
    %p171 = pnand %p169, %p170
    %p172 = pneg %p171
    // Predicated region
    $region33: #{residual_block_forward.5} parent=5 // pred_check
      _
    $region34: #{residual_block_forward.5} parent=5 // pred_check_branch
      %174 = sbr.rel (%p171) target = $region36
    $region35: #{residual_block_forward.5} parent=5 // pred_region
      %s175 = ssub.s32 %s10, 1
      %p176 = scmp.lt.s32.totalorder %s15, 1
      %s177 = scalar_select %p176, %s15, 1
      %s178 = smul.addr %s177, 4
      %s179 = scalar_lea.vmem %s0, %s178
      %p180 = pneg %p36
      %p181 = pneg %p33
      %p182 = scmp.lt.s32.totalorder %s15, 1
      %s183 = scalar_select %p182, %s15, 1
      %s184 = smul.addr %s183, 8
      %s185 = scalar_lea.vmem %s1, %s184
      %p186 = pneg %p62
      %p187 = pneg %p59
      %p188 = pneg %p83
      %p189 = pneg %p80
      %p190 = pneg %p104
      %p191 = pneg %p101
      %p192 = pneg %p130
      %p193 = pneg %p127
      %p194 = scmp.lt.s32.totalorder %s15, 1
      %s195 = scalar_select %p194, %s15, 1
      %s196 = smul.addr %s195, 8
      %s197 = scalar_lea.vmem %s4, %s196
      %p198 = scmp.lt.s32.totalorder %s15, 1
      %s199 = scalar_select %p198, %s15, 1
      %s200 = smul.addr %s199, 4
      %s201 = scalar_lea.vmem %s0, %s200
      %p202 = scmp.lt.s32.totalorder %s15, 1
      %s203 = scalar_select %p202, %s15, 1
      %s204 = smul.addr %s203, 8
      %s205 = scalar_lea.vmem %s1, %s204
      %p206 = scmp.lt.s32.totalorder %s15, 1
      %s207 = scalar_select %p206, %s15, 1
      %s208 = smul.addr %s207, 8
      %s209 = scalar_lea.vmem %s4, %s208
      %v210 = vld [vmem:[%s201] sm:$0xf]
      %v211 = vunpack.c.l.bf16 %v210
      %v212 = vld [vmem:[%s2] sm:$0x1]
      %v214 = vlaneseq
      %v215 = vshrl.u32 %v214, 7
      %v216 = vsub.s32 0, %v215
      %v217 = vrot.slane %v212, %v216
      %v219 = vmul.f32 %v211, %v217
      %v220 = vld [vmem:[%s3] sm:$0x1]
      %v222 = vlaneseq
      %v223 = vshrl.u32 %v222, 7
      %v224 = vsub.s32 0, %v223
      %v225 = vrot.slane %v220, %v224
      %v227 = vadd.f32 %v219, %v225
      %vm228 = vcmp.gt.f32.partialorder %v227, 0.0
      %v229 = vmul.f32 %v227, 0.1
      %v230 = vsel %vm228, %v227, %v229
      %v231 = vld [vmem:[%s205] sm:$0xff]
      %v232 = vadd.f32 %v230, %v231
      %233 = vst [vmem:[%s209] sm:$0xff] %v232
      %p234 = scmp.lt.s32.totalorder %s15, 1
      %s235 = scalar_select %p234, %s15, 1
      %s236 = smul.addr %s235, 8
      %s237 = scalar_lea.vmem %s4, %s236
      // Predicated region
      $region37: #{residual_block_forward.5} parent=35 // pred_check
        %p238 = pneg %p127
      $region38: #{residual_block_forward.5} parent=35 // pred_check_branch
        %240 = sbr.rel (%p238) target = $region40
      $region39: #{residual_block_forward.5} parent=35 // pred_region
        _
      $region40: #{residual_block_forward.5} parent=35 // pred_fallthru
        _
    $region36: #{residual_block_forward.5} parent=5 // pred_fallthru
      _
    %p241 = scmp.le.s32.totalorder 2, %s10
    // Predicated region
    $region41: #{residual_block_forward.5} parent=5 // pred_check
      %p242 = pneg %p241
    $region42: #{residual_block_forward.5} parent=5 // pred_check_branch
      %244 = sbr.rel (%p242) target = $region44
    $region43: #{residual_block_forward.5} parent=5 // pred_region
      %s245 = ssub.s32 %s10, 2
      // Predicated region
      $region45: #{residual_block_forward.5} parent=43 // pred_check
        %p246 = pneg %p133
      $region46: #{residual_block_forward.5} parent=43 // pred_check_branch
        %248 = sbr.rel (%p246) target = $region48
      $region47: #{residual_block_forward.5} parent=43 // pred_region
        %p249 = scmp.lt.s32.totalorder %s16, 1
        %s250 = scalar_select %p249, %s16, 1
        %s251 = smul.addr %s250, 8
        %s252 = scalar_lea.vmem %s4, %s251
      $region48: #{residual_block_forward.5} parent=43 // pred_fallthru
        _
    $region44: #{residual_block_forward.5} parent=5 // pred_fallthru
      _
  $region6: #{residual_block_forward.5} parent=0 // loop_footer
    %s14 = sadd.s32 1, %s10
  $region7: #{residual_block_forward.5} parent=0 // loop_footer_branch
    %9 = sbr.rel target = $region3
  $region8: #{residual_block_forward.5} parent=0 // loop_exit
    _

// kernel: residual_block_forward.4
$region0: #{residual_block_forward.4}
  #allocation0 [shape = 'u32[]', space=smem, size = 0x4, offset = 0x4, fixed_abs, tag = 'smem constant byte address 0x4 - core index']
  #allocation1 [shape = 'u32[144,128]{1,0:T(1,128)}', space=vmem, size = 0x12000, scoped, tag = 'internal scratch']
  #allocation2 [shape = 'f32[326,2]{1,0:T(8,128)}', space=vmem, size = 0x29000, scoped, tag = 'scratch operand']
  #allocation3 [shape = 'f32[288,4]{1,0:T(8,128)}', space=vmem, size = 0x24000, scoped, tag = 'scratch operand']
  %s0 = inlined_call_operand.vmem [shape: bf16[512,2], index: 0, kind: input, shape index: {}]
  %s1 = inlined_call_operand.vmem [shape: f32[1,2], index: 1, kind: input, shape index: {}]
  %s2 = inlined_call_operand.vmem [shape: f32[1,2], index: 2, kind: input, shape index: {}]
  %s3 = inlined_call_operand.vmem [shape: bf16[9,2,4], index: 3, kind: input, shape index: {}]
  %s4 = inlined_call_operand.vmem [shape: bf16[512,4], index: 4, kind: output, shape index: {0}]
  %s5 = inlined_call_operand.vmem [shape: f32[16,4], index: 5, kind: output, shape index: {1}]
  %s6 = inlined_call_operand.vmem [shape: f32[16,4], index: 6, kind: output, shape index: {2}]
  %7 = xla_tuple %s4, %s5, %s6
  %s8 = sld [smem:[#allocation0]]
  $region65: #{residual_block_forward.4} parent=0
    _
  %s10 = ssub.s32 1, %s8
  %s11 = scalar_select 0, %s10, %s8
  loop: start=0, step=1, limit=4
  $region2: #{residual_block_forward.4} parent=0 // loop_pre_header
    _
  $region3: #{residual_block_forward.4} parent=0 // loop_header
    %s13 = sphi 0, %s17
    %p14 = scmp.ge.s32.totalorder %s13, 4
    %s23 = sphi 0, %s25
    %s26 = sphi 0, %s23
    %s27 = sphi 0, %s26
    %s43 = sphi 0, %s27
    %s47 = sphi 0, %s47
    %s49 = sphi 0, %s47
    %s50 = sphi 0, %s49
    %s64 = sphi 0, %s50
    %s68 = sphi 0, %s68
    %s70 = sphi 0, %s68
    %s71 = sphi 0, %s70
    %s85 = sphi 0, %s71
    %s89 = sphi 0, %s89
    %s91 = sphi 0, %s89
    %s92 = sphi 0, %s91
    %s106 = sphi 0, %s92
    %s112 = sphi 0, %s114
    %s115 = sphi 0, %s112
    %s116 = sphi 0, %s115
    %s132 = sphi 0, %s116
    %s138 = sphi 0, %s140
    %s141 = sphi 0, %s138
    %s142 = sphi 0, %s141
    %s158 = sphi 0, %s142
    %s164 = sphi 0, %s166
    %s167 = sphi 0, %s164
    %s168 = sphi 0, %s167
    %s184 = sphi 0, %s168
  $region4: #{residual_block_forward.4} parent=0 // loop_header_branch
    %16 = sbr.rel (%p14) target = $region8
  $region5: #{residual_block_forward.4} parent=0 // loop_body
    %s18 = ssub.s32 %s13, 1
    %s19 = ssub.s32 %s13, 2
    %s20 = sadd.s32 %s13, 1
    %s21 = ssub.s32 %s13, %s20
    %p22 = scmp.eq.s32.totalorder %s21, 0
    %s24 = sadd.s32 %s23, 1
    %s25 = scalar_select %p22, %s23, %s24
    %p28 = pneg %p22
    %p29 = scmp.eq.s32.totalorder %s13, 1
    %p30 = por %p28, %p29
    %p31 = scmp.ne.s32.totalorder %s23, %s26
    %p32 = scmp.eq.s32.totalorder %s13, 0
    %p33 = por %p31, %p32
    %p34 = scmp.ne.s32.totalorder %s23, %s26
    %p35 = scmp.eq.s32.totalorder %s18, 1
    %p36 = por %p34, %p35
    %p37 = scmp.ne.s32.totalorder %s26, %s27
    %p38 = scmp.eq.s32.totalorder %s18, 0
    %p39 = por %p37, %p38
    %p40 = scmp.ne.s32.totalorder %s26, %s27
    %p41 = scmp.eq.s32.totalorder %s19, 1
    %p42 = por %p40, %p41
    %p44 = scmp.ne.s32.totalorder %s27, %s43
    %p45 = scmp.eq.s32.totalorder %s19, 0
    %p46 = por %p44, %p45
    %s48 = sadd.s32 %s47, 1
    %p51 = scmp.eq.s32.totalorder %s13, 1
    %p52 = scmp.ne.s32.totalorder %s47, %s49
    %p53 = scmp.eq.s32.totalorder %s13, 0
    %p54 = por %p52, %p53
    %p55 = scmp.ne.s32.totalorder %s47, %s49
    %p56 = scmp.eq.s32.totalorder %s18, 1
    %p57 = por %p55, %p56
    %p58 = scmp.ne.s32.totalorder %s49, %s50
    %p59 = scmp.eq.s32.totalorder %s18, 0
    %p60 = por %p58, %p59
    %p61 = scmp.ne.s32.totalorder %s49, %s50
    %p62 = scmp.eq.s32.totalorder %s19, 1
    %p63 = por %p61, %p62
    %p65 = scmp.ne.s32.totalorder %s50, %s64
    %p66 = scmp.eq.s32.totalorder %s19, 0
    %p67 = por %p65, %p66
    %s69 = sadd.s32 %s68, 1
    %p72 = scmp.eq.s32.totalorder %s13, 1
    %p73 = scmp.ne.s32.totalorder %s68, %s70
    %p74 = scmp.eq.s32.totalorder %s13, 0
    %p75 = por %p73, %p74
    %p76 = scmp.ne.s32.totalorder %s68, %s70
    %p77 = scmp.eq.s32.totalorder %s18, 1
    %p78 = por %p76, %p77
    %p79 = scmp.ne.s32.totalorder %s70, %s71
    %p80 = scmp.eq.s32.totalorder %s18, 0
    %p81 = por %p79, %p80
    %p82 = scmp.ne.s32.totalorder %s70, %s71
    %p83 = scmp.eq.s32.totalorder %s19, 1
    %p84 = por %p82, %p83
    %p86 = scmp.ne.s32.totalorder %s71, %s85
    %p87 = scmp.eq.s32.totalorder %s19, 0
    %p88 = por %p86, %p87
    %s90 = sadd.s32 %s89, 1
    %p93 = scmp.eq.s32.totalorder %s13, 1
    %p94 = scmp.ne.s32.totalorder %s89, %s91
    %p95 = scmp.eq.s32.totalorder %s13, 0
    %p96 = por %p94, %p95
    %p97 = scmp.ne.s32.totalorder %s89, %s91
    %p98 = scmp.eq.s32.totalorder %s18, 1
    %p99 = por %p97, %p98
    %p100 = scmp.ne.s32.totalorder %s91, %s92
    %p101 = scmp.eq.s32.totalorder %s18, 0
    %p102 = por %p100, %p101
    %p103 = scmp.ne.s32.totalorder %s91, %s92
    %p104 = scmp.eq.s32.totalorder %s19, 1
    %p105 = por %p103, %p104
    %p107 = scmp.ne.s32.totalorder %s92, %s106
    %p108 = scmp.eq.s32.totalorder %s19, 0
    %p109 = por %p107, %p108
    %s110 = ssub.s32 %s13, %s20
    %p111 = scmp.eq.s32.totalorder %s110, 0
    %s113 = sadd.s32 %s112, 1
    %s114 = scalar_select %p111, %s112, %s113
    %p117 = pneg %p111
    %p118 = scmp.eq.s32.totalorder %s13, 1
    %p119 = por %p117, %p118
    %p120 = scmp.ne.s32.totalorder %s112, %s115
    %p121 = scmp.eq.s32.totalorder %s13, 0
    %p122 = por %p120, %p121
    %p123 = scmp.ne.s32.totalorder %s112, %s115
    %p124 = scmp.eq.s32.totalorder %s18, 1
    %p125 = por %p123, %p124
    %p126 = scmp.ne.s32.totalorder %s115, %s116
    %p127 = scmp.eq.s32.totalorder %s18, 0
    %p128 = por %p126, %p127
    %p129 = scmp.ne.s32.totalorder %s115, %s116
    %p130 = scmp.eq.s32.totalorder %s19, 1
    %p131 = por %p129, %p130
    %p133 = scmp.ne.s32.totalorder %s116, %s132
    %p134 = scmp.eq.s32.totalorder %s19, 0
    %p135 = por %p133, %p134
    %s136 = ssub.s32 %s13, %s20
    %p137 = scmp.eq.s32.totalorder %s136, 0
    %s139 = sadd.s32 %s138, 1
    %s140 = scalar_select %p137, %s138, %s139
    %p143 = pneg %p137
    %p144 = scmp.eq.s32.totalorder %s13, 1
    %p145 = por %p143, %p144
    %p146 = scmp.ne.s32.totalorder %s138, %s141
    %p147 = scmp.eq.s32.totalorder %s13, 0
    %p148 = por %p146, %p147
    %p149 = scmp.ne.s32.totalorder %s138, %s141
    %p150 = scmp.eq.s32.totalorder %s18, 1
    %p151 = por %p149, %p150
    %p152 = scmp.ne.s32.totalorder %s141, %s142
    %p153 = scmp.eq.s32.totalorder %s18, 0
    %p154 = por %p152, %p153
    %p155 = scmp.ne.s32.totalorder %s141, %s142
    %p156 = scmp.eq.s32.totalorder %s19, 1
    %p157 = por %p155, %p156
    %p159 = scmp.ne.s32.totalorder %s142, %s158
    %p160 = scmp.eq.s32.totalorder %s19, 0
    %p161 = por %p159, %p160
    %s162 = ssub.s32 %s13, %s20
    %p163 = scmp.eq.s32.totalorder %s162, 0
    %s165 = sadd.s32 %s164, 1
    %s166 = scalar_select %p163, %s164, %s165
    %p169 = pneg %p163
    %p170 = scmp.eq.s32.totalorder %s13, 1
    %p171 = por %p169, %p170
    %p172 = scmp.ne.s32.totalorder %s164, %s167
    %p173 = scmp.eq.s32.totalorder %s13, 0
    %p174 = por %p172, %p173
    %p175 = scmp.ne.s32.totalorder %s164, %s167
    %p176 = scmp.eq.s32.totalorder %s18, 1
    %p177 = por %p175, %p176
    %p178 = scmp.ne.s32.totalorder %s167, %s168
    %p179 = scmp.eq.s32.totalorder %s18, 0
    %p180 = por %p178, %p179
    %p181 = scmp.ne.s32.totalorder %s167, %s168
    %p182 = scmp.eq.s32.totalorder %s19, 1
    %p183 = por %p181, %p182
    %p185 = scmp.ne.s32.totalorder %s168, %s184
    %p186 = scmp.eq.s32.totalorder %s19, 0
    %p187 = por %p185, %p186
    %p188 = scmp.le.s32.totalorder 1, %s13
    %p189 = scmp.lt.s32.totalorder %s13, 3
    %p190 = pnand %p188, %p189
    %p191 = pneg %p190
    // Predicated region
    $region9: #{residual_block_forward.4} parent=5 // pred_check
      _
    $region10: #{residual_block_forward.4} parent=5 // pred_check_branch
      %193 = sbr.rel (%p190) target = $region12
    $region11: #{residual_block_forward.4} parent=5 // pred_region
      %s194 = ssub.s32 %s13, 1
      // Predicated region
      $region13: #{residual_block_forward.4} parent=11 // pred_check
        %p195 = pneg %p60
      $region14: #{residual_block_forward.4} parent=11 // pred_check_branch
        %197 = sbr.rel (%p195) target = $region16
      $region15: #{residual_block_forward.4} parent=11 // pred_region
        _
      $region16: #{residual_block_forward.4} parent=11 // pred_fallthru
        _
      // Predicated region
      $region17: #{residual_block_forward.4} parent=11 // pred_check
        %p198 = pneg %p81
      $region18: #{residual_block_forward.4} parent=11 // pred_check_branch
        %200 = sbr.rel (%p198) target = $region20
      $region19: #{residual_block_forward.4} parent=11 // pred_region
        _
      $region20: #{residual_block_forward.4} parent=11 // pred_fallthru
        _
      // Predicated region
      $region21: #{residual_block_forward.4} parent=11 // pred_check
        %p201 = pneg %p102
      $region22: #{residual_block_forward.4} parent=11 // pred_check_branch
        %203 = sbr.rel (%p201) target = $region24
      $region23: #{residual_block_forward.4} parent=11 // pred_region
        _
      $region24: #{residual_block_forward.4} parent=11 // pred_fallthru
        _
    $region12: #{residual_block_forward.4} parent=5 // pred_fallthru
      _
    %p204 = scmp.lt.s32.totalorder %s13, 2
    // Predicated region
    $region25: #{residual_block_forward.4} parent=5 // pred_check
      %p205 = pneg %p204
    $region26: #{residual_block_forward.4} parent=5 // pred_check_branch
      %207 = sbr.rel (%p205) target = $region28
    $region27: #{residual_block_forward.4} parent=5 // pred_region
      // Predicated region
      $region29: #{residual_block_forward.4} parent=27 // pred_check
        %p208 = pneg %p33
      $region30: #{residual_block_forward.4} parent=27 // pred_check_branch
        %210 = sbr.rel (%p208) target = $region32
      $region31: #{residual_block_forward.4} parent=27 // pred_region
        %s211 = smul.u32 32, %s13
        %p212 = scmp.lt.s32.totalorder %s211, 63
        %s213 = scalar_select %p212, %s211, 63
        %s214 = smul.addr %s213, 4
        %s215 = scalar_lea.vmem %s0, %s214
        %s216 = smul.u32 32, %s13
      $region32: #{residual_block_forward.4} parent=27 // pred_fallthru
        _
    $region28: #{residual_block_forward.4} parent=5 // pred_fallthru
      _
    %p217 = scmp.le.s32.totalorder 1, %s13
    %p218 = scmp.lt.s32.totalorder %s13, 3
    %p219 = pnand %p217, %p218
    %p220 = pneg %p219
    // Predicated region
    $region33: #{residual_block_forward.4} parent=5 // pred_check
      _
    $region34: #{residual_block_forward.4} parent=5 // pred_check_branch
      %222 = sbr.rel (%p219) target = $region36
    $region35: #{residual_block_forward.4} parent=5 // pred_region
      %s223 = ssub.s32 %s13, 1
      %s224 = smul.u32 32, %s18
      %p225 = scmp.lt.s32.totalorder %s224, 63
      %s226 = scalar_select %p225, %s224, 63
      %s227 = smul.addr %s226, 4
      %s228 = scalar_lea.vmem %s0, %s227
      %p229 = pneg %p39
      %p230 = pneg %p36
      %p231 = pneg %p60
      %p232 = pneg %p57
      %p233 = pneg %p81
      %p234 = pneg %p78
      %p235 = pneg %p102
      %p236 = pneg %p99
      %p237 = pneg %p128
      %p238 = pneg %p125
      %s239 = smul.u32 32, %s18
      %p240 = scmp.lt.s32.totalorder %s239, 63
      %s241 = scalar_select %p240, %s239, 63
      %s242 = smul.addr %s241, 4
      %s243 = scalar_lea.vmem %s4, %s242
      %p244 = pneg %p154
      %p245 = pneg %p151
      %p246 = scmp.lt.s32.totalorder %s18, 1
      %s247 = scalar_select %p246, %s18, 1
      %s248 = smul.addr %s247, 8
      %s249 = scalar_lea.vmem %s5, %s248
      %p250 = pneg %p180
      %p251 = pneg %p177
      %p252 = scmp.lt.s32.totalorder %s18, 1
      %s253 = scalar_select %p252, %s18, 1
      %s254 = smul.addr %s253, 8
      %s255 = scalar_lea.vmem %s6, %s254
      %s256 = smul.u32 32, %s18
      %p257 = scmp.lt.s32.totalorder %s256, 63
      %s258 = scalar_select %p257, %s256, 63
      %s259 = smul.addr %s258, 4
      %s260 = scalar_lea.vmem %s0, %s259
      %s261 = smul.u32 32, %s18
      %s262 = smul.u32 32, %s18
      %p263 = scmp.lt.s32.totalorder %s262, 63
      %s264 = scalar_select %p263, %s262, 63
      %s265 = smul.addr %s264, 4
      %s266 = scalar_lea.vmem %s4, %s265
      %s267 = smul.u32 32, %s18
      %p268 = scmp.lt.s32.totalorder %s18, 1
      %s269 = scalar_select %p268, %s18, 1
      %s270 = smul.addr %s269, 8
      %s271 = scalar_lea.vmem %s5, %s270
      %p272 = scmp.lt.s32.totalorder %s18, 1
      %s273 = scalar_select %p272, %s18, 1
      %s274 = smul.addr %s273, 8
      %s275 = scalar_lea.vmem %s6, %s274
      %vm277 = vcmask 15360
      %278 = vst.msk [vmem:[#allocation2] sm:$0xff] %vm277, 0.0
      %279 = vst.msk [vmem:[#allocation2 + $0x8] sm:$0xff] %vm277, 0.0
      %280 = vst.msk [vmem:[#allocation2 + $0x10] sm:$0xff] %vm277, 0.0
      %281 = vst.msk [vmem:[#allocation2 + $0x18] sm:$0xff] %vm277, 0.0
      %282 = vst.msk [vmem:[#allocation2 + $0x20] sm:$0xff] %vm277, 0.0
      %283 = vst.msk [vmem:[#allocation2 + $0x28] sm:$0xff] %vm277, 0.0
      %284 = vst.msk [vmem:[#allocation2 + $0x30] sm:$0xff] %vm277, 0.0
      %285 = vst.msk [vmem:[#allocation2 + $0x38] sm:$0xff] %vm277, 0.0
      %286 = vst.msk [vmem:[#allocation2 + $0x40] sm:$0xff] %vm277, 0.0
      %287 = vst.msk [vmem:[#allocation2 + $0x48] sm:$0xff] %vm277, 0.0
      %288 = vst.msk [vmem:[#allocation2 + $0x50] sm:$0xff] %vm277, 0.0
      %289 = vst.msk [vmem:[#allocation2 + $0x58] sm:$0xff] %vm277, 0.0
      %290 = vst.msk [vmem:[#allocation2 + $0x60] sm:$0xff] %vm277, 0.0
      %291 = vst.msk [vmem:[#allocation2 + $0x68] sm:$0xff] %vm277, 0.0
      %292 = vst.msk [vmem:[#allocation2 + $0x70] sm:$0xff] %vm277, 0.0
      %293 = vst.msk [vmem:[#allocation2 + $0x78] sm:$0xff] %vm277, 0.0
      %294 = vst.msk [vmem:[#allocation2 + $0x80] sm:$0xff] %vm277, 0.0
      %295 = vst.msk [vmem:[#allocation2 + $0x88] sm:$0xff] %vm277, 0.0
      %296 = vst.msk [vmem:[#allocation2 + $0x90] sm:$0xff] %vm277, 0.0
      %297 = vst.msk [vmem:[#allocation2 + $0x98] sm:$0xff] %vm277, 0.0
      %298 = vst.msk [vmem:[#allocation2 + $0xa0] sm:$0xff] %vm277, 0.0
      %299 = vst.msk [vmem:[#allocation2 + $0xa8] sm:$0xff] %vm277, 0.0
      %300 = vst.msk [vmem:[#allocation2 + $0xb0] sm:$0xff] %vm277, 0.0
      %301 = vst.msk [vmem:[#allocation2 + $0xb8] sm:$0xff] %vm277, 0.0
      %302 = vst.msk [vmem:[#allocation2 + $0xc0] sm:$0xff] %vm277, 0.0
      %303 = vst.msk [vmem:[#allocation2 + $0xc8] sm:$0xff] %vm277, 0.0
      %304 = vst.msk [vmem:[#allocation2 + $0xd0] sm:$0xff] %vm277, 0.0
      %305 = vst.msk [vmem:[#allocation2 + $0xd8] sm:$0xff] %vm277, 0.0
      %306 = vst.msk [vmem:[#allocation2 + $0xe0] sm:$0xff] %vm277, 0.0
      %307 = vst.msk [vmem:[#allocation2 + $0xe8] sm:$0xff] %vm277, 0.0
      %308 = vst.msk [vmem:[#allocation2 + $0xf0] sm:$0xff] %vm277, 0.0
      %309 = vst.msk [vmem:[#allocation2 + $0xf8] sm:$0xff] %vm277, 0.0
      %310 = vst.msk [vmem:[#allocation2 + $0x100] sm:$0xff] %vm277, 0.0
      %311 = vst.msk [vmem:[#allocation2 + $0x108] sm:$0xff] %vm277, 0.0
      %312 = vst.msk [vmem:[#allocation2 + $0x110] sm:$0xff] %vm277, 0.0
      %313 = vst.msk [vmem:[#allocation2 + $0x118] sm:$0xff] %vm277, 0.0
      %314 = vst.msk [vmem:[#allocation2 + $0x120] sm:$0xff] %vm277, 0.0
      %315 = vst.msk [vmem:[#allocation2 + $0x128] sm:$0xff] %vm277, 0.0
      %316 = vst.msk [vmem:[#allocation2 + $0x130] sm:$0xff] %vm277, 0.0
      %317 = vst.msk [vmem:[#allocation2 + $0x138] sm:$0xff] %vm277, 0.0
      %vm318 = vcmask 13312
      %319 = vst.msk [vmem:[#allocation2 + $0x140] sm:$0x3f] %vm318, 0.0
      %v320 = vld [vmem:[%s1] sm:$0x1]
      %v321 = vld [vmem:[%s2] sm:$0x1]
      %v322 = vld [vmem:[%s260] sm:$0xf]
      %v323 = vld [vmem:[%s260 + $0x4] sm:$0xf]
      %v324 = vunpack.c.l.bf16 %v322
      %v325 = vunpack.c.l.bf16 %v323
      %v327 = vlaneseq
      %v328 = vshrl.u32 %v327, 7
      %v329 = vsub.s32 0, %v328
      %v330 = vrot.slane %v320, %v329
      %v332 = vmul.f32 %v324, %v330
      %v333 = vmul.f32 %v325, %v330
      %v335 = vlaneseq
      %v336 = vshrl.u32 %v335, 7
      %v337 = vsub.s32 0, %v336
      %v338 = vrot.slane %v321, %v337
      %v340 = vadd.f32 %v332, %v338
      %v341 = vadd.f32 %v333, %v338
      %vm342 = vcmp.gt.f32.partialorder %v340, 0.0
      %vm343 = vcmp.gt.f32.partialorder %v341, 0.0
      %v344 = vmul.f32 %v340, 0.1
      %v345 = vmul.f32 %v341, 0.1
      %v346 = vsel %vm342, %v340, %v344
      %v347 = vsel %vm343, %v341, %v345
      %348 = vst.msk [vmem:[#allocation2 + $0x13] sm:$0xff] %vm277, %v346
      %349 = vst.msk [vmem:[#allocation2 + $0x1b] sm:$0xff] %vm277, %v347
      %v350 = vld [vmem:[%s260 + $0x8] sm:$0xf]
      %v351 = vld [vmem:[%s260 + $0xc] sm:$0xf]
      %v352 = vunpack.c.l.bf16 %v350
      %v353 = vunpack.c.l.bf16 %v351
      %v354 = vmul.f32 %v352, %v330
      %v355 = vmul.f32 %v353, %v330
      %v356 = vadd.f32 %v354, %v338
      %v357 = vadd.f32 %v355, %v338
      %vm358 = vcmp.gt.f32.partialorder %v356, 0.0
      %vm359 = vcmp.gt.f32.partialorder %v357, 0.0
      %v360 = vmul.f32 %v356, 0.1
      %v361 = vmul.f32 %v357, 0.1
      %v362 = vsel %vm358, %v356, %v360
      %v363 = vsel %vm359, %v357, %v361
      %364 = vst.msk [vmem:[#allocation2 + $0x25] sm:$0xff] %vm277, %v362
      %365 = vst.msk [vmem:[#allocation2 + $0x2d] sm:$0xff] %vm277, %v363
      %v366 = vld [vmem:[%s260 + $0x10] sm:$0xf]
      %v367 = vld [vmem:[%s260 + $0x14] sm:$0xf]
      %v368 = vunpack.c.l.bf16 %v366
      %v369 = vunpack.c.l.bf16 %v367
      %v370 = vmul.f32 %v368, %v330
      %v371 = vmul.f32 %v369, %v330
      %v372 = vadd.f32 %v370, %v338
      %v373 = vadd.f32 %v371, %v338
      %vm374 = vcmp.gt.f32.partialorder %v372, 0.0
      %vm375 = vcmp.gt.f32.partialorder %v373, 0.0
      %v376 = vmul.f32 %v372, 0.1
      %v377 = vmul.f32 %v373, 0.1
      %v378 = vsel %vm374, %v372, %v376
      %v379 = vsel %vm375, %v373, %v377
      %380 = vst.msk [vmem:[#allocation2 + $0x37] sm:$0xff] %vm277, %v378
      %381 = vst.msk [vmem:[#allocation2 + $0x3f] sm:$0xff] %vm277, %v379
      %v382 = vld [vmem:[%s260 + $0x18] sm:$0xf]
      %v383 = vld [vmem:[%s260 + $0x1c] sm:$0xf]
      %v384 = vunpack.c.l.bf16 %v382
      %v385 = vunpack.c.l.bf16 %v383
      %v386 = vmul.f32 %v384, %v330
      %v387 = vmul.f32 %v385, %v330
      %v388 = vadd.f32 %v386, %v338
      %v389 = vadd.f32 %v387, %v338
      %vm390 = vcmp.gt.f32.partialorder %v388, 0.0
      %vm391 = vcmp.gt.f32.partialorder %v389, 0.0
      %v392 = vmul.f32 %v388, 0.1
      %v393 = vmul.f32 %v389, 0.1
      %v394 = vsel %vm390, %v388, %v392
      %v395 = vsel %vm391, %v389, %v393
      %396 = vst.msk [vmem:[#allocation2 + $0x49] sm:$0xff] %vm277, %v394
      %397 = vst.msk [vmem:[#allocation2 + $0x51] sm:$0xff] %vm277, %v395
      %v398 = vld [vmem:[%s260 + $0x20] sm:$0xf]
      %v399 = vld [vmem:[%s260 + $0x24] sm:$0xf]
      %v400 = vunpack.c.l.bf16 %v398
      %v401 = vunpack.c.l.bf16 %v399
      %v402 = vmul.f32 %v400, %v330
      %v403 = vmul.f32 %v401, %v330
      %v404 = vadd.f32 %v402, %v338
      %v405 = vadd.f32 %v403, %v338
      %vm406 = vcmp.gt.f32.partialorder %v404, 0.0
      %vm407 = vcmp.gt.f32.partialorder %v405, 0.0
      %v408 = vmul.f32 %v404, 0.1
      %v409 = vmul.f32 %v405, 0.1
      %v410 = vsel %vm406, %v404, %v408
      %v411 = vsel %vm407, %v405, %v409
      %412 = vst.msk [vmem:[#allocation2 + $0x5b] sm:$0xff] %vm277, %v410
      %413 = vst.msk [vmem:[#allocation2 + $0x63] sm:$0xff] %vm277, %v411
      %v414 = vld [vmem:[%s260 + $0x28] sm:$0xf]
      %v415 = vld [vmem:[%s260 + $0x2c] sm:$0xf]
      %v416 = vunpack.c.l.bf16 %v414
      %v417 = vunpack.c.l.bf16 %v415
      %v418 = vmul.f32 %v416, %v330
      %v419 = vmul.f32 %v417, %v330
      %v420 = vadd.f32 %v418, %v338
      %v421 = vadd.f32 %v419, %v338
      %vm422 = vcmp.gt.f32.partialorder %v420, 0.0
      %vm423 = vcmp.gt.f32.partialorder %v421, 0.0
      %v424 = vmul.f32 %v420, 0.1
      %v425 = vmul.f32 %v421, 0.1
      %v426 = vsel %vm422, %v420, %v424
      %v427 = vsel %vm423, %v421, %v425
      %428 = vst.msk [vmem:[#allocation2 + $0x6d] sm:$0xff] %vm277, %v426
      %429 = vst.msk [vmem:[#allocation2 + $0x75] sm:$0xff] %vm277, %v427
      %v430 = vld [vmem:[%s260 + $0x30] sm:$0xf]
      %v431 = vld [vmem:[%s260 + $0x34] sm:$0xf]
      %v432 = vunpack.c.l.bf16 %v430
      %v433 = vunpack.c.l.bf16 %v431
      %v434 = vmul.f32 %v432, %v330
      %v435 = vmul.f32 %v433, %v330
      %v436 = vadd.f32 %v434, %v338
      %v437 = vadd.f32 %v435, %v338
      %vm438 = vcmp.gt.f32.partialorder %v436, 0.0
      %vm439 = vcmp.gt.f32.partialorder %v437, 0.0
      %v440 = vmul.f32 %v436, 0.1
      %v441 = vmul.f32 %v437, 0.1
      %v442 = vsel %vm438, %v436, %v440
      %v443 = vsel %vm439, %v437, %v441
      %444 = vst.msk [vmem:[#allocation2 + $0x7f] sm:$0xff] %vm277, %v442
      %445 = vst.msk [vmem:[#allocation2 + $0x87] sm:$0xff] %vm277, %v443
      %v446 = vld [vmem:[%s260 + $0x38] sm:$0xf]
      %v447 = vld [vmem:[%s260 + $0x3c] sm:$0xf]
      %v448 = vunpack.c.l.bf16 %v446
      %v449 = vunpack.c.l.bf16 %v447
      %v450 = vmul.f32 %v448, %v330
      %v451 = vmul.f32 %v449, %v330
      %v452 = vadd.f32 %v450, %v338
      %v453 = vadd.f32 %v451, %v338
      %vm454 = vcmp.gt.f32.partialorder %v452, 0.0
      %vm455 = vcmp.gt.f32.partialorder %v453, 0.0
      %v456 = vmul.f32 %v452, 0.1
      %v457 = vmul.f32 %v453, 0.1
      %v458 = vsel %vm454, %v452, %v456
      %v459 = vsel %vm455, %v453, %v457
      %460 = vst.msk [vmem:[#allocation2 + $0x91] sm:$0xff] %vm277, %v458
      %461 = vst.msk [vmem:[#allocation2 + $0x99] sm:$0xff] %vm277, %v459
      %v462 = vld [vmem:[%s260 + $0x40] sm:$0xf]
      %v463 = vld [vmem:[%s260 + $0x44] sm:$0xf]
      %v464 = vunpack.c.l.bf16 %v462
      %v465 = vunpack.c.l.bf16 %v463
      %v466 = vmul.f32 %v464, %v330
      %v467 = vmul.f32 %v465, %v330
      %v468 = vadd.f32 %v466, %v338
      %v469 = vadd.f32 %v467, %v338
      %vm470 = vcmp.gt.f32.partialorder %v468, 0.0
      %vm471 = vcmp.gt.f32.partialorder %v469, 0.0
      %v472 = vmul.f32 %v468, 0.1
      %v473 = vmul.f32 %v469, 0.1
      %v474 = vsel %vm470, %v468, %v472
      %v475 = vsel %vm471, %v469, %v473
      %476 = vst.msk [vmem:[#allocation2 + $0xa3] sm:$0xff] %vm277, %v474
      %477 = vst.msk [vmem:[#allocation2 + $0xab] sm:$0xff] %vm277, %v475
      %v478 = vld [vmem:[%s260 + $0x48] sm:$0xf]
      %v479 = vld [vmem:[%s260 + $0x4c] sm:$0xf]
      %v480 = vunpack.c.l.bf16 %v478
      %v481 = vunpack.c.l.bf16 %v479
      %v482 = vmul.f32 %v480, %v330
      %v483 = vmul.f32 %v481, %v330
      %v484 = vadd.f32 %v482, %v338
      %v485 = vadd.f32 %v483, %v338
      %vm486 = vcmp.gt.f32.partialorder %v484, 0.0
      %vm487 = vcmp.gt.f32.partialorder %v485, 0.0
      %v488 = vmul.f32 %v484, 0.1
      %v489 = vmul.f32 %v485, 0.1
      %v490 = vsel %vm486, %v484, %v488
      %v491 = vsel %vm487, %v485, %v489
      %492 = vst.msk [vmem:[#allocation2 + $0xb5] sm:$0xff] %vm277, %v490
      %493 = vst.msk [vmem:[#allocation2 + $0xbd] sm:$0xff] %vm277, %v491
      %v494 = vld [vmem:[%s260 + $0x50] sm:$0xf]
      %v495 = vld [vmem:[%s260 + $0x54] sm:$0xf]
      %v496 = vunpack.c.l.bf16 %v494
      %v497 = vunpack.c.l.bf16 %v495
      %v498 = vmul.f32 %v496, %v330
      %v499 = vmul.f32 %v497, %v330
      %v500 = vadd.f32 %v498, %v338
      %v501 = vadd.f32 %v499, %v338
      %vm502 = vcmp.gt.f32.partialorder %v500, 0.0
      %vm503 = vcmp.gt.f32.partialorder %v501, 0.0
      %v504 = vmul.f32 %v500, 0.1
      %v505 = vmul.f32 %v501, 0.1
      %v506 = vsel %vm502, %v500, %v504
      %v507 = vsel %vm503, %v501, %v505
      %508 = vst.msk [vmem:[#allocation2 + $0xc7] sm:$0xff] %vm277, %v506
      %509 = vst.msk [vmem:[#allocation2 + $0xcf] sm:$0xff] %vm277, %v507
      %v510 = vld [vmem:[%s260 + $0x58] sm:$0xf]
      %v511 = vld [vmem:[%s260 + $0x5c] sm:$0xf]
      %v512 = vunpack.c.l.bf16 %v510
      %v513 = vunpack.c.l.bf16 %v511
      %v514 = vmul.f32 %v512, %v330
      %v515 = vmul.f32 %v513, %v330
      %v516 = vadd.f32 %v514, %v338
      %v517 = vadd.f32 %v515, %v338
      %vm518 = vcmp.gt.f32.partialorder %v516, 0.0
      %vm519 = vcmp.gt.f32.partialorder %v517, 0.0
      %v520 = vmul.f32 %v516, 0.1
      %v521 = vmul.f32 %v517, 0.1
      %v522 = vsel %vm518, %v516, %v520
      %v523 = vsel %vm519, %v517, %v521
      %524 = vst.msk [vmem:[#allocation2 + $0xd9] sm:$0xff] %vm277, %v522
      %525 = vst.msk [vmem:[#allocation2 + $0xe1] sm:$0xff] %vm277, %v523
      %v526 = vld [vmem:[%s260 + $0x60] sm:$0xf]
      %v527 = vld [vmem:[%s260 + $0x64] sm:$0xf]
      %v528 = vunpack.c.l.bf16 %v526
      %v529 = vunpack.c.l.bf16 %v527
      %v530 = vmul.f32 %v528, %v330
      %v531 = vmul.f32 %v529, %v330
      %v532 = vadd.f32 %v530, %v338
      %v533 = vadd.f32 %v531, %v338
      %vm534 = vcmp.gt.f32.partialorder %v532, 0.0
      %vm535 = vcmp.gt.f32.partialorder %v533, 0.0
      %v536 = vmul.f32 %v532, 0.1
      %v537 = vmul.f32 %v533, 0.1
      %v538 = vsel %vm534, %v532, %v536
      %v539 = vsel %vm535, %v533, %v537
      %540 = vst.msk [vmem:[#allocation2 + $0xeb] sm:$0xff] %vm277, %v538
      %541 = vst.msk [vmem:[#allocation2 + $0xf3] sm:$0xff] %vm277, %v539
      %v542 = vld [vmem:[%s260 + $0x68] sm:$0xf]
      %v543 = vld [vmem:[%s260 + $0x6c] sm:$0xf]
      %v544 = vunpack.c.l.bf16 %v542
      %v545 = vunpack.c.l.bf16 %v543
      %v546 = vmul.f32 %v544, %v330
      %v547 = vmul.f32 %v545, %v330
      %v548 = vadd.f32 %v546, %v338
      %v549 = vadd.f32 %v547, %v338
      %vm550 = vcmp.gt.f32.partialorder %v548, 0.0
      %vm551 = vcmp.gt.f32.partialorder %v549, 0.0
      %v552 = vmul.f32 %v548, 0.1
      %v553 = vmul.f32 %v549, 0.1
      %v554 = vsel %vm550, %v548, %v552
      %v555 = vsel %vm551, %v549, %v553
      %556 = vst.msk [vmem:[#allocation2 + $0xfd] sm:$0xff] %vm277, %v554
      %557 = vst.msk [vmem:[#allocation2 + $0x105] sm:$0xff] %vm277, %v555
      %v558 = vld [vmem:[%s260 + $0x70] sm:$0xf]
      %v559 = vld [vmem:[%s260 + $0x74] sm:$0xf]
      %v560 = vunpack.c.l.bf16 %v558
      %v561 = vunpack.c.l.bf16 %v559
      %v562 = vmul.f32 %v560, %v330
      %v563 = vmul.f32 %v561, %v330
      %v564 = vadd.f32 %v562, %v338
      %v565 = vadd.f32 %v563, %v338
      %vm566 = vcmp.gt.f32.partialorder %v564, 0.0
      %vm567 = vcmp.gt.f32.partialorder %v565, 0.0
      %v568 = vmul.f32 %v564, 0.1
      %v569 = vmul.f32 %v565, 0.1
      %v570 = vsel %vm566, %v564, %v568
      %v571 = vsel %vm567, %v565, %v569
      %572 = vst.msk [vmem:[#allocation2 + $0x10f] sm:$0xff] %vm277, %v570
      %573 = vst.msk [vmem:[#allocation2 + $0x117] sm:$0xff] %vm277, %v571
      %v574 = vld [vmem:[%s260 + $0x78] sm:$0xf]
      %v575 = vld [vmem:[%s260 + $0x7c] sm:$0xf]
      %v576 = vunpack.c.l.bf16 %v574
      %v577 = vunpack.c.l.bf16 %v575
      %v578 = vmul.f32 %v576, %v330
      %v579 = vmul.f32 %v577, %v330
      %v580 = vadd.f32 %v578, %v338
      %v581 = vadd.f32 %v579, %v338
      %vm582 = vcmp.gt.f32.partialorder %v580, 0.0
      %vm583 = vcmp.gt.f32.partialorder %v581, 0.0
      %v584 = vmul.f32 %v580, 0.1
      %v585 = vmul.f32 %v581, 0.1
      %v586 = vsel %vm582, %v580, %v584
      %v587 = vsel %vm583, %v581, %v585
      %588 = vst.msk [vmem:[#allocation2 + $0x121] sm:$0xff] %vm277, %v586
      %589 = vst.msk [vmem:[#allocation2 + $0x129] sm:$0xff] %vm277, %v587
      %v590 = vld [vmem:[#allocation2] sm:$0xff]
      %v591 = vld [vmem:[#allocation2 + $0x8] sm:$0xff]
      %v592 = vld [vmem:[#allocation2 + $0x10] sm:$0xff]
      %v593 = vld [vmem:[#allocation2 + $0x18] sm:$0xff]
      %v594 = vld [vmem:[#allocation2 + $0x20] sm:$0xff]
      %v595 = vld [vmem:[#allocation2 + $0x28] sm:$0xff]
      %v596 = vld [vmem:[#allocation2 + $0x30] sm:$0xff]
      %v597 = vld [vmem:[#allocation2 + $0x38] sm:$0xff]
      %v598 = vld [vmem:[#allocation2 + $0x40] sm:$0xff]
      %v599 = vld [vmem:[#allocation2 + $0x48] sm:$0xff]
      %v600 = vld [vmem:[#allocation2 + $0x50] sm:$0xff]
      %v601 = vld [vmem:[#allocation2 + $0x58] sm:$0xff]
      %v602 = vld [vmem:[#allocation2 + $0x60] sm:$0xff]
      %v603 = vld [vmem:[#allocation2 + $0x68] sm:$0xff]
      %v604 = vld [vmem:[#allocation2 + $0x70] sm:$0xff]
      %v605 = vld [vmem:[#allocation2 + $0x78] sm:$0xff]
      %v606 = vld [vmem:[#allocation2 + $0x80] sm:$0xff]
      %v607 = vld [vmem:[#allocation2 + $0x88] sm:$0xff]
      %v608 = vld [vmem:[#allocation2 + $0x90] sm:$0xff]
      %v609 = vld [vmem:[#allocation2 + $0x98] sm:$0xff]
      %v610 = vld [vmem:[#allocation2 + $0xa0] sm:$0xff]
      %v611 = vld [vmem:[#allocation2 + $0xa8] sm:$0xff]
      %v612 = vld [vmem:[#allocation2 + $0xb0] sm:$0xff]
      %v613 = vld [vmem:[#allocation2 + $0xb8] sm:$0xff]
      %v614 = vld [vmem:[#allocation2 + $0xc0] sm:$0xff]
      %v615 = vld [vmem:[#allocation2 + $0xc8] sm:$0xff]
      %v616 = vld [vmem:[#allocation2 + $0xd0] sm:$0xff]
      %v617 = vld [vmem:[#allocation2 + $0xd8] sm:$0xff]
      %v618 = vld [vmem:[#allocation2 + $0xe0] sm:$0xff]
      %v619 = vld [vmem:[#allocation2 + $0xe8] sm:$0xff]
      %v620 = vld [vmem:[#allocation2 + $0xf0] sm:$0xff]
      %v621 = vld [vmem:[#allocation2 + $0xf8] sm:$0xff]
      %v622 = vld [vmem:[#allocation2 + $0x100] sm:$0xff]
      %v623 = vld [vmem:[#allocation2 + $0x108] sm:$0xff]
      %v624 = vld [vmem:[#allocation2 + $0x110] sm:$0xff]
      %v625 = vld [vmem:[#allocation2 + $0x118] sm:$0xff]
      %v626 = vld [vmem:[%s3] sm:$0x1]
      %v628 = vsel %vm277, %v590, 0
      %v631 = vsel %vm277, %v591, 0
      %v634 = vsel %vm277, %v592, 0
      %v637 = vsel %vm277, %v593, 0
      %v640 = vsel %vm277, %v594, 0
      %v643 = vsel %vm277, %v595, 0
      %v646 = vsel %vm277, %v596, 0
      %v649 = vsel %vm277, %v597, 0
      %v652 = vsel %vm277, %v598, 0
      %v655 = vsel %vm277, %v599, 0
      %v658 = vsel %vm277, %v600, 0
      %v661 = vsel %vm277, %v601, 0
      %v664 = vsel %vm277, %v602, 0
      %v667 = vsel %vm277, %v603, 0
      %v670 = vsel %vm277, %v604, 0
      %v673 = vsel %vm277, %v605, 0
      %v676 = vsel %vm277, %v606, 0
      %v679 = vsel %vm277, %v607, 0
      %v682 = vsel %vm277, %v608, 0
      %v685 = vsel %vm277, %v609, 0
      %v688 = vsel %vm277, %v610, 0
      %v691 = vsel %vm277, %v611, 0
      %v694 = vsel %vm277, %v612, 0
      %v697 = vsel %vm277, %v613, 0
      %v700 = vsel %vm277, %v614, 0
      %v703 = vsel %vm277, %v615, 0
      %v706 = vsel %vm277, %v616, 0
      %v709 = vsel %vm277, %v617, 0
      %v712 = vsel %vm277, %v618, 0
      %v715 = vsel %vm277, %v619, 0
      %v718 = vsel %vm277, %v620, 0
      %v721 = vsel %vm277, %v621, 0
      %v724 = vsel %vm277, %v622, 0
      %v727 = vsel %vm277, %v623, 0
      %v730 = vsel %vm277, %v624, 0
      %v733 = vsel %vm277, %v625, 0
      %vm735 = vcmask 1040384
      %v737 = vsel %vm735, %v626, 0
      %739 = vmatprep.subr.bf16.mxu0 0
      %740 = vmatpush1.bf16.msra.mxu0 0
      %741 = vmatprep.subr.bf16.mxu0 0
      %742 = vmatpush1.bf16.msra.mxu0 0
      %743 = vmatprep.subr.bf16.mxu0 0
      %744 = vmatpush1.bf16.msra.mxu0 0
      %745 = vmatprep.subr.bf16.mxu0 0
      %746 = vmatpush1.bf16.msra.mxu0 0
      %747 = vmatprep.subr.bf16.mxu0 0
      %748 = vmatpush1.bf16.msra.mxu0 0
      %749 = vmatprep.subr.bf16.mxu0 0
      %750 = vmatpush1.bf16.msra.mxu0 0
      %751 = vmatprep.subr.bf16.mxu0 0
      %752 = vmatpush1.bf16.msra.mxu0 0
      %753 = vmatprep.subr.bf16.mxu0 0
      %754 = vmatpush1.bf16.msra.mxu0 %v737
      %755 = vmatprep.subr.bf16.mxu0 0
      %756 = vmatpush2.bf16.msra.mxu0 0
      %757 = vmatprep.subr.bf16.mxu0 0
      %758 = vmatpush2.bf16.msra.mxu0 0
      %759 = vmatprep.subr.bf16.mxu0 0
      %760 = vmatpush2.bf16.msra.mxu0 0
      %761 = vmatprep.subr.bf16.mxu0 0
      %762 = vmatpush2.bf16.msra.mxu0 0
      %763 = vmatprep.subr.bf16.mxu0 0
      %764 = vmatpush2.bf16.msra.mxu0 0
      %765 = vmatprep.subr.bf16.mxu0 0
      %766 = vmatpush2.bf16.msra.mxu0 0
      %767 = vmatprep.subr.bf16.mxu0 0
      %768 = vmatpush2.bf16.msra.mxu0 0
      %769 = vmatprep.subr.bf16.mxu0 0
      %770 = vmatpush2.bf16.msra.mxu0 0
      %771 = vmatprep.mubr.f32.mxu0 0.0
      %772 = vmatmul.mubr.f32.gmra.mxu0 %v628
      %v773 = vpop.f32.mrf.mxu0
      %v774 = vadd.f32 0.0, %v773
      %v775 = vpop.f32.mrf.mxu0
      %776 = vmatprep.mubr.f32.mxu0 0.0
      %777 = vmatmul.mubr.f32.gmra.mxu0 %v631
      %v778 = vpop.f32.mrf.mxu0
      %v779 = vadd.f32 0.0, %v778
      %v780 = vpop.f32.mrf.mxu0
      %781 = vmatprep.mubr.f32.mxu0 0.0
      %782 = vmatmul.mubr.f32.gmra.mxu0 %v634
      %v783 = vpop.f32.mrf.mxu0
      %v784 = vadd.f32 0.0, %v783
      %v785 = vpop.f32.mrf.mxu0
      %786 = vmatprep.mubr.f32.mxu0 0.0
      %787 = vmatmul.mubr.f32.gmra.mxu0 %v637
      %v788 = vpop.f32.mrf.mxu0
      %v789 = vadd.f32 0.0, %v788
      %v790 = vpop.f32.mrf.mxu0
      %791 = vmatprep.mubr.f32.mxu0 0.0
      %792 = vmatmul.mubr.f32.gmra.mxu0 %v640
      %v793 = vpop.f32.mrf.mxu0
      %v794 = vadd.f32 0.0, %v793
      %v795 = vpop.f32.mrf.mxu0
      %796 = vmatprep.mubr.f32.mxu0 0.0
      %797 = vmatmul.mubr.f32.gmra.mxu0 %v643
      %v798 = vpop.f32.mrf.mxu0
      %v799 = vadd.f32 0.0, %v798
      %v800 = vpop.f32.mrf.mxu0
      %801 = vmatprep.mubr.f32.mxu0 0.0
      %802 = vmatmul.mubr.f32.gmra.mxu0 %v646
      %v803 = vpop.f32.mrf.mxu0
      %v804 = vadd.f32 0.0, %v803
      %v805 = vpop.f32.mrf.mxu0
      %806 = vmatprep.mubr.f32.mxu0 0.0
      %807 = vmatmul.mubr.f32.gmra.mxu0 %v649
      %v808 = vpop.f32.mrf.mxu0
      %v809 = vadd.f32 0.0, %v808
      %v810 = vpop.f32.mrf.mxu0
      %811 = vmatprep.mubr.f32.mxu0 0.0
      %812 = vmatmul.mubr.f32.gmra.mxu0 %v652
      %v813 = vpop.f32.mrf.mxu0
      %v814 = vadd.f32 0.0, %v813
      %v815 = vpop.f32.mrf.mxu0
      %816 = vmatprep.mubr.f32.mxu0 0.0
      %817 = vmatmul.mubr.f32.gmra.mxu0 %v655
      %v818 = vpop.f32.mrf.mxu0
      %v819 = vadd.f32 0.0, %v818
      %v820 = vpop.f32.mrf.mxu0
      %821 = vmatprep.mubr.f32.mxu0 0.0
      %822 = vmatmul.mubr.f32.gmra.mxu0 %v658
      %v823 = vpop.f32.mrf.mxu0
      %v824 = vadd.f32 0.0, %v823
      %v825 = vpop.f32.mrf.mxu0
      %826 = vmatprep.mubr.f32.mxu0 0.0
      %827 = vmatmul.mubr.f32.gmra.mxu0 %v661
      %v828 = vpop.f32.mrf.mxu0
      %v829 = vadd.f32 0.0, %v828
      %v830 = vpop.f32.mrf.mxu0
      %831 = vmatprep.mubr.f32.mxu0 0.0
      %832 = vmatmul.mubr.f32.gmra.mxu0 %v664
      %v833 = vpop.f32.mrf.mxu0
      %v834 = vadd.f32 0.0, %v833
      %v835 = vpop.f32.mrf.mxu0
      %836 = vmatprep.mubr.f32.mxu0 0.0
      %837 = vmatmul.mubr.f32.gmra.mxu0 %v667
      %v838 = vpop.f32.mrf.mxu0
      %v839 = vadd.f32 0.0, %v838
      %v840 = vpop.f32.mrf.mxu0
      %841 = vmatprep.mubr.f32.mxu0 0.0
      %842 = vmatmul.mubr.f32.gmra.mxu0 %v670
      %v843 = vpop.f32.mrf.mxu0
      %v844 = vadd.f32 0.0, %v843
      %v845 = vpop.f32.mrf.mxu0
      %846 = vmatprep.mubr.f32.mxu0 0.0
      %847 = vmatmul.mubr.f32.gmra.mxu0 %v673
      %v848 = vpop.f32.mrf.mxu0
      %v849 = vadd.f32 0.0, %v848
      %v850 = vpop.f32.mrf.mxu0
      %851 = vmatprep.mubr.f32.mxu0 0.0
      %852 = vmatmul.mubr.f32.gmra.mxu0 %v676
      %v853 = vpop.f32.mrf.mxu0
      %v854 = vadd.f32 0.0, %v853
      %v855 = vpop.f32.mrf.mxu0
      %856 = vmatprep.mubr.f32.mxu0 0.0
      %857 = vmatmul.mubr.f32.gmra.mxu0 %v679
      %v858 = vpop.f32.mrf.mxu0
      %v859 = vadd.f32 0.0, %v858
      %v860 = vpop.f32.mrf.mxu0
      %861 = vmatprep.mubr.f32.mxu0 0.0
      %862 = vmatmul.mubr.f32.gmra.mxu0 %v682
      %v863 = vpop.f32.mrf.mxu0
      %v864 = vadd.f32 0.0, %v863
      %v865 = vpop.f32.mrf.mxu0
      %866 = vmatprep.mubr.f32.mxu0 0.0
      %867 = vmatmul.mubr.f32.gmra.mxu0 %v685
      %v868 = vpop.f32.mrf.mxu0
      %v869 = vadd.f32 0.0, %v868
      %v870 = vpop.f32.mrf.mxu0
      %871 = vmatprep.mubr.f32.mxu0 0.0
      %872 = vmatmul.mubr.f32.gmra.mxu0 %v688
      %v873 = vpop.f32.mrf.mxu0
      %v874 = vadd.f32 0.0, %v873
      %v875 = vpop.f32.mrf.mxu0
      %876 = vmatprep.mubr.f32.mxu0 0.0
      %877 = vmatmul.mubr.f32.gmra.mxu0 %v691
      %v878 = vpop.f32.mrf.mxu0
      %v879 = vadd.f32 0.0, %v878
      %v880 = vpop.f32.mrf.mxu0
      %881 = vmatprep.mubr.f32.mxu0 0.0
      %882 = vmatmul.mubr.f32.gmra.mxu0 %v694
      %v883 = vpop.f32.mrf.mxu0
      %v884 = vadd.f32 0.0, %v883
      %v885 = vpop.f32.mrf.mxu0
      %886 = vmatprep.mubr.f32.mxu0 0.0
      %887 = vmatmul.mubr.f32.gmra.mxu0 %v697
      %v888 = vpop.f32.mrf.mxu0
      %v889 = vadd.f32 0.0, %v888
      %v890 = vpop.f32.mrf.mxu0
      %891 = vmatprep.mubr.f32.mxu0 0.0
      %892 = vmatmul.mubr.f32.gmra.mxu0 %v700
      %v893 = vpop.f32.mrf.mxu0
      %v894 = vadd.f32 0.0, %v893
      %v895 = vpop.f32.mrf.mxu0
      %896 = vmatprep.mubr.f32.mxu0 0.0
      %897 = vmatmul.mubr.f32.gmra.mxu0 %v703
      %v898 = vpop.f32.mrf.mxu0
      %v899 = vadd.f32 0.0, %v898
      %v900 = vpop.f32.mrf.mxu0
      %901 = vmatprep.mubr.f32.mxu0 0.0
      %902 = vmatmul.mubr.f32.gmra.mxu0 %v706
      %v903 = vpop.f32.mrf.mxu0
      %v904 = vadd.f32 0.0, %v903
      %v905 = vpop.f32.mrf.mxu0
      %906 = vmatprep.mubr.f32.mxu0 0.0
      %907 = vmatmul.mubr.f32.gmra.mxu0 %v709
      %v908 = vpop.f32.mrf.mxu0
      %v909 = vadd.f32 0.0, %v908
      %v910 = vpop.f32.mrf.mxu0
      %911 = vmatprep.mubr.f32.mxu0 0.0
      %912 = vmatmul.mubr.f32.gmra.mxu0 %v712
      %v913 = vpop.f32.mrf.mxu0
      %v914 = vadd.f32 0.0, %v913
      %v915 = vpop.f32.mrf.mxu0
      %916 = vmatprep.mubr.f32.mxu0 0.0
      %917 = vmatmul.mubr.f32.gmra.mxu0 %v715
      %v918 = vpop.f32.mrf.mxu0
      %v919 = vadd.f32 0.0, %v918
      %v920 = vpop.f32.mrf.mxu0
      %921 = vmatprep.mubr.f32.mxu0 0.0
      %922 = vmatmul.mubr.f32.gmra.mxu0 %v718
      %v923 = vpop.f32.mrf.mxu0
      %v924 = vadd.f32 0.0, %v923
      %v925 = vpop.f32.mrf.mxu0
      %926 = vmatprep.mubr.f32.mxu0 0.0
      %927 = vmatmul.mubr.f32.gmra.mxu0 %v721
      %v928 = vpop.f32.mrf.mxu0
      %v929 = vadd.f32 0.0, %v928
      %v930 = vpop.f32.mrf.mxu0
      %931 = vmatprep.mubr.f32.mxu0 0.0
      %932 = vmatmul.mubr.f32.gmra.mxu0 %v724
      %v933 = vpop.f32.mrf.mxu0
      %v934 = vadd.f32 0.0, %v933
      %v935 = vpop.f32.mrf.mxu0
      %936 = vmatprep.mubr.f32.mxu0 0.0
      %937 = vmatmul.mubr.f32.gmra.mxu0 %v727
      %v938 = vpop.f32.mrf.mxu0
      %v939 = vadd.f32 0.0, %v938
      %v940 = vpop.f32.mrf.mxu0
      %941 = vmatprep.mubr.f32.mxu0 0.0
      %942 = vmatmul.mubr.f32.gmra.mxu0 %v730
      %v943 = vpop.f32.mrf.mxu0
      %v944 = vadd.f32 0.0, %v943
      %v945 = vpop.f32.mrf.mxu0
      %946 = vmatprep.mubr.f32.mxu0 0.0
      %947 = vmatmul.mubr.f32.gmra.mxu0 %v733
      %v948 = vpop.f32.mrf.mxu0
      %v949 = vadd.f32 0.0, %v948
      %v950 = vpop.f32.mrf.mxu0
      %951 = vdwg.mxu0
      %vm952 = vcmask 31744
      %953 = vst.msk [vmem:[#allocation3] sm:$0xff] %vm952, %v774
      %954 = vst.msk [vmem:[#allocation3 + $0x8] sm:$0xff] %vm952, %v779
      %955 = vst.msk [vmem:[#allocation3 + $0x10] sm:$0xff] %vm952, %v784
      %956 = vst.msk [vmem:[#allocation3 + $0x18] sm:$0xff] %vm952, %v789
      %957 = vst.msk [vmem:[#allocation3 + $0x20] sm:$0xff] %vm952, %v794
      %958 = vst.msk [vmem:[#allocation3 + $0x28] sm:$0xff] %vm952, %v799
      %959 = vst.msk [vmem:[#allocation3 + $0x30] sm:$0xff] %vm952, %v804
      %960 = vst.msk [vmem:[#allocation3 + $0x38] sm:$0xff] %vm952, %v809
      %961 = vst.msk [vmem:[#allocation3 + $0x40] sm:$0xff] %vm952, %v814
      %962 = vst.msk [vmem:[#allocation3 + $0x48] sm:$0xff] %vm952, %v819
      %963 = vst.msk [vmem:[#allocation3 + $0x50] sm:$0xff] %vm952, %v824
      %964 = vst.msk [vmem:[#allocation3 + $0x58] sm:$0xff] %vm952, %v829
      %965 = vst.msk [vmem:[#allocation3 + $0x60] sm:$0xff] %vm952, %v834
      %966 = vst.msk [vmem:[#allocation3 + $0x68] sm:$0xff] %vm952, %v839
      %967 = vst.msk [vmem:[#allocation3 + $0x70] sm:$0xff] %vm952, %v844
      %968 = vst.msk [vmem:[#allocation3 + $0x78] sm:$0xff] %vm952, %v849
      %969 = vst.msk [vmem:[#allocation3 + $0x80] sm:$0xff] %vm952, %v854
      %970 = vst.msk [vmem:[#allocation3 + $0x88] sm:$0xff] %vm952, %v859
      %971 = vst.msk [vmem:[#allocation3 + $0x90] sm:$0xff] %vm952, %v864
      %972 = vst.msk [vmem:[#allocation3 + $0x98] sm:$0xff] %vm952, %v869
      %973 = vst.msk [vmem:[#allocation3 + $0xa0] sm:$0xff] %vm952, %v874
      %974 = vst.msk [vmem:[#allocation3 + $0xa8] sm:$0xff] %vm952, %v879
      %975 = vst.msk [vmem:[#allocation3 + $0xb0] sm:$0xff] %vm952, %v884
      %976 = vst.msk [vmem:[#allocation3 + $0xb8] sm:$0xff] %vm952, %v889
      %977 = vst.msk [vmem:[#allocation3 + $0xc0] sm:$0xff] %vm952, %v894
      %978 = vst.msk [vmem:[#allocation3 + $0xc8] sm:$0xff] %vm952, %v899
      %979 = vst.msk [vmem:[#allocation3 + $0xd0] sm:$0xff] %vm952, %v904
      %980 = vst.msk [vmem:[#allocation3 + $0xd8] sm:$0xff] %vm952, %v909
      %981 = vst.msk [vmem:[#allocation3 + $0xe0] sm:$0xff] %vm952, %v914
      %982 = vst.msk [vmem:[#allocation3 + $0xe8] sm:$0xff] %vm952, %v919
      %983 = vst.msk [vmem:[#allocation3 + $0xf0] sm:$0xff] %vm952, %v924
      %984 = vst.msk [vmem:[#allocation3 + $0xf8] sm:$0xff] %vm952, %v929
      %985 = vst.msk [vmem:[#allocation3 + $0x100] sm:$0xff] %vm952, %v934
      %986 = vst.msk [vmem:[#allocation3 + $0x108] sm:$0xff] %vm952, %v939
      %987 = vst.msk [vmem:[#allocation3 + $0x110] sm:$0xff] %vm952, %v944
      %988 = vst.msk [vmem:[#allocation3 + $0x118] sm:$0xff] %vm952, %v949
      %v989 = vld [vmem:[#allocation3] sm:$0xff]
      %v990 = vld [vmem:[#allocation3 + $0x8] sm:$0xff]
      %v991 = vld [vmem:[#allocation3 + $0x10] sm:$0xff]
      %v992 = vld [vmem:[#allocation3 + $0x18] sm:$0xff]
      %v993 = vld [vmem:[#allocation3 + $0x20] sm:$0xff]
      %v994 = vld [vmem:[#allocation3 + $0x28] sm:$0xff]
      %v995 = vld [vmem:[#allocation3 + $0x30] sm:$0xff]
      %v996 = vld [vmem:[#allocation3 + $0x38] sm:$0xff]
      %v997 = vld [vmem:[#allocation3 + $0x40] sm:$0xff]
      %v998 = vld [vmem:[#allocation3 + $0x48] sm:$0xff]
      %v999 = vld [vmem:[#allocation3 + $0x50] sm:$0xff]
      %v1000 = vld [vmem:[#allocation3 + $0x58] sm:$0xff]
      %v1001 = vld [vmem:[#allocation3 + $0x60] sm:$0xff]
      %v1002 = vld [vmem:[#allocation3 + $0x68] sm:$0xff]
      %v1003 = vld [vmem:[#allocation3 + $0x70] sm:$0xff]
      %v1004 = vld [vmem:[#allocation3 + $0x78] sm:$0xff]
      %v1005 = vld [vmem:[#allocation3 + $0x80] sm:$0xff]
      %v1006 = vld [vmem:[#allocation3 + $0x88] sm:$0xff]
      %v1007 = vld [vmem:[#allocation3 + $0x90] sm:$0xff]
      %v1008 = vld [vmem:[#allocation3 + $0x98] sm:$0xff]
      %v1009 = vld [vmem:[#allocation3 + $0xa0] sm:$0xff]
      %v1010 = vld [vmem:[#allocation3 + $0xa8] sm:$0xff]
      %v1011 = vld [vmem:[#allocation3 + $0xb0] sm:$0xff]
      %v1012 = vld [vmem:[#allocation3 + $0xb8] sm:$0xff]
      %v1013 = vld [vmem:[#allocation3 + $0xc0] sm:$0xff]
      %v1014 = vld [vmem:[#allocation3 + $0xc8] sm:$0xff]
      %v1015 = vld [vmem:[#allocation3 + $0xd0] sm:$0xff]
      %v1016 = vld [vmem:[#allocation3 + $0xd8] sm:$0xff]
      %v1017 = vld [vmem:[#allocation3 + $0xe0] sm:$0xff]
      %v1018 = vld [vmem:[#allocation3 + $0xe8] sm:$0xff]
      %v1019 = vld [vmem:[#allocation3 + $0xf0] sm:$0xff]
      %v1020 = vld [vmem:[#allocation3 + $0xf8] sm:$0xff]
      %v1021 = vld [vmem:[#allocation3 + $0x100] sm:$0xff]
      %v1022 = vld [vmem:[#allocation3 + $0x108] sm:$0xff]
      %v1023 = vld [vmem:[#allocation3 + $0x110] sm:$0xff]
      %v1024 = vld [vmem:[#allocation3 + $0x118] sm:$0xff]
      %v1025 = vld [vmem:[#allocation2 + $0x1] sm:$0xff]
      %v1026 = vld [vmem:[#allocation2 + $0x9] sm:$0xff]
      %v1027 = vld [vmem:[#allocation2 + $0x11] sm:$0xff]
      %v1028 = vld [vmem:[#allocation2 + $0x19] sm:$0xff]
      %v1029 = vld [vmem:[#allocation2 + $0x21] sm:$0xff]
      %v1030 = vld [vmem:[#allocation2 + $0x29] sm:$0xff]
      %v1031 = vld [vmem:[#allocation2 + $0x31] sm:$0xff]
      %v1032 = vld [vmem:[#allocation2 + $0x39] sm:$0xff]
      %v1033 = vld [vmem:[#allocation2 + $0x41] sm:$0xff]
      %v1034 = vld [vmem:[#allocation2 + $0x49] sm:$0xff]
      %v1035 = vld [vmem:[#allocation2 + $0x51] sm:$0xff]
      %v1036 = vld [vmem:[#allocation2 + $0x59] sm:$0xff]
      %v1037 = vld [vmem:[#allocation2 + $0x61] sm:$0xff]
      %v1038 = vld [vmem:[#allocation2 + $0x69] sm:$0xff]
      %v1039 = vld [vmem:[#allocation2 + $0x71] sm:$0xff]
      %v1040 = vld [vmem:[#allocation2 + $0x79] sm:$0xff]
      %v1041 = vld [vmem:[#allocation2 + $0x81] sm:$0xff]
      %v1042 = vld [vmem:[#allocation2 + $0x89] sm:$0xff]
      %v1043 = vld [vmem:[#allocation2 + $0x91] sm:$0xff]
      %v1044 = vld [vmem:[#allocation2 + $0x99] sm:$0xff]
      %v1045 = vld [vmem:[#allocation2 + $0xa1] sm:$0xff]
      %v1046 = vld [vmem:[#allocation2 + $0xa9] sm:$0xff]
      %v1047 = vld [vmem:[#allocation2 + $0xb1] sm:$0xff]
      %v1048 = vld [vmem:[#allocation2 + $0xb9] sm:$0xff]
      %v1049 = vld [vmem:[#allocation2 + $0xc1] sm:$0xff]
      %v1050 = vld [vmem:[#allocation2 + $0xc9] sm:$0xff]
      %v1051 = vld [vmem:[#allocation2 + $0xd1] sm:$0xff]
      %v1052 = vld [vmem:[#allocation2 + $0xd9] sm:$0xff]
      %v1053 = vld [vmem:[#allocation2 + $0xe1] sm:$0xff]
      %v1054 = vld [vmem:[#allocation2 + $0xe9] sm:$0xff]
      %v1055 = vld [vmem:[#allocation2 + $0xf1] sm:$0xff]
      %v1056 = vld [vmem:[#allocation2 + $0xf9] sm:$0xff]
      %v1057 = vld [vmem:[#allocation2 + $0x101] sm:$0xff]
      %v1058 = vld [vmem:[#allocation2 + $0x109] sm:$0xff]
      %v1059 = vld [vmem:[#allocation2 + $0x111] sm:$0xff]
      %v1060 = vld [vmem:[#allocation2 + $0x119] sm:$0xff]
      %s1061 = scalar_lea.vmem %s3, 1
      %v1062 = vld [vmem:[%s1061] sm:$0x1]
      %v1064 = vsel %vm277, %v1025, 0
      %v1067 = vsel %vm277, %v1026, 0
      %v1070 = vsel %vm277, %v1027, 0
      %v1073 = vsel %vm277, %v1028, 0
      %v1076 = vsel %vm277, %v1029, 0
      %v1079 = vsel %vm277, %v1030, 0
      %v1082 = vsel %vm277, %v1031, 0
      %v1085 = vsel %vm277, %v1032, 0
      %v1088 = vsel %vm277, %v1033, 0
      %v1091 = vsel %vm277, %v1034, 0
      %v1094 = vsel %vm277, %v1035, 0
      %v1097 = vsel %vm277, %v1036, 0
      %v1100 = vsel %vm277, %v1037, 0
      %v1103 = vsel %vm277, %v1038, 0
      %v1106 = vsel %vm277, %v1039, 0
      %v1109 = vsel %vm277, %v1040, 0
      %v1112 = vsel %vm277, %v1041, 0
      %v1115 = vsel %vm277, %v1042, 0
      %v1118 = vsel %vm277, %v1043, 0
      %v1121 = vsel %vm277, %v1044, 0
      %v1124 = vsel %vm277, %v1045, 0
      %v1127 = vsel %vm277, %v1046, 0
      %v1130 = vsel %vm277, %v1047, 0
      %v1133 = vsel %vm277, %v1048, 0
      %v1136 = vsel %vm277, %v1049, 0
      %v1139 = vsel %vm277, %v1050, 0
      %v1142 = vsel %vm277, %v1051, 0
      %v1145 = vsel %vm277, %v1052, 0
      %v1148 = vsel %vm277, %v1053, 0
      %v1151 = vsel %vm277, %v1054, 0
      %v1154 = vsel %vm277, %v1055, 0
      %v1157 = vsel %vm277, %v1056, 0
      %v1160 = vsel %vm277, %v1057, 0
      %v1163 = vsel %vm277, %v1058, 0
      %v1166 = vsel %vm277, %v1059, 0
      %v1169 = vsel %vm277, %v1060, 0
      %v1172 = vsel %vm735, %v1062, 0
      %1174 = vmatprep.subr.bf16.mxu0 0
      %1175 = vmatpush1.bf16.msra.mxu0 0
      %1176 = vmatprep.subr.bf16.mxu0 0
      %1177 = vmatpush1.bf16.msra.mxu0 0
      %1178 = vmatprep.subr.bf16.mxu0 0
      %1179 = vmatpush1.bf16.msra.mxu0 0
      %1180 = vmatprep.subr.bf16.mxu0 0
      %1181 = vmatpush1.bf16.msra.mxu0 0
      %1182 = vmatprep.subr.bf16.mxu0 0
      %1183 = vmatpush1.bf16.msra.mxu0 0
      %1184 = vmatprep.subr.bf16.mxu0 0
      %1185 = vmatpush1.bf16.msra.mxu0 0
      %1186 = vmatprep.subr.bf16.mxu0 0
      %1187 = vmatpush1.bf16.msra.mxu0 0
      %1188 = vmatprep.subr.bf16.mxu0 0
      %1189 = vmatpush1.bf16.msra.mxu0 %v1172
      %1190 = vmatprep.subr.bf16.mxu0 0
      %1191 = vmatpush2.bf16.msra.mxu0 0
      %1192 = vmatprep.subr.bf16.mxu0 0
      %1193 = vmatpush2.bf16.msra.mxu0 0
      %1194 = vmatprep.subr.bf16.mxu0 0
      %1195 = vmatpush2.bf16.msra.mxu0 0
      %1196 = vmatprep.subr.bf16.mxu0 0
      %1197 = vmatpush2.bf16.msra.mxu0 0
      %1198 = vmatprep.subr.bf16.mxu0 0
      %1199 = vmatpush2.bf16.msra.mxu0 0
      %1200 = vmatprep.subr.bf16.mxu0 0
      %1201 = vmatpush2.bf16.msra.mxu0 0
      %1202 = vmatprep.subr.bf16.mxu0 0
      %1203 = vmatpush2.bf16.msra.mxu0 0
      %1204 = vmatprep.subr.bf16.mxu0 0
      %1205 = vmatpush2.bf16.msra.mxu0 0
      %1206 = vmatprep.mubr.f32.mxu0 0.0
      %1207 = vmatmul.mubr.f32.gmra.mxu0 %v1064
      %v1208 = vpop.f32.mrf.mxu0
      %v1209 = vadd.f32 0.0, %v1208
      %v1210 = vpop.f32.mrf.mxu0
      %1211 = vmatprep.mubr.f32.mxu0 0.0
      %1212 = vmatmul.mubr.f32.gmra.mxu0 %v1067
      %v1213 = vpop.f32.mrf.mxu0
      %v1214 = vadd.f32 0.0, %v1213
      %v1215 = vpop.f32.mrf.mxu0
      %1216 = vmatprep.mubr.f32.mxu0 0.0
      %1217 = vmatmul.mubr.f32.gmra.mxu0 %v1070
      %v1218 = vpop.f32.mrf.mxu0
      %v1219 = vadd.f32 0.0, %v1218
      %v1220 = vpop.f32.mrf.mxu0
      %1221 = vmatprep.mubr.f32.mxu0 0.0
      %1222 = vmatmul.mubr.f32.gmra.mxu0 %v1073
      %v1223 = vpop.f32.mrf.mxu0
      %v1224 = vadd.f32 0.0, %v1223
      %v1225 = vpop.f32.mrf.mxu0
      %1226 = vmatprep.mubr.f32.mxu0 0.0
      %1227 = vmatmul.mubr.f32.gmra.mxu0 %v1076
      %v1228 = vpop.f32.mrf.mxu0
      %v1229 = vadd.f32 0.0, %v1228
      %v1230 = vpop.f32.mrf.mxu0
      %1231 = vmatprep.mubr.f32.mxu0 0.0
      %1232 = vmatmul.mubr.f32.gmra.mxu0 %v1079
      %v1233 = vpop.f32.mrf.mxu0
      %v1234 = vadd.f32 0.0, %v1233
      %v1235 = vpop.f32.mrf.mxu0
      %1236 = vmatprep.mubr.f32.mxu0 0.0
      %1237 = vmatmul.mubr.f32.gmra.mxu0 %v1082
      %v1238 = vpop.f32.mrf.mxu0
      %v1239 = vadd.f32 0.0, %v1238
      %v1240 = vpop.f32.mrf.mxu0
      %1241 = vmatprep.mubr.f32.mxu0 0.0
      %1242 = vmatmul.mubr.f32.gmra.mxu0 %v1085
      %v1243 = vpop.f32.mrf.mxu0
      %v1244 = vadd.f32 0.0, %v1243
      %v1245 = vpop.f32.mrf.mxu0
      %1246 = vmatprep.mubr.f32.mxu0 0.0
      %1247 = vmatmul.mubr.f32.gmra.mxu0 %v1088
      %v1248 = vpop.f32.mrf.mxu0
      %v1249 = vadd.f32 0.0, %v1248
      %v1250 = vpop.f32.mrf.mxu0
      %1251 = vmatprep.mubr.f32.mxu0 0.0
      %1252 = vmatmul.mubr.f32.gmra.mxu0 %v1091
      %v1253 = vpop.f32.mrf.mxu0
      %v1254 = vadd.f32 0.0, %v1253
      %v1255 = vpop.f32.mrf.mxu0
      %1256 = vmatprep.mubr.f32.mxu0 0.0
      %1257 = vmatmul.mubr.f32.gmra.mxu0 %v1094
      %v1258 = vpop.f32.mrf.mxu0
      %v1259 = vadd.f32 0.0, %v1258
      %v1260 = vpop.f32.mrf.mxu0
      %1261 = vmatprep.mubr.f32.mxu0 0.0
      %1262 = vmatmul.mubr.f32.gmra.mxu0 %v1097
      %v1263 = vpop.f32.mrf.mxu0
      %v1264 = vadd.f32 0.0, %v1263
      %v1265 = vpop.f32.mrf.mxu0
      %1266 = vmatprep.mubr.f32.mxu0 0.0
      %1267 = vmatmul.mubr.f32.gmra.mxu0 %v1100
      %v1268 = vpop.f32.mrf.mxu0
      %v1269 = vadd.f32 0.0, %v1268
      %v1270 = vpop.f32.mrf.mxu0
      %1271 = vmatprep.mubr.f32.mxu0 0.0
      %1272 = vmatmul.mubr.f32.gmra.mxu0 %v1103
      %v1273 = vpop.f32.mrf.mxu0
      %v1274 = vadd.f32 0.0, %v1273
      %v1275 = vpop.f32.mrf.mxu0
      %1276 = vmatprep.mubr.f32.mxu0 0.0
      %1277 = vmatmul.mubr.f32.gmra.mxu0 %v1106
      %v1278 = vpop.f32.mrf.mxu0
      %v1279 = vadd.f32 0.0, %v1278
      %v1280 = vpop.f32.mrf.mxu0
      %1281 = vmatprep.mubr.f32.mxu0 0.0
      %1282 = vmatmul.mubr.f32.gmra.mxu0 %v1109
      %v1283 = vpop.f32.mrf.mxu0
      %v1284 = vadd.f32 0.0, %v1283
      %v1285 = vpop.f32.mrf.mxu0
      %1286 = vmatprep.mubr.f32.mxu0 0.0
      %1287 = vmatmul.mubr.f32.gmra.mxu0 %v1112
      %v1288 = vpop.f32.mrf.mxu0
      %v1289 = vadd.f32 0.0, %v1288
      %v1290 = vpop.f32.mrf.mxu0
      %1291 = vmatprep.mubr.f32.mxu0 0.0
      %1292 = vmatmul.mubr.f32.gmra.mxu0 %v1115
      %v1293 = vpop.f32.mrf.mxu0
      %v1294 = vadd.f32 0.0, %v1293
      %v1295 = vpop.f32.mrf.mxu0
      %1296 = vmatprep.mubr.f32.mxu0 0.0
      %1297 = vmatmul.mubr.f32.gmra.mxu0 %v1118
      %v1298 = vpop.f32.mrf.mxu0
      %v1299 = vadd.f32 0.0, %v1298
      %v1300 = vpop.f32.mrf.mxu0
      %1301 = vmatprep.mubr.f32.mxu0 0.0
      %1302 = vmatmul.mubr.f32.gmra.mxu0 %v1121
      %v1303 = vpop.f32.mrf.mxu0
      %v1304 = vadd.f32 0.0, %v1303
      %v1305 = vpop.f32.mrf.mxu0
      %1306 = vmatprep.mubr.f32.mxu0 0.0
      %1307 = vmatmul.mubr.f32.gmra.mxu0 %v1124
      %v1308 = vpop.f32.mrf.mxu0
      %v1309 = vadd.f32 0.0, %v1308
      %v1310 = vpop.f32.mrf.mxu0
      %1311 = vmatprep.mubr.f32.mxu0 0.0
      %1312 = vmatmul.mubr.f32.gmra.mxu0 %v1127
      %v1313 = vpop.f32.mrf.mxu0
      %v1314 = vadd.f32 0.0, %v1313
      %v1315 = vpop.f32.mrf.mxu0
      %1316 = vmatprep.mubr.f32.mxu0 0.0
      %1317 = vmatmul.mubr.f32.gmra.mxu0 %v1130
      %v1318 = vpop.f32.mrf.mxu0
      %v1319 = vadd.f32 0.0, %v1318
      %v1320 = vpop.f32.mrf.mxu0
      %1321 = vmatprep.mubr.f32.mxu0 0.0
      %1322 = vmatmul.mubr.f32.gmra.mxu0 %v1133
      %v1323 = vpop.f32.mrf.mxu0
      %v1324 = vadd.f32 0.0, %v1323
      %v1325 = vpop.f32.mrf.mxu0
      %1326 = vmatprep.mubr.f32.mxu0 0.0
      %1327 = vmatmul.mubr.f32.gmra.mxu0 %v1136
      %v1328 = vpop.f32.mrf.mxu0
      %v1329 = vadd.f32 0.0, %v1328
      %v1330 = vpop.f32.mrf.mxu0
      %1331 = vmatprep.mubr.f32.mxu0 0.0
      %1332 = vmatmul.mubr.f32.gmra.mxu0 %v1139
      %v1333 = vpop.f32.mrf.mxu0
      %v1334 = vadd.f32 0.0, %v1333
      %v1335 = vpop.f32.mrf.mxu0
      %1336 = vmatprep.mubr.f32.mxu0 0.0
      %1337 = vmatmul.mubr.f32.gmra.mxu0 %v1142
      %v1338 = vpop.f32.mrf.mxu0
      %v1339 = vadd.f32 0.0, %v1338
      %v1340 = vpop.f32.mrf.mxu0
      %1341 = vmatprep.mubr.f32.mxu0 0.0
      %1342 = vmatmul.mubr.f32.gmra.mxu0 %v1145
      %v1343 = vpop.f32.mrf.mxu0
      %v1344 = vadd.f32 0.0, %v1343
      %v1345 = vpop.f32.mrf.mxu0
      %1346 = vmatprep.mubr.f32.mxu0 0.0
      %1347 = vmatmul.mubr.f32.gmra.mxu0 %v1148
      %v1348 = vpop.f32.mrf.mxu0
      %v1349 = vadd.f32 0.0, %v1348
      %v1350 = vpop.f32.mrf.mxu0
      %1351 = vmatprep.mubr.f32.mxu0 0.0
      %1352 = vmatmul.mubr.f32.gmra.mxu0 %v1151
      %v1353 = vpop.f32.mrf.mxu0
      %v1354 = vadd.f32 0.0, %v1353
      %v1355 = vpop.f32.mrf.mxu0
      %1356 = vmatprep.mubr.f32.mxu0 0.0
      %1357 = vmatmul.mubr.f32.gmra.mxu0 %v1154
      %v1358 = vpop.f32.mrf.mxu0
      %v1359 = vadd.f32 0.0, %v1358
      %v1360 = vpop.f32.mrf.mxu0
      %1361 = vmatprep.mubr.f32.mxu0 0.0
      %1362 = vmatmul.mubr.f32.gmra.mxu0 %v1157
      %v1363 = vpop.f32.mrf.mxu0
      %v1364 = vadd.f32 0.0, %v1363
      %v1365 = vpop.f32.mrf.mxu0
      %1366 = vmatprep.mubr.f32.mxu0 0.0
      %1367 = vmatmul.mubr.f32.gmra.mxu0 %v1160
      %v1368 = vpop.f32.mrf.mxu0
      %v1369 = vadd.f32 0.0, %v1368
      %v1370 = vpop.f32.mrf.mxu0
      %1371 = vmatprep.mubr.f32.mxu0 0.0
      %1372 = vmatmul.mubr.f32.gmra.mxu0 %v1163
      %v1373 = vpop.f32.mrf.mxu0
      %v1374 = vadd.f32 0.0, %v1373
      %v1375 = vpop.f32.mrf.mxu0
      %1376 = vmatprep.mubr.f32.mxu0 0.0
      %1377 = vmatmul.mubr.f32.gmra.mxu0 %v1166
      %v1378 = vpop.f32.mrf.mxu0
      %v1379 = vadd.f32 0.0, %v1378
      %v1380 = vpop.f32.mrf.mxu0
      %1381 = vmatprep.mubr.f32.mxu0 0.0
      %1382 = vmatmul.mubr.f32.gmra.mxu0 %v1169
      %v1383 = vpop.f32.mrf.mxu0
      %v1384 = vadd.f32 0.0, %v1383
      %v1385 = vpop.f32.mrf.mxu0
      %1386 = vdwg.mxu0
      %v1387 = vadd.f32 %v989, %v1209
      %v1388 = vadd.f32 %v990, %v1214
      %v1389 = vadd.f32 %v991, %v1219
      %v1390 = vadd.f32 %v992, %v1224
      %v1391 = vadd.f32 %v993, %v1229
      %v1392 = vadd.f32 %v994, %v1234
      %v1393 = vadd.f32 %v995, %v1239
      %v1394 = vadd.f32 %v996, %v1244
      %v1395 = vadd.f32 %v997, %v1249
      %v1396 = vadd.f32 %v998, %v1254
      %v1397 = vadd.f32 %v999, %v1259
      %v1398 = vadd.f32 %v1000, %v1264
      %v1399 = vadd.f32 %v1001, %v1269
      %v1400 = vadd.f32 %v1002, %v1274
      %v1401 = vadd.f32 %v1003, %v1279
      %v1402 = vadd.f32 %v1004, %v1284
      %v1403 = vadd.f32 %v1005, %v1289
      %v1404 = vadd.f32 %v1006, %v1294
      %v1405 = vadd.f32 %v1007, %v1299
      %v1406 = vadd.f32 %v1008, %v1304
      %v1407 = vadd.f32 %v1009, %v1309
      %v1408 = vadd.f32 %v1010, %v1314
      %v1409 = vadd.f32 %v1011, %v1319
      %v1410 = vadd.f32 %v1012, %v1324
      %v1411 = vadd.f32 %v1013, %v1329
      %v1412 = vadd.f32 %v1014, %v1334
      %v1413 = vadd.f32 %v1015, %v1339
      %v1414 = vadd.f32 %v1016, %v1344
      %v1415 = vadd.f32 %v1017, %v1349
      %v1416 = vadd.f32 %v1018, %v1354
      %v1417 = vadd.f32 %v1019, %v1359
      %v1418 = vadd.f32 %v1020, %v1364
      %v1419 = vadd.f32 %v1021, %v1369
      %v1420 = vadd.f32 %v1022, %v1374
      %v1421 = vadd.f32 %v1023, %v1379
      %v1422 = vadd.f32 %v1024, %v1384
      %1423 = vst.msk [vmem:[#allocation3] sm:$0xff] %vm952, %v1387
      %1424 = vst.msk [vmem:[#allocation3 + $0x8] sm:$0xff] %vm952, %v1388
      %1425 = vst.msk [vmem:[#allocation3 + $0x10] sm:$0xff] %vm952, %v1389
      %1426 = vst.msk [vmem:[#allocation3 + $0x18] sm:$0xff] %vm952, %v1390
      %1427 = vst.msk [vmem:[#allocation3 + $0x20] sm:$0xff] %vm952, %v1391
      %1428 = vst.msk [vmem:[#allocation3 + $0x28] sm:$0xff] %vm952, %v1392
      %1429 = vst.msk [vmem:[#allocation3 + $0x30] sm:$0xff] %vm952, %v1393
      %1430 = vst.msk [vmem:[#allocation3 + $0x38] sm:$0xff] %vm952, %v1394
      %1431 = vst.msk [vmem:[#allocation3 + $0x40] sm:$0xff] %vm952, %v1395
      %1432 = vst.msk [vmem:[#allocation3 + $0x48] sm:$0xff] %vm952, %v1396
      %1433 = vst.msk [vmem:[#allocation3 + $0x50] sm:$0xff] %vm952, %v1397
      %1434 = vst.msk [vmem:[#allocation3 + $0x58] sm:$0xff] %vm952, %v1398
      %1435 = vst.msk [vmem:[#allocation3 + $0x60] sm:$0xff] %vm952, %v1399
      %1436 = vst.msk [vmem:[#allocation3 + $0x68] sm:$0xff] %vm952, %v1400
      %1437 = vst.msk [vmem:[#allocation3 + $0x70] sm:$0xff] %vm952, %v1401
      %1438 = vst.msk [vmem:[#allocation3 + $0x78] sm:$0xff] %vm952, %v1402
      %1439 = vst.msk [vmem:[#allocation3 + $0x80] sm:$0xff] %vm952, %v1403
      %1440 = vst.msk [vmem:[#allocation3 + $0x88] sm:$0xff] %vm952, %v1404
      %1441 = vst.msk [vmem:[#allocation3 + $0x90] sm:$0xff] %vm952, %v1405
      %1442 = vst.msk [vmem:[#allocation3 + $0x98] sm:$0xff] %vm952, %v1406
      %1443 = vst.msk [vmem:[#allocation3 + $0xa0] sm:$0xff] %vm952, %v1407
      %1444 = vst.msk [vmem:[#allocation3 + $0xa8] sm:$0xff] %vm952, %v1408
      %1445 = vst.msk [vmem:[#allocation3 + $0xb0] sm:$0xff] %vm952, %v1409
      %1446 = vst.msk [vmem:[#allocation3 + $0xb8] sm:$0xff] %vm952, %v1410
      %1447 = vst.msk [vmem:[#allocation3 + $0xc0] sm:$0xff] %vm952, %v1411
      %1448 = vst.msk [vmem:[#allocation3 + $0xc8] sm:$0xff] %vm952, %v1412
      %1449 = vst.msk [vmem:[#allocation3 + $0xd0] sm:$0xff] %vm952, %v1413
      %1450 = vst.msk [vmem:[#allocation3 + $0xd8] sm:$0xff] %vm952, %v1414
      %1451 = vst.msk [vmem:[#allocation3 + $0xe0] sm:$0xff] %vm952, %v1415
      %1452 = vst.msk [vmem:[#allocation3 + $0xe8] sm:$0xff] %vm952, %v1416
      %1453 = vst.msk [vmem:[#allocation3 + $0xf0] sm:$0xff] %vm952, %v1417
      %1454 = vst.msk [vmem:[#allocation3 + $0xf8] sm:$0xff] %vm952, %v1418
      %1455 = vst.msk [vmem:[#allocation3 + $0x100] sm:$0xff] %vm952, %v1419
      %1456 = vst.msk [vmem:[#allocation3 + $0x108] sm:$0xff] %vm952, %v1420
      %1457 = vst.msk [vmem:[#allocation3 + $0x110] sm:$0xff] %vm952, %v1421
      %1458 = vst.msk [vmem:[#allocation3 + $0x118] sm:$0xff] %vm952, %v1422
      %v1459 = vld [vmem:[#allocation3] sm:$0xff]
      %v1460 = vld [vmem:[#allocation3 + $0x8] sm:$0xff]
      %v1461 = vld [vmem:[#allocation3 + $0x10] sm:$0xff]
      %v1462 = vld [vmem:[#allocation3 + $0x18] sm:$0xff]
      %v1463 = vld [vmem:[#allocation3 + $0x20] sm:$0xff]
      %v1464 = vld [vmem:[#allocation3 + $0x28] sm:$0xff]
      %v1465 = vld [vmem:[#allocation3 + $0x30] sm:$0xff]
      %v1466 = vld [vmem:[#allocation3 + $0x38] sm:$0xff]
      %v1467 = vld [vmem:[#allocation3 + $0x40] sm:$0xff]
      %v1468 = vld [vmem:[#allocation3 + $0x48] sm:$0xff]
      %v1469 = vld [vmem:[#allocation3 + $0x50] sm:$0xff]
      %v1470 = vld [vmem:[#allocation3 + $0x58] sm:$0xff]
      %v1471 = vld [vmem:[#allocation3 + $0x60] sm:$0xff]
      %v1472 = vld [vmem:[#allocation3 + $0x68] sm:$0xff]
      %v1473 = vld [vmem:[#allocation3 + $0x70] sm:$0xff]
      %v1474 = vld [vmem:[#allocation3 + $0x78] sm:$0xff]
      %v1475 = vld [vmem:[#allocation3 + $0x80] sm:$0xff]
      %v1476 = vld [vmem:[#allocation3 + $0x88] sm:$0xff]
      %v1477 = vld [vmem:[#allocation3 + $0x90] sm:$0xff]
      %v1478 = vld [vmem:[#allocation3 + $0x98] sm:$0xff]
      %v1479 = vld [vmem:[#allocation3 + $0xa0] sm:$0xff]
      %v1480 = vld [vmem:[#allocation3 + $0xa8] sm:$0xff]
      %v1481 = vld [vmem:[#allocation3 + $0xb0] sm:$0xff]
      %v1482 = vld [vmem:[#allocation3 + $0xb8] sm:$0xff]
      %v1483 = vld [vmem:[#allocation3 + $0xc0] sm:$0xff]
      %v1484 = vld [vmem:[#allocation3 + $0xc8] sm:$0xff]
      %v1485 = vld [vmem:[#allocation3 + $0xd0] sm:$0xff]
      %v1486 = vld [vmem:[#allocation3 + $0xd8] sm:$0xff]
      %v1487 = vld [vmem:[#allocation3 + $0xe0] sm:$0xff]
      %v1488 = vld [vmem:[#allocation3 + $0xe8] sm:$0xff]
      %v1489 = vld [vmem:[#allocation3 + $0xf0] sm:$0xff]
      %v1490 = vld [vmem:[#allocation3 + $0xf8] sm:$0xff]
      %v1491 = vld [vmem:[#allocation3 + $0x100] sm:$0xff]
      %v1492 = vld [vmem:[#allocation3 + $0x108] sm:$0xff]
      %v1493 = vld [vmem:[#allocation3 + $0x110] sm:$0xff]
      %v1494 = vld [vmem:[#allocation3 + $0x118] sm:$0xff]
      %v1495 = vld [vmem:[#allocation2 + $0x2] sm:$0xff]
      %v1496 = vld [vmem:[#allocation2 + $0xa] sm:$0xff]
      %v1497 = vld [vmem:[#allocation2 + $0x12] sm:$0xff]
      %v1498 = vld [vmem:[#allocation2 + $0x1a] sm:$0xff]
      %v1499 = vld [vmem:[#allocation2 + $0x22] sm:$0xff]
      %v1500 = vld [vmem:[#allocation2 + $0x2a] sm:$0xff]
      %v1501 = vld [vmem:[#allocation2 + $0x32] sm:$0xff]
      %v1502 = vld [vmem:[#allocation2 + $0x3a] sm:$0xff]
      %v1503 = vld [vmem:[#allocation2 + $0x42] sm:$0xff]
      %v1504 = vld [vmem:[#allocation2 + $0x4a] sm:$0xff]
      %v1505 = vld [vmem:[#allocation2 + $0x52] sm:$0xff]
      %v1506 = vld [vmem:[#allocation2 + $0x5a] sm:$0xff]
      %v1507 = vld [vmem:[#allocation2 + $0x62] sm:$0xff]
      %v1508 = vld [vmem:[#allocation2 + $0x6a] sm:$0xff]
      %v1509 = vld [vmem:[#allocation2 + $0x72] sm:$0xff]
      %v1510 = vld [vmem:[#allocation2 + $0x7a] sm:$0xff]
      %v1511 = vld [vmem:[#allocation2 + $0x82] sm:$0xff]
      %v1512 = vld [vmem:[#allocation2 + $0x8a] sm:$0xff]
      %v1513 = vld [vmem:[#allocation2 + $0x92] sm:$0xff]
      %v1514 = vld [vmem:[#allocation2 + $0x9a] sm:$0xff]
      %v1515 = vld [vmem:[#allocation2 + $0xa2] sm:$0xff]
      %v1516 = vld [vmem:[#allocation2 + $0xaa] sm:$0xff]
      %v1517 = vld [vmem:[#allocation2 + $0xb2] sm:$0xff]
      %v1518 = vld [vmem:[#allocation2 + $0xba] sm:$0xff]
      %v1519 = vld [vmem:[#allocation2 + $0xc2] sm:$0xff]
      %v1520 = vld [vmem:[#allocation2 + $0xca] sm:$0xff]
      %v1521 = vld [vmem:[#allocation2 + $0xd2] sm:$0xff]
      %v1522 = vld [vmem:[#allocation2 + $0xda] sm:$0xff]
      %v1523 = vld [vmem:[#allocation2 + $0xe2] sm:$0xff]
      %v1524 = vld [vmem:[#allocation2 + $0xea] sm:$0xff]
      %v1525 = vld [vmem:[#allocation2 + $0xf2] sm:$0xff]
      %v1526 = vld [vmem:[#allocation2 + $0xfa] sm:$0xff]
      %v1527 = vld [vmem:[#allocation2 + $0x102] sm:$0xff]
      %v1528 = vld [vmem:[#allocation2 + $0x10a] sm:$0xff]
      %v1529 = vld [vmem:[#allocation2 + $0x112] sm:$0xff]
      %v1530 = vld [vmem:[#allocation2 + $0x11a] sm:$0xff]
      %s1531 = scalar_lea.vmem %s3, 2
      %v1532 = vld [vmem:[%s1531] sm:$0x1]
      %v1534 = vsel %vm277, %v1495, 0
      %v1537 = vsel %vm277, %v1496, 0
      %v1540 = vsel %vm277, %v1497, 0
      %v1543 = vsel %vm277, %v1498, 0
      %v1546 = vsel %vm277, %v1499, 0
      %v1549 = vsel %vm277, %v1500, 0
      %v1552 = vsel %vm277, %v1501, 0
      %v1555 = vsel %vm277, %v1502, 0
      %v1558 = vsel %vm277, %v1503, 0
      %v1561 = vsel %vm277, %v1504, 0
      %v1564 = vsel %vm277, %v1505, 0
      %v1567 = vsel %vm277, %v1506, 0
      %v1570 = vsel %vm277, %v1507, 0
      %v1573 = vsel %vm277, %v1508, 0
      %v1576 = vsel %vm277, %v1509, 0
      %v1579 = vsel %vm277, %v1510, 0
      %v1582 = vsel %vm277, %v1511, 0
      %v1585 = vsel %vm277, %v1512, 0
      %v1588 = vsel %vm277, %v1513, 0
      %v1591 = vsel %vm277, %v1514, 0
      %v1594 = vsel %vm277, %v1515, 0
      %v1597 = vsel %vm277, %v1516, 0
      %v1600 = vsel %vm277, %v1517, 0
      %v1603 = vsel %vm277, %v1518, 0
      %v1606 = vsel %vm277, %v1519, 0
      %v1609 = vsel %vm277, %v1520, 0
      %v1612 = vsel %vm277, %v1521, 0
      %v1615 = vsel %vm277, %v1522, 0
      %v1618 = vsel %vm277, %v1523, 0
      %v1621 = vsel %vm277, %v1524, 0
      %v1624 = vsel %vm277, %v1525, 0
      %v1627 = vsel %vm277, %v1526, 0
      %v1630 = vsel %vm277, %v1527, 0
      %v1633 = vsel %vm277, %v1528, 0
      %v1636 = vsel %vm277, %v1529, 0
      %v1639 = vsel %vm277, %v1530, 0
      %v1642 = vsel %vm735, %v1532, 0
      %1644 = vmatprep.subr.bf16.mxu0 0
      %1645 = vmatpush1.bf16.msra.mxu0 0
      %1646 = vmatprep.subr.bf16.mxu0 0
      %1647 = vmatpush1.bf16.msra.mxu0 0
      %1648 = vmatprep.subr.bf16.mxu0 0
      %1649 = vmatpush1.bf16.msra.mxu0 0
      %1650 = vmatprep.subr.bf16.mxu0 0
      %1651 = vmatpush1.bf16.msra.mxu0 0
      %1652 = vmatprep.subr.bf16.mxu0 0
      %1653 = vmatpush1.bf16.msra.mxu0 0
      %1654 = vmatprep.subr.bf16.mxu0 0
      %1655 = vmatpush1.bf16.msra.mxu0 0
      %1656 = vmatprep.subr.bf16.mxu0 0
      %1657 = vmatpush1.bf16.msra.mxu0 0
      %1658 = vmatprep.subr.bf16.mxu0 0
      %1659 = vmatpush1.bf16.msra.mxu0 %v1642
      %1660 = vmatprep.subr.bf16.mxu0 0
      %1661 = vmatpush2.bf16.msra.mxu0 0
      %1662 = vmatprep.subr.bf16.mxu0 0
      %1663 = vmatpush2.bf16.msra.mxu0 0
      %1664 = vmatprep.subr.bf16.mxu0 0
      %1665 = vmatpush2.bf16.msra.mxu0 0
      %1666 = vmatprep.subr.bf16.mxu0 0
      %1667 = vmatpush2.bf16.msra.mxu0 0
      %1668 = vmatprep.subr.bf16.mxu0 0
      %1669 = vmatpush2.bf16.msra.mxu0 0
      %1670 = vmatprep.subr.bf16.mxu0 0
      %1671 = vmatpush2.bf16.msra.mxu0 0
      %1672 = vmatprep.subr.bf16.mxu0 0
      %1673 = vmatpush2.bf16.msra.mxu0 0
      %1674 = vmatprep.subr.bf16.mxu0 0
      %1675 = vmatpush2.bf16.msra.mxu0 0
      %1676 = vmatprep.mubr.f32.mxu0 0.0
      %1677 = vmatmul.mubr.f32.gmra.mxu0 %v1534
      %v1678 = vpop.f32.mrf.mxu0
      %v1679 = vadd.f32 0.0, %v1678
      %v1680 = vpop.f32.mrf.mxu0
      %1681 = vmatprep.mubr.f32.mxu0 0.0
      %1682 = vmatmul.mubr.f32.gmra.mxu0 %v1537
      %v1683 = vpop.f32.mrf.mxu0
      %v1684 = vadd.f32 0.0, %v1683
      %v1685 = vpop.f32.mrf.mxu0
      %1686 = vmatprep.mubr.f32.mxu0 0.0
      %1687 = vmatmul.mubr.f32.gmra.mxu0 %v1540
      %v1688 = vpop.f32.mrf.mxu0
      %v1689 = vadd.f32 0.0, %v1688
      %v1690 = vpop.f32.mrf.mxu0
      %1691 = vmatprep.mubr.f32.mxu0 0.0
      %1692 = vmatmul.mubr.f32.gmra.mxu0 %v1543
      %v1693 = vpop.f32.mrf.mxu0
      %v1694 = vadd.f32 0.0, %v1693
      %v1695 = vpop.f32.mrf.mxu0
      %1696 = vmatprep.mubr.f32.mxu0 0.0
      %1697 = vmatmul.mubr.f32.gmra.mxu0 %v1546
      %v1698 = vpop.f32.mrf.mxu0
      %v1699 = vadd.f32 0.0, %v1698
      %v1700 = vpop.f32.mrf.mxu0
      %1701 = vmatprep.mubr.f32.mxu0 0.0
      %1702 = vmatmul.mubr.f32.gmra.mxu0 %v1549
      %v1703 = vpop.f32.mrf.mxu0
      %v1704 = vadd.f32 0.0, %v1703
      %v1705 = vpop.f32.mrf.mxu0
      %1706 = vmatprep.mubr.f32.mxu0 0.0
      %1707 = vmatmul.mubr.f32.gmra.mxu0 %v1552
      %v1708 = vpop.f32.mrf.mxu0
      %v1709 = vadd.f32 0.0, %v1708
      %v1710 = vpop.f32.mrf.mxu0
      %1711 = vmatprep.mubr.f32.mxu0 0.0
      %1712 = vmatmul.mubr.f32.gmra.mxu0 %v1555
      %v1713 = vpop.f32.mrf.mxu0
      %v1714 = vadd.f32 0.0, %v1713
      %v1715 = vpop.f32.mrf.mxu0
      %1716 = vmatprep.mubr.f32.mxu0 0.0
      %1717 = vmatmul.mubr.f32.gmra.mxu0 %v1558
      %v1718 = vpop.f32.mrf.mxu0
      %v1719 = vadd.f32 0.0, %v1718
      %v1720 = vpop.f32.mrf.mxu0
      %1721 = vmatprep.mubr.f32.mxu0 0.0
      %1722 = vmatmul.mubr.f32.gmra.mxu0 %v1561
      %v1723 = vpop.f32.mrf.mxu0
      %v1724 = vadd.f32 0.0, %v1723
      %v1725 = vpop.f32.mrf.mxu0
      %1726 = vmatprep.mubr.f32.mxu0 0.0
      %1727 = vmatmul.mubr.f32.gmra.mxu0 %v1564
      %v1728 = vpop.f32.mrf.mxu0
      %v1729 = vadd.f32 0.0, %v1728
      %v1730 = vpop.f32.mrf.mxu0
      %1731 = vmatprep.mubr.f32.mxu0 0.0
      %1732 = vmatmul.mubr.f32.gmra.mxu0 %v1567
      %v1733 = vpop.f32.mrf.mxu0
      %v1734 = vadd.f32 0.0, %v1733
      %v1735 = vpop.f32.mrf.mxu0
      %1736 = vmatprep.mubr.f32.mxu0 0.0
      %1737 = vmatmul.mubr.f32.gmra.mxu0 %v1570
      %v1738 = vpop.f32.mrf.mxu0
      %v1739 = vadd.f32 0.0, %v1738
      %v1740 = vpop.f32.mrf.mxu0
      %1741 = vmatprep.mubr.f32.mxu0 0.0
      %1742 = vmatmul.mubr.f32.gmra.mxu0 %v1573
      %v1743 = vpop.f32.mrf.mxu0
      %v1744 = vadd.f32 0.0, %v1743
      %v1745 = vpop.f32.mrf.mxu0
      %1746 = vmatprep.mubr.f32.mxu0 0.0
      %1747 = vmatmul.mubr.f32.gmra.mxu0 %v1576
      %v1748 = vpop.f32.mrf.mxu0
      %v1749 = vadd.f32 0.0, %v1748
      %v1750 = vpop.f32.mrf.mxu0
      %1751 = vmatprep.mubr.f32.mxu0 0.0
      %1752 = vmatmul.mubr.f32.gmra.mxu0 %v1579
      %v1753 = vpop.f32.mrf.mxu0
      %v1754 = vadd.f32 0.0, %v1753
      %v1755 = vpop.f32.mrf.mxu0
      %1756 = vmatprep.mubr.f32.mxu0 0.0
      %1757 = vmatmul.mubr.f32.gmra.mxu0 %v1582
      %v1758 = vpop.f32.mrf.mxu0
      %v1759 = vadd.f32 0.0, %v1758
      %v1760 = vpop.f32.mrf.mxu0
      %1761 = vmatprep.mubr.f32.mxu0 0.0
      %1762 = vmatmul.mubr.f32.gmra.mxu0 %v1585
      %v1763 = vpop.f32.mrf.mxu0
      %v1764 = vadd.f32 0.0, %v1763
      %v1765 = vpop.f32.mrf.mxu0
      %1766 = vmatprep.mubr.f32.mxu0 0.0
      %1767 = vmatmul.mubr.f32.gmra.mxu0 %v1588
      %v1768 = vpop.f32.mrf.mxu0
      %v1769 = vadd.f32 0.0, %v1768
      %v1770 = vpop.f32.mrf.mxu0
      %1771 = vmatprep.mubr.f32.mxu0 0.0
      %1772 = vmatmul.mubr.f32.gmra.mxu0 %v1591
      %v1773 = vpop.f32.mrf.mxu0
      %v1774 = vadd.f32 0.0, %v1773
      %v1775 = vpop.f32.mrf.mxu0
      %1776 = vmatprep.mubr.f32.mxu0 0.0
      %1777 = vmatmul.mubr.f32.gmra.mxu0 %v1594
      %v1778 = vpop.f32.mrf.mxu0
      %v1779 = vadd.f32 0.0, %v1778
      %v1780 = vpop.f32.mrf.mxu0
      %1781 = vmatprep.mubr.f32.mxu0 0.0
      %1782 = vmatmul.mubr.f32.gmra.mxu0 %v1597
      %v1783 = vpop.f32.mrf.mxu0
      %v1784 = vadd.f32 0.0, %v1783
      %v1785 = vpop.f32.mrf.mxu0
      %1786 = vmatprep.mubr.f32.mxu0 0.0
      %1787 = vmatmul.mubr.f32.gmra.mxu0 %v1600
      %v1788 = vpop.f32.mrf.mxu0
      %v1789 = vadd.f32 0.0, %v1788
      %v1790 = vpop.f32.mrf.mxu0
      %1791 = vmatprep.mubr.f32.mxu0 0.0
      %1792 = vmatmul.mubr.f32.gmra.mxu0 %v1603
      %v1793 = vpop.f32.mrf.mxu0
      %v1794 = vadd.f32 0.0, %v1793
      %v1795 = vpop.f32.mrf.mxu0
      %1796 = vmatprep.mubr.f32.mxu0 0.0
      %1797 = vmatmul.mubr.f32.gmra.mxu0 %v1606
      %v1798 = vpop.f32.mrf.mxu0
      %v1799 = vadd.f32 0.0, %v1798
      %v1800 = vpop.f32.mrf.mxu0
      %1801 = vmatprep.mubr.f32.mxu0 0.0
      %1802 = vmatmul.mubr.f32.gmra.mxu0 %v1609
      %v1803 = vpop.f32.mrf.mxu0
      %v1804 = vadd.f32 0.0, %v1803
      %v1805 = vpop.f32.mrf.mxu0
      %1806 = vmatprep.mubr.f32.mxu0 0.0
      %1807 = vmatmul.mubr.f32.gmra.mxu0 %v1612
      %v1808 = vpop.f32.mrf.mxu0
      %v1809 = vadd.f32 0.0, %v1808
      %v1810 = vpop.f32.mrf.mxu0
      %1811 = vmatprep.mubr.f32.mxu0 0.0
      %1812 = vmatmul.mubr.f32.gmra.mxu0 %v1615
      %v1813 = vpop.f32.mrf.mxu0
      %v1814 = vadd.f32 0.0, %v1813
      %v1815 = vpop.f32.mrf.mxu0
      %1816 = vmatprep.mubr.f32.mxu0 0.0
      %1817 = vmatmul.mubr.f32.gmra.mxu0 %v1618
      %v1818 = vpop.f32.mrf.mxu0
      %v1819 = vadd.f32 0.0, %v1818
      %v1820 = vpop.f32.mrf.mxu0
      %1821 = vmatprep.mubr.f32.mxu0 0.0
      %1822 = vmatmul.mubr.f32.gmra.mxu0 %v1621
      %v1823 = vpop.f32.mrf.mxu0
      %v1824 = vadd.f32 0.0, %v1823
      %v1825 = vpop.f32.mrf.mxu0
      %1826 = vmatprep.mubr.f32.mxu0 0.0
      %1827 = vmatmul.mubr.f32.gmra.mxu0 %v1624
      %v1828 = vpop.f32.mrf.mxu0
      %v1829 = vadd.f32 0.0, %v1828
      %v1830 = vpop.f32.mrf.mxu0
      %1831 = vmatprep.mubr.f32.mxu0 0.0
      %1832 = vmatmul.mubr.f32.gmra.mxu0 %v1627
      %v1833 = vpop.f32.mrf.mxu0
      %v1834 = vadd.f32 0.0, %v1833
      %v1835 = vpop.f32.mrf.mxu0
      %1836 = vmatprep.mubr.f32.mxu0 0.0
      %1837 = vmatmul.mubr.f32.gmra.mxu0 %v1630
      %v1838 = vpop.f32.mrf.mxu0
      %v1839 = vadd.f32 0.0, %v1838
      %v1840 = vpop.f32.mrf.mxu0
      %1841 = vmatprep.mubr.f32.mxu0 0.0
      %1842 = vmatmul.mubr.f32.gmra.mxu0 %v1633
      %v1843 = vpop.f32.mrf.mxu0
      %v1844 = vadd.f32 0.0, %v1843
      %v1845 = vpop.f32.mrf.mxu0
      %1846 = vmatprep.mubr.f32.mxu0 0.0
      %1847 = vmatmul.mubr.f32.gmra.mxu0 %v1636
      %v1848 = vpop.f32.mrf.mxu0
      %v1849 = vadd.f32 0.0, %v1848
      %v1850 = vpop.f32.mrf.mxu0
      %1851 = vmatprep.mubr.f32.mxu0 0.0
      %1852 = vmatmul.mubr.f32.gmra.mxu0 %v1639
      %v1853 = vpop.f32.mrf.mxu0
      %v1854 = vadd.f32 0.0, %v1853
      %v1855 = vpop.f32.mrf.mxu0
      %1856 = vdwg.mxu0
      %v1857 = vadd.f32 %v1459, %v1679
      %v1858 = vadd.f32 %v1460, %v1684
      %v1859 = vadd.f32 %v1461, %v1689
      %v1860 = vadd.f32 %v1462, %v1694
      %v1861 = vadd.f32 %v1463, %v1699
      %v1862 = vadd.f32 %v1464, %v1704
      %v1863 = vadd.f32 %v1465, %v1709
      %v1864 = vadd.f32 %v1466, %v1714
      %v1865 = vadd.f32 %v1467, %v1719
      %v1866 = vadd.f32 %v1468, %v1724
      %v1867 = vadd.f32 %v1469, %v1729
      %v1868 = vadd.f32 %v1470, %v1734
      %v1869 = vadd.f32 %v1471, %v1739
      %v1870 = vadd.f32 %v1472, %v1744
      %v1871 = vadd.f32 %v1473, %v1749
      %v1872 = vadd.f32 %v1474, %v1754
      %v1873 = vadd.f32 %v1475, %v1759
      %v1874 = vadd.f32 %v1476, %v1764
      %v1875 = vadd.f32 %v1477, %v1769
      %v1876 = vadd.f32 %v1478, %v1774
      %v1877 = vadd.f32 %v1479, %v1779
      %v1878 = vadd.f32 %v1480, %v1784
      %v1879 = vadd.f32 %v1481, %v1789
      %v1880 = vadd.f32 %v1482, %v1794
      %v1881 = vadd.f32 %v1483, %v1799
      %v1882 = vadd.f32 %v1484, %v1804
      %v1883 = vadd.f32 %v1485, %v1809
      %v1884 = vadd.f32 %v1486, %v1814
      %v1885 = vadd.f32 %v1487, %v1819
      %v1886 = vadd.f32 %v1488, %v1824
      %v1887 = vadd.f32 %v1489, %v1829
      %v1888 = vadd.f32 %v1490, %v1834
      %v1889 = vadd.f32 %v1491, %v1839
      %v1890 = vadd.f32 %v1492, %v1844
      %v1891 = vadd.f32 %v1493, %v1849
      %v1892 = vadd.f32 %v1494, %v1854
      %1893 = vst.msk [vmem:[#allocation3] sm:$0xff] %vm952, %v1857
      %1894 = vst.msk [vmem:[#allocation3 + $0x8] sm:$0xff] %vm952, %v1858
      %1895 = vst.msk [vmem:[#allocation3 + $0x10] sm:$0xff] %vm952, %v1859
      %1896 = vst.msk [vmem:[#allocation3 + $0x18] sm:$0xff] %vm952, %v1860
      %1897 = vst.msk [vmem:[#allocation3 + $0x20] sm:$0xff] %vm952, %v1861
      %1898 = vst.msk [vmem:[#allocation3 + $0x28] sm:$0xff] %vm952, %v1862
      %1899 = vst.msk [vmem:[#allocation3 + $0x30] sm:$0xff] %vm952, %v1863
      %1900 = vst.msk [vmem:[#allocation3 + $0x38] sm:$0xff] %vm952, %v1864
      %1901 = vst.msk [vmem:[#allocation3 + $0x40] sm:$0xff] %vm952, %v1865
      %1902 = vst.msk [vmem:[#allocation3 + $0x48] sm:$0xff] %vm952, %v1866
      %1903 = vst.msk [vmem:[#allocation3 + $0x50] sm:$0xff] %vm952, %v1867
      %1904 = vst.msk [vmem:[#allocation3 + $0x58] sm:$0xff] %vm952, %v1868
      %1905 = vst.msk [vmem:[#allocation3 + $0x60] sm:$0xff] %vm952, %v1869
      %1906 = vst.msk [vmem:[#allocation3 + $0x68] sm:$0xff] %vm952, %v1870
      %1907 = vst.msk [vmem:[#allocation3 + $0x70] sm:$0xff] %vm952, %v1871
      %1908 = vst.msk [vmem:[#allocation3 + $0x78] sm:$0xff] %vm952, %v1872
      %1909 = vst.msk [vmem:[#allocation3 + $0x80] sm:$0xff] %vm952, %v1873
      %1910 = vst.msk [vmem:[#allocation3 + $0x88] sm:$0xff] %vm952, %v1874
      %1911 = vst.msk [vmem:[#allocation3 + $0x90] sm:$0xff] %vm952, %v1875
      %1912 = vst.msk [vmem:[#allocation3 + $0x98] sm:$0xff] %vm952, %v1876
      %1913 = vst.msk [vmem:[#allocation3 + $0xa0] sm:$0xff] %vm952, %v1877
      %1914 = vst.msk [vmem:[#allocation3 + $0xa8] sm:$0xff] %vm952, %v1878
      %1915 = vst.msk [vmem:[#allocation3 + $0xb0] sm:$0xff] %vm952, %v1879
      %1916 = vst.msk [vmem:[#allocation3 + $0xb8] sm:$0xff] %vm952, %v1880
      %1917 = vst.msk [vmem:[#allocation3 + $0xc0] sm:$0xff] %vm952, %v1881
      %1918 = vst.msk [vmem:[#allocation3 + $0xc8] sm:$0xff] %vm952, %v1882
      %1919 = vst.msk [vmem:[#allocation3 + $0xd0] sm:$0xff] %vm952, %v1883
      %1920 = vst.msk [vmem:[#allocation3 + $0xd8] sm:$0xff] %vm952, %v1884
      %1921 = vst.msk [vmem:[#allocation3 + $0xe0] sm:$0xff] %vm952, %v1885
      %1922 = vst.msk [vmem:[#allocation3 + $0xe8] sm:$0xff] %vm952, %v1886
      %1923 = vst.msk [vmem:[#allocation3 + $0xf0] sm:$0xff] %vm952, %v1887
      %1924 = vst.msk [vmem:[#allocation3 + $0xf8] sm:$0xff] %vm952, %v1888
      %1925 = vst.msk [vmem:[#allocation3 + $0x100] sm:$0xff] %vm952, %v1889
      %1926 = vst.msk [vmem:[#allocation3 + $0x108] sm:$0xff] %vm952, %v1890
      %1927 = vst.msk [vmem:[#allocation3 + $0x110] sm:$0xff] %vm952, %v1891
      %1928 = vst.msk [vmem:[#allocation3 + $0x118] sm:$0xff] %vm952, %v1892
      %v1929 = vld [vmem:[#allocation3] sm:$0xff]
      %v1930 = vld [vmem:[#allocation3 + $0x8] sm:$0xff]
      %v1931 = vld [vmem:[#allocation3 + $0x10] sm:$0xff]
      %v1932 = vld [vmem:[#allocation3 + $0x18] sm:$0xff]
      %v1933 = vld [vmem:[#allocation3 + $0x20] sm:$0xff]
      %v1934 = vld [vmem:[#allocation3 + $0x28] sm:$0xff]
      %v1935 = vld [vmem:[#allocation3 + $0x30] sm:$0xff]
      %v1936 = vld [vmem:[#allocation3 + $0x38] sm:$0xff]
      %v1937 = vld [vmem:[#allocation3 + $0x40] sm:$0xff]
      %v1938 = vld [vmem:[#allocation3 + $0x48] sm:$0xff]
      %v1939 = vld [vmem:[#allocation3 + $0x50] sm:$0xff]
      %v1940 = vld [vmem:[#allocation3 + $0x58] sm:$0xff]
      %v1941 = vld [vmem:[#allocation3 + $0x60] sm:$0xff]
      %v1942 = vld [vmem:[#allocation3 + $0x68] sm:$0xff]
      %v1943 = vld [vmem:[#allocation3 + $0x70] sm:$0xff]
      %v1944 = vld [vmem:[#allocation3 + $0x78] sm:$0xff]
      %v1945 = vld [vmem:[#allocation3 + $0x80] sm:$0xff]
      %v1946 = vld [vmem:[#allocation3 + $0x88] sm:$0xff]
      %v1947 = vld [vmem:[#allocation3 + $0x90] sm:$0xff]
      %v1948 = vld [vmem:[#allocation3 + $0x98] sm:$0xff]
      %v1949 = vld [vmem:[#allocation3 + $0xa0] sm:$0xff]
      %v1950 = vld [vmem:[#allocation3 + $0xa8] sm:$0xff]
      %v1951 = vld [vmem:[#allocation3 + $0xb0] sm:$0xff]
      %v1952 = vld [vmem:[#allocation3 + $0xb8] sm:$0xff]
      %v1953 = vld [vmem:[#allocation3 + $0xc0] sm:$0xff]
      %v1954 = vld [vmem:[#allocation3 + $0xc8] sm:$0xff]
      %v1955 = vld [vmem:[#allocation3 + $0xd0] sm:$0xff]
      %v1956 = vld [vmem:[#allocation3 + $0xd8] sm:$0xff]
      %v1957 = vld [vmem:[#allocation3 + $0xe0] sm:$0xff]
      %v1958 = vld [vmem:[#allocation3 + $0xe8] sm:$0xff]
      %v1959 = vld [vmem:[#allocation3 + $0xf0] sm:$0xff]
      %v1960 = vld [vmem:[#allocation3 + $0xf8] sm:$0xff]
      %v1961 = vld [vmem:[#allocation3 + $0x100] sm:$0xff]
      %v1962 = vld [vmem:[#allocation3 + $0x108] sm:$0xff]
      %v1963 = vld [vmem:[#allocation3 + $0x110] sm:$0xff]
      %v1964 = vld [vmem:[#allocation3 + $0x118] sm:$0xff]
      %v1965 = vld [vmem:[#allocation2 + $0x12] sm:$0xff]
      %v1966 = vld [vmem:[#allocation2 + $0x1a] sm:$0xff]
      %v1967 = vld [vmem:[#allocation2 + $0x22] sm:$0xff]
      %v1968 = vld [vmem:[#allocation2 + $0x2a] sm:$0xff]
      %v1969 = vld [vmem:[#allocation2 + $0x32] sm:$0xff]
      %v1970 = vld [vmem:[#allocation2 + $0x3a] sm:$0xff]
      %v1971 = vld [vmem:[#allocation2 + $0x42] sm:$0xff]
      %v1972 = vld [vmem:[#allocation2 + $0x4a] sm:$0xff]
      %v1973 = vld [vmem:[#allocation2 + $0x52] sm:$0xff]
      %v1974 = vld [vmem:[#allocation2 + $0x5a] sm:$0xff]
      %v1975 = vld [vmem:[#allocation2 + $0x62] sm:$0xff]
      %v1976 = vld [vmem:[#allocation2 + $0x6a] sm:$0xff]
      %v1977 = vld [vmem:[#allocation2 + $0x72] sm:$0xff]
      %v1978 = vld [vmem:[#allocation2 + $0x7a] sm:$0xff]
      %v1979 = vld [vmem:[#allocation2 + $0x82] sm:$0xff]
      %v1980 = vld [vmem:[#allocation2 + $0x8a] sm:$0xff]
      %v1981 = vld [vmem:[#allocation2 + $0x92] sm:$0xff]
      %v1982 = vld [vmem:[#allocation2 + $0x9a] sm:$0xff]
      %v1983 = vld [vmem:[#allocation2 + $0xa2] sm:$0xff]
      %v1984 = vld [vmem:[#allocation2 + $0xaa] sm:$0xff]
      %v1985 = vld [vmem:[#allocation2 + $0xb2] sm:$0xff]
      %v1986 = vld [vmem:[#allocation2 + $0xba] sm:$0xff]
      %v1987 = vld [vmem:[#allocation2 + $0xc2] sm:$0xff]
      %v1988 = vld [vmem:[#allocation2 + $0xca] sm:$0xff]
      %v1989 = vld [vmem:[#allocation2 + $0xd2] sm:$0xff]
      %v1990 = vld [vmem:[#allocation2 + $0xda] sm:$0xff]
      %v1991 = vld [vmem:[#allocation2 + $0xe2] sm:$0xff]
      %v1992 = vld [vmem:[#allocation2 + $0xea] sm:$0xff]
      %v1993 = vld [vmem:[#allocation2 + $0xf2] sm:$0xff]
      %v1994 = vld [vmem:[#allocation2 + $0xfa] sm:$0xff]
      %v1995 = vld [vmem:[#allocation2 + $0x102] sm:$0xff]
      %v1996 = vld [vmem:[#allocation2 + $0x10a] sm:$0xff]
      %v1997 = vld [vmem:[#allocation2 + $0x112] sm:$0xff]
      %v1998 = vld [vmem:[#allocation2 + $0x11a] sm:$0xff]
      %v1999 = vld [vmem:[#allocation2 + $0x122] sm:$0xff]
      %v2000 = vld [vmem:[#allocation2 + $0x12a] sm:$0xff]
      %s2001 = scalar_lea.vmem %s3, 3
      %v2002 = vld [vmem:[%s2001] sm:$0x1]
      %v2004 = vsel %vm277, %v1965, 0
      %v2007 = vsel %vm277, %v1966, 0
      %v2010 = vsel %vm277, %v1967, 0
      %v2013 = vsel %vm277, %v1968, 0
      %v2016 = vsel %vm277, %v1969, 0
      %v2019 = vsel %vm277, %v1970, 0
      %v2022 = vsel %vm277, %v1971, 0
      %v2025 = vsel %vm277, %v1972, 0
      %v2028 = vsel %vm277, %v1973, 0
      %v2031 = vsel %vm277, %v1974, 0
      %v2034 = vsel %vm277, %v1975, 0
      %v2037 = vsel %vm277, %v1976, 0
      %v2040 = vsel %vm277, %v1977, 0
      %v2043 = vsel %vm277, %v1978, 0
      %v2046 = vsel %vm277, %v1979, 0
      %v2049 = vsel %vm277, %v1980, 0
      %v2052 = vsel %vm277, %v1981, 0
      %v2055 = vsel %vm277, %v1982, 0
      %v2058 = vsel %vm277, %v1983, 0
      %v2061 = vsel %vm277, %v1984, 0
      %v2064 = vsel %vm277, %v1985, 0
      %v2067 = vsel %vm277, %v1986, 0
      %v2070 = vsel %vm277, %v1987, 0
      %v2073 = vsel %vm277, %v1988, 0
      %v2076 = vsel %vm277, %v1989, 0
      %v2079 = vsel %vm277, %v1990, 0
      %v2082 = vsel %vm277, %v1991, 0
      %v2085 = vsel %vm277, %v1992, 0
      %v2088 = vsel %vm277, %v1993, 0
      %v2091 = vsel %vm277, %v1994, 0
      %v2094 = vsel %vm277, %v1995, 0
      %v2097 = vsel %vm277, %v1996, 0
      %v2100 = vsel %vm277, %v1997, 0
      %v2103 = vsel %vm277, %v1998, 0
      %v2106 = vsel %vm277, %v1999, 0
      %v2109 = vsel %vm277, %v2000, 0
      %v2112 = vsel %vm735, %v2002, 0
      %2114 = vmatprep.subr.bf16.mxu0 0
      %2115 = vmatpush1.bf16.msra.mxu0 0
      %2116 = vmatprep.subr.bf16.mxu0 0
      %2117 = vmatpush1.bf16.msra.mxu0 0
      %2118 = vmatprep.subr.bf16.mxu0 0
      %2119 = vmatpush1.bf16.msra.mxu0 0
      %2120 = vmatprep.subr.bf16.mxu0 0
      %2121 = vmatpush1.bf16.msra.mxu0 0
      %2122 = vmatprep.subr.bf16.mxu0 0
      %2123 = vmatpush1.bf16.msra.mxu0 0
      %2124 = vmatprep.subr.bf16.mxu0 0
      %2125 = vmatpush1.bf16.msra.mxu0 0
      %2126 = vmatprep.subr.bf16.mxu0 0
      %2127 = vmatpush1.bf16.msra.mxu0 0
      %2128 = vmatprep.subr.bf16.mxu0 0
      %2129 = vmatpush1.bf16.msra.mxu0 %v2112
      %2130 = vmatprep.subr.bf16.mxu0 0
      %2131 = vmatpush2.bf16.msra.mxu0 0
      %2132 = vmatprep.subr.bf16.mxu0 0
      %2133 = vmatpush2.bf16.msra.mxu0 0
      %2134 = vmatprep.subr.bf16.mxu0 0
      %2135 = vmatpush2.bf16.msra.mxu0 0
      %2136 = vmatprep.subr.bf16.mxu0 0
      %2137 = vmatpush2.bf16.msra.mxu0 0
      %2138 = vmatprep.subr.bf16.mxu0 0
      %2139 = vmatpush2.bf16.msra.mxu0 0
      %2140 = vmatprep.subr.bf16.mxu0 0
      %2141 = vmatpush2.bf16.msra.mxu0 0
      %2142 = vmatprep.subr.bf16.mxu0 0
      %2143 = vmatpush2.bf16.msra.mxu0 0
      %2144 = vmatprep.subr.bf16.mxu0 0
      %2145 = vmatpush2.bf16.msra.mxu0 0
      %2146 = vmatprep.mubr.f32.mxu0 0.0
      %2147 = vmatmul.mubr.f32.gmra.mxu0 %v2004
      %v2148 = vpop.f32.mrf.mxu0
      %v2149 = vadd.f32 0.0, %v2148
      %v2150 = vpop.f32.mrf.mxu0
      %2151 = vmatprep.mubr.f32.mxu0 0.0
      %2152 = vmatmul.mubr.f32.gmra.mxu0 %v2007
      %v2153 = vpop.f32.mrf.mxu0
      %v2154 = vadd.f32 0.0, %v2153
      %v2155 = vpop.f32.mrf.mxu0
      %2156 = vmatprep.mubr.f32.mxu0 0.0
      %2157 = vmatmul.mubr.f32.gmra.mxu0 %v2010
      %v2158 = vpop.f32.mrf.mxu0
      %v2159 = vadd.f32 0.0, %v2158
      %v2160 = vpop.f32.mrf.mxu0
      %2161 = vmatprep.mubr.f32.mxu0 0.0
      %2162 = vmatmul.mubr.f32.gmra.mxu0 %v2013
      %v2163 = vpop.f32.mrf.mxu0
      %v2164 = vadd.f32 0.0, %v2163
      %v2165 = vpop.f32.mrf.mxu0
      %2166 = vmatprep.mubr.f32.mxu0 0.0
      %2167 = vmatmul.mubr.f32.gmra.mxu0 %v2016
      %v2168 = vpop.f32.mrf.mxu0
      %v2169 = vadd.f32 0.0, %v2168
      %v2170 = vpop.f32.mrf.mxu0
      %2171 = vmatprep.mubr.f32.mxu0 0.0
      %2172 = vmatmul.mubr.f32.gmra.mxu0 %v2019
      %v2173 = vpop.f32.mrf.mxu0
      %v2174 = vadd.f32 0.0, %v2173
      %v2175 = vpop.f32.mrf.mxu0
      %2176 = vmatprep.mubr.f32.mxu0 0.0
      %2177 = vmatmul.mubr.f32.gmra.mxu0 %v2022
      %v2178 = vpop.f32.mrf.mxu0
      %v2179 = vadd.f32 0.0, %v2178
      %v2180 = vpop.f32.mrf.mxu0
      %2181 = vmatprep.mubr.f32.mxu0 0.0
      %2182 = vmatmul.mubr.f32.gmra.mxu0 %v2025
      %v2183 = vpop.f32.mrf.mxu0
      %v2184 = vadd.f32 0.0, %v2183
      %v2185 = vpop.f32.mrf.mxu0
      %2186 = vmatprep.mubr.f32.mxu0 0.0
      %2187 = vmatmul.mubr.f32.gmra.mxu0 %v2028
      %v2188 = vpop.f32.mrf.mxu0
      %v2189 = vadd.f32 0.0, %v2188
      %v2190 = vpop.f32.mrf.mxu0
      %2191 = vmatprep.mubr.f32.mxu0 0.0
      %2192 = vmatmul.mubr.f32.gmra.mxu0 %v2031
      %v2193 = vpop.f32.mrf.mxu0
      %v2194 = vadd.f32 0.0, %v2193
      %v2195 = vpop.f32.mrf.mxu0
      %2196 = vmatprep.mubr.f32.mxu0 0.0
      %2197 = vmatmul.mubr.f32.gmra.mxu0 %v2034
      %v2198 = vpop.f32.mrf.mxu0
      %v2199 = vadd.f32 0.0, %v2198
      %v2200 = vpop.f32.mrf.mxu0
      %2201 = vmatprep.mubr.f32.mxu0 0.0
      %2202 = vmatmul.mubr.f32.gmra.mxu0 %v2037
      %v2203 = vpop.f32.mrf.mxu0
      %v2204 = vadd.f32 0.0, %v2203
      %v2205 = vpop.f32.mrf.mxu0
      %2206 = vmatprep.mubr.f32.mxu0 0.0
      %2207 = vmatmul.mubr.f32.gmra.mxu0 %v2040
      %v2208 = vpop.f32.mrf.mxu0
      %v2209 = vadd.f32 0.0, %v2208
      %v2210 = vpop.f32.mrf.mxu0
      %2211 = vmatprep.mubr.f32.mxu0 0.0
      %2212 = vmatmul.mubr.f32.gmra.mxu0 %v2043
      %v2213 = vpop.f32.mrf.mxu0
      %v2214 = vadd.f32 0.0, %v2213
      %v2215 = vpop.f32.mrf.mxu0
      %2216 = vmatprep.mubr.f32.mxu0 0.0
      %2217 = vmatmul.mubr.f32.gmra.mxu0 %v2046
      %v2218 = vpop.f32.mrf.mxu0
      %v2219 = vadd.f32 0.0, %v2218
      %v2220 = vpop.f32.mrf.mxu0
      %2221 = vmatprep.mubr.f32.mxu0 0.0
      %2222 = vmatmul.mubr.f32.gmra.mxu0 %v2049
      %v2223 = vpop.f32.mrf.mxu0
      %v2224 = vadd.f32 0.0, %v2223
      %v2225 = vpop.f32.mrf.mxu0
      %2226 = vmatprep.mubr.f32.mxu0 0.0
      %2227 = vmatmul.mubr.f32.gmra.mxu0 %v2052
      %v2228 = vpop.f32.mrf.mxu0
      %v2229 = vadd.f32 0.0, %v2228
      %v2230 = vpop.f32.mrf.mxu0
      %2231 = vmatprep.mubr.f32.mxu0 0.0
      %2232 = vmatmul.mubr.f32.gmra.mxu0 %v2055
      %v2233 = vpop.f32.mrf.mxu0
      %v2234 = vadd.f32 0.0, %v2233
      %v2235 = vpop.f32.mrf.mxu0
      %2236 = vmatprep.mubr.f32.mxu0 0.0
      %2237 = vmatmul.mubr.f32.gmra.mxu0 %v2058
      %v2238 = vpop.f32.mrf.mxu0
      %v2239 = vadd.f32 0.0, %v2238
      %v2240 = vpop.f32.mrf.mxu0
      %2241 = vmatprep.mubr.f32.mxu0 0.0
      %2242 = vmatmul.mubr.f32.gmra.mxu0 %v2061
      %v2243 = vpop.f32.mrf.mxu0
      %v2244 = vadd.f32 0.0, %v2243
      %v2245 = vpop.f32.mrf.mxu0
      %2246 = vmatprep.mubr.f32.mxu0 0.0
      %2247 = vmatmul.mubr.f32.gmra.mxu0 %v2064
      %v2248 = vpop.f32.mrf.mxu0
      %v2249 = vadd.f32 0.0, %v2248
      %v2250 = vpop.f32.mrf.mxu0
      %2251 = vmatprep.mubr.f32.mxu0 0.0
      %2252 = vmatmul.mubr.f32.gmra.mxu0 %v2067
      %v2253 = vpop.f32.mrf.mxu0
      %v2254 = vadd.f32 0.0, %v2253
      %v2255 = vpop.f32.mrf.mxu0
      %2256 = vmatprep.mubr.f32.mxu0 0.0
      %2257 = vmatmul.mubr.f32.gmra.mxu0 %v2070
      %v2258 = vpop.f32.mrf.mxu0
      %v2259 = vadd.f32 0.0, %v2258
      %v2260 = vpop.f32.mrf.mxu0
      %2261 = vmatprep.mubr.f32.mxu0 0.0
      %2262 = vmatmul.mubr.f32.gmra.mxu0 %v2073
      %v2263 = vpop.f32.mrf.mxu0
      %v2264 = vadd.f32 0.0, %v2263
      %v2265 = vpop.f32.mrf.mxu0
      %2266 = vmatprep.mubr.f32.mxu0 0.0
      %2267 = vmatmul.mubr.f32.gmra.mxu0 %v2076
      %v2268 = vpop.f32.mrf.mxu0
      %v2269 = vadd.f32 0.0, %v2268
      %v2270 = vpop.f32.mrf.mxu0
      %2271 = vmatprep.mubr.f32.mxu0 0.0
      %2272 = vmatmul.mubr.f32.gmra.mxu0 %v2079
      %v2273 = vpop.f32.mrf.mxu0
      %v2274 = vadd.f32 0.0, %v2273
      %v2275 = vpop.f32.mrf.mxu0
      %2276 = vmatprep.mubr.f32.mxu0 0.0
      %2277 = vmatmul.mubr.f32.gmra.mxu0 %v2082
      %v2278 = vpop.f32.mrf.mxu0
      %v2279 = vadd.f32 0.0, %v2278
      %v2280 = vpop.f32.mrf.mxu0
      %2281 = vmatprep.mubr.f32.mxu0 0.0
      %2282 = vmatmul.mubr.f32.gmra.mxu0 %v2085
      %v2283 = vpop.f32.mrf.mxu0
      %v2284 = vadd.f32 0.0, %v2283
      %v2285 = vpop.f32.mrf.mxu0
      %2286 = vmatprep.mubr.f32.mxu0 0.0
      %2287 = vmatmul.mubr.f32.gmra.mxu0 %v2088
      %v2288 = vpop.f32.mrf.mxu0
      %v2289 = vadd.f32 0.0, %v2288
      %v2290 = vpop.f32.mrf.mxu0
      %2291 = vmatprep.mubr.f32.mxu0 0.0
      %2292 = vmatmul.mubr.f32.gmra.mxu0 %v2091
      %v2293 = vpop.f32.mrf.mxu0
      %v2294 = vadd.f32 0.0, %v2293
      %v2295 = vpop.f32.mrf.mxu0
      %2296 = vmatprep.mubr.f32.mxu0 0.0
      %2297 = vmatmul.mubr.f32.gmra.mxu0 %v2094
      %v2298 = vpop.f32.mrf.mxu0
      %v2299 = vadd.f32 0.0, %v2298
      %v2300 = vpop.f32.mrf.mxu0
      %2301 = vmatprep.mubr.f32.mxu0 0.0
      %2302 = vmatmul.mubr.f32.gmra.mxu0 %v2097
      %v2303 = vpop.f32.mrf.mxu0
      %v2304 = vadd.f32 0.0, %v2303
      %v2305 = vpop.f32.mrf.mxu0
      %2306 = vmatprep.mubr.f32.mxu0 0.0
      %2307 = vmatmul.mubr.f32.gmra.mxu0 %v2100
      %v2308 = vpop.f32.mrf.mxu0
      %v2309 = vadd.f32 0.0, %v2308
      %v2310 = vpop.f32.mrf.mxu0
      %2311 = vmatprep.mubr.f32.mxu0 0.0
      %2312 = vmatmul.mubr.f32.gmra.mxu0 %v2103
      %v2313 = vpop.f32.mrf.mxu0
      %v2314 = vadd.f32 0.0, %v2313
      %v2315 = vpop.f32.mrf.mxu0
      %2316 = vmatprep.mubr.f32.mxu0 0.0
      %2317 = vmatmul.mubr.f32.gmra.mxu0 %v2106
      %v2318 = vpop.f32.mrf.mxu0
      %v2319 = vadd.f32 0.0, %v2318
      %v2320 = vpop.f32.mrf.mxu0
      %2321 = vmatprep.mubr.f32.mxu0 0.0
      %2322 = vmatmul.mubr.f32.gmra.mxu0 %v2109
      %v2323 = vpop.f32.mrf.mxu0
      %v2324 = vadd.f32 0.0, %v2323
      %v2325 = vpop.f32.mrf.mxu0
      %2326 = vdwg.mxu0
      %v2327 = vadd.f32 %v1929, %v2149
      %v2328 = vadd.f32 %v1930, %v2154
      %v2329 = vadd.f32 %v1931, %v2159
      %v2330 = vadd.f32 %v1932, %v2164
      %v2331 = vadd.f32 %v1933, %v2169
      %v2332 = vadd.f32 %v1934, %v2174
      %v2333 = vadd.f32 %v1935, %v2179
      %v2334 = vadd.f32 %v1936, %v2184
      %v2335 = vadd.f32 %v1937, %v2189
      %v2336 = vadd.f32 %v1938, %v2194
      %v2337 = vadd.f32 %v1939, %v2199
      %v2338 = vadd.f32 %v1940, %v2204
      %v2339 = vadd.f32 %v1941, %v2209
      %v2340 = vadd.f32 %v1942, %v2214
      %v2341 = vadd.f32 %v1943, %v2219
      %v2342 = vadd.f32 %v1944, %v2224
      %v2343 = vadd.f32 %v1945, %v2229
      %v2344 = vadd.f32 %v1946, %v2234
      %v2345 = vadd.f32 %v1947, %v2239
      %v2346 = vadd.f32 %v1948, %v2244
      %v2347 = vadd.f32 %v1949, %v2249
      %v2348 = vadd.f32 %v1950, %v2254
      %v2349 = vadd.f32 %v1951, %v2259
      %v2350 = vadd.f32 %v1952, %v2264
      %v2351 = vadd.f32 %v1953, %v2269
      %v2352 = vadd.f32 %v1954, %v2274
      %v2353 = vadd.f32 %v1955, %v2279
      %v2354 = vadd.f32 %v1956, %v2284
      %v2355 = vadd.f32 %v1957, %v2289
      %v2356 = vadd.f32 %v1958, %v2294
      %v2357 = vadd.f32 %v1959, %v2299
      %v2358 = vadd.f32 %v1960, %v2304
      %v2359 = vadd.f32 %v1961, %v2309
      %v2360 = vadd.f32 %v1962, %v2314
      %v2361 = vadd.f32 %v1963, %v2319
      %v2362 = vadd.f32 %v1964, %v2324
      %2363 = vst.msk [vmem:[#allocation3] sm:$0xff] %vm952, %v2327
      %2364 = vst.msk [vmem:[#allocation3 + $0x8] sm:$0xff] %vm952, %v2328
      %2365 = vst.msk [vmem:[#allocation3 + $0x10] sm:$0xff] %vm952, %v2329
      %2366 = vst.msk [vmem:[#allocation3 + $0x18] sm:$0xff] %vm952, %v2330
      %2367 = vst.msk [vmem:[#allocation3 + $0x20] sm:$0xff] %vm952, %v2331
      %2368 = vst.msk [vmem:[#allocation3 + $0x28] sm:$0xff] %vm952, %v2332
      %2369 = vst.msk [vmem:[#allocation3 + $0x30] sm:$0xff] %vm952, %v2333
      %2370 = vst.msk [vmem:[#allocation3 + $0x38] sm:$0xff] %vm952, %v2334
      %2371 = vst.msk [vmem:[#allocation3 + $0x40] sm:$0xff] %vm952, %v2335
      %2372 = vst.msk [vmem:[#allocation3 + $0x48] sm:$0xff] %vm952, %v2336
      %2373 = vst.msk [vmem:[#allocation3 + $0x50] sm:$0xff] %vm952, %v2337
      %2374 = vst.msk [vmem:[#allocation3 + $0x58] sm:$0xff] %vm952, %v2338
      %2375 = vst.msk [vmem:[#allocation3 + $0x60] sm:$0xff] %vm952, %v2339
      %2376 = vst.msk [vmem:[#allocation3 + $0x68] sm:$0xff] %vm952, %v2340
      %2377 = vst.msk [vmem:[#allocation3 + $0x70] sm:$0xff] %vm952, %v2341
      %2378 = vst.msk [vmem:[#allocation3 + $0x78] sm:$0xff] %vm952, %v2342
      %2379 = vst.msk [vmem:[#allocation3 + $0x80] sm:$0xff] %vm952, %v2343
      %2380 = vst.msk [vmem:[#allocation3 + $0x88] sm:$0xff] %vm952, %v2344
      %2381 = vst.msk [vmem:[#allocation3 + $0x90] sm:$0xff] %vm952, %v2345
      %2382 = vst.msk [vmem:[#allocation3 + $0x98] sm:$0xff] %vm952, %v2346
      %2383 = vst.msk [vmem:[#allocation3 + $0xa0] sm:$0xff] %vm952, %v2347
      %2384 = vst.msk [vmem:[#allocation3 + $0xa8] sm:$0xff] %vm952, %v2348
      %2385 = vst.msk [vmem:[#allocation3 + $0xb0] sm:$0xff] %vm952, %v2349
      %2386 = vst.msk [vmem:[#allocation3 + $0xb8] sm:$0xff] %vm952, %v2350
      %2387 = vst.msk [vmem:[#allocation3 + $0xc0] sm:$0xff] %vm952, %v2351
      %2388 = vst.msk [vmem:[#allocation3 + $0xc8] sm:$0xff] %vm952, %v2352
      %2389 = vst.msk [vmem:[#allocation3 + $0xd0] sm:$0xff] %vm952, %v2353
      %2390 = vst.msk [vmem:[#allocation3 + $0xd8] sm:$0xff] %vm952, %v2354
      %2391 = vst.msk [vmem:[#allocation3 + $0xe0] sm:$0xff] %vm952, %v2355
      %2392 = vst.msk [vmem:[#allocation3 + $0xe8] sm:$0xff] %vm952, %v2356
      %2393 = vst.msk [vmem:[#allocation3 + $0xf0] sm:$0xff] %vm952, %v2357
      %2394 = vst.msk [vmem:[#allocation3 + $0xf8] sm:$0xff] %vm952, %v2358
      %2395 = vst.msk [vmem:[#allocation3 + $0x100] sm:$0xff] %vm952, %v2359
      %2396 = vst.msk [vmem:[#allocation3 + $0x108] sm:$0xff] %vm952, %v2360
      %2397 = vst.msk [vmem:[#allocation3 + $0x110] sm:$0xff] %vm952, %v2361
      %2398 = vst.msk [vmem:[#allocation3 + $0x118] sm:$0xff] %vm952, %v2362
      %v2399 = vld [vmem:[#allocation3] sm:$0xff]
      %v2400 = vld [vmem:[#allocation3 + $0x8] sm:$0xff]
      %v2401 = vld [vmem:[#allocation3 + $0x10] sm:$0xff]
      %v2402 = vld [vmem:[#allocation3 + $0x18] sm:$0xff]
      %v2403 = vld [vmem:[#allocation3 + $0x20] sm:$0xff]
      %v2404 = vld [vmem:[#allocation3 + $0x28] sm:$0xff]
      %v2405 = vld [vmem:[#allocation3 + $0x30] sm:$0xff]
      %v2406 = vld [vmem:[#allocation3 + $0x38] sm:$0xff]
      %v2407 = vld [vmem:[#allocation3 + $0x40] sm:$0xff]
      %v2408 = vld [vmem:[#allocation3 + $0x48] sm:$0xff]
      %v2409 = vld [vmem:[#allocation3 + $0x50] sm:$0xff]
      %v2410 = vld [vmem:[#allocation3 + $0x58] sm:$0xff]
      %v2411 = vld [vmem:[#allocation3 + $0x60] sm:$0xff]
      %v2412 = vld [vmem:[#allocation3 + $0x68] sm:$0xff]
      %v2413 = vld [vmem:[#allocation3 + $0x70] sm:$0xff]
      %v2414 = vld [vmem:[#allocation3 + $0x78] sm:$0xff]
      %v2415 = vld [vmem:[#allocation3 + $0x80] sm:$0xff]
      %v2416 = vld [vmem:[#allocation3 + $0x88] sm:$0xff]
      %v2417 = vld [vmem:[#allocation3 + $0x90] sm:$0xff]
      %v2418 = vld [vmem:[#allocation3 + $0x98] sm:$0xff]
      %v2419 = vld [vmem:[#allocation3 + $0xa0] sm:$0xff]
      %v2420 = vld [vmem:[#allocation3 + $0xa8] sm:$0xff]
      %v2421 = vld [vmem:[#allocation3 + $0xb0] sm:$0xff]
      %v2422 = vld [vmem:[#allocation3 + $0xb8] sm:$0xff]
      %v2423 = vld [vmem:[#allocation3 + $0xc0] sm:$0xff]
      %v2424 = vld [vmem:[#allocation3 + $0xc8] sm:$0xff]
      %v2425 = vld [vmem:[#allocation3 + $0xd0] sm:$0xff]
      %v2426 = vld [vmem:[#allocation3 + $0xd8] sm:$0xff]
      %v2427 = vld [vmem:[#allocation3 + $0xe0] sm:$0xff]
      %v2428 = vld [vmem:[#allocation3 + $0xe8] sm:$0xff]
      %v2429 = vld [vmem:[#allocation3 + $0xf0] sm:$0xff]
      %v2430 = vld [vmem:[#allocation3 + $0xf8] sm:$0xff]
      %v2431 = vld [vmem:[#allocation3 + $0x100] sm:$0xff]
      %v2432 = vld [vmem:[#allocation3 + $0x108] sm:$0xff]
      %v2433 = vld [vmem:[#allocation3 + $0x110] sm:$0xff]
      %v2434 = vld [vmem:[#allocation3 + $0x118] sm:$0xff]
      %v2435 = vld [vmem:[#allocation2 + $0x13] sm:$0xff]
      %v2436 = vld [vmem:[#allocation2 + $0x1b] sm:$0xff]
      %v2437 = vld [vmem:[#allocation2 + $0x23] sm:$0xff]
      %v2438 = vld [vmem:[#allocation2 + $0x2b] sm:$0xff]
      %v2439 = vld [vmem:[#allocation2 + $0x33] sm:$0xff]
      %v2440 = vld [vmem:[#allocation2 + $0x3b] sm:$0xff]
      %v2441 = vld [vmem:[#allocation2 + $0x43] sm:$0xff]
      %v2442 = vld [vmem:[#allocation2 + $0x4b] sm:$0xff]
      %v2443 = vld [vmem:[#allocation2 + $0x53] sm:$0xff]
      %v2444 = vld [vmem:[#allocation2 + $0x5b] sm:$0xff]
      %v2445 = vld [vmem:[#allocation2 + $0x63] sm:$0xff]
      %v2446 = vld [vmem:[#allocation2 + $0x6b] sm:$0xff]
      %v2447 = vld [vmem:[#allocation2 + $0x73] sm:$0xff]
      %v2448 = vld [vmem:[#allocation2 + $0x7b] sm:$0xff]
      %v2449 = vld [vmem:[#allocation2 + $0x83] sm:$0xff]
      %v2450 = vld [vmem:[#allocation2 + $0x8b] sm:$0xff]
      %v2451 = vld [vmem:[#allocation2 + $0x93] sm:$0xff]
      %v2452 = vld [vmem:[#allocation2 + $0x9b] sm:$0xff]
      %v2453 = vld [vmem:[#allocation2 + $0xa3] sm:$0xff]
      %v2454 = vld [vmem:[#allocation2 + $0xab] sm:$0xff]
      %v2455 = vld [vmem:[#allocation2 + $0xb3] sm:$0xff]
      %v2456 = vld [vmem:[#allocation2 + $0xbb] sm:$0xff]
      %v2457 = vld [vmem:[#allocation2 + $0xc3] sm:$0xff]
      %v2458 = vld [vmem:[#allocation2 + $0xcb] sm:$0xff]
      %v2459 = vld [vmem:[#allocation2 + $0xd3] sm:$0xff]
      %v2460 = vld [vmem:[#allocation2 + $0xdb] sm:$0xff]
      %v2461 = vld [vmem:[#allocation2 + $0xe3] sm:$0xff]
      %v2462 = vld [vmem:[#allocation2 + $0xeb] sm:$0xff]
      %v2463 = vld [vmem:[#allocation2 + $0xf3] sm:$0xff]
      %v2464 = vld [vmem:[#allocation2 + $0xfb] sm:$0xff]
      %v2465 = vld [vmem:[#allocation2 + $0x103] sm:$0xff]
      %v2466 = vld [vmem:[#allocation2 + $0x10b] sm:$0xff]
      %v2467 = vld [vmem:[#allocation2 + $0x113] sm:$0xff]
      %v2468 = vld [vmem:[#allocation2 + $0x11b] sm:$0xff]
      %v2469 = vld [vmem:[#allocation2 + $0x123] sm:$0xff]
      %v2470 = vld [vmem:[#allocation2 + $0x12b] sm:$0xff]
      %s2471 = scalar_lea.vmem %s3, 4
      %v2472 = vld [vmem:[%s2471] sm:$0x1]
      %v2474 = vsel %vm277, %v2435, 0
      %v2477 = vsel %vm277, %v2436, 0
      %v2480 = vsel %vm277, %v2437, 0
      %v2483 = vsel %vm277, %v2438, 0
      %v2486 = vsel %vm277, %v2439, 0
      %v2489 = vsel %vm277, %v2440, 0
      %v2492 = vsel %vm277, %v2441, 0
      %v2495 = vsel %vm277, %v2442, 0
      %v2498 = vsel %vm277, %v2443, 0
      %v2501 = vsel %vm277, %v2444, 0
      %v2504 = vsel %vm277, %v2445, 0
      %v2507 = vsel %vm277, %v2446, 0
      %v2510 = vsel %vm277, %v2447, 0
      %v2513 = vsel %vm277, %v2448, 0
      %v2516 = vsel %vm277, %v2449, 0
      %v2519 = vsel %vm277, %v2450, 0
      %v2522 = vsel %vm277, %v2451, 0
      %v2525 = vsel %vm277, %v2452, 0
      %v2528 = vsel %vm277, %v2453, 0
      %v2531 = vsel %vm277, %v2454, 0
      %v2534 = vsel %vm277, %v2455, 0
      %v2537 = vsel %vm277, %v2456, 0
      %v2540 = vsel %vm277, %v2457, 0
      %v2543 = vsel %vm277, %v2458, 0
      %v2546 = vsel %vm277, %v2459, 0
      %v2549 = vsel %vm277, %v2460, 0
      %v2552 = vsel %vm277, %v2461, 0
      %v2555 = vsel %vm277, %v2462, 0
      %v2558 = vsel %vm277, %v2463, 0
      %v2561 = vsel %vm277, %v2464, 0
      %v2564 = vsel %vm277, %v2465, 0
      %v2567 = vsel %vm277, %v2466, 0
      %v2570 = vsel %vm277, %v2467, 0
      %v2573 = vsel %vm277, %v2468, 0
      %v2576 = vsel %vm277, %v2469, 0
      %v2579 = vsel %vm277, %v2470, 0
      %v2582 = vsel %vm735, %v2472, 0
      %2584 = vmatprep.subr.bf16.mxu0 0
      %2585 = vmatpush1.bf16.msra.mxu0 0
      %2586 = vmatprep.subr.bf16.mxu0 0
      %2587 = vmatpush1.bf16.msra.mxu0 0
      %2588 = vmatprep.subr.bf16.mxu0 0
      %2589 = vmatpush1.bf16.msra.mxu0 0
      %2590 = vmatprep.subr.bf16.mxu0 0
      %2591 = vmatpush1.bf16.msra.mxu0 0
      %2592 = vmatprep.subr.bf16.mxu0 0
      %2593 = vmatpush1.bf16.msra.mxu0 0
      %2594 = vmatprep.subr.bf16.mxu0 0
      %2595 = vmatpush1.bf16.msra.mxu0 0
      %2596 = vmatprep.subr.bf16.mxu0 0
      %2597 = vmatpush1.bf16.msra.mxu0 0
      %2598 = vmatprep.subr.bf16.mxu0 0
      %2599 = vmatpush1.bf16.msra.mxu0 %v2582
      %2600 = vmatprep.subr.bf16.mxu0 0
      %2601 = vmatpush2.bf16.msra.mxu0 0
      %2602 = vmatprep.subr.bf16.mxu0 0
      %2603 = vmatpush2.bf16.msra.mxu0 0
      %2604 = vmatprep.subr.bf16.mxu0 0
      %2605 = vmatpush2.bf16.msra.mxu0 0
      %2606 = vmatprep.subr.bf16.mxu0 0
      %2607 = vmatpush2.bf16.msra.mxu0 0
      %2608 = vmatprep.subr.bf16.mxu0 0
      %2609 = vmatpush2.bf16.msra.mxu0 0
      %2610 = vmatprep.subr.bf16.mxu0 0
      %2611 = vmatpush2.bf16.msra.mxu0 0
      %2612 = vmatprep.subr.bf16.mxu0 0
      %2613 = vmatpush2.bf16.msra.mxu0 0
      %2614 = vmatprep.subr.bf16.mxu0 0
      %2615 = vmatpush2.bf16.msra.mxu0 0
      %2616 = vmatprep.mubr.f32.mxu0 0.0
      %2617 = vmatmul.mubr.f32.gmra.mxu0 %v2474
      %v2618 = vpop.f32.mrf.mxu0
      %v2619 = vadd.f32 0.0, %v2618
      %v2620 = vpop.f32.mrf.mxu0
      %2621 = vmatprep.mubr.f32.mxu0 0.0
      %2622 = vmatmul.mubr.f32.gmra.mxu0 %v2477
      %v2623 = vpop.f32.mrf.mxu0
      %v2624 = vadd.f32 0.0, %v2623
      %v2625 = vpop.f32.mrf.mxu0
      %2626 = vmatprep.mubr.f32.mxu0 0.0
      %2627 = vmatmul.mubr.f32.gmra.mxu0 %v2480
      %v2628 = vpop.f32.mrf.mxu0
      %v2629 = vadd.f32 0.0, %v2628
      %v2630 = vpop.f32.mrf.mxu0
      %2631 = vmatprep.mubr.f32.mxu0 0.0
      %2632 = vmatmul.mubr.f32.gmra.mxu0 %v2483
      %v2633 = vpop.f32.mrf.mxu0
      %v2634 = vadd.f32 0.0, %v2633
      %v2635 = vpop.f32.mrf.mxu0
      %2636 = vmatprep.mubr.f32.mxu0 0.0
      %2637 = vmatmul.mubr.f32.gmra.mxu0 %v2486
      %v2638 = vpop.f32.mrf.mxu0
      %v2639 = vadd.f32 0.0, %v2638
      %v2640 = vpop.f32.mrf.mxu0
      %2641 = vmatprep.mubr.f32.mxu0 0.0
      %2642 = vmatmul.mubr.f32.gmra.mxu0 %v2489
      %v2643 = vpop.f32.mrf.mxu0
      %v2644 = vadd.f32 0.0, %v2643
      %v2645 = vpop.f32.mrf.mxu0
      %2646 = vmatprep.mubr.f32.mxu0 0.0
      %2647 = vmatmul.mubr.f32.gmra.mxu0 %v2492
      %v2648 = vpop.f32.mrf.mxu0
      %v2649 = vadd.f32 0.0, %v2648
      %v2650 = vpop.f32.mrf.mxu0
      %2651 = vmatprep.mubr.f32.mxu0 0.0
      %2652 = vmatmul.mubr.f32.gmra.mxu0 %v2495
      %v2653 = vpop.f32.mrf.mxu0
      %v2654 = vadd.f32 0.0, %v2653
      %v2655 = vpop.f32.mrf.mxu0
      %2656 = vmatprep.mubr.f32.mxu0 0.0
      %2657 = vmatmul.mubr.f32.gmra.mxu0 %v2498
      %v2658 = vpop.f32.mrf.mxu0
      %v2659 = vadd.f32 0.0, %v2658
      %v2660 = vpop.f32.mrf.mxu0
      %2661 = vmatprep.mubr.f32.mxu0 0.0
      %2662 = vmatmul.mubr.f32.gmra.mxu0 %v2501
      %v2663 = vpop.f32.mrf.mxu0
      %v2664 = vadd.f32 0.0, %v2663
      %v2665 = vpop.f32.mrf.mxu0
      %2666 = vmatprep.mubr.f32.mxu0 0.0
      %2667 = vmatmul.mubr.f32.gmra.mxu0 %v2504
      %v2668 = vpop.f32.mrf.mxu0
      %v2669 = vadd.f32 0.0, %v2668
      %v2670 = vpop.f32.mrf.mxu0
      %2671 = vmatprep.mubr.f32.mxu0 0.0
      %2672 = vmatmul.mubr.f32.gmra.mxu0 %v2507
      %v2673 = vpop.f32.mrf.mxu0
      %v2674 = vadd.f32 0.0, %v2673
      %v2675 = vpop.f32.mrf.mxu0
      %2676 = vmatprep.mubr.f32.mxu0 0.0
      %2677 = vmatmul.mubr.f32.gmra.mxu0 %v2510
      %v2678 = vpop.f32.mrf.mxu0
      %v2679 = vadd.f32 0.0, %v2678
      %v2680 = vpop.f32.mrf.mxu0
      %2681 = vmatprep.mubr.f32.mxu0 0.0
      %2682 = vmatmul.mubr.f32.gmra.mxu0 %v2513
      %v2683 = vpop.f32.mrf.mxu0
      %v2684 = vadd.f32 0.0, %v2683
      %v2685 = vpop.f32.mrf.mxu0
      %2686 = vmatprep.mubr.f32.mxu0 0.0
      %2687 = vmatmul.mubr.f32.gmra.mxu0 %v2516
      %v2688 = vpop.f32.mrf.mxu0
      %v2689 = vadd.f32 0.0, %v2688
      %v2690 = vpop.f32.mrf.mxu0
      %2691 = vmatprep.mubr.f32.mxu0 0.0
      %2692 = vmatmul.mubr.f32.gmra.mxu0 %v2519
      %v2693 = vpop.f32.mrf.mxu0
      %v2694 = vadd.f32 0.0, %v2693
      %v2695 = vpop.f32.mrf.mxu0
      %2696 = vmatprep.mubr.f32.mxu0 0.0
      %2697 = vmatmul.mubr.f32.gmra.mxu0 %v2522
      %v2698 = vpop.f32.mrf.mxu0
      %v2699 = vadd.f32 0.0, %v2698
      %v2700 = vpop.f32.mrf.mxu0
      %2701 = vmatprep.mubr.f32.mxu0 0.0
      %2702 = vmatmul.mubr.f32.gmra.mxu0 %v2525
      %v2703 = vpop.f32.mrf.mxu0
      %v2704 = vadd.f32 0.0, %v2703
      %v2705 = vpop.f32.mrf.mxu0
      %2706 = vmatprep.mubr.f32.mxu0 0.0
      %2707 = vmatmul.mubr.f32.gmra.mxu0 %v2528
      %v2708 = vpop.f32.mrf.mxu0
      %v2709 = vadd.f32 0.0, %v2708
      %v2710 = vpop.f32.mrf.mxu0
      %2711 = vmatprep.mubr.f32.mxu0 0.0
      %2712 = vmatmul.mubr.f32.gmra.mxu0 %v2531
      %v2713 = vpop.f32.mrf.mxu0
      %v2714 = vadd.f32 0.0, %v2713
      %v2715 = vpop.f32.mrf.mxu0
      %2716 = vmatprep.mubr.f32.mxu0 0.0
      %2717 = vmatmul.mubr.f32.gmra.mxu0 %v2534
      %v2718 = vpop.f32.mrf.mxu0
      %v2719 = vadd.f32 0.0, %v2718
      %v2720 = vpop.f32.mrf.mxu0
      %2721 = vmatprep.mubr.f32.mxu0 0.0
      %2722 = vmatmul.mubr.f32.gmra.mxu0 %v2537
      %v2723 = vpop.f32.mrf.mxu0
      %v2724 = vadd.f32 0.0, %v2723
      %v2725 = vpop.f32.mrf.mxu0
      %2726 = vmatprep.mubr.f32.mxu0 0.0
      %2727 = vmatmul.mubr.f32.gmra.mxu0 %v2540
      %v2728 = vpop.f32.mrf.mxu0
      %v2729 = vadd.f32 0.0, %v2728
      %v2730 = vpop.f32.mrf.mxu0
      %2731 = vmatprep.mubr.f32.mxu0 0.0
      %2732 = vmatmul.mubr.f32.gmra.mxu0 %v2543
      %v2733 = vpop.f32.mrf.mxu0
      %v2734 = vadd.f32 0.0, %v2733
      %v2735 = vpop.f32.mrf.mxu0
      %2736 = vmatprep.mubr.f32.mxu0 0.0
      %2737 = vmatmul.mubr.f32.gmra.mxu0 %v2546
      %v2738 = vpop.f32.mrf.mxu0
      %v2739 = vadd.f32 0.0, %v2738
      %v2740 = vpop.f32.mrf.mxu0
      %2741 = vmatprep.mubr.f32.mxu0 0.0
      %2742 = vmatmul.mubr.f32.gmra.mxu0 %v2549
      %v2743 = vpop.f32.mrf.mxu0
      %v2744 = vadd.f32 0.0, %v2743
      %v2745 = vpop.f32.mrf.mxu0
      %2746 = vmatprep.mubr.f32.mxu0 0.0
      %2747 = vmatmul.mubr.f32.gmra.mxu0 %v2552
      %v2748 = vpop.f32.mrf.mxu0
      %v2749 = vadd.f32 0.0, %v2748
      %v2750 = vpop.f32.mrf.mxu0
      %2751 = vmatprep.mubr.f32.mxu0 0.0
      %2752 = vmatmul.mubr.f32.gmra.mxu0 %v2555
      %v2753 = vpop.f32.mrf.mxu0
      %v2754 = vadd.f32 0.0, %v2753
      %v2755 = vpop.f32.mrf.mxu0
      %2756 = vmatprep.mubr.f32.mxu0 0.0
      %2757 = vmatmul.mubr.f32.gmra.mxu0 %v2558
      %v2758 = vpop.f32.mrf.mxu0
      %v2759 = vadd.f32 0.0, %v2758
      %v2760 = vpop.f32.mrf.mxu0
      %2761 = vmatprep.mubr.f32.mxu0 0.0
      %2762 = vmatmul.mubr.f32.gmra.mxu0 %v2561
      %v2763 = vpop.f32.mrf.mxu0
      %v2764 = vadd.f32 0.0, %v2763
      %v2765 = vpop.f32.mrf.mxu0
      %2766 = vmatprep.mubr.f32.mxu0 0.0
      %2767 = vmatmul.mubr.f32.gmra.mxu0 %v2564
      %v2768 = vpop.f32.mrf.mxu0
      %v2769 = vadd.f32 0.0, %v2768
      %v2770 = vpop.f32.mrf.mxu0
      %2771 = vmatprep.mubr.f32.mxu0 0.0
      %2772 = vmatmul.mubr.f32.gmra.mxu0 %v2567
      %v2773 = vpop.f32.mrf.mxu0
      %v2774 = vadd.f32 0.0, %v2773
      %v2775 = vpop.f32.mrf.mxu0
      %2776 = vmatprep.mubr.f32.mxu0 0.0
      %2777 = vmatmul.mubr.f32.gmra.mxu0 %v2570
      %v2778 = vpop.f32.mrf.mxu0
      %v2779 = vadd.f32 0.0, %v2778
      %v2780 = vpop.f32.mrf.mxu0
      %2781 = vmatprep.mubr.f32.mxu0 0.0
      %2782 = vmatmul.mubr.f32.gmra.mxu0 %v2573
      %v2783 = vpop.f32.mrf.mxu0
      %v2784 = vadd.f32 0.0, %v2783
      %v2785 = vpop.f32.mrf.mxu0
      %2786 = vmatprep.mubr.f32.mxu0 0.0
      %2787 = vmatmul.mubr.f32.gmra.mxu0 %v2576
      %v2788 = vpop.f32.mrf.mxu0
      %v2789 = vadd.f32 0.0, %v2788
      %v2790 = vpop.f32.mrf.mxu0
      %2791 = vmatprep.mubr.f32.mxu0 0.0
      %2792 = vmatmul.mubr.f32.gmra.mxu0 %v2579
      %v2793 = vpop.f32.mrf.mxu0
      %v2794 = vadd.f32 0.0, %v2793
      %v2795 = vpop.f32.mrf.mxu0
      %2796 = vdwg.mxu0
      %v2797 = vadd.f32 %v2399, %v2619
      %v2798 = vadd.f32 %v2400, %v2624
      %v2799 = vadd.f32 %v2401, %v2629
      %v2800 = vadd.f32 %v2402, %v2634
      %v2801 = vadd.f32 %v2403, %v2639
      %v2802 = vadd.f32 %v2404, %v2644
      %v2803 = vadd.f32 %v2405, %v2649
      %v2804 = vadd.f32 %v2406, %v2654
      %v2805 = vadd.f32 %v2407, %v2659
      %v2806 = vadd.f32 %v2408, %v2664
      %v2807 = vadd.f32 %v2409, %v2669
      %v2808 = vadd.f32 %v2410, %v2674
      %v2809 = vadd.f32 %v2411, %v2679
      %v2810 = vadd.f32 %v2412, %v2684
      %v2811 = vadd.f32 %v2413, %v2689
      %v2812 = vadd.f32 %v2414, %v2694
      %v2813 = vadd.f32 %v2415, %v2699
      %v2814 = vadd.f32 %v2416, %v2704
      %v2815 = vadd.f32 %v2417, %v2709
      %v2816 = vadd.f32 %v2418, %v2714
      %v2817 = vadd.f32 %v2419, %v2719
      %v2818 = vadd.f32 %v2420, %v2724
      %v2819 = vadd.f32 %v2421, %v2729
      %v2820 = vadd.f32 %v2422, %v2734
      %v2821 = vadd.f32 %v2423, %v2739
      %v2822 = vadd.f32 %v2424, %v2744
      %v2823 = vadd.f32 %v2425, %v2749
      %v2824 = vadd.f32 %v2426, %v2754
      %v2825 = vadd.f32 %v2427, %v2759
      %v2826 = vadd.f32 %v2428, %v2764
      %v2827 = vadd.f32 %v2429, %v2769
      %v2828 = vadd.f32 %v2430, %v2774
      %v2829 = vadd.f32 %v2431, %v2779
      %v2830 = vadd.f32 %v2432, %v2784
      %v2831 = vadd.f32 %v2433, %v2789
      %v2832 = vadd.f32 %v2434, %v2794
      %2833 = vst.msk [vmem:[#allocation3] sm:$0xff] %vm952, %v2797
      %2834 = vst.msk [vmem:[#allocation3 + $0x8] sm:$0xff] %vm952, %v2798
      %2835 = vst.msk [vmem:[#allocation3 + $0x10] sm:$0xff] %vm952, %v2799
      %2836 = vst.msk [vmem:[#allocation3 + $0x18] sm:$0xff] %vm952, %v2800
      %2837 = vst.msk [vmem:[#allocation3 + $0x20] sm:$0xff] %vm952, %v2801
      %2838 = vst.msk [vmem:[#allocation3 + $0x28] sm:$0xff] %vm952, %v2802
      %2839 = vst.msk [vmem:[#allocation3 + $0x30] sm:$0xff] %vm952, %v2803
      %2840 = vst.msk [vmem:[#allocation3 + $0x38] sm:$0xff] %vm952, %v2804
      %2841 = vst.msk [vmem:[#allocation3 + $0x40] sm:$0xff] %vm952, %v2805
      %2842 = vst.msk [vmem:[#allocation3 + $0x48] sm:$0xff] %vm952, %v2806
      %2843 = vst.msk [vmem:[#allocation3 + $0x50] sm:$0xff] %vm952, %v2807
      %2844 = vst.msk [vmem:[#allocation3 + $0x58] sm:$0xff] %vm952, %v2808
      %2845 = vst.msk [vmem:[#allocation3 + $0x60] sm:$0xff] %vm952, %v2809
      %2846 = vst.msk [vmem:[#allocation3 + $0x68] sm:$0xff] %vm952, %v2810
      %2847 = vst.msk [vmem:[#allocation3 + $0x70] sm:$0xff] %vm952, %v2811
      %2848 = vst.msk [vmem:[#allocation3 + $0x78] sm:$0xff] %vm952, %v2812
      %2849 = vst.msk [vmem:[#allocation3 + $0x80] sm:$0xff] %vm952, %v2813
      %2850 = vst.msk [vmem:[#allocation3 + $0x88] sm:$0xff] %vm952, %v2814
      %2851 = vst.msk [vmem:[#allocation3 + $0x90] sm:$0xff] %vm952, %v2815
      %2852 = vst.msk [vmem:[#allocation3 + $0x98] sm:$0xff] %vm952, %v2816
      %2853 = vst.msk [vmem:[#allocation3 + $0xa0] sm:$0xff] %vm952, %v2817
      %2854 = vst.msk [vmem:[#allocation3 + $0xa8] sm:$0xff] %vm952, %v2818
      %2855 = vst.msk [vmem:[#allocation3 + $0xb0] sm:$0xff] %vm952, %v2819
      %2856 = vst.msk [vmem:[#allocation3 + $0xb8] sm:$0xff] %vm952, %v2820
      %2857 = vst.msk [vmem:[#allocation3 + $0xc0] sm:$0xff] %vm952, %v2821
      %2858 = vst.msk [vmem:[#allocation3 + $0xc8] sm:$0xff] %vm952, %v2822
      %2859 = vst.msk [vmem:[#allocation3 + $0xd0] sm:$0xff] %vm952, %v2823
      %2860 = vst.msk [vmem:[#allocation3 + $0xd8] sm:$0xff] %vm952, %v2824
      %2861 = vst.msk [vmem:[#allocation3 + $0xe0] sm:$0xff] %vm952, %v2825
      %2862 = vst.msk [vmem:[#allocation3 + $0xe8] sm:$0xff] %vm952, %v2826
      %2863 = vst.msk [vmem:[#allocation3 + $0xf0] sm:$0xff] %vm952, %v2827
      %2864 = vst.msk [vmem:[#allocation3 + $0xf8] sm:$0xff] %vm952, %v2828
      %2865 = vst.msk [vmem:[#allocation3 + $0x100] sm:$0xff] %vm952, %v2829
      %2866 = vst.msk [vmem:[#allocation3 + $0x108] sm:$0xff] %vm952, %v2830
      %2867 = vst.msk [vmem:[#allocation3 + $0x110] sm:$0xff] %vm952, %v2831
      %2868 = vst.msk [vmem:[#allocation3 + $0x118] sm:$0xff] %vm952, %v2832
      %v2869 = vld [vmem:[#allocation3] sm:$0xff]
      %v2870 = vld [vmem:[#allocation3 + $0x8] sm:$0xff]
      %v2871 = vld [vmem:[#allocation3 + $0x10] sm:$0xff]
      %v2872 = vld [vmem:[#allocation3 + $0x18] sm:$0xff]
      %v2873 = vld [vmem:[#allocation3 + $0x20] sm:$0xff]
      %v2874 = vld [vmem:[#allocation3 + $0x28] sm:$0xff]
      %v2875 = vld [vmem:[#allocation3 + $0x30] sm:$0xff]
      %v2876 = vld [vmem:[#allocation3 + $0x38] sm:$0xff]
      %v2877 = vld [vmem:[#allocation3 + $0x40] sm:$0xff]
      %v2878 = vld [vmem:[#allocation3 + $0x48] sm:$0xff]
      %v2879 = vld [vmem:[#allocation3 + $0x50] sm:$0xff]
      %v2880 = vld [vmem:[#allocation3 + $0x58] sm:$0xff]
      %v2881 = vld [vmem:[#allocation3 + $0x60] sm:$0xff]
      %v2882 = vld [vmem:[#allocation3 + $0x68] sm:$0xff]
      %v2883 = vld [vmem:[#allocation3 + $0x70] sm:$0xff]
      %v2884 = vld [vmem:[#allocation3 + $0x78] sm:$0xff]
      %v2885 = vld [vmem:[#allocation3 + $0x80] sm:$0xff]
      %v2886 = vld [vmem:[#allocation3 + $0x88] sm:$0xff]
      %v2887 = vld [vmem:[#allocation3 + $0x90] sm:$0xff]
      %v2888 = vld [vmem:[#allocation3 + $0x98] sm:$0xff]
      %v2889 = vld [vmem:[#allocation3 + $0xa0] sm:$0xff]
      %v2890 = vld [vmem:[#allocation3 + $0xa8] sm:$0xff]
      %v2891 = vld [vmem:[#allocation3 + $0xb0] sm:$0xff]
      %v2892 = vld [vmem:[#allocation3 + $0xb8] sm:$0xff]
      %v2893 = vld [vmem:[#allocation3 + $0xc0] sm:$0xff]
      %v2894 = vld [vmem:[#allocation3 + $0xc8] sm:$0xff]
      %v2895 = vld [vmem:[#allocation3 + $0xd0] sm:$0xff]
      %v2896 = vld [vmem:[#allocation3 + $0xd8] sm:$0xff]
      %v2897 = vld [vmem:[#allocation3 + $0xe0] sm:$0xff]
      %v2898 = vld [vmem:[#allocation3 + $0xe8] sm:$0xff]
      %v2899 = vld [vmem:[#allocation3 + $0xf0] sm:$0xff]
      %v2900 = vld [vmem:[#allocation3 + $0xf8] sm:$0xff]
      %v2901 = vld [vmem:[#allocation3 + $0x100] sm:$0xff]
      %v2902 = vld [vmem:[#allocation3 + $0x108] sm:$0xff]
      %v2903 = vld [vmem:[#allocation3 + $0x110] sm:$0xff]
      %v2904 = vld [vmem:[#allocation3 + $0x118] sm:$0xff]
      %v2905 = vld [vmem:[#allocation2 + $0x14] sm:$0xff]
      %v2906 = vld [vmem:[#allocation2 + $0x1c] sm:$0xff]
      %v2907 = vld [vmem:[#allocation2 + $0x24] sm:$0xff]
      %v2908 = vld [vmem:[#allocation2 + $0x2c] sm:$0xff]
      %v2909 = vld [vmem:[#allocation2 + $0x34] sm:$0xff]
      %v2910 = vld [vmem:[#allocation2 + $0x3c] sm:$0xff]
      %v2911 = vld [vmem:[#allocation2 + $0x44] sm:$0xff]
      %v2912 = vld [vmem:[#allocation2 + $0x4c] sm:$0xff]
      %v2913 = vld [vmem:[#allocation2 + $0x54] sm:$0xff]
      %v2914 = vld [vmem:[#allocation2 + $0x5c] sm:$0xff]
      %v2915 = vld [vmem:[#allocation2 + $0x64] sm:$0xff]
      %v2916 = vld [vmem:[#allocation2 + $0x6c] sm:$0xff]
      %v2917 = vld [vmem:[#allocation2 + $0x74] sm:$0xff]
      %v2918 = vld [vmem:[#allocation2 + $0x7c] sm:$0xff]
      %v2919 = vld [vmem:[#allocation2 + $0x84] sm:$0xff]
      %v2920 = vld [vmem:[#allocation2 + $0x8c] sm:$0xff]
      %v2921 = vld [vmem:[#allocation2 + $0x94] sm:$0xff]
      %v2922 = vld [vmem:[#allocation2 + $0x9c] sm:$0xff]
      %v2923 = vld [vmem:[#allocation2 + $0xa4] sm:$0xff]
      %v2924 = vld [vmem:[#allocation2 + $0xac] sm:$0xff]
      %v2925 = vld [vmem:[#allocation2 + $0xb4] sm:$0xff]
      %v2926 = vld [vmem:[#allocation2 + $0xbc] sm:$0xff]
      %v2927 = vld [vmem:[#allocation2 + $0xc4] sm:$0xff]
      %v2928 = vld [vmem:[#allocation2 + $0xcc] sm:$0xff]
      %v2929 = vld [vmem:[#allocation2 + $0xd4] sm:$0xff]
      %v2930 = vld [vmem:[#allocation2 + $0xdc] sm:$0xff]
      %v2931 = vld [vmem:[#allocation2 + $0xe4] sm:$0xff]
      %v2932 = vld [vmem:[#allocation2 + $0xec] sm:$0xff]
      %v2933 = vld [vmem:[#allocation2 + $0xf4] sm:$0xff]
      %v2934 = vld [vmem:[#allocation2 + $0xfc] sm:$0xff]
      %v2935 = vld [vmem:[#allocation2 + $0x104] sm:$0xff]
      %v2936 = vld [vmem:[#allocation2 + $0x10c] sm:$0xff]
      %v2937 = vld [vmem:[#allocation2 + $0x114] sm:$0xff]
      %v2938 = vld [vmem:[#allocation2 + $0x11c] sm:$0xff]
      %v2939 = vld [vmem:[#allocation2 + $0x124] sm:$0xff]
      %v2940 = vld [vmem:[#allocation2 + $0x12c] sm:$0xff]
      %s2941 = scalar_lea.vmem %s3, 5
      %v2942 = vld [vmem:[%s2941] sm:$0x1]
      %v2944 = vsel %vm277, %v2905, 0
      %v2947 = vsel %vm277, %v2906, 0
      %v2950 = vsel %vm277, %v2907, 0
      %v2953 = vsel %vm277, %v2908, 0
      %v2956 = vsel %vm277, %v2909, 0
      %v2959 = vsel %vm277, %v2910, 0
      %v2962 = vsel %vm277, %v2911, 0
      %v2965 = vsel %vm277, %v2912, 0
      %v2968 = vsel %vm277, %v2913, 0
      %v2971 = vsel %vm277, %v2914, 0
      %v2974 = vsel %vm277, %v2915, 0
      %v2977 = vsel %vm277, %v2916, 0
      %v2980 = vsel %vm277, %v2917, 0
      %v2983 = vsel %vm277, %v2918, 0
      %v2986 = vsel %vm277, %v2919, 0
      %v2989 = vsel %vm277, %v2920, 0
      %v2992 = vsel %vm277, %v2921, 0
      %v2995 = vsel %vm277, %v2922, 0
      %v2998 = vsel %vm277, %v2923, 0
      %v3001 = vsel %vm277, %v2924, 0
      %v3004 = vsel %vm277, %v2925, 0
      %v3007 = vsel %vm277, %v2926, 0
      %v3010 = vsel %vm277, %v2927, 0
      %v3013 = vsel %vm277, %v2928, 0
      %v3016 = vsel %vm277, %v2929, 0
      %v3019 = vsel %vm277, %v2930, 0
      %v3022 = vsel %vm277, %v2931, 0
      %v3025 = vsel %vm277, %v2932, 0
      %v3028 = vsel %vm277, %v2933, 0
      %v3031 = vsel %vm277, %v2934, 0
      %v3034 = vsel %vm277, %v2935, 0
      %v3037 = vsel %vm277, %v2936, 0
      %v3040 = vsel %vm277, %v2937, 0
      %v3043 = vsel %vm277, %v2938, 0
      %v3046 = vsel %vm277, %v2939, 0
      %v3049 = vsel %vm277, %v2940, 0
      %v3052 = vsel %vm735, %v2942, 0
      %3054 = vmatprep.subr.bf16.mxu0 0
      %3055 = vmatpush1.bf16.msra.mxu0 0
      %3056 = vmatprep.subr.bf16.mxu0 0
      %3057 = vmatpush1.bf16.msra.mxu0 0
      %3058 = vmatprep.subr.bf16.mxu0 0
      %3059 = vmatpush1.bf16.msra.mxu0 0
      %3060 = vmatprep.subr.bf16.mxu0 0
      %3061 = vmatpush1.bf16.msra.mxu0 0
      %3062 = vmatprep.subr.bf16.mxu0 0
      %3063 = vmatpush1.bf16.msra.mxu0 0
      %3064 = vmatprep.subr.bf16.mxu0 0
      %3065 = vmatpush1.bf16.msra.mxu0 0
      %3066 = vmatprep.subr.bf16.mxu0 0
      %3067 = vmatpush1.bf16.msra.mxu0 0
      %3068 = vmatprep.subr.bf16.mxu0 0
      %3069 = vmatpush1.bf16.msra.mxu0 %v3052
      %3070 = vmatprep.subr.bf16.mxu0 0
      %3071 = vmatpush2.bf16.msra.mxu0 0
      %3072 = vmatprep.subr.bf16.mxu0 0
      %3073 = vmatpush2.bf16.msra.mxu0 0
      %3074 = vmatprep.subr.bf16.mxu0 0
      %3075 = vmatpush2.bf16.msra.mxu0 0
      %3076 = vmatprep.subr.bf16.mxu0 0
      %3077 = vmatpush2.bf16.msra.mxu0 0
      %3078 = vmatprep.subr.bf16.mxu0 0
      %3079 = vmatpush2.bf16.msra.mxu0 0
      %3080 = vmatprep.subr.bf16.mxu0 0
      %3081 = vmatpush2.bf16.msra.mxu0 0
      %3082 = vmatprep.subr.bf16.mxu0 0
      %3083 = vmatpush2.bf16.msra.mxu0 0
      %3084 = vmatprep.subr.bf16.mxu0 0
      %3085 = vmatpush2.bf16.msra.mxu0 0
      %3086 = vmatprep.mubr.f32.mxu0 0.0
      %3087 = vmatmul.mubr.f32.gmra.mxu0 %v2944
      %v3088 = vpop.f32.mrf.mxu0
      %v3089 = vadd.f32 0.0, %v3088
      %v3090 = vpop.f32.mrf.mxu0
      %3091 = vmatprep.mubr.f32.mxu0 0.0
      %3092 = vmatmul.mubr.f32.gmra.mxu0 %v2947
      %v3093 = vpop.f32.mrf.mxu0
      %v3094 = vadd.f32 0.0, %v3093
      %v3095 = vpop.f32.mrf.mxu0
      %3096 = vmatprep.mubr.f32.mxu0 0.0
      %3097 = vmatmul.mubr.f32.gmra.mxu0 %v2950
      %v3098 = vpop.f32.mrf.mxu0
      %v3099 = vadd.f32 0.0, %v3098
      %v3100 = vpop.f32.mrf.mxu0
      %3101 = vmatprep.mubr.f32.mxu0 0.0
      %3102 = vmatmul.mubr.f32.gmra.mxu0 %v2953
      %v3103 = vpop.f32.mrf.mxu0
      %v3104 = vadd.f32 0.0, %v3103
      %v3105 = vpop.f32.mrf.mxu0
      %3106 = vmatprep.mubr.f32.mxu0 0.0
      %3107 = vmatmul.mubr.f32.gmra.mxu0 %v2956
      %v3108 = vpop.f32.mrf.mxu0
      %v3109 = vadd.f32 0.0, %v3108
      %v3110 = vpop.f32.mrf.mxu0
      %3111 = vmatprep.mubr.f32.mxu0 0.0
      %3112 = vmatmul.mubr.f32.gmra.mxu0 %v2959
      %v3113 = vpop.f32.mrf.mxu0
      %v3114 = vadd.f32 0.0, %v3113
      %v3115 = vpop.f32.mrf.mxu0
      %3116 = vmatprep.mubr.f32.mxu0 0.0
      %3117 = vmatmul.mubr.f32.gmra.mxu0 %v2962
      %v3118 = vpop.f32.mrf.mxu0
      %v3119 = vadd.f32 0.0, %v3118
      %v3120 = vpop.f32.mrf.mxu0
      %3121 = vmatprep.mubr.f32.mxu0 0.0
      %3122 = vmatmul.mubr.f32.gmra.mxu0 %v2965
      %v3123 = vpop.f32.mrf.mxu0
      %v3124 = vadd.f32 0.0, %v3123
      %v3125 = vpop.f32.mrf.mxu0
      %3126 = vmatprep.mubr.f32.mxu0 0.0
      %3127 = vmatmul.mubr.f32.gmra.mxu0 %v2968
      %v3128 = vpop.f32.mrf.mxu0
      %v3129 = vadd.f32 0.0, %v3128
      %v3130 = vpop.f32.mrf.mxu0
      %3131 = vmatprep.mubr.f32.mxu0 0.0
      %3132 = vmatmul.mubr.f32.gmra.mxu0 %v2971
      %v3133 = vpop.f32.mrf.mxu0
      %v3134 = vadd.f32 0.0, %v3133
      %v3135 = vpop.f32.mrf.mxu0
      %3136 = vmatprep.mubr.f32.mxu0 0.0
      %3137 = vmatmul.mubr.f32.gmra.mxu0 %v2974
      %v3138 = vpop.f32.mrf.mxu0
      %v3139 = vadd.f32 0.0, %v3138
      %v3140 = vpop.f32.mrf.mxu0
      %3141 = vmatprep.mubr.f32.mxu0 0.0
      %3142 = vmatmul.mubr.f32.gmra.mxu0 %v2977
      %v3143 = vpop.f32.mrf.mxu0
      %v3144 = vadd.f32 0.0, %v3143
      %v3145 = vpop.f32.mrf.mxu0
      %3146 = vmatprep.mubr.f32.mxu0 0.0
      %3147 = vmatmul.mubr.f32.gmra.mxu0 %v2980
      %v3148 = vpop.f32.mrf.mxu0
      %v3149 = vadd.f32 0.0, %v3148
      %v3150 = vpop.f32.mrf.mxu0
      %3151 = vmatprep.mubr.f32.mxu0 0.0
      %3152 = vmatmul.mubr.f32.gmra.mxu0 %v2983
      %v3153 = vpop.f32.mrf.mxu0
      %v3154 = vadd.f32 0.0, %v3153
      %v3155 = vpop.f32.mrf.mxu0
      %3156 = vmatprep.mubr.f32.mxu0 0.0
      %3157 = vmatmul.mubr.f32.gmra.mxu0 %v2986
      %v3158 = vpop.f32.mrf.mxu0
      %v3159 = vadd.f32 0.0, %v3158
      %v3160 = vpop.f32.mrf.mxu0
      %3161 = vmatprep.mubr.f32.mxu0 0.0
      %3162 = vmatmul.mubr.f32.gmra.mxu0 %v2989
      %v3163 = vpop.f32.mrf.mxu0
      %v3164 = vadd.f32 0.0, %v3163
      %v3165 = vpop.f32.mrf.mxu0
      %3166 = vmatprep.mubr.f32.mxu0 0.0
      %3167 = vmatmul.mubr.f32.gmra.mxu0 %v2992
      %v3168 = vpop.f32.mrf.mxu0
      %v3169 = vadd.f32 0.0, %v3168
      %v3170 = vpop.f32.mrf.mxu0
      %3171 = vmatprep.mubr.f32.mxu0 0.0
      %3172 = vmatmul.mubr.f32.gmra.mxu0 %v2995
      %v3173 = vpop.f32.mrf.mxu0
      %v3174 = vadd.f32 0.0, %v3173
      %v3175 = vpop.f32.mrf.mxu0
      %3176 = vmatprep.mubr.f32.mxu0 0.0
      %3177 = vmatmul.mubr.f32.gmra.mxu0 %v2998
      %v3178 = vpop.f32.mrf.mxu0
      %v3179 = vadd.f32 0.0, %v3178
      %v3180 = vpop.f32.mrf.mxu0
      %3181 = vmatprep.mubr.f32.mxu0 0.0
      %3182 = vmatmul.mubr.f32.gmra.mxu0 %v3001
      %v3183 = vpop.f32.mrf.mxu0
      %v3184 = vadd.f32 0.0, %v3183
      %v3185 = vpop.f32.mrf.mxu0
      %3186 = vmatprep.mubr.f32.mxu0 0.0
      %3187 = vmatmul.mubr.f32.gmra.mxu0 %v3004
      %v3188 = vpop.f32.mrf.mxu0
      %v3189 = vadd.f32 0.0, %v3188
      %v3190 = vpop.f32.mrf.mxu0
      %3191 = vmatprep.mubr.f32.mxu0 0.0
      %3192 = vmatmul.mubr.f32.gmra.mxu0 %v3007
      %v3193 = vpop.f32.mrf.mxu0
      %v3194 = vadd.f32 0.0, %v3193
      %v3195 = vpop.f32.mrf.mxu0
      %3196 = vmatprep.mubr.f32.mxu0 0.0
      %3197 = vmatmul.mubr.f32.gmra.mxu0 %v3010
      %v3198 = vpop.f32.mrf.mxu0
      %v3199 = vadd.f32 0.0, %v3198
      %v3200 = vpop.f32.mrf.mxu0
      %3201 = vmatprep.mubr.f32.mxu0 0.0
      %3202 = vmatmul.mubr.f32.gmra.mxu0 %v3013
      %v3203 = vpop.f32.mrf.mxu0
      %v3204 = vadd.f32 0.0, %v3203
      %v3205 = vpop.f32.mrf.mxu0
      %3206 = vmatprep.mubr.f32.mxu0 0.0
      %3207 = vmatmul.mubr.f32.gmra.mxu0 %v3016
      %v3208 = vpop.f32.mrf.mxu0
      %v3209 = vadd.f32 0.0, %v3208
      %v3210 = vpop.f32.mrf.mxu0
      %3211 = vmatprep.mubr.f32.mxu0 0.0
      %3212 = vmatmul.mubr.f32.gmra.mxu0 %v3019
      %v3213 = vpop.f32.mrf.mxu0
      %v3214 = vadd.f32 0.0, %v3213
      %v3215 = vpop.f32.mrf.mxu0
      %3216 = vmatprep.mubr.f32.mxu0 0.0
      %3217 = vmatmul.mubr.f32.gmra.mxu0 %v3022
      %v3218 = vpop.f32.mrf.mxu0
      %v3219 = vadd.f32 0.0, %v3218
      %v3220 = vpop.f32.mrf.mxu0
      %3221 = vmatprep.mubr.f32.mxu0 0.0
      %3222 = vmatmul.mubr.f32.gmra.mxu0 %v3025
      %v3223 = vpop.f32.mrf.mxu0
      %v3224 = vadd.f32 0.0, %v3223
      %v3225 = vpop.f32.mrf.mxu0
      %3226 = vmatprep.mubr.f32.mxu0 0.0
      %3227 = vmatmul.mubr.f32.gmra.mxu0 %v3028
      %v3228 = vpop.f32.mrf.mxu0
      %v3229 = vadd.f32 0.0, %v3228
      %v3230 = vpop.f32.mrf.mxu0
      %3231 = vmatprep.mubr.f32.mxu0 0.0
      %3232 = vmatmul.mubr.f32.gmra.mxu0 %v3031
      %v3233 = vpop.f32.mrf.mxu0
      %v3234 = vadd.f32 0.0, %v3233
      %v3235 = vpop.f32.mrf.mxu0
      %3236 = vmatprep.mubr.f32.mxu0 0.0
      %3237 = vmatmul.mubr.f32.gmra.mxu0 %v3034
      %v3238 = vpop.f32.mrf.mxu0
      %v3239 = vadd.f32 0.0, %v3238
      %v3240 = vpop.f32.mrf.mxu0
      %3241 = vmatprep.mubr.f32.mxu0 0.0
      %3242 = vmatmul.mubr.f32.gmra.mxu0 %v3037
      %v3243 = vpop.f32.mrf.mxu0
      %v3244 = vadd.f32 0.0, %v3243
      %v3245 = vpop.f32.mrf.mxu0
      %3246 = vmatprep.mubr.f32.mxu0 0.0
      %3247 = vmatmul.mubr.f32.gmra.mxu0 %v3040
      %v3248 = vpop.f32.mrf.mxu0
      %v3249 = vadd.f32 0.0, %v3248
      %v3250 = vpop.f32.mrf.mxu0
      %3251 = vmatprep.mubr.f32.mxu0 0.0
      %3252 = vmatmul.mubr.f32.gmra.mxu0 %v3043
      %v3253 = vpop.f32.mrf.mxu0
      %v3254 = vadd.f32 0.0, %v3253
      %v3255 = vpop.f32.mrf.mxu0
      %3256 = vmatprep.mubr.f32.mxu0 0.0
      %3257 = vmatmul.mubr.f32.gmra.mxu0 %v3046
      %v3258 = vpop.f32.mrf.mxu0
      %v3259 = vadd.f32 0.0, %v3258
      %v3260 = vpop.f32.mrf.mxu0
      %3261 = vmatprep.mubr.f32.mxu0 0.0
      %3262 = vmatmul.mubr.f32.gmra.mxu0 %v3049
      %v3263 = vpop.f32.mrf.mxu0
      %v3264 = vadd.f32 0.0, %v3263
      %v3265 = vpop.f32.mrf.mxu0
      %3266 = vdwg.mxu0
      %v3267 = vadd.f32 %v2869, %v3089
      %v3268 = vadd.f32 %v2870, %v3094
      %v3269 = vadd.f32 %v2871, %v3099
      %v3270 = vadd.f32 %v2872, %v3104
      %v3271 = vadd.f32 %v2873, %v3109
      %v3272 = vadd.f32 %v2874, %v3114
      %v3273 = vadd.f32 %v2875, %v3119
      %v3274 = vadd.f32 %v2876, %v3124
      %v3275 = vadd.f32 %v2877, %v3129
      %v3276 = vadd.f32 %v2878, %v3134
      %v3277 = vadd.f32 %v2879, %v3139
      %v3278 = vadd.f32 %v2880, %v3144
      %v3279 = vadd.f32 %v2881, %v3149
      %v3280 = vadd.f32 %v2882, %v3154
      %v3281 = vadd.f32 %v2883, %v3159
      %v3282 = vadd.f32 %v2884, %v3164
      %v3283 = vadd.f32 %v2885, %v3169
      %v3284 = vadd.f32 %v2886, %v3174
      %v3285 = vadd.f32 %v2887, %v3179
      %v3286 = vadd.f32 %v2888, %v3184
      %v3287 = vadd.f32 %v2889, %v3189
      %v3288 = vadd.f32 %v2890, %v3194
      %v3289 = vadd.f32 %v2891, %v3199
      %v3290 = vadd.f32 %v2892, %v3204
      %v3291 = vadd.f32 %v2893, %v3209
      %v3292 = vadd.f32 %v2894, %v3214
      %v3293 = vadd.f32 %v2895, %v3219
      %v3294 = vadd.f32 %v2896, %v3224
      %v3295 = vadd.f32 %v2897, %v3229
      %v3296 = vadd.f32 %v2898, %v3234
      %v3297 = vadd.f32 %v2899, %v3239
      %v3298 = vadd.f32 %v2900, %v3244
      %v3299 = vadd.f32 %v2901, %v3249
      %v3300 = vadd.f32 %v2902, %v3254
      %v3301 = vadd.f32 %v2903, %v3259
      %v3302 = vadd.f32 %v2904, %v3264
      %3303 = vst.msk [vmem:[#allocation3] sm:$0xff] %vm952, %v3267
      %3304 = vst.msk [vmem:[#allocation3 + $0x8] sm:$0xff] %vm952, %v3268
      %3305 = vst.msk [vmem:[#allocation3 + $0x10] sm:$0xff] %vm952, %v3269
      %3306 = vst.msk [vmem:[#allocation3 + $0x18] sm:$0xff] %vm952, %v3270
      %3307 = vst.msk [vmem:[#allocation3 + $0x20] sm:$0xff] %vm952, %v3271
      %3308 = vst.msk [vmem:[#allocation3 + $0x28] sm:$0xff] %vm952, %v3272
      %3309 = vst.msk [vmem:[#allocation3 + $0x30] sm:$0xff] %vm952, %v3273
      %3310 = vst.msk [vmem:[#allocation3 + $0x38] sm:$0xff] %vm952, %v3274
      %3311 = vst.msk [vmem:[#allocation3 + $0x40] sm:$0xff] %vm952, %v3275
      %3312 = vst.msk [vmem:[#allocation3 + $0x48] sm:$0xff] %vm952, %v3276
      %3313 = vst.msk [vmem:[#allocation3 + $0x50] sm:$0xff] %vm952, %v3277
      %3314 = vst.msk [vmem:[#allocation3 + $0x58] sm:$0xff] %vm952, %v3278
      %3315 = vst.msk [vmem:[#allocation3 + $0x60] sm:$0xff] %vm952, %v3279
      %3316 = vst.msk [vmem:[#allocation3 + $0x68] sm:$0xff] %vm952, %v3280
      %3317 = vst.msk [vmem:[#allocation3 + $0x70] sm:$0xff] %vm952, %v3281
      %3318 = vst.msk [vmem:[#allocation3 + $0x78] sm:$0xff] %vm952, %v3282
      %3319 = vst.msk [vmem:[#allocation3 + $0x80] sm:$0xff] %vm952, %v3283
      %3320 = vst.msk [vmem:[#allocation3 + $0x88] sm:$0xff] %vm952, %v3284
      %3321 = vst.msk [vmem:[#allocation3 + $0x90] sm:$0xff] %vm952, %v3285
      %3322 = vst.msk [vmem:[#allocation3 + $0x98] sm:$0xff] %vm952, %v3286
      %3323 = vst.msk [vmem:[#allocation3 + $0xa0] sm:$0xff] %vm952, %v3287
      %3324 = vst.msk [vmem:[#allocation3 + $0xa8] sm:$0xff] %vm952, %v3288
      %3325 = vst.msk [vmem:[#allocation3 + $0xb0] sm:$0xff] %vm952, %v3289
      %3326 = vst.msk [vmem:[#allocation3 + $0xb8] sm:$0xff] %vm952, %v3290
      %3327 = vst.msk [vmem:[#allocation3 + $0xc0] sm:$0xff] %vm952, %v3291
      %3328 = vst.msk [vmem:[#allocation3 + $0xc8] sm:$0xff] %vm952, %v3292
      %3329 = vst.msk [vmem:[#allocation3 + $0xd0] sm:$0xff] %vm952, %v3293
      %3330 = vst.msk [vmem:[#allocation3 + $0xd8] sm:$0xff] %vm952, %v3294
      %3331 = vst.msk [vmem:[#allocation3 + $0xe0] sm:$0xff] %vm952, %v3295
      %3332 = vst.msk [vmem:[#allocation3 + $0xe8] sm:$0xff] %vm952, %v3296
      %3333 = vst.msk [vmem:[#allocation3 + $0xf0] sm:$0xff] %vm952, %v3297
      %3334 = vst.msk [vmem:[#allocation3 + $0xf8] sm:$0xff] %vm952, %v3298
      %3335 = vst.msk [vmem:[#allocation3 + $0x100] sm:$0xff] %vm952, %v3299
      %3336 = vst.msk [vmem:[#allocation3 + $0x108] sm:$0xff] %vm952, %v3300
      %3337 = vst.msk [vmem:[#allocation3 + $0x110] sm:$0xff] %vm952, %v3301
      %3338 = vst.msk [vmem:[#allocation3 + $0x118] sm:$0xff] %vm952, %v3302
      %v3339 = vld [vmem:[#allocation3] sm:$0xff]
      %v3340 = vld [vmem:[#allocation3 + $0x8] sm:$0xff]
      %v3341 = vld [vmem:[#allocation3 + $0x10] sm:$0xff]
      %v3342 = vld [vmem:[#allocation3 + $0x18] sm:$0xff]
      %v3343 = vld [vmem:[#allocation3 + $0x20] sm:$0xff]
      %v3344 = vld [vmem:[#allocation3 + $0x28] sm:$0xff]
      %v3345 = vld [vmem:[#allocation3 + $0x30] sm:$0xff]
      %v3346 = vld [vmem:[#allocation3 + $0x38] sm:$0xff]
      %v3347 = vld [vmem:[#allocation3 + $0x40] sm:$0xff]
      %v3348 = vld [vmem:[#allocation3 + $0x48] sm:$0xff]
      %v3349 = vld [vmem:[#allocation3 + $0x50] sm:$0xff]
      %v3350 = vld [vmem:[#allocation3 + $0x58] sm:$0xff]
      %v3351 = vld [vmem:[#allocation3 + $0x60] sm:$0xff]
      %v3352 = vld [vmem:[#allocation3 + $0x68] sm:$0xff]
      %v3353 = vld [vmem:[#allocation3 + $0x70] sm:$0xff]
      %v3354 = vld [vmem:[#allocation3 + $0x78] sm:$0xff]
      %v3355 = vld [vmem:[#allocation3 + $0x80] sm:$0xff]
      %v3356 = vld [vmem:[#allocation3 + $0x88] sm:$0xff]
      %v3357 = vld [vmem:[#allocation3 + $0x90] sm:$0xff]
      %v3358 = vld [vmem:[#allocation3 + $0x98] sm:$0xff]
      %v3359 = vld [vmem:[#allocation3 + $0xa0] sm:$0xff]
      %v3360 = vld [vmem:[#allocation3 + $0xa8] sm:$0xff]
      %v3361 = vld [vmem:[#allocation3 + $0xb0] sm:$0xff]
      %v3362 = vld [vmem:[#allocation3 + $0xb8] sm:$0xff]
      %v3363 = vld [vmem:[#allocation3 + $0xc0] sm:$0xff]
      %v3364 = vld [vmem:[#allocation3 + $0xc8] sm:$0xff]
      %v3365 = vld [vmem:[#allocation3 + $0xd0] sm:$0xff]
      %v3366 = vld [vmem:[#allocation3 + $0xd8] sm:$0xff]
      %v3367 = vld [vmem:[#allocation3 + $0xe0] sm:$0xff]
      %v3368 = vld [vmem:[#allocation3 + $0xe8] sm:$0xff]
      %v3369 = vld [vmem:[#allocation3 + $0xf0] sm:$0xff]
      %v3370 = vld [vmem:[#allocation3 + $0xf8] sm:$0xff]
      %v3371 = vld [vmem:[#allocation3 + $0x100] sm:$0xff]
      %v3372 = vld [vmem:[#allocation3 + $0x108] sm:$0xff]
      %v3373 = vld [vmem:[#allocation3 + $0x110] sm:$0xff]
      %v3374 = vld [vmem:[#allocation3 + $0x118] sm:$0xff]
      %v3375 = vld [vmem:[#allocation2 + $0x24] sm:$0xff]
      %v3376 = vld [vmem:[#allocation2 + $0x2c] sm:$0xff]
      %v3377 = vld [vmem:[#allocation2 + $0x34] sm:$0xff]
      %v3378 = vld [vmem:[#allocation2 + $0x3c] sm:$0xff]
      %v3379 = vld [vmem:[#allocation2 + $0x44] sm:$0xff]
      %v3380 = vld [vmem:[#allocation2 + $0x4c] sm:$0xff]
      %v3381 = vld [vmem:[#allocation2 + $0x54] sm:$0xff]
      %v3382 = vld [vmem:[#allocation2 + $0x5c] sm:$0xff]
      %v3383 = vld [vmem:[#allocation2 + $0x64] sm:$0xff]
      %v3384 = vld [vmem:[#allocation2 + $0x6c] sm:$0xff]
      %v3385 = vld [vmem:[#allocation2 + $0x74] sm:$0xff]
      %v3386 = vld [vmem:[#allocation2 + $0x7c] sm:$0xff]
      %v3387 = vld [vmem:[#allocation2 + $0x84] sm:$0xff]
      %v3388 = vld [vmem:[#allocation2 + $0x8c] sm:$0xff]
      %v3389 = vld [vmem:[#allocation2 + $0x94] sm:$0xff]
      %v3390 = vld [vmem:[#allocation2 + $0x9c] sm:$0xff]
      %v3391 = vld [vmem:[#allocation2 + $0xa4] sm:$0xff]
      %v3392 = vld [vmem:[#allocation2 + $0xac] sm:$0xff]
      %v3393 = vld [vmem:[#allocation2 + $0xb4] sm:$0xff]
      %v3394 = vld [vmem:[#allocation2 + $0xbc] sm:$0xff]
      %v3395 = vld [vmem:[#allocation2 + $0xc4] sm:$0xff]
      %v3396 = vld [vmem:[#allocation2 + $0xcc] sm:$0xff]
      %v3397 = vld [vmem:[#allocation2 + $0xd4] sm:$0xff]
      %v3398 = vld [vmem:[#allocation2 + $0xdc] sm:$0xff]
      %v3399 = vld [vmem:[#allocation2 + $0xe4] sm:$0xff]
      %v3400 = vld [vmem:[#allocation2 + $0xec] sm:$0xff]
      %v3401 = vld [vmem:[#allocation2 + $0xf4] sm:$0xff]
      %v3402 = vld [vmem:[#allocation2 + $0xfc] sm:$0xff]
      %v3403 = vld [vmem:[#allocation2 + $0x104] sm:$0xff]
      %v3404 = vld [vmem:[#allocation2 + $0x10c] sm:$0xff]
      %v3405 = vld [vmem:[#allocation2 + $0x114] sm:$0xff]
      %v3406 = vld [vmem:[#allocation2 + $0x11c] sm:$0xff]
      %v3407 = vld [vmem:[#allocation2 + $0x124] sm:$0xff]
      %v3408 = vld [vmem:[#allocation2 + $0x12c] sm:$0xff]
      %v3409 = vld [vmem:[#allocation2 + $0x134] sm:$0xff]
      %v3410 = vld [vmem:[#allocation2 + $0x13c] sm:$0xff]
      %s3411 = scalar_lea.vmem %s3, 6
      %v3412 = vld [vmem:[%s3411] sm:$0x1]
      %v3414 = vsel %vm277, %v3375, 0
      %v3417 = vsel %vm277, %v3376, 0
      %v3420 = vsel %vm277, %v3377, 0
      %v3423 = vsel %vm277, %v3378, 0
      %v3426 = vsel %vm277, %v3379, 0
      %v3429 = vsel %vm277, %v3380, 0
      %v3432 = vsel %vm277, %v3381, 0
      %v3435 = vsel %vm277, %v3382, 0
      %v3438 = vsel %vm277, %v3383, 0
      %v3441 = vsel %vm277, %v3384, 0
      %v3444 = vsel %vm277, %v3385, 0
      %v3447 = vsel %vm277, %v3386, 0
      %v3450 = vsel %vm277, %v3387, 0
      %v3453 = vsel %vm277, %v3388, 0
      %v3456 = vsel %vm277, %v3389, 0
      %v3459 = vsel %vm277, %v3390, 0
      %v3462 = vsel %vm277, %v3391, 0
      %v3465 = vsel %vm277, %v3392, 0
      %v3468 = vsel %vm277, %v3393, 0
      %v3471 = vsel %vm277, %v3394, 0
      %v3474 = vsel %vm277, %v3395, 0
      %v3477 = vsel %vm277, %v3396, 0
      %v3480 = vsel %vm277, %v3397, 0
      %v3483 = vsel %vm277, %v3398, 0
      %v3486 = vsel %vm277, %v3399, 0
      %v3489 = vsel %vm277, %v3400, 0
      %v3492 = vsel %vm277, %v3401, 0
      %v3495 = vsel %vm277, %v3402, 0
      %v3498 = vsel %vm277, %v3403, 0
      %v3501 = vsel %vm277, %v3404, 0
      %v3504 = vsel %vm277, %v3405, 0
      %v3507 = vsel %vm277, %v3406, 0
      %v3510 = vsel %vm277, %v3407, 0
      %v3513 = vsel %vm277, %v3408, 0
      %v3516 = vsel %vm277, %v3409, 0
      %v3519 = vsel %vm277, %v3410, 0
      %v3522 = vsel %vm735, %v3412, 0
      %3524 = vmatprep.subr.bf16.mxu0 0
      %3525 = vmatpush1.bf16.msra.mxu0 0
      %3526 = vmatprep.subr.bf16.mxu0 0
      %3527 = vmatpush1.bf16.msra.mxu0 0
      %3528 = vmatprep.subr.bf16.mxu0 0
      %3529 = vmatpush1.bf16.msra.mxu0 0
      %3530 = vmatprep.subr.bf16.mxu0 0
      %3531 = vmatpush1.bf16.msra.mxu0 0
      %3532 = vmatprep.subr.bf16.mxu0 0
      %3533 = vmatpush1.bf16.msra.mxu0 0
      %3534 = vmatprep.subr.bf16.mxu0 0
      %3535 = vmatpush1.bf16.msra.mxu0 0
      %3536 = vmatprep.subr.bf16.mxu0 0
      %3537 = vmatpush1.bf16.msra.mxu0 0
      %3538 = vmatprep.subr.bf16.mxu0 0
      %3539 = vmatpush1.bf16.msra.mxu0 %v3522
      %3540 = vmatprep.subr.bf16.mxu0 0
      %3541 = vmatpush2.bf16.msra.mxu0 0
      %3542 = vmatprep.subr.bf16.mxu0 0
      %3543 = vmatpush2.bf16.msra.mxu0 0
      %3544 = vmatprep.subr.bf16.mxu0 0
      %3545 = vmatpush2.bf16.msra.mxu0 0
      %3546 = vmatprep.subr.bf16.mxu0 0
      %3547 = vmatpush2.bf16.msra.mxu0 0
      %3548 = vmatprep.subr.bf16.mxu0 0
      %3549 = vmatpush2.bf16.msra.mxu0 0
      %3550 = vmatprep.subr.bf16.mxu0 0
      %3551 = vmatpush2.bf16.msra.mxu0 0
      %3552 = vmatprep.subr.bf16.mxu0 0
      %3553 = vmatpush2.bf16.msra.mxu0 0
      %3554 = vmatprep.subr.bf16.mxu0 0
      %3555 = vmatpush2.bf16.msra.mxu0 0
      %3556 = vmatprep.mubr.f32.mxu0 0.0
      %3557 = vmatmul.mubr.f32.gmra.mxu0 %v3414
      %v3558 = vpop.f32.mrf.mxu0
      %v3559 = vadd.f32 0.0, %v3558
      %v3560 = vpop.f32.mrf.mxu0
      %3561 = vmatprep.mubr.f32.mxu0 0.0
      %3562 = vmatmul.mubr.f32.gmra.mxu0 %v3417
      %v3563 = vpop.f32.mrf.mxu0
      %v3564 = vadd.f32 0.0, %v3563
      %v3565 = vpop.f32.mrf.mxu0
      %3566 = vmatprep.mubr.f32.mxu0 0.0
      %3567 = vmatmul.mubr.f32.gmra.mxu0 %v3420
      %v3568 = vpop.f32.mrf.mxu0
      %v3569 = vadd.f32 0.0, %v3568
      %v3570 = vpop.f32.mrf.mxu0
      %3571 = vmatprep.mubr.f32.mxu0 0.0
      %3572 = vmatmul.mubr.f32.gmra.mxu0 %v3423
      %v3573 = vpop.f32.mrf.mxu0
      %v3574 = vadd.f32 0.0, %v3573
      %v3575 = vpop.f32.mrf.mxu0
      %3576 = vmatprep.mubr.f32.mxu0 0.0
      %3577 = vmatmul.mubr.f32.gmra.mxu0 %v3426
      %v3578 = vpop.f32.mrf.mxu0
      %v3579 = vadd.f32 0.0, %v3578
      %v3580 = vpop.f32.mrf.mxu0
      %3581 = vmatprep.mubr.f32.mxu0 0.0
      %3582 = vmatmul.mubr.f32.gmra.mxu0 %v3429
      %v3583 = vpop.f32.mrf.mxu0
      %v3584 = vadd.f32 0.0, %v3583
      %v3585 = vpop.f32.mrf.mxu0
      %3586 = vmatprep.mubr.f32.mxu0 0.0
      %3587 = vmatmul.mubr.f32.gmra.mxu0 %v3432
      %v3588 = vpop.f32.mrf.mxu0
      %v3589 = vadd.f32 0.0, %v3588
      %v3590 = vpop.f32.mrf.mxu0
      %3591 = vmatprep.mubr.f32.mxu0 0.0
      %3592 = vmatmul.mubr.f32.gmra.mxu0 %v3435
      %v3593 = vpop.f32.mrf.mxu0
      %v3594 = vadd.f32 0.0, %v3593
      %v3595 = vpop.f32.mrf.mxu0
      %3596 = vmatprep.mubr.f32.mxu0 0.0
      %3597 = vmatmul.mubr.f32.gmra.mxu0 %v3438
      %v3598 = vpop.f32.mrf.mxu0
      %v3599 = vadd.f32 0.0, %v3598
      %v3600 = vpop.f32.mrf.mxu0
      %3601 = vmatprep.mubr.f32.mxu0 0.0
      %3602 = vmatmul.mubr.f32.gmra.mxu0 %v3441
      %v3603 = vpop.f32.mrf.mxu0
      %v3604 = vadd.f32 0.0, %v3603
      %v3605 = vpop.f32.mrf.mxu0
      %3606 = vmatprep.mubr.f32.mxu0 0.0
      %3607 = vmatmul.mubr.f32.gmra.mxu0 %v3444
      %v3608 = vpop.f32.mrf.mxu0
      %v3609 = vadd.f32 0.0, %v3608
      %v3610 = vpop.f32.mrf.mxu0
      %3611 = vmatprep.mubr.f32.mxu0 0.0
      %3612 = vmatmul.mubr.f32.gmra.mxu0 %v3447
      %v3613 = vpop.f32.mrf.mxu0
      %v3614 = vadd.f32 0.0, %v3613
      %v3615 = vpop.f32.mrf.mxu0
      %3616 = vmatprep.mubr.f32.mxu0 0.0
      %3617 = vmatmul.mubr.f32.gmra.mxu0 %v3450
      %v3618 = vpop.f32.mrf.mxu0
      %v3619 = vadd.f32 0.0, %v3618
      %v3620 = vpop.f32.mrf.mxu0
      %3621 = vmatprep.mubr.f32.mxu0 0.0
      %3622 = vmatmul.mubr.f32.gmra.mxu0 %v3453
      %v3623 = vpop.f32.mrf.mxu0
      %v3624 = vadd.f32 0.0, %v3623
      %v3625 = vpop.f32.mrf.mxu0
      %3626 = vmatprep.mubr.f32.mxu0 0.0
      %3627 = vmatmul.mubr.f32.gmra.mxu0 %v3456
      %v3628 = vpop.f32.mrf.mxu0
      %v3629 = vadd.f32 0.0, %v3628
      %v3630 = vpop.f32.mrf.mxu0
      %3631 = vmatprep.mubr.f32.mxu0 0.0
      %3632 = vmatmul.mubr.f32.gmra.mxu0 %v3459
      %v3633 = vpop.f32.mrf.mxu0
      %v3634 = vadd.f32 0.0, %v3633
      %v3635 = vpop.f32.mrf.mxu0
      %3636 = vmatprep.mubr.f32.mxu0 0.0
      %3637 = vmatmul.mubr.f32.gmra.mxu0 %v3462
      %v3638 = vpop.f32.mrf.mxu0
      %v3639 = vadd.f32 0.0, %v3638
      %v3640 = vpop.f32.mrf.mxu0
      %3641 = vmatprep.mubr.f32.mxu0 0.0
      %3642 = vmatmul.mubr.f32.gmra.mxu0 %v3465
      %v3643 = vpop.f32.mrf.mxu0
      %v3644 = vadd.f32 0.0, %v3643
      %v3645 = vpop.f32.mrf.mxu0
      %3646 = vmatprep.mubr.f32.mxu0 0.0
      %3647 = vmatmul.mubr.f32.gmra.mxu0 %v3468
      %v3648 = vpop.f32.mrf.mxu0
      %v3649 = vadd.f32 0.0, %v3648
      %v3650 = vpop.f32.mrf.mxu0
      %3651 = vmatprep.mubr.f32.mxu0 0.0
      %3652 = vmatmul.mubr.f32.gmra.mxu0 %v3471
      %v3653 = vpop.f32.mrf.mxu0
      %v3654 = vadd.f32 0.0, %v3653
      %v3655 = vpop.f32.mrf.mxu0
      %3656 = vmatprep.mubr.f32.mxu0 0.0
      %3657 = vmatmul.mubr.f32.gmra.mxu0 %v3474
      %v3658 = vpop.f32.mrf.mxu0
      %v3659 = vadd.f32 0.0, %v3658
      %v3660 = vpop.f32.mrf.mxu0
      %3661 = vmatprep.mubr.f32.mxu0 0.0
      %3662 = vmatmul.mubr.f32.gmra.mxu0 %v3477
      %v3663 = vpop.f32.mrf.mxu0
      %v3664 = vadd.f32 0.0, %v3663
      %v3665 = vpop.f32.mrf.mxu0
      %3666 = vmatprep.mubr.f32.mxu0 0.0
      %3667 = vmatmul.mubr.f32.gmra.mxu0 %v3480
      %v3668 = vpop.f32.mrf.mxu0
      %v3669 = vadd.f32 0.0, %v3668
      %v3670 = vpop.f32.mrf.mxu0
      %3671 = vmatprep.mubr.f32.mxu0 0.0
      %3672 = vmatmul.mubr.f32.gmra.mxu0 %v3483
      %v3673 = vpop.f32.mrf.mxu0
      %v3674 = vadd.f32 0.0, %v3673
      %v3675 = vpop.f32.mrf.mxu0
      %3676 = vmatprep.mubr.f32.mxu0 0.0
      %3677 = vmatmul.mubr.f32.gmra.mxu0 %v3486
      %v3678 = vpop.f32.mrf.mxu0
      %v3679 = vadd.f32 0.0, %v3678
      %v3680 = vpop.f32.mrf.mxu0
      %3681 = vmatprep.mubr.f32.mxu0 0.0
      %3682 = vmatmul.mubr.f32.gmra.mxu0 %v3489
      %v3683 = vpop.f32.mrf.mxu0
      %v3684 = vadd.f32 0.0, %v3683
      %v3685 = vpop.f32.mrf.mxu0
      %3686 = vmatprep.mubr.f32.mxu0 0.0
      %3687 = vmatmul.mubr.f32.gmra.mxu0 %v3492
      %v3688 = vpop.f32.mrf.mxu0
      %v3689 = vadd.f32 0.0, %v3688
      %v3690 = vpop.f32.mrf.mxu0
      %3691 = vmatprep.mubr.f32.mxu0 0.0
      %3692 = vmatmul.mubr.f32.gmra.mxu0 %v3495
      %v3693 = vpop.f32.mrf.mxu0
      %v3694 = vadd.f32 0.0, %v3693
      %v3695 = vpop.f32.mrf.mxu0
      %3696 = vmatprep.mubr.f32.mxu0 0.0
      %3697 = vmatmul.mubr.f32.gmra.mxu0 %v3498
      %v3698 = vpop.f32.mrf.mxu0
      %v3699 = vadd.f32 0.0, %v3698
      %v3700 = vpop.f32.mrf.mxu0
      %3701 = vmatprep.mubr.f32.mxu0 0.0
      %3702 = vmatmul.mubr.f32.gmra.mxu0 %v3501
      %v3703 = vpop.f32.mrf.mxu0
      %v3704 = vadd.f32 0.0, %v3703
      %v3705 = vpop.f32.mrf.mxu0
      %3706 = vmatprep.mubr.f32.mxu0 0.0
      %3707 = vmatmul.mubr.f32.gmra.mxu0 %v3504
      %v3708 = vpop.f32.mrf.mxu0
      %v3709 = vadd.f32 0.0, %v3708
      %v3710 = vpop.f32.mrf.mxu0
      %3711 = vmatprep.mubr.f32.mxu0 0.0
      %3712 = vmatmul.mubr.f32.gmra.mxu0 %v3507
      %v3713 = vpop.f32.mrf.mxu0
      %v3714 = vadd.f32 0.0, %v3713
      %v3715 = vpop.f32.mrf.mxu0
      %3716 = vmatprep.mubr.f32.mxu0 0.0
      %3717 = vmatmul.mubr.f32.gmra.mxu0 %v3510
      %v3718 = vpop.f32.mrf.mxu0
      %v3719 = vadd.f32 0.0, %v3718
      %v3720 = vpop.f32.mrf.mxu0
      %3721 = vmatprep.mubr.f32.mxu0 0.0
      %3722 = vmatmul.mubr.f32.gmra.mxu0 %v3513
      %v3723 = vpop.f32.mrf.mxu0
      %v3724 = vadd.f32 0.0, %v3723
      %v3725 = vpop.f32.mrf.mxu0
      %3726 = vmatprep.mubr.f32.mxu0 0.0
      %3727 = vmatmul.mubr.f32.gmra.mxu0 %v3516
      %v3728 = vpop.f32.mrf.mxu0
      %v3729 = vadd.f32 0.0, %v3728
      %v3730 = vpop.f32.mrf.mxu0
      %3731 = vmatprep.mubr.f32.mxu0 0.0
      %3732 = vmatmul.mubr.f32.gmra.mxu0 %v3519
      %v3733 = vpop.f32.mrf.mxu0
      %v3734 = vadd.f32 0.0, %v3733
      %v3735 = vpop.f32.mrf.mxu0
      %3736 = vdwg.mxu0
      %v3737 = vadd.f32 %v3339, %v3559
      %v3738 = vadd.f32 %v3340, %v3564
      %v3739 = vadd.f32 %v3341, %v3569
      %v3740 = vadd.f32 %v3342, %v3574
      %v3741 = vadd.f32 %v3343, %v3579
      %v3742 = vadd.f32 %v3344, %v3584
      %v3743 = vadd.f32 %v3345, %v3589
      %v3744 = vadd.f32 %v3346, %v3594
      %v3745 = vadd.f32 %v3347, %v3599
      %v3746 = vadd.f32 %v3348, %v3604
      %v3747 = vadd.f32 %v3349, %v3609
      %v3748 = vadd.f32 %v3350, %v3614
      %v3749 = vadd.f32 %v3351, %v3619
      %v3750 = vadd.f32 %v3352, %v3624
      %v3751 = vadd.f32 %v3353, %v3629
      %v3752 = vadd.f32 %v3354, %v3634
      %v3753 = vadd.f32 %v3355, %v3639
      %v3754 = vadd.f32 %v3356, %v3644
      %v3755 = vadd.f32 %v3357, %v3649
      %v3756 = vadd.f32 %v3358, %v3654
      %v3757 = vadd.f32 %v3359, %v3659
      %v3758 = vadd.f32 %v3360, %v3664
      %v3759 = vadd.f32 %v3361, %v3669
      %v3760 = vadd.f32 %v3362, %v3674
      %v3761 = vadd.f32 %v3363, %v3679
      %v3762 = vadd.f32 %v3364, %v3684
      %v3763 = vadd.f32 %v3365, %v3689
      %v3764 = vadd.f32 %v3366, %v3694
      %v3765 = vadd.f32 %v3367, %v3699
      %v3766 = vadd.f32 %v3368, %v3704
      %v3767 = vadd.f32 %v3369, %v3709
      %v3768 = vadd.f32 %v3370, %v3714
      %v3769 = vadd.f32 %v3371, %v3719
      %v3770 = vadd.f32 %v3372, %v3724
      %v3771 = vadd.f32 %v3373, %v3729
      %v3772 = vadd.f32 %v3374, %v3734
      %3773 = vst.msk [vmem:[#allocation3] sm:$0xff] %vm952, %v3737
      %3774 = vst.msk [vmem:[#allocation3 + $0x8] sm:$0xff] %vm952, %v3738
      %3775 = vst.msk [vmem:[#allocation3 + $0x10] sm:$0xff] %vm952, %v3739
      %3776 = vst.msk [vmem:[#allocation3 + $0x18] sm:$0xff] %vm952, %v3740
      %3777 = vst.msk [vmem:[#allocation3 + $0x20] sm:$0xff] %vm952, %v3741
      %3778 = vst.msk [vmem:[#allocation3 + $0x28] sm:$0xff] %vm952, %v3742
      %3779 = vst.msk [vmem:[#allocation3 + $0x30] sm:$0xff] %vm952, %v3743
      %3780 = vst.msk [vmem:[#allocation3 + $0x38] sm:$0xff] %vm952, %v3744
      %3781 = vst.msk [vmem:[#allocation3 + $0x40] sm:$0xff] %vm952, %v3745
      %3782 = vst.msk [vmem:[#allocation3 + $0x48] sm:$0xff] %vm952, %v3746
      %3783 = vst.msk [vmem:[#allocation3 + $0x50] sm:$0xff] %vm952, %v3747
      %3784 = vst.msk [vmem:[#allocation3 + $0x58] sm:$0xff] %vm952, %v3748
      %3785 = vst.msk [vmem:[#allocation3 + $0x60] sm:$0xff] %vm952, %v3749
      %3786 = vst.msk [vmem:[#allocation3 + $0x68] sm:$0xff] %vm952, %v3750
      %3787 = vst.msk [vmem:[#allocation3 + $0x70] sm:$0xff] %vm952, %v3751
      %3788 = vst.msk [vmem:[#allocation3 + $0x78] sm:$0xff] %vm952, %v3752
      %3789 = vst.msk [vmem:[#allocation3 + $0x80] sm:$0xff] %vm952, %v3753
      %3790 = vst.msk [vmem:[#allocation3 + $0x88] sm:$0xff] %vm952, %v3754
      %3791 = vst.msk [vmem:[#allocation3 + $0x90] sm:$0xff] %vm952, %v3755
      %3792 = vst.msk [vmem:[#allocation3 + $0x98] sm:$0xff] %vm952, %v3756
      %3793 = vst.msk [vmem:[#allocation3 + $0xa0] sm:$0xff] %vm952, %v3757
      %3794 = vst.msk [vmem:[#allocation3 + $0xa8] sm:$0xff] %vm952, %v3758
      %3795 = vst.msk [vmem:[#allocation3 + $0xb0] sm:$0xff] %vm952, %v3759
      %3796 = vst.msk [vmem:[#allocation3 + $0xb8] sm:$0xff] %vm952, %v3760
      %3797 = vst.msk [vmem:[#allocation3 + $0xc0] sm:$0xff] %vm952, %v3761
      %3798 = vst.msk [vmem:[#allocation3 + $0xc8] sm:$0xff] %vm952, %v3762
      %3799 = vst.msk [vmem:[#allocation3 + $0xd0] sm:$0xff] %vm952, %v3763
      %3800 = vst.msk [vmem:[#allocation3 + $0xd8] sm:$0xff] %vm952, %v3764
      %3801 = vst.msk [vmem:[#allocation3 + $0xe0] sm:$0xff] %vm952, %v3765
      %3802 = vst.msk [vmem:[#allocation3 + $0xe8] sm:$0xff] %vm952, %v3766
      %3803 = vst.msk [vmem:[#allocation3 + $0xf0] sm:$0xff] %vm952, %v3767
      %3804 = vst.msk [vmem:[#allocation3 + $0xf8] sm:$0xff] %vm952, %v3768
      %3805 = vst.msk [vmem:[#allocation3 + $0x100] sm:$0xff] %vm952, %v3769
      %3806 = vst.msk [vmem:[#allocation3 + $0x108] sm:$0xff] %vm952, %v3770
      %3807 = vst.msk [vmem:[#allocation3 + $0x110] sm:$0xff] %vm952, %v3771
      %3808 = vst.msk [vmem:[#allocation3 + $0x118] sm:$0xff] %vm952, %v3772
      %v3809 = vld [vmem:[#allocation3] sm:$0xff]
      %v3810 = vld [vmem:[#allocation3 + $0x8] sm:$0xff]
      %v3811 = vld [vmem:[#allocation3 + $0x10] sm:$0xff]
      %v3812 = vld [vmem:[#allocation3 + $0x18] sm:$0xff]
      %v3813 = vld [vmem:[#allocation3 + $0x20] sm:$0xff]
      %v3814 = vld [vmem:[#allocation3 + $0x28] sm:$0xff]
      %v3815 = vld [vmem:[#allocation3 + $0x30] sm:$0xff]
      %v3816 = vld [vmem:[#allocation3 + $0x38] sm:$0xff]
      %v3817 = vld [vmem:[#allocation3 + $0x40] sm:$0xff]
      %v3818 = vld [vmem:[#allocation3 + $0x48] sm:$0xff]
      %v3819 = vld [vmem:[#allocation3 + $0x50] sm:$0xff]
      %v3820 = vld [vmem:[#allocation3 + $0x58] sm:$0xff]
      %v3821 = vld [vmem:[#allocation3 + $0x60] sm:$0xff]
      %v3822 = vld [vmem:[#allocation3 + $0x68] sm:$0xff]
      %v3823 = vld [vmem:[#allocation3 + $0x70] sm:$0xff]
      %v3824 = vld [vmem:[#allocation3 + $0x78] sm:$0xff]
      %v3825 = vld [vmem:[#allocation3 + $0x80] sm:$0xff]
      %v3826 = vld [vmem:[#allocation3 + $0x88] sm:$0xff]
      %v3827 = vld [vmem:[#allocation3 + $0x90] sm:$0xff]
      %v3828 = vld [vmem:[#allocation3 + $0x98] sm:$0xff]
      %v3829 = vld [vmem:[#allocation3 + $0xa0] sm:$0xff]
      %v3830 = vld [vmem:[#allocation3 + $0xa8] sm:$0xff]
      %v3831 = vld [vmem:[#allocation3 + $0xb0] sm:$0xff]
      %v3832 = vld [vmem:[#allocation3 + $0xb8] sm:$0xff]
      %v3833 = vld [vmem:[#allocation3 + $0xc0] sm:$0xff]
      %v3834 = vld [vmem:[#allocation3 + $0xc8] sm:$0xff]
      %v3835 = vld [vmem:[#allocation3 + $0xd0] sm:$0xff]
      %v3836 = vld [vmem:[#allocation3 + $0xd8] sm:$0xff]
      %v3837 = vld [vmem:[#allocation3 + $0xe0] sm:$0xff]
      %v3838 = vld [vmem:[#allocation3 + $0xe8] sm:$0xff]
      %v3839 = vld [vmem:[#allocation3 + $0xf0] sm:$0xff]
      %v3840 = vld [vmem:[#allocation3 + $0xf8] sm:$0xff]
      %v3841 = vld [vmem:[#allocation3 + $0x100] sm:$0xff]
      %v3842 = vld [vmem:[#allocation3 + $0x108] sm:$0xff]
      %v3843 = vld [vmem:[#allocation3 + $0x110] sm:$0xff]
      %v3844 = vld [vmem:[#allocation3 + $0x118] sm:$0xff]
      %v3845 = vld [vmem:[#allocation2 + $0x25] sm:$0xff]
      %v3846 = vld [vmem:[#allocation2 + $0x2d] sm:$0xff]
      %v3847 = vld [vmem:[#allocation2 + $0x35] sm:$0xff]
      %v3848 = vld [vmem:[#allocation2 + $0x3d] sm:$0xff]
      %v3849 = vld [vmem:[#allocation2 + $0x45] sm:$0xff]
      %v3850 = vld [vmem:[#allocation2 + $0x4d] sm:$0xff]
      %v3851 = vld [vmem:[#allocation2 + $0x55] sm:$0xff]
      %v3852 = vld [vmem:[#allocation2 + $0x5d] sm:$0xff]
      %v3853 = vld [vmem:[#allocation2 + $0x65] sm:$0xff]
      %v3854 = vld [vmem:[#allocation2 + $0x6d] sm:$0xff]
      %v3855 = vld [vmem:[#allocation2 + $0x75] sm:$0xff]
      %v3856 = vld [vmem:[#allocation2 + $0x7d] sm:$0xff]
      %v3857 = vld [vmem:[#allocation2 + $0x85] sm:$0xff]
      %v3858 = vld [vmem:[#allocation2 + $0x8d] sm:$0xff]
      %v3859 = vld [vmem:[#allocation2 + $0x95] sm:$0xff]
      %v3860 = vld [vmem:[#allocation2 + $0x9d] sm:$0xff]
      %v3861 = vld [vmem:[#allocation2 + $0xa5] sm:$0xff]
      %v3862 = vld [vmem:[#allocation2 + $0xad] sm:$0xff]
      %v3863 = vld [vmem:[#allocation2 + $0xb5] sm:$0xff]
      %v3864 = vld [vmem:[#allocation2 + $0xbd] sm:$0xff]
      %v3865 = vld [vmem:[#allocation2 + $0xc5] sm:$0xff]
      %v3866 = vld [vmem:[#allocation2 + $0xcd] sm:$0xff]
      %v3867 = vld [vmem:[#allocation2 + $0xd5] sm:$0xff]
      %v3868 = vld [vmem:[#allocation2 + $0xdd] sm:$0xff]
      %v3869 = vld [vmem:[#allocation2 + $0xe5] sm:$0xff]
      %v3870 = vld [vmem:[#allocation2 + $0xed] sm:$0xff]
      %v3871 = vld [vmem:[#allocation2 + $0xf5] sm:$0xff]
      %v3872 = vld [vmem:[#allocation2 + $0xfd] sm:$0xff]
      %v3873 = vld [vmem:[#allocation2 + $0x105] sm:$0xff]
      %v3874 = vld [vmem:[#allocation2 + $0x10d] sm:$0xff]
      %v3875 = vld [vmem:[#allocation2 + $0x115] sm:$0xff]
      %v3876 = vld [vmem:[#allocation2 + $0x11d] sm:$0xff]
      %v3877 = vld [vmem:[#allocation2 + $0x125] sm:$0xff]
      %v3878 = vld [vmem:[#allocation2 + $0x12d] sm:$0xff]
      %v3879 = vld [vmem:[#allocation2 + $0x135] sm:$0xff]
      %v3880 = vld [vmem:[#allocation2 + $0x13d] sm:$0xff]
      %s3881 = scalar_lea.vmem %s3, 7
      %v3882 = vld [vmem:[%s3881] sm:$0x1]
      %v3884 = vsel %vm277, %v3845, 0
      %v3887 = vsel %vm277, %v3846, 0
      %v3890 = vsel %vm277, %v3847, 0
      %v3893 = vsel %vm277, %v3848, 0
      %v3896 = vsel %vm277, %v3849, 0
      %v3899 = vsel %vm277, %v3850, 0
      %v3902 = vsel %vm277, %v3851, 0
      %v3905 = vsel %vm277, %v3852, 0
      %v3908 = vsel %vm277, %v3853, 0
      %v3911 = vsel %vm277, %v3854, 0
      %v3914 = vsel %vm277, %v3855, 0
      %v3917 = vsel %vm277, %v3856, 0
      %v3920 = vsel %vm277, %v3857, 0
      %v3923 = vsel %vm277, %v3858, 0
      %v3926 = vsel %vm277, %v3859, 0
      %v3929 = vsel %vm277, %v3860, 0
      %v3932 = vsel %vm277, %v3861, 0
      %v3935 = vsel %vm277, %v3862, 0
      %v3938 = vsel %vm277, %v3863, 0
      %v3941 = vsel %vm277, %v3864, 0
      %v3944 = vsel %vm277, %v3865, 0
      %v3947 = vsel %vm277, %v3866, 0
      %v3950 = vsel %vm277, %v3867, 0
      %v3953 = vsel %vm277, %v3868, 0
      %v3956 = vsel %vm277, %v3869, 0
      %v3959 = vsel %vm277, %v3870, 0
      %v3962 = vsel %vm277, %v3871, 0
      %v3965 = vsel %vm277, %v3872, 0
      %v3968 = vsel %vm277, %v3873, 0
      %v3971 = vsel %vm277, %v3874, 0
      %v3974 = vsel %vm277, %v3875, 0
      %v3977 = vsel %vm277, %v3876, 0
      %v3980 = vsel %vm277, %v3877, 0
      %v3983 = vsel %vm277, %v3878, 0
      %v3986 = vsel %vm277, %v3879, 0
      %v3989 = vsel %vm277, %v3880, 0
      %v3992 = vsel %vm735, %v3882, 0
      %3994 = vmatprep.subr.bf16.mxu0 0
      %3995 = vmatpush1.bf16.msra.mxu0 0
      %3996 = vmatprep.subr.bf16.mxu0 0
      %3997 = vmatpush1.bf16.msra.mxu0 0
      %3998 = vmatprep.subr.bf16.mxu0 0
      %3999 = vmatpush1.bf16.msra.mxu0 0
      %4000 = vmatprep.subr.bf16.mxu0 0
      %4001 = vmatpush1.bf16.msra.mxu0 0
      %4002 = vmatprep.subr.bf16.mxu0 0
      %4003 = vmatpush1.bf16.msra.mxu0 0
      %4004 = vmatprep.subr.bf16.mxu0 0
      %4005 = vmatpush1.bf16.msra.mxu0 0
      %4006 = vmatprep.subr.bf16.mxu0 0
      %4007 = vmatpush1.bf16.msra.mxu0 0
      %4008 = vmatprep.subr.bf16.mxu0 0
      %4009 = vmatpush1.bf16.msra.mxu0 %v3992
      %4010 = vmatprep.subr.bf16.mxu0 0
      %4011 = vmatpush2.bf16.msra.mxu0 0
      %4012 = vmatprep.subr.bf16.mxu0 0
      %4013 = vmatpush2.bf16.msra.mxu0 0
      %4014 = vmatprep.subr.bf16.mxu0 0
      %4015 = vmatpush2.bf16.msra.mxu0 0
      %4016 = vmatprep.subr.bf16.mxu0 0
      %4017 = vmatpush2.bf16.msra.mxu0 0
      %4018 = vmatprep.subr.bf16.mxu0 0
      %4019 = vmatpush2.bf16.msra.mxu0 0
      %4020 = vmatprep.subr.bf16.mxu0 0
      %4021 = vmatpush2.bf16.msra.mxu0 0
      %4022 = vmatprep.subr.bf16.mxu0 0
      %4023 = vmatpush2.bf16.msra.mxu0 0
      %4024 = vmatprep.subr.bf16.mxu0 0
      %4025 = vmatpush2.bf16.msra.mxu0 0
      %4026 = vmatprep.mubr.f32.mxu0 0.0
      %4027 = vmatmul.mubr.f32.gmra.mxu0 %v3884
      %v4028 = vpop.f32.mrf.mxu0
      %v4029 = vadd.f32 0.0, %v4028
      %v4030 = vpop.f32.mrf.mxu0
      %4031 = vmatprep.mubr.f32.mxu0 0.0
      %4032 = vmatmul.mubr.f32.gmra.mxu0 %v3887
      %v4033 = vpop.f32.mrf.mxu0
      %v4034 = vadd.f32 0.0, %v4033
      %v4035 = vpop.f32.mrf.mxu0
      %4036 = vmatprep.mubr.f32.mxu0 0.0
      %4037 = vmatmul.mubr.f32.gmra.mxu0 %v3890
      %v4038 = vpop.f32.mrf.mxu0
      %v4039 = vadd.f32 0.0, %v4038
      %v4040 = vpop.f32.mrf.mxu0
      %4041 = vmatprep.mubr.f32.mxu0 0.0
      %4042 = vmatmul.mubr.f32.gmra.mxu0 %v3893
      %v4043 = vpop.f32.mrf.mxu0
      %v4044 = vadd.f32 0.0, %v4043
      %v4045 = vpop.f32.mrf.mxu0
      %4046 = vmatprep.mubr.f32.mxu0 0.0
      %4047 = vmatmul.mubr.f32.gmra.mxu0 %v3896
      %v4048 = vpop.f32.mrf.mxu0
      %v4049 = vadd.f32 0.0, %v4048
      %v4050 = vpop.f32.mrf.mxu0
      %4051 = vmatprep.mubr.f32.mxu0 0.0
      %4052 = vmatmul.mubr.f32.gmra.mxu0 %v3899
      %v4053 = vpop.f32.mrf.mxu0
      %v4054 = vadd.f32 0.0, %v4053
      %v4055 = vpop.f32.mrf.mxu0
      %4056 = vmatprep.mubr.f32.mxu0 0.0
      %4057 = vmatmul.mubr.f32.gmra.mxu0 %v3902
      %v4058 = vpop.f32.mrf.mxu0
      %v4059 = vadd.f32 0.0, %v4058
      %v4060 = vpop.f32.mrf.mxu0
      %4061 = vmatprep.mubr.f32.mxu0 0.0
      %4062 = vmatmul.mubr.f32.gmra.mxu0 %v3905
      %v4063 = vpop.f32.mrf.mxu0
      %v4064 = vadd.f32 0.0, %v4063
      %v4065 = vpop.f32.mrf.mxu0
      %4066 = vmatprep.mubr.f32.mxu0 0.0
      %4067 = vmatmul.mubr.f32.gmra.mxu0 %v3908
      %v4068 = vpop.f32.mrf.mxu0
      %v4069 = vadd.f32 0.0, %v4068
      %v4070 = vpop.f32.mrf.mxu0
      %4071 = vmatprep.mubr.f32.mxu0 0.0
      %4072 = vmatmul.mubr.f32.gmra.mxu0 %v3911
      %v4073 = vpop.f32.mrf.mxu0
      %v4074 = vadd.f32 0.0, %v4073
      %v4075 = vpop.f32.mrf.mxu0
      %4076 = vmatprep.mubr.f32.mxu0 0.0
      %4077 = vmatmul.mubr.f32.gmra.mxu0 %v3914
      %v4078 = vpop.f32.mrf.mxu0
      %v4079 = vadd.f32 0.0, %v4078
      %v4080 = vpop.f32.mrf.mxu0
      %4081 = vmatprep.mubr.f32.mxu0 0.0
      %4082 = vmatmul.mubr.f32.gmra.mxu0 %v3917
      %v4083 = vpop.f32.mrf.mxu0
      %v4084 = vadd.f32 0.0, %v4083
      %v4085 = vpop.f32.mrf.mxu0
      %4086 = vmatprep.mubr.f32.mxu0 0.0
      %4087 = vmatmul.mubr.f32.gmra.mxu0 %v3920
      %v4088 = vpop.f32.mrf.mxu0
      %v4089 = vadd.f32 0.0, %v4088
      %v4090 = vpop.f32.mrf.mxu0
      %4091 = vmatprep.mubr.f32.mxu0 0.0
      %4092 = vmatmul.mubr.f32.gmra.mxu0 %v3923
      %v4093 = vpop.f32.mrf.mxu0
      %v4094 = vadd.f32 0.0, %v4093
      %v4095 = vpop.f32.mrf.mxu0
      %4096 = vmatprep.mubr.f32.mxu0 0.0
      %4097 = vmatmul.mubr.f32.gmra.mxu0 %v3926
      %v4098 = vpop.f32.mrf.mxu0
      %v4099 = vadd.f32 0.0, %v4098
      %v4100 = vpop.f32.mrf.mxu0
      %4101 = vmatprep.mubr.f32.mxu0 0.0
      %4102 = vmatmul.mubr.f32.gmra.mxu0 %v3929
      %v4103 = vpop.f32.mrf.mxu0
      %v4104 = vadd.f32 0.0, %v4103
      %v4105 = vpop.f32.mrf.mxu0
      %4106 = vmatprep.mubr.f32.mxu0 0.0
      %4107 = vmatmul.mubr.f32.gmra.mxu0 %v3932
      %v4108 = vpop.f32.mrf.mxu0
      %v4109 = vadd.f32 0.0, %v4108
      %v4110 = vpop.f32.mrf.mxu0
      %4111 = vmatprep.mubr.f32.mxu0 0.0
      %4112 = vmatmul.mubr.f32.gmra.mxu0 %v3935
      %v4113 = vpop.f32.mrf.mxu0
      %v4114 = vadd.f32 0.0, %v4113
      %v4115 = vpop.f32.mrf.mxu0
      %4116 = vmatprep.mubr.f32.mxu0 0.0
      %4117 = vmatmul.mubr.f32.gmra.mxu0 %v3938
      %v4118 = vpop.f32.mrf.mxu0
      %v4119 = vadd.f32 0.0, %v4118
      %v4120 = vpop.f32.mrf.mxu0
      %4121 = vmatprep.mubr.f32.mxu0 0.0
      %4122 = vmatmul.mubr.f32.gmra.mxu0 %v3941
      %v4123 = vpop.f32.mrf.mxu0
      %v4124 = vadd.f32 0.0, %v4123
      %v4125 = vpop.f32.mrf.mxu0
      %4126 = vmatprep.mubr.f32.mxu0 0.0
      %4127 = vmatmul.mubr.f32.gmra.mxu0 %v3944
      %v4128 = vpop.f32.mrf.mxu0
      %v4129 = vadd.f32 0.0, %v4128
      %v4130 = vpop.f32.mrf.mxu0
      %4131 = vmatprep.mubr.f32.mxu0 0.0
      %4132 = vmatmul.mubr.f32.gmra.mxu0 %v3947
      %v4133 = vpop.f32.mrf.mxu0
      %v4134 = vadd.f32 0.0, %v4133
      %v4135 = vpop.f32.mrf.mxu0
      %4136 = vmatprep.mubr.f32.mxu0 0.0
      %4137 = vmatmul.mubr.f32.gmra.mxu0 %v3950
      %v4138 = vpop.f32.mrf.mxu0
      %v4139 = vadd.f32 0.0, %v4138
      %v4140 = vpop.f32.mrf.mxu0
      %4141 = vmatprep.mubr.f32.mxu0 0.0
      %4142 = vmatmul.mubr.f32.gmra.mxu0 %v3953
      %v4143 = vpop.f32.mrf.mxu0
      %v4144 = vadd.f32 0.0, %v4143
      %v4145 = vpop.f32.mrf.mxu0
      %4146 = vmatprep.mubr.f32.mxu0 0.0
      %4147 = vmatmul.mubr.f32.gmra.mxu0 %v3956
      %v4148 = vpop.f32.mrf.mxu0
      %v4149 = vadd.f32 0.0, %v4148
      %v4150 = vpop.f32.mrf.mxu0
      %4151 = vmatprep.mubr.f32.mxu0 0.0
      %4152 = vmatmul.mubr.f32.gmra.mxu0 %v3959
      %v4153 = vpop.f32.mrf.mxu0
      %v4154 = vadd.f32 0.0, %v4153
      %v4155 = vpop.f32.mrf.mxu0
      %4156 = vmatprep.mubr.f32.mxu0 0.0
      %4157 = vmatmul.mubr.f32.gmra.mxu0 %v3962
      %v4158 = vpop.f32.mrf.mxu0
      %v4159 = vadd.f32 0.0, %v4158
      %v4160 = vpop.f32.mrf.mxu0
      %4161 = vmatprep.mubr.f32.mxu0 0.0
      %4162 = vmatmul.mubr.f32.gmra.mxu0 %v3965
      %v4163 = vpop.f32.mrf.mxu0
      %v4164 = vadd.f32 0.0, %v4163
      %v4165 = vpop.f32.mrf.mxu0
      %4166 = vmatprep.mubr.f32.mxu0 0.0
      %4167 = vmatmul.mubr.f32.gmra.mxu0 %v3968
      %v4168 = vpop.f32.mrf.mxu0
      %v4169 = vadd.f32 0.0, %v4168
      %v4170 = vpop.f32.mrf.mxu0
      %4171 = vmatprep.mubr.f32.mxu0 0.0
      %4172 = vmatmul.mubr.f32.gmra.mxu0 %v3971
      %v4173 = vpop.f32.mrf.mxu0
      %v4174 = vadd.f32 0.0, %v4173
      %v4175 = vpop.f32.mrf.mxu0
      %4176 = vmatprep.mubr.f32.mxu0 0.0
      %4177 = vmatmul.mubr.f32.gmra.mxu0 %v3974
      %v4178 = vpop.f32.mrf.mxu0
      %v4179 = vadd.f32 0.0, %v4178
      %v4180 = vpop.f32.mrf.mxu0
      %4181 = vmatprep.mubr.f32.mxu0 0.0
      %4182 = vmatmul.mubr.f32.gmra.mxu0 %v3977
      %v4183 = vpop.f32.mrf.mxu0
      %v4184 = vadd.f32 0.0, %v4183
      %v4185 = vpop.f32.mrf.mxu0
      %4186 = vmatprep.mubr.f32.mxu0 0.0
      %4187 = vmatmul.mubr.f32.gmra.mxu0 %v3980
      %v4188 = vpop.f32.mrf.mxu0
      %v4189 = vadd.f32 0.0, %v4188
      %v4190 = vpop.f32.mrf.mxu0
      %4191 = vmatprep.mubr.f32.mxu0 0.0
      %4192 = vmatmul.mubr.f32.gmra.mxu0 %v3983
      %v4193 = vpop.f32.mrf.mxu0
      %v4194 = vadd.f32 0.0, %v4193
      %v4195 = vpop.f32.mrf.mxu0
      %4196 = vmatprep.mubr.f32.mxu0 0.0
      %4197 = vmatmul.mubr.f32.gmra.mxu0 %v3986
      %v4198 = vpop.f32.mrf.mxu0
      %v4199 = vadd.f32 0.0, %v4198
      %v4200 = vpop.f32.mrf.mxu0
      %4201 = vmatprep.mubr.f32.mxu0 0.0
      %4202 = vmatmul.mubr.f32.gmra.mxu0 %v3989
      %v4203 = vpop.f32.mrf.mxu0
      %v4204 = vadd.f32 0.0, %v4203
      %v4205 = vpop.f32.mrf.mxu0
      %4206 = vdwg.mxu0
      %v4207 = vadd.f32 %v3809, %v4029
      %v4208 = vadd.f32 %v3810, %v4034
      %v4209 = vadd.f32 %v3811, %v4039
      %v4210 = vadd.f32 %v3812, %v4044
      %v4211 = vadd.f32 %v3813, %v4049
      %v4212 = vadd.f32 %v3814, %v4054
      %v4213 = vadd.f32 %v3815, %v4059
      %v4214 = vadd.f32 %v3816, %v4064
      %v4215 = vadd.f32 %v3817, %v4069
      %v4216 = vadd.f32 %v3818, %v4074
      %v4217 = vadd.f32 %v3819, %v4079
      %v4218 = vadd.f32 %v3820, %v4084
      %v4219 = vadd.f32 %v3821, %v4089
      %v4220 = vadd.f32 %v3822, %v4094
      %v4221 = vadd.f32 %v3823, %v4099
      %v4222 = vadd.f32 %v3824, %v4104
      %v4223 = vadd.f32 %v3825, %v4109
      %v4224 = vadd.f32 %v3826, %v4114
      %v4225 = vadd.f32 %v3827, %v4119
      %v4226 = vadd.f32 %v3828, %v4124
      %v4227 = vadd.f32 %v3829, %v4129
      %v4228 = vadd.f32 %v3830, %v4134
      %v4229 = vadd.f32 %v3831, %v4139
      %v4230 = vadd.f32 %v3832, %v4144
      %v4231 = vadd.f32 %v3833, %v4149
      %v4232 = vadd.f32 %v3834, %v4154
      %v4233 = vadd.f32 %v3835, %v4159
      %v4234 = vadd.f32 %v3836, %v4164
      %v4235 = vadd.f32 %v3837, %v4169
      %v4236 = vadd.f32 %v3838, %v4174
      %v4237 = vadd.f32 %v3839, %v4179
      %v4238 = vadd.f32 %v3840, %v4184
      %v4239 = vadd.f32 %v3841, %v4189
      %v4240 = vadd.f32 %v3842, %v4194
      %v4241 = vadd.f32 %v3843, %v4199
      %v4242 = vadd.f32 %v3844, %v4204
      %4243 = vst.msk [vmem:[#allocation3] sm:$0xff] %vm952, %v4207
      %4244 = vst.msk [vmem:[#allocation3 + $0x8] sm:$0xff] %vm952, %v4208
      %4245 = vst.msk [vmem:[#allocation3 + $0x10] sm:$0xff] %vm952, %v4209
      %4246 = vst.msk [vmem:[#allocation3 + $0x18] sm:$0xff] %vm952, %v4210
      %4247 = vst.msk [vmem:[#allocation3 + $0x20] sm:$0xff] %vm952, %v4211
      %4248 = vst.msk [vmem:[#allocation3 + $0x28] sm:$0xff] %vm952, %v4212
      %4249 = vst.msk [vmem:[#allocation3 + $0x30] sm:$0xff] %vm952, %v4213
      %4250 = vst.msk [vmem:[#allocation3 + $0x38] sm:$0xff] %vm952, %v4214
      %4251 = vst.msk [vmem:[#allocation3 + $0x40] sm:$0xff] %vm952, %v4215
      %4252 = vst.msk [vmem:[#allocation3 + $0x48] sm:$0xff] %vm952, %v4216
      %4253 = vst.msk [vmem:[#allocation3 + $0x50] sm:$0xff] %vm952, %v4217
      %4254 = vst.msk [vmem:[#allocation3 + $0x58] sm:$0xff] %vm952, %v4218
      %4255 = vst.msk [vmem:[#allocation3 + $0x60] sm:$0xff] %vm952, %v4219
      %4256 = vst.msk [vmem:[#allocation3 + $0x68] sm:$0xff] %vm952, %v4220
      %4257 = vst.msk [vmem:[#allocation3 + $0x70] sm:$0xff] %vm952, %v4221
      %4258 = vst.msk [vmem:[#allocation3 + $0x78] sm:$0xff] %vm952, %v4222
      %4259 = vst.msk [vmem:[#allocation3 + $0x80] sm:$0xff] %vm952, %v4223
      %4260 = vst.msk [vmem:[#allocation3 + $0x88] sm:$0xff] %vm952, %v4224
      %4261 = vst.msk [vmem:[#allocation3 + $0x90] sm:$0xff] %vm952, %v4225
      %4262 = vst.msk [vmem:[#allocation3 + $0x98] sm:$0xff] %vm952, %v4226
      %4263 = vst.msk [vmem:[#allocation3 + $0xa0] sm:$0xff] %vm952, %v4227
      %4264 = vst.msk [vmem:[#allocation3 + $0xa8] sm:$0xff] %vm952, %v4228
      %4265 = vst.msk [vmem:[#allocation3 + $0xb0] sm:$0xff] %vm952, %v4229
      %4266 = vst.msk [vmem:[#allocation3 + $0xb8] sm:$0xff] %vm952, %v4230
      %4267 = vst.msk [vmem:[#allocation3 + $0xc0] sm:$0xff] %vm952, %v4231
      %4268 = vst.msk [vmem:[#allocation3 + $0xc8] sm:$0xff] %vm952, %v4232
      %4269 = vst.msk [vmem:[#allocation3 + $0xd0] sm:$0xff] %vm952, %v4233
      %4270 = vst.msk [vmem:[#allocation3 + $0xd8] sm:$0xff] %vm952, %v4234
      %4271 = vst.msk [vmem:[#allocation3 + $0xe0] sm:$0xff] %vm952, %v4235
      %4272 = vst.msk [vmem:[#allocation3 + $0xe8] sm:$0xff] %vm952, %v4236
      %4273 = vst.msk [vmem:[#allocation3 + $0xf0] sm:$0xff] %vm952, %v4237
      %4274 = vst.msk [vmem:[#allocation3 + $0xf8] sm:$0xff] %vm952, %v4238
      %4275 = vst.msk [vmem:[#allocation3 + $0x100] sm:$0xff] %vm952, %v4239
      %4276 = vst.msk [vmem:[#allocation3 + $0x108] sm:$0xff] %vm952, %v4240
      %4277 = vst.msk [vmem:[#allocation3 + $0x110] sm:$0xff] %vm952, %v4241
      %4278 = vst.msk [vmem:[#allocation3 + $0x118] sm:$0xff] %vm952, %v4242
      %v4279 = vld [vmem:[#allocation3] sm:$0xff]
      %v4280 = vld [vmem:[#allocation3 + $0x8] sm:$0xff]
      %v4281 = vld [vmem:[#allocation3 + $0x10] sm:$0xff]
      %v4282 = vld [vmem:[#allocation3 + $0x18] sm:$0xff]
      %v4283 = vld [vmem:[#allocation3 + $0x20] sm:$0xff]
      %v4284 = vld [vmem:[#allocation3 + $0x28] sm:$0xff]
      %v4285 = vld [vmem:[#allocation3 + $0x30] sm:$0xff]
      %v4286 = vld [vmem:[#allocation3 + $0x38] sm:$0xff]
      %v4287 = vld [vmem:[#allocation3 + $0x40] sm:$0xff]
      %v4288 = vld [vmem:[#allocation3 + $0x48] sm:$0xff]
      %v4289 = vld [vmem:[#allocation3 + $0x50] sm:$0xff]
      %v4290 = vld [vmem:[#allocation3 + $0x58] sm:$0xff]
      %v4291 = vld [vmem:[#allocation3 + $0x60] sm:$0xff]
      %v4292 = vld [vmem:[#allocation3 + $0x68] sm:$0xff]
      %v4293 = vld [vmem:[#allocation3 + $0x70] sm:$0xff]
      %v4294 = vld [vmem:[#allocation3 + $0x78] sm:$0xff]
      %v4295 = vld [vmem:[#allocation3 + $0x80] sm:$0xff]
      %v4296 = vld [vmem:[#allocation3 + $0x88] sm:$0xff]
      %v4297 = vld [vmem:[#allocation3 + $0x90] sm:$0xff]
      %v4298 = vld [vmem:[#allocation3 + $0x98] sm:$0xff]
      %v4299 = vld [vmem:[#allocation3 + $0xa0] sm:$0xff]
      %v4300 = vld [vmem:[#allocation3 + $0xa8] sm:$0xff]
      %v4301 = vld [vmem:[#allocation3 + $0xb0] sm:$0xff]
      %v4302 = vld [vmem:[#allocation3 + $0xb8] sm:$0xff]
      %v4303 = vld [vmem:[#allocation3 + $0xc0] sm:$0xff]
      %v4304 = vld [vmem:[#allocation3 + $0xc8] sm:$0xff]
      %v4305 = vld [vmem:[#allocation3 + $0xd0] sm:$0xff]
      %v4306 = vld [vmem:[#allocation3 + $0xd8] sm:$0xff]
      %v4307 = vld [vmem:[#allocation3 + $0xe0] sm:$0xff]
      %v4308 = vld [vmem:[#allocation3 + $0xe8] sm:$0xff]
      %v4309 = vld [vmem:[#allocation3 + $0xf0] sm:$0xff]
      %v4310 = vld [vmem:[#allocation3 + $0xf8] sm:$0xff]
      %v4311 = vld [vmem:[#allocation3 + $0x100] sm:$0xff]
      %v4312 = vld [vmem:[#allocation3 + $0x108] sm:$0xff]
      %v4313 = vld [vmem:[#allocation3 + $0x110] sm:$0xff]
      %v4314 = vld [vmem:[#allocation3 + $0x118] sm:$0xff]
      %v4315 = vld [vmem:[#allocation2 + $0x26] sm:$0xff]
      %v4316 = vld [vmem:[#allocation2 + $0x2e] sm:$0xff]
      %v4317 = vld [vmem:[#allocation2 + $0x36] sm:$0xff]
      %v4318 = vld [vmem:[#allocation2 + $0x3e] sm:$0xff]
      %v4319 = vld [vmem:[#allocation2 + $0x46] sm:$0xff]
      %v4320 = vld [vmem:[#allocation2 + $0x4e] sm:$0xff]
      %v4321 = vld [vmem:[#allocation2 + $0x56] sm:$0xff]
      %v4322 = vld [vmem:[#allocation2 + $0x5e] sm:$0xff]
      %v4323 = vld [vmem:[#allocation2 + $0x66] sm:$0xff]
      %v4324 = vld [vmem:[#allocation2 + $0x6e] sm:$0xff]
      %v4325 = vld [vmem:[#allocation2 + $0x76] sm:$0xff]
      %v4326 = vld [vmem:[#allocation2 + $0x7e] sm:$0xff]
      %v4327 = vld [vmem:[#allocation2 + $0x86] sm:$0xff]
      %v4328 = vld [vmem:[#allocation2 + $0x8e] sm:$0xff]
      %v4329 = vld [vmem:[#allocation2 + $0x96] sm:$0xff]
      %v4330 = vld [vmem:[#allocation2 + $0x9e] sm:$0xff]
      %v4331 = vld [vmem:[#allocation2 + $0xa6] sm:$0xff]
      %v4332 = vld [vmem:[#allocation2 + $0xae] sm:$0xff]
      %v4333 = vld [vmem:[#allocation2 + $0xb6] sm:$0xff]
      %v4334 = vld [vmem:[#allocation2 + $0xbe] sm:$0xff]
      %v4335 = vld [vmem:[#allocation2 + $0xc6] sm:$0xff]
      %v4336 = vld [vmem:[#allocation2 + $0xce] sm:$0xff]
      %v4337 = vld [vmem:[#allocation2 + $0xd6] sm:$0xff]
      %v4338 = vld [vmem:[#allocation2 + $0xde] sm:$0xff]
      %v4339 = vld [vmem:[#allocation2 + $0xe6] sm:$0xff]
      %v4340 = vld [vmem:[#allocation2 + $0xee] sm:$0xff]
      %v4341 = vld [vmem:[#allocation2 + $0xf6] sm:$0xff]
      %v4342 = vld [vmem:[#allocation2 + $0xfe] sm:$0xff]
      %v4343 = vld [vmem:[#allocation2 + $0x106] sm:$0xff]
      %v4344 = vld [vmem:[#allocation2 + $0x10e] sm:$0xff]
      %v4345 = vld [vmem:[#allocation2 + $0x116] sm:$0xff]
      %v4346 = vld [vmem:[#allocation2 + $0x11e] sm:$0xff]
      %v4347 = vld [vmem:[#allocation2 + $0x126] sm:$0xff]
      %v4348 = vld [vmem:[#allocation2 + $0x12e] sm:$0xff]
      %v4349 = vld [vmem:[#allocation2 + $0x136] sm:$0xff]
      %v4350 = vld [vmem:[#allocation2 + $0x13e] sm:$0xff]
      %s4351 = scalar_lea.vmem %s3, 8
      %v4352 = vld [vmem:[%s4351] sm:$0x1]
      %v4354 = vsel %vm277, %v4315, 0
      %v4357 = vsel %vm277, %v4316, 0
      %v4360 = vsel %vm277, %v4317, 0
      %v4363 = vsel %vm277, %v4318, 0
      %v4366 = vsel %vm277, %v4319, 0
      %v4369 = vsel %vm277, %v4320, 0
      %v4372 = vsel %vm277, %v4321, 0
      %v4375 = vsel %vm277, %v4322, 0
      %v4378 = vsel %vm277, %v4323, 0
      %v4381 = vsel %vm277, %v4324, 0
      %v4384 = vsel %vm277, %v4325, 0
      %v4387 = vsel %vm277, %v4326, 0
      %v4390 = vsel %vm277, %v4327, 0
      %v4393 = vsel %vm277, %v4328, 0
      %v4396 = vsel %vm277, %v4329, 0
      %v4399 = vsel %vm277, %v4330, 0
      %v4402 = vsel %vm277, %v4331, 0
      %v4405 = vsel %vm277, %v4332, 0
      %v4408 = vsel %vm277, %v4333, 0
      %v4411 = vsel %vm277, %v4334, 0
      %v4414 = vsel %vm277, %v4335, 0
      %v4417 = vsel %vm277, %v4336, 0
      %v4420 = vsel %vm277, %v4337, 0
      %v4423 = vsel %vm277, %v4338, 0
      %v4426 = vsel %vm277, %v4339, 0
      %v4429 = vsel %vm277, %v4340, 0
      %v4432 = vsel %vm277, %v4341, 0
      %v4435 = vsel %vm277, %v4342, 0
      %v4438 = vsel %vm277, %v4343, 0
      %v4441 = vsel %vm277, %v4344, 0
      %v4444 = vsel %vm277, %v4345, 0
      %v4447 = vsel %vm277, %v4346, 0
      %v4450 = vsel %vm277, %v4347, 0
      %v4453 = vsel %vm277, %v4348, 0
      %v4456 = vsel %vm277, %v4349, 0
      %v4459 = vsel %vm277, %v4350, 0
      %v4462 = vsel %vm735, %v4352, 0
      %4464 = vmatprep.subr.bf16.mxu0 0
      %4465 = vmatpush1.bf16.msra.mxu0 0
      %4466 = vmatprep.subr.bf16.mxu0 0
      %4467 = vmatpush1.bf16.msra.mxu0 0
      %4468 = vmatprep.subr.bf16.mxu0 0
      %4469 = vmatpush1.bf16.msra.mxu0 0
      %4470 = vmatprep.subr.bf16.mxu0 0
      %4471 = vmatpush1.bf16.msra.mxu0 0
      %4472 = vmatprep.subr.bf16.mxu0 0
      %4473 = vmatpush1.bf16.msra.mxu0 0
      %4474 = vmatprep.subr.bf16.mxu0 0
      %4475 = vmatpush1.bf16.msra.mxu0 0
      %4476 = vmatprep.subr.bf16.mxu0 0
      %4477 = vmatpush1.bf16.msra.mxu0 0
      %4478 = vmatprep.subr.bf16.mxu0 0
      %4479 = vmatpush1.bf16.msra.mxu0 %v4462
      %4480 = vmatprep.subr.bf16.mxu0 0
      %4481 = vmatpush2.bf16.msra.mxu0 0
      %4482 = vmatprep.subr.bf16.mxu0 0
      %4483 = vmatpush2.bf16.msra.mxu0 0
      %4484 = vmatprep.subr.bf16.mxu0 0
      %4485 = vmatpush2.bf16.msra.mxu0 0
      %4486 = vmatprep.subr.bf16.mxu0 0
      %4487 = vmatpush2.bf16.msra.mxu0 0
      %4488 = vmatprep.subr.bf16.mxu0 0
      %4489 = vmatpush2.bf16.msra.mxu0 0
      %4490 = vmatprep.subr.bf16.mxu0 0
      %4491 = vmatpush2.bf16.msra.mxu0 0
      %4492 = vmatprep.subr.bf16.mxu0 0
      %4493 = vmatpush2.bf16.msra.mxu0 0
      %4494 = vmatprep.subr.bf16.mxu0 0
      %4495 = vmatpush2.bf16.msra.mxu0 0
      %4496 = vmatprep.mubr.f32.mxu0 0.0
      %4497 = vmatmul.mubr.f32.gmra.mxu0 %v4354
      %v4498 = vpop.f32.mrf.mxu0
      %v4499 = vadd.f32 0.0, %v4498
      %v4500 = vpop.f32.mrf.mxu0
      %4501 = vmatprep.mubr.f32.mxu0 0.0
      %4502 = vmatmul.mubr.f32.gmra.mxu0 %v4357
      %v4503 = vpop.f32.mrf.mxu0
      %v4504 = vadd.f32 0.0, %v4503
      %v4505 = vpop.f32.mrf.mxu0
      %4506 = vmatprep.mubr.f32.mxu0 0.0
      %4507 = vmatmul.mubr.f32.gmra.mxu0 %v4360
      %v4508 = vpop.f32.mrf.mxu0
      %v4509 = vadd.f32 0.0, %v4508
      %v4510 = vpop.f32.mrf.mxu0
      %4511 = vmatprep.mubr.f32.mxu0 0.0
      %4512 = vmatmul.mubr.f32.gmra.mxu0 %v4363
      %v4513 = vpop.f32.mrf.mxu0
      %v4514 = vadd.f32 0.0, %v4513
      %v4515 = vpop.f32.mrf.mxu0
      %4516 = vmatprep.mubr.f32.mxu0 0.0
      %4517 = vmatmul.mubr.f32.gmra.mxu0 %v4366
      %v4518 = vpop.f32.mrf.mxu0
      %v4519 = vadd.f32 0.0, %v4518
      %v4520 = vpop.f32.mrf.mxu0
      %4521 = vmatprep.mubr.f32.mxu0 0.0
      %4522 = vmatmul.mubr.f32.gmra.mxu0 %v4369
      %v4523 = vpop.f32.mrf.mxu0
      %v4524 = vadd.f32 0.0, %v4523
      %v4525 = vpop.f32.mrf.mxu0
      %4526 = vmatprep.mubr.f32.mxu0 0.0
      %4527 = vmatmul.mubr.f32.gmra.mxu0 %v4372
      %v4528 = vpop.f32.mrf.mxu0
      %v4529 = vadd.f32 0.0, %v4528
      %v4530 = vpop.f32.mrf.mxu0
      %4531 = vmatprep.mubr.f32.mxu0 0.0
      %4532 = vmatmul.mubr.f32.gmra.mxu0 %v4375
      %v4533 = vpop.f32.mrf.mxu0
      %v4534 = vadd.f32 0.0, %v4533
      %v4535 = vpop.f32.mrf.mxu0
      %4536 = vmatprep.mubr.f32.mxu0 0.0
      %4537 = vmatmul.mubr.f32.gmra.mxu0 %v4378
      %v4538 = vpop.f32.mrf.mxu0
      %v4539 = vadd.f32 0.0, %v4538
      %v4540 = vpop.f32.mrf.mxu0
      %4541 = vmatprep.mubr.f32.mxu0 0.0
      %4542 = vmatmul.mubr.f32.gmra.mxu0 %v4381
      %v4543 = vpop.f32.mrf.mxu0
      %v4544 = vadd.f32 0.0, %v4543
      %v4545 = vpop.f32.mrf.mxu0
      %4546 = vmatprep.mubr.f32.mxu0 0.0
      %4547 = vmatmul.mubr.f32.gmra.mxu0 %v4384
      %v4548 = vpop.f32.mrf.mxu0
      %v4549 = vadd.f32 0.0, %v4548
      %v4550 = vpop.f32.mrf.mxu0
      %4551 = vmatprep.mubr.f32.mxu0 0.0
      %4552 = vmatmul.mubr.f32.gmra.mxu0 %v4387
      %v4553 = vpop.f32.mrf.mxu0
      %v4554 = vadd.f32 0.0, %v4553
      %v4555 = vpop.f32.mrf.mxu0
      %4556 = vmatprep.mubr.f32.mxu0 0.0
      %4557 = vmatmul.mubr.f32.gmra.mxu0 %v4390
      %v4558 = vpop.f32.mrf.mxu0
      %v4559 = vadd.f32 0.0, %v4558
      %v4560 = vpop.f32.mrf.mxu0
      %4561 = vmatprep.mubr.f32.mxu0 0.0
      %4562 = vmatmul.mubr.f32.gmra.mxu0 %v4393
      %v4563 = vpop.f32.mrf.mxu0
      %v4564 = vadd.f32 0.0, %v4563
      %v4565 = vpop.f32.mrf.mxu0
      %4566 = vmatprep.mubr.f32.mxu0 0.0
      %4567 = vmatmul.mubr.f32.gmra.mxu0 %v4396
      %v4568 = vpop.f32.mrf.mxu0
      %v4569 = vadd.f32 0.0, %v4568
      %v4570 = vpop.f32.mrf.mxu0
      %4571 = vmatprep.mubr.f32.mxu0 0.0
      %4572 = vmatmul.mubr.f32.gmra.mxu0 %v4399
      %v4573 = vpop.f32.mrf.mxu0
      %v4574 = vadd.f32 0.0, %v4573
      %v4575 = vpop.f32.mrf.mxu0
      %4576 = vmatprep.mubr.f32.mxu0 0.0
      %4577 = vmatmul.mubr.f32.gmra.mxu0 %v4402
      %v4578 = vpop.f32.mrf.mxu0
      %v4579 = vadd.f32 0.0, %v4578
      %v4580 = vpop.f32.mrf.mxu0
      %4581 = vmatprep.mubr.f32.mxu0 0.0
      %4582 = vmatmul.mubr.f32.gmra.mxu0 %v4405
      %v4583 = vpop.f32.mrf.mxu0
      %v4584 = vadd.f32 0.0, %v4583
      %v4585 = vpop.f32.mrf.mxu0
      %4586 = vmatprep.mubr.f32.mxu0 0.0
      %4587 = vmatmul.mubr.f32.gmra.mxu0 %v4408
      %v4588 = vpop.f32.mrf.mxu0
      %v4589 = vadd.f32 0.0, %v4588
      %v4590 = vpop.f32.mrf.mxu0
      %4591 = vmatprep.mubr.f32.mxu0 0.0
      %4592 = vmatmul.mubr.f32.gmra.mxu0 %v4411
      %v4593 = vpop.f32.mrf.mxu0
      %v4594 = vadd.f32 0.0, %v4593
      %v4595 = vpop.f32.mrf.mxu0
      %4596 = vmatprep.mubr.f32.mxu0 0.0
      %4597 = vmatmul.mubr.f32.gmra.mxu0 %v4414
      %v4598 = vpop.f32.mrf.mxu0
      %v4599 = vadd.f32 0.0, %v4598
      %v4600 = vpop.f32.mrf.mxu0
      %4601 = vmatprep.mubr.f32.mxu0 0.0
      %4602 = vmatmul.mubr.f32.gmra.mxu0 %v4417
      %v4603 = vpop.f32.mrf.mxu0
      %v4604 = vadd.f32 0.0, %v4603
      %v4605 = vpop.f32.mrf.mxu0
      %4606 = vmatprep.mubr.f32.mxu0 0.0
      %4607 = vmatmul.mubr.f32.gmra.mxu0 %v4420
      %v4608 = vpop.f32.mrf.mxu0
      %v4609 = vadd.f32 0.0, %v4608
      %v4610 = vpop.f32.mrf.mxu0
      %4611 = vmatprep.mubr.f32.mxu0 0.0
      %4612 = vmatmul.mubr.f32.gmra.mxu0 %v4423
      %v4613 = vpop.f32.mrf.mxu0
      %v4614 = vadd.f32 0.0, %v4613
      %v4615 = vpop.f32.mrf.mxu0
      %4616 = vmatprep.mubr.f32.mxu0 0.0
      %4617 = vmatmul.mubr.f32.gmra.mxu0 %v4426
      %v4618 = vpop.f32.mrf.mxu0
      %v4619 = vadd.f32 0.0, %v4618
      %v4620 = vpop.f32.mrf.mxu0
      %4621 = vmatprep.mubr.f32.mxu0 0.0
      %4622 = vmatmul.mubr.f32.gmra.mxu0 %v4429
      %v4623 = vpop.f32.mrf.mxu0
      %v4624 = vadd.f32 0.0, %v4623
      %v4625 = vpop.f32.mrf.mxu0
      %4626 = vmatprep.mubr.f32.mxu0 0.0
      %4627 = vmatmul.mubr.f32.gmra.mxu0 %v4432
      %v4628 = vpop.f32.mrf.mxu0
      %v4629 = vadd.f32 0.0, %v4628
      %v4630 = vpop.f32.mrf.mxu0
      %4631 = vmatprep.mubr.f32.mxu0 0.0
      %4632 = vmatmul.mubr.f32.gmra.mxu0 %v4435
      %v4633 = vpop.f32.mrf.mxu0
      %v4634 = vadd.f32 0.0, %v4633
      %v4635 = vpop.f32.mrf.mxu0
      %4636 = vmatprep.mubr.f32.mxu0 0.0
      %4637 = vmatmul.mubr.f32.gmra.mxu0 %v4438
      %v4638 = vpop.f32.mrf.mxu0
      %v4639 = vadd.f32 0.0, %v4638
      %v4640 = vpop.f32.mrf.mxu0
      %4641 = vmatprep.mubr.f32.mxu0 0.0
      %4642 = vmatmul.mubr.f32.gmra.mxu0 %v4441
      %v4643 = vpop.f32.mrf.mxu0
      %v4644 = vadd.f32 0.0, %v4643
      %v4645 = vpop.f32.mrf.mxu0
      %4646 = vmatprep.mubr.f32.mxu0 0.0
      %4647 = vmatmul.mubr.f32.gmra.mxu0 %v4444
      %v4648 = vpop.f32.mrf.mxu0
      %v4649 = vadd.f32 0.0, %v4648
      %v4650 = vpop.f32.mrf.mxu0
      %4651 = vmatprep.mubr.f32.mxu0 0.0
      %4652 = vmatmul.mubr.f32.gmra.mxu0 %v4447
      %v4653 = vpop.f32.mrf.mxu0
      %v4654 = vadd.f32 0.0, %v4653
      %v4655 = vpop.f32.mrf.mxu0
      %4656 = vmatprep.mubr.f32.mxu0 0.0
      %4657 = vmatmul.mubr.f32.gmra.mxu0 %v4450
      %v4658 = vpop.f32.mrf.mxu0
      %v4659 = vadd.f32 0.0, %v4658
      %v4660 = vpop.f32.mrf.mxu0
      %4661 = vmatprep.mubr.f32.mxu0 0.0
      %4662 = vmatmul.mubr.f32.gmra.mxu0 %v4453
      %v4663 = vpop.f32.mrf.mxu0
      %v4664 = vadd.f32 0.0, %v4663
      %v4665 = vpop.f32.mrf.mxu0
      %4666 = vmatprep.mubr.f32.mxu0 0.0
      %4667 = vmatmul.mubr.f32.gmra.mxu0 %v4456
      %v4668 = vpop.f32.mrf.mxu0
      %v4669 = vadd.f32 0.0, %v4668
      %v4670 = vpop.f32.mrf.mxu0
      %4671 = vmatprep.mubr.f32.mxu0 0.0
      %4672 = vmatmul.mubr.f32.gmra.mxu0 %v4459
      %v4673 = vpop.f32.mrf.mxu0
      %v4674 = vadd.f32 0.0, %v4673
      %v4675 = vpop.f32.mrf.mxu0
      %4676 = vdwg.mxu0
      %v4677 = vadd.f32 %v4279, %v4499
      %v4678 = vadd.f32 %v4280, %v4504
      %v4679 = vadd.f32 %v4281, %v4509
      %v4680 = vadd.f32 %v4282, %v4514
      %v4681 = vadd.f32 %v4283, %v4519
      %v4682 = vadd.f32 %v4284, %v4524
      %v4683 = vadd.f32 %v4285, %v4529
      %v4684 = vadd.f32 %v4286, %v4534
      %v4685 = vadd.f32 %v4287, %v4539
      %v4686 = vadd.f32 %v4288, %v4544
      %v4687 = vadd.f32 %v4289, %v4549
      %v4688 = vadd.f32 %v4290, %v4554
      %v4689 = vadd.f32 %v4291, %v4559
      %v4690 = vadd.f32 %v4292, %v4564
      %v4691 = vadd.f32 %v4293, %v4569
      %v4692 = vadd.f32 %v4294, %v4574
      %v4693 = vadd.f32 %v4295, %v4579
      %v4694 = vadd.f32 %v4296, %v4584
      %v4695 = vadd.f32 %v4297, %v4589
      %v4696 = vadd.f32 %v4298, %v4594
      %v4697 = vadd.f32 %v4299, %v4599
      %v4698 = vadd.f32 %v4300, %v4604
      %v4699 = vadd.f32 %v4301, %v4609
      %v4700 = vadd.f32 %v4302, %v4614
      %v4701 = vadd.f32 %v4303, %v4619
      %v4702 = vadd.f32 %v4304, %v4624
      %v4703 = vadd.f32 %v4305, %v4629
      %v4704 = vadd.f32 %v4306, %v4634
      %v4705 = vadd.f32 %v4307, %v4639
      %v4706 = vadd.f32 %v4308, %v4644
      %v4707 = vadd.f32 %v4309, %v4649
      %v4708 = vadd.f32 %v4310, %v4654
      %v4709 = vadd.f32 %v4311, %v4659
      %v4710 = vadd.f32 %v4312, %v4664
      %v4711 = vadd.f32 %v4313, %v4669
      %v4712 = vadd.f32 %v4314, %v4674
      %4713 = vst.msk [vmem:[#allocation3] sm:$0xff] %vm952, %v4677
      %4714 = vst.msk [vmem:[#allocation3 + $0x8] sm:$0xff] %vm952, %v4678
      %4715 = vst.msk [vmem:[#allocation3 + $0x10] sm:$0xff] %vm952, %v4679
      %4716 = vst.msk [vmem:[#allocation3 + $0x18] sm:$0xff] %vm952, %v4680
      %4717 = vst.msk [vmem:[#allocation3 + $0x20] sm:$0xff] %vm952, %v4681
      %4718 = vst.msk [vmem:[#allocation3 + $0x28] sm:$0xff] %vm952, %v4682
      %4719 = vst.msk [vmem:[#allocation3 + $0x30] sm:$0xff] %vm952, %v4683
      %4720 = vst.msk [vmem:[#allocation3 + $0x38] sm:$0xff] %vm952, %v4684
      %4721 = vst.msk [vmem:[#allocation3 + $0x40] sm:$0xff] %vm952, %v4685
      %4722 = vst.msk [vmem:[#allocation3 + $0x48] sm:$0xff] %vm952, %v4686
      %4723 = vst.msk [vmem:[#allocation3 + $0x50] sm:$0xff] %vm952, %v4687
      %4724 = vst.msk [vmem:[#allocation3 + $0x58] sm:$0xff] %vm952, %v4688
      %4725 = vst.msk [vmem:[#allocation3 + $0x60] sm:$0xff] %vm952, %v4689
      %4726 = vst.msk [vmem:[#allocation3 + $0x68] sm:$0xff] %vm952, %v4690
      %4727 = vst.msk [vmem:[#allocation3 + $0x70] sm:$0xff] %vm952, %v4691
      %4728 = vst.msk [vmem:[#allocation3 + $0x78] sm:$0xff] %vm952, %v4692
      %4729 = vst.msk [vmem:[#allocation3 + $0x80] sm:$0xff] %vm952, %v4693
      %4730 = vst.msk [vmem:[#allocation3 + $0x88] sm:$0xff] %vm952, %v4694
      %4731 = vst.msk [vmem:[#allocation3 + $0x90] sm:$0xff] %vm952, %v4695
      %4732 = vst.msk [vmem:[#allocation3 + $0x98] sm:$0xff] %vm952, %v4696
      %4733 = vst.msk [vmem:[#allocation3 + $0xa0] sm:$0xff] %vm952, %v4697
      %4734 = vst.msk [vmem:[#allocation3 + $0xa8] sm:$0xff] %vm952, %v4698
      %4735 = vst.msk [vmem:[#allocation3 + $0xb0] sm:$0xff] %vm952, %v4699
      %4736 = vst.msk [vmem:[#allocation3 + $0xb8] sm:$0xff] %vm952, %v4700
      %4737 = vst.msk [vmem:[#allocation3 + $0xc0] sm:$0xff] %vm952, %v4701
      %4738 = vst.msk [vmem:[#allocation3 + $0xc8] sm:$0xff] %vm952, %v4702
      %4739 = vst.msk [vmem:[#allocation3 + $0xd0] sm:$0xff] %vm952, %v4703
      %4740 = vst.msk [vmem:[#allocation3 + $0xd8] sm:$0xff] %vm952, %v4704
      %4741 = vst.msk [vmem:[#allocation3 + $0xe0] sm:$0xff] %vm952, %v4705
      %4742 = vst.msk [vmem:[#allocation3 + $0xe8] sm:$0xff] %vm952, %v4706
      %4743 = vst.msk [vmem:[#allocation3 + $0xf0] sm:$0xff] %vm952, %v4707
      %4744 = vst.msk [vmem:[#allocation3 + $0xf8] sm:$0xff] %vm952, %v4708
      %4745 = vst.msk [vmem:[#allocation3 + $0x100] sm:$0xff] %vm952, %v4709
      %4746 = vst.msk [vmem:[#allocation3 + $0x108] sm:$0xff] %vm952, %v4710
      %4747 = vst.msk [vmem:[#allocation3 + $0x110] sm:$0xff] %vm952, %v4711
      %4748 = vst.msk [vmem:[#allocation3 + $0x118] sm:$0xff] %vm952, %v4712
      %v4749 = vld [vmem:[#allocation3] sm:$0xff]
      %v4750 = vld [vmem:[#allocation3 + $0x8] sm:$0xff]
      %v4751 = vpack.c.bf16 %v4750, %v4749
      %v4753 = vunpack.c.l.b16 %v4751
      %v4754 = vunpack.c.h.b16 %v4751
      %v4755 = vpack.c.b16 %v4753, %v4753
      %v4756 = vpack.c.b16 %v4754, %v4754
      %vm4759 = vcmask 27648
      %4760 = vst.msk [vmem:[%s266] sm:$0xf] %vm4759, %v4755
      %4761 = vst.msk [vmem:[%s266 + $0x4] sm:$0xf] %vm4759, %v4756
      %v4762 = vsel %vm952, %v4749, 0.0
      %v4763 = vsel %vm952, %v4750, 0.0
      %v4764 = vadd.f32 %v4762, %v4763
      %v4765 = vrot.slane %v4764, 4
      %v4766 = vadd.f32 %v4764, %v4765
      %v4767 = vrot.slane %v4766, 2
      %v4768 = vadd.f32 %v4766, %v4767
      %v4769 = vrot.slane %v4768, 1
      %v4770 = vadd.f32 %v4768, %v4769
      %v4771 = vadd.f32 %v4770, 0.0
      %v4772 = vmul.f32 %v4749, %v4749
      %v4773 = vmul.f32 %v4750, %v4750
      %v4774 = vsel %vm952, %v4772, 0.0
      %v4775 = vsel %vm952, %v4773, 0.0
      %v4776 = vadd.f32 %v4774, %v4775
      %v4777 = vrot.slane %v4776, 4
      %v4778 = vadd.f32 %v4776, %v4777
      %v4779 = vrot.slane %v4778, 2
      %v4780 = vadd.f32 %v4778, %v4779
      %v4781 = vrot.slane %v4780, 1
      %v4782 = vadd.f32 %v4780, %v4781
      %v4783 = vadd.f32 %v4782, 0.0
      %v4784 = vld [vmem:[#allocation3 + $0x12] sm:$0xff]
      %v4785 = vld [vmem:[#allocation3 + $0x1a] sm:$0xff]
      %v4786 = vpack.c.bf16 %v4785, %v4784
      %v4788 = vunpack.c.l.b16 %v4786
      %v4789 = vunpack.c.h.b16 %v4786
      %v4790 = vpack.c.b16 %v4788, %v4788
      %v4791 = vpack.c.b16 %v4789, %v4789
      %4794 = vst.msk [vmem:[%s266 + $0x8] sm:$0xf] %vm4759, %v4790
      %4795 = vst.msk [vmem:[%s266 + $0xc] sm:$0xf] %vm4759, %v4791
      %v4796 = vsel %vm952, %v4784, 0.0
      %v4797 = vsel %vm952, %v4785, 0.0
      %v4798 = vadd.f32 %v4796, %v4797
      %v4799 = vrot.slane %v4798, 4
      %v4800 = vadd.f32 %v4798, %v4799
      %v4801 = vrot.slane %v4800, 2
      %v4802 = vadd.f32 %v4800, %v4801
      %v4803 = vrot.slane %v4802, 1
      %v4804 = vadd.f32 %v4802, %v4803
      %v4805 = vadd.f32 %v4771, %v4804
      %v4806 = vmul.f32 %v4784, %v4784
      %v4807 = vmul.f32 %v4785, %v4785
      %v4808 = vsel %vm952, %v4806, 0.0
      %v4809 = vsel %vm952, %v4807, 0.0
      %v4810 = vadd.f32 %v4808, %v4809
      %v4811 = vrot.slane %v4810, 4
      %v4812 = vadd.f32 %v4810, %v4811
      %v4813 = vrot.slane %v4812, 2
      %v4814 = vadd.f32 %v4812, %v4813
      %v4815 = vrot.slane %v4814, 1
      %v4816 = vadd.f32 %v4814, %v4815
      %v4817 = vadd.f32 %v4783, %v4816
      %v4818 = vld [vmem:[#allocation3 + $0x24] sm:$0xff]
      %v4819 = vld [vmem:[#allocation3 + $0x2c] sm:$0xff]
      %v4820 = vpack.c.bf16 %v4819, %v4818
      %v4822 = vunpack.c.l.b16 %v4820
      %v4823 = vunpack.c.h.b16 %v4820
      %v4824 = vpack.c.b16 %v4822, %v4822
      %v4825 = vpack.c.b16 %v4823, %v4823
      %4828 = vst.msk [vmem:[%s266 + $0x10] sm:$0xf] %vm4759, %v4824
      %4829 = vst.msk [vmem:[%s266 + $0x14] sm:$0xf] %vm4759, %v4825
      %v4830 = vsel %vm952, %v4818, 0.0
      %v4831 = vsel %vm952, %v4819, 0.0
      %v4832 = vadd.f32 %v4830, %v4831
      %v4833 = vrot.slane %v4832, 4
      %v4834 = vadd.f32 %v4832, %v4833
      %v4835 = vrot.slane %v4834, 2
      %v4836 = vadd.f32 %v4834, %v4835
      %v4837 = vrot.slane %v4836, 1
      %v4838 = vadd.f32 %v4836, %v4837
      %v4839 = vadd.f32 %v4805, %v4838
      %v4840 = vmul.f32 %v4818, %v4818
      %v4841 = vmul.f32 %v4819, %v4819
      %v4842 = vsel %vm952, %v4840, 0.0
      %v4843 = vsel %vm952, %v4841, 0.0
      %v4844 = vadd.f32 %v4842, %v4843
      %v4845 = vrot.slane %v4844, 4
      %v4846 = vadd.f32 %v4844, %v4845
      %v4847 = vrot.slane %v4846, 2
      %v4848 = vadd.f32 %v4846, %v4847
      %v4849 = vrot.slane %v4848, 1
      %v4850 = vadd.f32 %v4848, %v4849
      %v4851 = vadd.f32 %v4817, %v4850
      %v4852 = vld [vmem:[#allocation3 + $0x36] sm:$0xff]
      %v4853 = vld [vmem:[#allocation3 + $0x3e] sm:$0xff]
      %v4854 = vpack.c.bf16 %v4853, %v4852
      %v4856 = vunpack.c.l.b16 %v4854
      %v4857 = vunpack.c.h.b16 %v4854
      %v4858 = vpack.c.b16 %v4856, %v4856
      %v4859 = vpack.c.b16 %v4857, %v4857
      %4862 = vst.msk [vmem:[%s266 + $0x18] sm:$0xf] %vm4759, %v4858
      %4863 = vst.msk [vmem:[%s266 + $0x1c] sm:$0xf] %vm4759, %v4859
      %v4864 = vsel %vm952, %v4852, 0.0
      %v4865 = vsel %vm952, %v4853, 0.0
      %v4866 = vadd.f32 %v4864, %v4865
      %v4867 = vrot.slane %v4866, 4
      %v4868 = vadd.f32 %v4866, %v4867
      %v4869 = vrot.slane %v4868, 2
      %v4870 = vadd.f32 %v4868, %v4869
      %v4871 = vrot.slane %v4870, 1
      %v4872 = vadd.f32 %v4870, %v4871
      %v4873 = vadd.f32 %v4839, %v4872
      %v4874 = vmul.f32 %v4852, %v4852
      %v4875 = vmul.f32 %v4853, %v4853
      %v4876 = vsel %vm952, %v4874, 0.0
      %v4877 = vsel %vm952, %v4875, 0.0
      %v4878 = vadd.f32 %v4876, %v4877
      %v4879 = vrot.slane %v4878, 4
      %v4880 = vadd.f32 %v4878, %v4879
      %v4881 = vrot.slane %v4880, 2
      %v4882 = vadd.f32 %v4880, %v4881
      %v4883 = vrot.slane %v4882, 1
      %v4884 = vadd.f32 %v4882, %v4883
      %v4885 = vadd.f32 %v4851, %v4884
      %v4886 = vld [vmem:[#allocation3 + $0x48] sm:$0xff]
      %v4887 = vld [vmem:[#allocation3 + $0x50] sm:$0xff]
      %v4888 = vpack.c.bf16 %v4887, %v4886
      %v4890 = vunpack.c.l.b16 %v4888
      %v4891 = vunpack.c.h.b16 %v4888
      %v4892 = vpack.c.b16 %v4890, %v4890
      %v4893 = vpack.c.b16 %v4891, %v4891
      %4896 = vst.msk [vmem:[%s266 + $0x20] sm:$0xf] %vm4759, %v4892
      %4897 = vst.msk [vmem:[%s266 + $0x24] sm:$0xf] %vm4759, %v4893
      %v4898 = vsel %vm952, %v4886, 0.0
      %v4899 = vsel %vm952, %v4887, 0.0
      %v4900 = vadd.f32 %v4898, %v4899
      %v4901 = vrot.slane %v4900, 4
      %v4902 = vadd.f32 %v4900, %v4901
      %v4903 = vrot.slane %v4902, 2
      %v4904 = vadd.f32 %v4902, %v4903
      %v4905 = vrot.slane %v4904, 1
      %v4906 = vadd.f32 %v4904, %v4905
      %v4907 = vadd.f32 %v4873, %v4906
      %v4908 = vmul.f32 %v4886, %v4886
      %v4909 = vmul.f32 %v4887, %v4887
      %v4910 = vsel %vm952, %v4908, 0.0
      %v4911 = vsel %vm952, %v4909, 0.0
      %v4912 = vadd.f32 %v4910, %v4911
      %v4913 = vrot.slane %v4912, 4
      %v4914 = vadd.f32 %v4912, %v4913
      %v4915 = vrot.slane %v4914, 2
      %v4916 = vadd.f32 %v4914, %v4915
      %v4917 = vrot.slane %v4916, 1
      %v4918 = vadd.f32 %v4916, %v4917
      %v4919 = vadd.f32 %v4885, %v4918
      %v4920 = vld [vmem:[#allocation3 + $0x5a] sm:$0xff]
      %v4921 = vld [vmem:[#allocation3 + $0x62] sm:$0xff]
      %v4922 = vpack.c.bf16 %v4921, %v4920
      %v4924 = vunpack.c.l.b16 %v4922
      %v4925 = vunpack.c.h.b16 %v4922
      %v4926 = vpack.c.b16 %v4924, %v4924
      %v4927 = vpack.c.b16 %v4925, %v4925
      %4930 = vst.msk [vmem:[%s266 + $0x28] sm:$0xf] %vm4759, %v4926
      %4931 = vst.msk [vmem:[%s266 + $0x2c] sm:$0xf] %vm4759, %v4927
      %v4932 = vsel %vm952, %v4920, 0.0
      %v4933 = vsel %vm952, %v4921, 0.0
      %v4934 = vadd.f32 %v4932, %v4933
      %v4935 = vrot.slane %v4934, 4
      %v4936 = vadd.f32 %v4934, %v4935
      %v4937 = vrot.slane %v4936, 2
      %v4938 = vadd.f32 %v4936, %v4937
      %v4939 = vrot.slane %v4938, 1
      %v4940 = vadd.f32 %v4938, %v4939
      %v4941 = vadd.f32 %v4907, %v4940
      %v4942 = vmul.f32 %v4920, %v4920
      %v4943 = vmul.f32 %v4921, %v4921
      %v4944 = vsel %vm952, %v4942, 0.0
      %v4945 = vsel %vm952, %v4943, 0.0
      %v4946 = vadd.f32 %v4944, %v4945
      %v4947 = vrot.slane %v4946, 4
      %v4948 = vadd.f32 %v4946, %v4947
      %v4949 = vrot.slane %v4948, 2
      %v4950 = vadd.f32 %v4948, %v4949
      %v4951 = vrot.slane %v4950, 1
      %v4952 = vadd.f32 %v4950, %v4951
      %v4953 = vadd.f32 %v4919, %v4952
      %v4954 = vld [vmem:[#allocation3 + $0x6c] sm:$0xff]
      %v4955 = vld [vmem:[#allocation3 + $0x74] sm:$0xff]
      %v4956 = vpack.c.bf16 %v4955, %v4954
      %v4958 = vunpack.c.l.b16 %v4956
      %v4959 = vunpack.c.h.b16 %v4956
      %v4960 = vpack.c.b16 %v4958, %v4958
      %v4961 = vpack.c.b16 %v4959, %v4959
      %4964 = vst.msk [vmem:[%s266 + $0x30] sm:$0xf] %vm4759, %v4960
      %4965 = vst.msk [vmem:[%s266 + $0x34] sm:$0xf] %vm4759, %v4961
      %v4966 = vsel %vm952, %v4954, 0.0
      %v4967 = vsel %vm952, %v4955, 0.0
      %v4968 = vadd.f32 %v4966, %v4967
      %v4969 = vrot.slane %v4968, 4
      %v4970 = vadd.f32 %v4968, %v4969
      %v4971 = vrot.slane %v4970, 2
      %v4972 = vadd.f32 %v4970, %v4971
      %v4973 = vrot.slane %v4972, 1
      %v4974 = vadd.f32 %v4972, %v4973
      %v4975 = vadd.f32 %v4941, %v4974
      %v4976 = vmul.f32 %v4954, %v4954
      %v4977 = vmul.f32 %v4955, %v4955
      %v4978 = vsel %vm952, %v4976, 0.0
      %v4979 = vsel %vm952, %v4977, 0.0
      %v4980 = vadd.f32 %v4978, %v4979
      %v4981 = vrot.slane %v4980, 4
      %v4982 = vadd.f32 %v4980, %v4981
      %v4983 = vrot.slane %v4982, 2
      %v4984 = vadd.f32 %v4982, %v4983
      %v4985 = vrot.slane %v4984, 1
      %v4986 = vadd.f32 %v4984, %v4985
      %v4987 = vadd.f32 %v4953, %v4986
      %v4988 = vld [vmem:[#allocation3 + $0x7e] sm:$0xff]
      %v4989 = vld [vmem:[#allocation3 + $0x86] sm:$0xff]
      %v4990 = vpack.c.bf16 %v4989, %v4988
      %v4992 = vunpack.c.l.b16 %v4990
      %v4993 = vunpack.c.h.b16 %v4990
      %v4994 = vpack.c.b16 %v4992, %v4992
      %v4995 = vpack.c.b16 %v4993, %v4993
      %4998 = vst.msk [vmem:[%s266 + $0x38] sm:$0xf] %vm4759, %v4994
      %4999 = vst.msk [vmem:[%s266 + $0x3c] sm:$0xf] %vm4759, %v4995
      %v5000 = vsel %vm952, %v4988, 0.0
      %v5001 = vsel %vm952, %v4989, 0.0
      %v5002 = vadd.f32 %v5000, %v5001
      %v5003 = vrot.slane %v5002, 4
      %v5004 = vadd.f32 %v5002, %v5003
      %v5005 = vrot.slane %v5004, 2
      %v5006 = vadd.f32 %v5004, %v5005
      %v5007 = vrot.slane %v5006, 1
      %v5008 = vadd.f32 %v5006, %v5007
      %v5009 = vadd.f32 %v4975, %v5008
      %v5010 = vmul.f32 %v4988, %v4988
      %v5011 = vmul.f32 %v4989, %v4989
      %v5012 = vsel %vm952, %v5010, 0.0
      %v5013 = vsel %vm952, %v5011, 0.0
      %v5014 = vadd.f32 %v5012, %v5013
      %v5015 = vrot.slane %v5014, 4
      %v5016 = vadd.f32 %v5014, %v5015
      %v5017 = vrot.slane %v5016, 2
      %v5018 = vadd.f32 %v5016, %v5017
      %v5019 = vrot.slane %v5018, 1
      %v5020 = vadd.f32 %v5018, %v5019
      %v5021 = vadd.f32 %v4987, %v5020
      %v5022 = vld [vmem:[#allocation3 + $0x90] sm:$0xff]
      %v5023 = vld [vmem:[#allocation3 + $0x98] sm:$0xff]
      %v5024 = vpack.c.bf16 %v5023, %v5022
      %v5026 = vunpack.c.l.b16 %v5024
      %v5027 = vunpack.c.h.b16 %v5024
      %v5028 = vpack.c.b16 %v5026, %v5026
      %v5029 = vpack.c.b16 %v5027, %v5027
      %5032 = vst.msk [vmem:[%s266 + $0x40] sm:$0xf] %vm4759, %v5028
      %5033 = vst.msk [vmem:[%s266 + $0x44] sm:$0xf] %vm4759, %v5029
      %v5034 = vsel %vm952, %v5022, 0.0
      %v5035 = vsel %vm952, %v5023, 0.0
      %v5036 = vadd.f32 %v5034, %v5035
      %v5037 = vrot.slane %v5036, 4
      %v5038 = vadd.f32 %v5036, %v5037
      %v5039 = vrot.slane %v5038, 2
      %v5040 = vadd.f32 %v5038, %v5039
      %v5041 = vrot.slane %v5040, 1
      %v5042 = vadd.f32 %v5040, %v5041
      %v5043 = vadd.f32 %v5009, %v5042
      %v5044 = vmul.f32 %v5022, %v5022
      %v5045 = vmul.f32 %v5023, %v5023
      %v5046 = vsel %vm952, %v5044, 0.0
      %v5047 = vsel %vm952, %v5045, 0.0
      %v5048 = vadd.f32 %v5046, %v5047
      %v5049 = vrot.slane %v5048, 4
      %v5050 = vadd.f32 %v5048, %v5049
      %v5051 = vrot.slane %v5050, 2
      %v5052 = vadd.f32 %v5050, %v5051
      %v5053 = vrot.slane %v5052, 1
      %v5054 = vadd.f32 %v5052, %v5053
      %v5055 = vadd.f32 %v5021, %v5054
      %v5056 = vld [vmem:[#allocation3 + $0xa2] sm:$0xff]
      %v5057 = vld [vmem:[#allocation3 + $0xaa] sm:$0xff]
      %v5058 = vpack.c.bf16 %v5057, %v5056
      %v5060 = vunpack.c.l.b16 %v5058
      %v5061 = vunpack.c.h.b16 %v5058
      %v5062 = vpack.c.b16 %v5060, %v5060
      %v5063 = vpack.c.b16 %v5061, %v5061
      %5066 = vst.msk [vmem:[%s266 + $0x48] sm:$0xf] %vm4759, %v5062
      %5067 = vst.msk [vmem:[%s266 + $0x4c] sm:$0xf] %vm4759, %v5063
      %v5068 = vsel %vm952, %v5056, 0.0
      %v5069 = vsel %vm952, %v5057, 0.0
      %v5070 = vadd.f32 %v5068, %v5069
      %v5071 = vrot.slane %v5070, 4
      %v5072 = vadd.f32 %v5070, %v5071
      %v5073 = vrot.slane %v5072, 2
      %v5074 = vadd.f32 %v5072, %v5073
      %v5075 = vrot.slane %v5074, 1
      %v5076 = vadd.f32 %v5074, %v5075
      %v5077 = vadd.f32 %v5043, %v5076
      %v5078 = vmul.f32 %v5056, %v5056
      %v5079 = vmul.f32 %v5057, %v5057
      %v5080 = vsel %vm952, %v5078, 0.0
      %v5081 = vsel %vm952, %v5079, 0.0
      %v5082 = vadd.f32 %v5080, %v5081
      %v5083 = vrot.slane %v5082, 4
      %v5084 = vadd.f32 %v5082, %v5083
      %v5085 = vrot.slane %v5084, 2
      %v5086 = vadd.f32 %v5084, %v5085
      %v5087 = vrot.slane %v5086, 1
      %v5088 = vadd.f32 %v5086, %v5087
      %v5089 = vadd.f32 %v5055, %v5088
      %v5090 = vld [vmem:[#allocation3 + $0xb4] sm:$0xff]
      %v5091 = vld [vmem:[#allocation3 + $0xbc] sm:$0xff]
      %v5092 = vpack.c.bf16 %v5091, %v5090
      %v5094 = vunpack.c.l.b16 %v5092
      %v5095 = vunpack.c.h.b16 %v5092
      %v5096 = vpack.c.b16 %v5094, %v5094
      %v5097 = vpack.c.b16 %v5095, %v5095
      %5100 = vst.msk [vmem:[%s266 + $0x50] sm:$0xf] %vm4759, %v5096
      %5101 = vst.msk [vmem:[%s266 + $0x54] sm:$0xf] %vm4759, %v5097
      %v5102 = vsel %vm952, %v5090, 0.0
      %v5103 = vsel %vm952, %v5091, 0.0
      %v5104 = vadd.f32 %v5102, %v5103
      %v5105 = vrot.slane %v5104, 4
      %v5106 = vadd.f32 %v5104, %v5105
      %v5107 = vrot.slane %v5106, 2
      %v5108 = vadd.f32 %v5106, %v5107
      %v5109 = vrot.slane %v5108, 1
      %v5110 = vadd.f32 %v5108, %v5109
      %v5111 = vadd.f32 %v5077, %v5110
      %v5112 = vmul.f32 %v5090, %v5090
      %v5113 = vmul.f32 %v5091, %v5091
      %v5114 = vsel %vm952, %v5112, 0.0
      %v5115 = vsel %vm952, %v5113, 0.0
      %v5116 = vadd.f32 %v5114, %v5115
      %v5117 = vrot.slane %v5116, 4
      %v5118 = vadd.f32 %v5116, %v5117
      %v5119 = vrot.slane %v5118, 2
      %v5120 = vadd.f32 %v5118, %v5119
      %v5121 = vrot.slane %v5120, 1
      %v5122 = vadd.f32 %v5120, %v5121
      %v5123 = vadd.f32 %v5089, %v5122
      %v5124 = vld [vmem:[#allocation3 + $0xc6] sm:$0xff]
      %v5125 = vld [vmem:[#allocation3 + $0xce] sm:$0xff]
      %v5126 = vpack.c.bf16 %v5125, %v5124
      %v5128 = vunpack.c.l.b16 %v5126
      %v5129 = vunpack.c.h.b16 %v5126
      %v5130 = vpack.c.b16 %v5128, %v5128
      %v5131 = vpack.c.b16 %v5129, %v5129
      %5134 = vst.msk [vmem:[%s266 + $0x58] sm:$0xf] %vm4759, %v5130
      %5135 = vst.msk [vmem:[%s266 + $0x5c] sm:$0xf] %vm4759, %v5131
      %v5136 = vsel %vm952, %v5124, 0.0
      %v5137 = vsel %vm952, %v5125, 0.0
      %v5138 = vadd.f32 %v5136, %v5137
      %v5139 = vrot.slane %v5138, 4
      %v5140 = vadd.f32 %v5138, %v5139
      %v5141 = vrot.slane %v5140, 2
      %v5142 = vadd.f32 %v5140, %v5141
      %v5143 = vrot.slane %v5142, 1
      %v5144 = vadd.f32 %v5142, %v5143
      %v5145 = vadd.f32 %v5111, %v5144
      %v5146 = vmul.f32 %v5124, %v5124
      %v5147 = vmul.f32 %v5125, %v5125
      %v5148 = vsel %vm952, %v5146, 0.0
      %v5149 = vsel %vm952, %v5147, 0.0
      %v5150 = vadd.f32 %v5148, %v5149
      %v5151 = vrot.slane %v5150, 4
      %v5152 = vadd.f32 %v5150, %v5151
      %v5153 = vrot.slane %v5152, 2
      %v5154 = vadd.f32 %v5152, %v5153
      %v5155 = vrot.slane %v5154, 1
      %v5156 = vadd.f32 %v5154, %v5155
      %v5157 = vadd.f32 %v5123, %v5156
      %v5158 = vld [vmem:[#allocation3 + $0xd8] sm:$0xff]
      %v5159 = vld [vmem:[#allocation3 + $0xe0] sm:$0xff]
      %v5160 = vpack.c.bf16 %v5159, %v5158
      %v5162 = vunpack.c.l.b16 %v5160
      %v5163 = vunpack.c.h.b16 %v5160
      %v5164 = vpack.c.b16 %v5162, %v5162
      %v5165 = vpack.c.b16 %v5163, %v5163
      %5168 = vst.msk [vmem:[%s266 + $0x60] sm:$0xf] %vm4759, %v5164
      %5169 = vst.msk [vmem:[%s266 + $0x64] sm:$0xf] %vm4759, %v5165
      %v5170 = vsel %vm952, %v5158, 0.0
      %v5171 = vsel %vm952, %v5159, 0.0
      %v5172 = vadd.f32 %v5170, %v5171
      %v5173 = vrot.slane %v5172, 4
      %v5174 = vadd.f32 %v5172, %v5173
      %v5175 = vrot.slane %v5174, 2
      %v5176 = vadd.f32 %v5174, %v5175
      %v5177 = vrot.slane %v5176, 1
      %v5178 = vadd.f32 %v5176, %v5177
      %v5179 = vadd.f32 %v5145, %v5178
      %v5180 = vmul.f32 %v5158, %v5158
      %v5181 = vmul.f32 %v5159, %v5159
      %v5182 = vsel %vm952, %v5180, 0.0
      %v5183 = vsel %vm952, %v5181, 0.0
      %v5184 = vadd.f32 %v5182, %v5183
      %v5185 = vrot.slane %v5184, 4
      %v5186 = vadd.f32 %v5184, %v5185
      %v5187 = vrot.slane %v5186, 2
      %v5188 = vadd.f32 %v5186, %v5187
      %v5189 = vrot.slane %v5188, 1
      %v5190 = vadd.f32 %v5188, %v5189
      %v5191 = vadd.f32 %v5157, %v5190
      %v5192 = vld [vmem:[#allocation3 + $0xea] sm:$0xff]
      %v5193 = vld [vmem:[#allocation3 + $0xf2] sm:$0xff]
      %v5194 = vpack.c.bf16 %v5193, %v5192
      %v5196 = vunpack.c.l.b16 %v5194
      %v5197 = vunpack.c.h.b16 %v5194
      %v5198 = vpack.c.b16 %v5196, %v5196
      %v5199 = vpack.c.b16 %v5197, %v5197
      %5202 = vst.msk [vmem:[%s266 + $0x68] sm:$0xf] %vm4759, %v5198
      %5203 = vst.msk [vmem:[%s266 + $0x6c] sm:$0xf] %vm4759, %v5199
      %v5204 = vsel %vm952, %v5192, 0.0
      %v5205 = vsel %vm952, %v5193, 0.0
      %v5206 = vadd.f32 %v5204, %v5205
      %v5207 = vrot.slane %v5206, 4
      %v5208 = vadd.f32 %v5206, %v5207
      %v5209 = vrot.slane %v5208, 2
      %v5210 = vadd.f32 %v5208, %v5209
      %v5211 = vrot.slane %v5210, 1
      %v5212 = vadd.f32 %v5210, %v5211
      %v5213 = vadd.f32 %v5179, %v5212
      %v5214 = vmul.f32 %v5192, %v5192
      %v5215 = vmul.f32 %v5193, %v5193
      %v5216 = vsel %vm952, %v5214, 0.0
      %v5217 = vsel %vm952, %v5215, 0.0
      %v5218 = vadd.f32 %v5216, %v5217
      %v5219 = vrot.slane %v5218, 4
      %v5220 = vadd.f32 %v5218, %v5219
      %v5221 = vrot.slane %v5220, 2
      %v5222 = vadd.f32 %v5220, %v5221
      %v5223 = vrot.slane %v5222, 1
      %v5224 = vadd.f32 %v5222, %v5223
      %v5225 = vadd.f32 %v5191, %v5224
      %v5226 = vld [vmem:[#allocation3 + $0xfc] sm:$0xff]
      %v5227 = vld [vmem:[#allocation3 + $0x104] sm:$0xff]
      %v5228 = vpack.c.bf16 %v5227, %v5226
      %v5230 = vunpack.c.l.b16 %v5228
      %v5231 = vunpack.c.h.b16 %v5228
      %v5232 = vpack.c.b16 %v5230, %v5230
      %v5233 = vpack.c.b16 %v5231, %v5231
      %5236 = vst.msk [vmem:[%s266 + $0x70] sm:$0xf] %vm4759, %v5232
      %5237 = vst.msk [vmem:[%s266 + $0x74] sm:$0xf] %vm4759, %v5233
      %v5238 = vsel %vm952, %v5226, 0.0
      %v5239 = vsel %vm952, %v5227, 0.0
      %v5240 = vadd.f32 %v5238, %v5239
      %v5241 = vrot.slane %v5240, 4
      %v5242 = vadd.f32 %v5240, %v5241
      %v5243 = vrot.slane %v5242, 2
      %v5244 = vadd.f32 %v5242, %v5243
      %v5245 = vrot.slane %v5244, 1
      %v5246 = vadd.f32 %v5244, %v5245
      %v5247 = vadd.f32 %v5213, %v5246
      %v5248 = vmul.f32 %v5226, %v5226
      %v5249 = vmul.f32 %v5227, %v5227
      %v5250 = vsel %vm952, %v5248, 0.0
      %v5251 = vsel %vm952, %v5249, 0.0
      %v5252 = vadd.f32 %v5250, %v5251
      %v5253 = vrot.slane %v5252, 4
      %v5254 = vadd.f32 %v5252, %v5253
      %v5255 = vrot.slane %v5254, 2
      %v5256 = vadd.f32 %v5254, %v5255
      %v5257 = vrot.slane %v5256, 1
      %v5258 = vadd.f32 %v5256, %v5257
      %v5259 = vadd.f32 %v5225, %v5258
      %v5260 = vld [vmem:[#allocation3 + $0x10e] sm:$0xff]
      %v5261 = vld [vmem:[#allocation3 + $0x116] sm:$0xff]
      %v5262 = vpack.c.bf16 %v5261, %v5260
      %v5264 = vunpack.c.l.b16 %v5262
      %v5265 = vunpack.c.h.b16 %v5262
      %v5266 = vpack.c.b16 %v5264, %v5264
      %v5267 = vpack.c.b16 %v5265, %v5265
      %5270 = vst.msk [vmem:[%s266 + $0x78] sm:$0xf] %vm4759, %v5266
      %5271 = vst.msk [vmem:[%s266 + $0x7c] sm:$0xf] %vm4759, %v5267
      %v5272 = vsel %vm952, %v5260, 0.0
      %v5273 = vsel %vm952, %v5261, 0.0
      %v5274 = vadd.f32 %v5272, %v5273
      %v5275 = vrot.slane %v5274, 4
      %v5276 = vadd.f32 %v5274, %v5275
      %v5277 = vrot.slane %v5276, 2
      %v5278 = vadd.f32 %v5276, %v5277
      %v5279 = vrot.slane %v5278, 1
      %v5280 = vadd.f32 %v5278, %v5279
      %v5281 = vadd.f32 %v5247, %v5280
      %v5282 = vmul.f32 %v5260, %v5260
      %v5283 = vmul.f32 %v5261, %v5261
      %v5284 = vsel %vm952, %v5282, 0.0
      %v5285 = vsel %vm952, %v5283, 0.0
      %v5286 = vadd.f32 %v5284, %v5285
      %v5287 = vrot.slane %v5286, 4
      %v5288 = vadd.f32 %v5286, %v5287
      %v5289 = vrot.slane %v5288, 2
      %v5290 = vadd.f32 %v5288, %v5289
      %v5291 = vrot.slane %v5290, 1
      %v5292 = vadd.f32 %v5290, %v5291
      %v5293 = vadd.f32 %v5259, %v5292
      %5294 = vst.msk [vmem:[%s271] sm:$0xff] %vm952, %v5281
      %5295 = vst.msk [vmem:[%s275] sm:$0xff] %vm952, %v5293
      %s5296 = smul.u32 32, %s18
      %p5297 = scmp.lt.s32.totalorder %s5296, 63
      %s5298 = scalar_select %p5297, %s5296, 63
      %s5299 = smul.addr %s5298, 4
      %s5300 = scalar_lea.vmem %s4, %s5299
      %p5301 = scmp.lt.s32.totalorder %s18, 1
      %s5302 = scalar_select %p5301, %s18, 1
      %s5303 = smul.addr %s5302, 8
      %s5304 = scalar_lea.vmem %s5, %s5303
      %p5305 = scmp.lt.s32.totalorder %s18, 1
      %s5306 = scalar_select %p5305, %s18, 1
      %s5307 = smul.addr %s5306, 8
      %s5308 = scalar_lea.vmem %s6, %s5307
      // Predicated region
      $region37: #{residual_block_forward.4} parent=35 // pred_check
        %p5309 = pneg %p125
      $region38: #{residual_block_forward.4} parent=35 // pred_check_branch
        %5311 = sbr.rel (%p5309) target = $region40
      $region39: #{residual_block_forward.4} parent=35 // pred_region
        %s5312 = smul.u32 32, %s18
      $region40: #{residual_block_forward.4} parent=35 // pred_fallthru
        _
      // Predicated region
      $region41: #{residual_block_forward.4} parent=35 // pred_check
        %p5313 = pneg %p151
      $region42: #{residual_block_forward.4} parent=35 // pred_check_branch
        %5315 = sbr.rel (%p5313) target = $region44
      $region43: #{residual_block_forward.4} parent=35 // pred_region
        _
      $region44: #{residual_block_forward.4} parent=35 // pred_fallthru
        _
      // Predicated region
      $region45: #{residual_block_forward.4} parent=35 // pred_check
        %p5316 = pneg %p177
      $region46: #{residual_block_forward.4} parent=35 // pred_check_branch
        %5318 = sbr.rel (%p5316) target = $region48
      $region47: #{residual_block_forward.4} parent=35 // pred_region
        _
      $region48: #{residual_block_forward.4} parent=35 // pred_fallthru
        _
    $region36: #{residual_block_forward.4} parent=5 // pred_fallthru
      _
    %p5319 = scmp.le.s32.totalorder 2, %s13
    // Predicated region
    $region49: #{residual_block_forward.4} parent=5 // pred_check
      %p5320 = pneg %p5319
    $region50: #{residual_block_forward.4} parent=5 // pred_check_branch
      %5322 = sbr.rel (%p5320) target = $region52
    $region51: #{residual_block_forward.4} parent=5 // pred_region
      %s5323 = ssub.s32 %s13, 2
      // Predicated region
      $region53: #{residual_block_forward.4} parent=51 // pred_check
        %p5324 = pneg %p131
      $region54: #{residual_block_forward.4} parent=51 // pred_check_branch
        %5326 = sbr.rel (%p5324) target = $region56
      $region55: #{residual_block_forward.4} parent=51 // pred_region
        %s5327 = smul.u32 32, %s19
        %p5328 = scmp.lt.s32.totalorder %s5327, 63
        %s5329 = scalar_select %p5328, %s5327, 63
        %s5330 = smul.addr %s5329, 4
        %s5331 = scalar_lea.vmem %s4, %s5330
      $region56: #{residual_block_forward.4} parent=51 // pred_fallthru
        _
      // Predicated region
      $region57: #{residual_block_forward.4} parent=51 // pred_check
        %p5332 = pneg %p157
      $region58: #{residual_block_forward.4} parent=51 // pred_check_branch
        %5334 = sbr.rel (%p5332) target = $region60
      $region59: #{residual_block_forward.4} parent=51 // pred_region
        %p5335 = scmp.lt.s32.totalorder %s19, 1
        %s5336 = scalar_select %p5335, %s19, 1
        %s5337 = smul.addr %s5336, 8
        %s5338 = scalar_lea.vmem %s5, %s5337
      $region60: #{residual_block_forward.4} parent=51 // pred_fallthru
        _
      // Predicated region
      $region61: #{residual_block_forward.4} parent=51 // pred_check
        %p5339 = pneg %p183
      $region62: #{residual_block_forward.4} parent=51 // pred_check_branch
        %5341 = sbr.rel (%p5339) target = $region64
      $region63: #{residual_block_forward.4} parent=51 // pred_region
        %p5342 = scmp.lt.s32.totalorder %s19, 1
        %s5343 = scalar_select %p5342, %s19, 1
        %s5344 = smul.addr %s5343, 8
        %s5345 = scalar_lea.vmem %s6, %s5344
      $region64: #{residual_block_forward.4} parent=51 // pred_fallthru
        _
    $region52: #{residual_block_forward.4} parent=5 // pred_fallthru
      _
  $region6: #{residual_block_forward.4} parent=0 // loop_footer
    %s17 = sadd.s32 1, %s13
  $region7: #{residual_block_forward.4} parent=0 // loop_footer_branch
    %12 = sbr.rel target = $region3
  $region8: #{residual_block_forward.4} parent=0 // loop_exit
    _

</llo_original>
